<compile_context>
chip_gen: v5e
topology: v5e:2x2
jax: 0.10.0
libtpu: 0.0.40
codegen_flags: <defaults>
</compile_context>

<pallas_src>
import functools

import jax
import jax.numpy as jnp
from jax import lax
from jax.experimental import pallas as pl
from jax.experimental.pallas import tpu as pltpu


# ----------------------------------------------------------------------------
# Fused forward kernel.  All refs are whole-array VMEM residents (tiny sizes).
#   refs[0]            ids    (S*B, 1) int32   time-major flattened token ids
#   refs[1]            emb    (V, E)           embedding table
#   refs[2+4l .. 5+4l] per GRU layer l: wih (Din,6H)=[w_ih_f^T|w_ih_b^T],
#                      whh (2H,6H) block-diag, bih (1,6H), bhh (1,6H)
#   then: conv1 folded (3*C0,RC),(1,RC); conv2 folded (3*RC,RC),(1,RC);
#         fc1 folded (K,RC,LH),(1,LH); fc2 (LH,CLS),(1,CLS)
#   out_ref (B, CLS); scratch: outf (S,B,H), outb (S,B,H)
# ----------------------------------------------------------------------------
def gru_cnn_kernel(S, B, H, K, n_layers, *refs):
    ids_ref, emb_ref = refs[0], refs[1]
    gru_refs = refs[2:2 + 4 * n_layers]
    (wc1_ref, sh1_ref, wc2_ref, sh2_ref,
     wfc1_ref, shfc1_ref, wfc2_ref, bfc2_ref,
     out_ref, outf_ref, outb_ref) = refs[2 + 4 * n_layers:]

    f32 = jnp.float32
    V, E = emb_ref.shape

    # --- embedding lookup as one-hot @ table (MXU-friendly for a tiny vocab) ---
    # TODO(synk): for production vocab sizes replace with a DMA gather (or an
    # XLA-level take outside the kernel) instead of a one-hot matmul.
    ids = ids_ref[...]                                               # (S*B, 1) int32
    onehot = (ids == lax.broadcasted_iota(jnp.int32, (S * B, V), 1)).astype(f32)
    embeds_flat = jnp.dot(onehot, emb_ref[...], preferred_element_type=f32)
    embeds = embeds_flat.reshape(S, B, E)                            # (S, B, E)

    # --- bidirectional GRU stack: fwd+bwd fused, input projection hoisted ----
    def bigru_layer(x_flat, wih_ref, whh_ref, bih_ref, bhh_ref):
        # One hoisted MXU matmul gives the input projection of BOTH directions
        # for every timestep (bias_ih folded in).  gi[t, :, :3H] feeds the fwd
        # cell at time t, gi[S-1-t, :, 3H:] feeds the bwd cell at step t.
        gi = (jnp.dot(x_flat, wih_ref[...], preferred_element_type=f32)
              + bih_ref[...]).reshape(S, B, 6 * H)
        whh = whh_ref[...]                                           # (2H, 6H) block-diag
        bhh = bhh_ref[...]                                           # (1, 6H)

        def gates(gi_d, gh_d, h_d):
            r = jax.nn.sigmoid(gi_d[:, 0:H] + gh_d[:, 0:H])
            z = jax.nn.sigmoid(gi_d[:, H:2 * H] + gh_d[:, H:2 * H])
            n = jnp.tanh(gi_d[:, 2 * H:3 * H] + r * gh_d[:, 2 * H:3 * H])
            return (1.0 - z) * n + z * h_d

        h_cat = jnp.zeros((B, 2 * H), f32)                           # [h_fwd | h_bwd]
        for t in range(S):                                           # fully unrolled (S static, small)
            gh = jnp.dot(h_cat, whh, preferred_element_type=f32) + bhh   # (B, 6H)
            h_f = gates(gi[t][:, 0:3 * H], gh[:, 0:3 * H], h_cat[:, 0:H])
            h_b = gates(gi[S - 1 - t][:, 3 * H:6 * H], gh[:, 3 * H:6 * H],
                        h_cat[:, H:2 * H])
            h_cat = jnp.concatenate([h_f, h_b], axis=-1)
            outf_ref[t] = h_f
            outb_ref[S - 1 - t] = h_b                                # stored un-reversed
        return jnp.concatenate([outf_ref[...], outb_ref[...]], axis=-1)   # (S, B, 2H)

    layer_in = embeds
    for l in range(n_layers):
        wih_ref, whh_ref, bih_ref, bhh_ref = gru_refs[4 * l:4 * l + 4]
        layer_in = bigru_layer(layer_in.reshape(S * B, layer_in.shape[-1]),
                               wih_ref, whh_ref, bih_ref, bhh_ref)
    gru_out = layer_in                                               # (S, B, 2H)

    # --- concat GRU output with embeddings on the channel axis (time-major) ---
    feat = jnp.concatenate([gru_out, embeds], axis=-1)               # (S, B, 2H+E)

    # --- Conv1d(k=3) + BatchNorm(folded) + ReLU as one lane-dense matmul each ---
    def conv_bn_relu(x, w_ref, shift_ref):
        L, _, cin = x.shape
        lout = L - 2
        cout = w_ref.shape[1]
        x3 = jnp.concatenate([x[0:lout], x[1:1 + lout], x[2:2 + lout]], axis=-1)
        y = (jnp.dot(x3.reshape(lout * B, 3 * cin), w_ref[...],
                     preferred_element_type=f32) + shift_ref[...])
        return jnp.maximum(y, 0.0).reshape(lout, B, cout)

    y = conv_bn_relu(feat, wc1_ref, sh1_ref)                         # (S-2, B, RC)
    y = conv_bn_relu(y, wc2_ref, sh2_ref)                            # (S-4, B, RC)
    L2, _, RC = y.shape

    # --- k-max pooling over time, preserving temporal order (ties -> lowest t) ---
    rows = [y[t] for t in range(L2)]                                 # each (B, RC)
    sel = [jnp.zeros((B, RC), jnp.bool_) for _ in range(L2)]
    for _ in range(K):
        masked = [jnp.where(sel[t], -jnp.inf, rows[t]) for t in range(L2)]
        cur = masked[0]
        for t in range(1, L2):
            cur = jnp.maximum(cur, masked[t])
        taken = jnp.zeros((B, RC), jnp.bool_)
        for t in range(L2):
            hit = jnp.logical_and(masked[t] == cur, jnp.logical_not(taken))
            sel[t] = jnp.logical_or(sel[t], hit)
            taken = jnp.logical_or(taken, hit)
    run = jnp.zeros((B, RC), f32)
    pooled = [jnp.zeros((B, RC), f32) for _ in range(K)]
    for t in range(L2):
        run = run + sel[t].astype(f32)
        for j in range(K):
            pick = jnp.logical_and(sel[t], run == float(j + 1))
            pooled[j] = pooled[j] + jnp.where(pick, rows[t], 0.0)

    # --- FC -> BN(folded) -> ReLU -> FC (k-slot flatten folded into fc1 weights) ---
    z = shfc1_ref[...]
    for j in range(K):
        z = z + jnp.dot(pooled[j], wfc1_ref[j], preferred_element_type=f32)
    z = jnp.maximum(z, 0.0)
    out_ref[...] = (jnp.dot(z, wfc2_ref[...], preferred_element_type=f32)
                    + bfc2_ref[...])


# ----------------------------------------------------------------------------
# Trace-time parameter packing / BN folding (plain JAX on tiny weights).
# ----------------------------------------------------------------------------
def _pack_bigru_layer(layer, H):
    f, b = layer['fwd'], layer['bwd']
    wih = jnp.concatenate([f['w_ih'].T, b['w_ih'].T], axis=1)            # (Din, 6H)
    whh = jnp.zeros((2 * H, 6 * H), jnp.float32)
    whh = whh.at[0:H, 0:3 * H].set(f['w_hh'].T)                          # block-diagonal
    whh = whh.at[H:2 * H, 3 * H:6 * H].set(b['w_hh'].T)
    bih = jnp.concatenate([f['b_ih'], b['b_ih']]).reshape(1, 6 * H)
    bhh = jnp.concatenate([f['b_hh'], b['b_hh']]).reshape(1, 6 * H)
    return [wih, whh, bih, bhh]


def _fold_conv_bn(p, eps):
    cout, cin, kw = p['w'].shape
    wt = jnp.transpose(p['w'], (2, 1, 0)).reshape(kw * cin, cout)        # (3*cin, cout)
    s = p['bn_gamma'] / jnp.sqrt(p['bn_var'] + eps)
    shift = (p['b'] - p['bn_mean']) * s + p['bn_beta']
    return wt * s[None, :], shift.reshape(1, cout)


def _fold_fc1_bn(p, k, eps):
    lh = p['w'].shape[0]
    s = p['bn_gamma'] / jnp.sqrt(p['bn_var'] + eps)
    w_split = jnp.stack([p['w'][:, j::k].T for j in range(k)], axis=0)   # (k, RC, LH)
    shift = (p['b'] - p['bn_mean']) * s + p['bn_beta']
    return w_split * s[None, None, :], shift.reshape(1, lh)


def gru_cnn_forward(sentence, params, *, kmax_k, eps=1e-5):
    B, S = sentence.shape
    H = params['gru'][0]['fwd']['w_hh'].shape[1]
    n_layers = len(params['gru'])
    class_num = params['fc2']['w'].shape[0]
    assert kmax_k <= S - 4, "sequence too short for two k=3 convs + kmax"

    ids_flat = sentence.T.reshape(S * B, 1).astype(jnp.int32)            # text.data.t_()

    inputs = [ids_flat, params['embedding']]
    for layer in params['gru']:
        inputs.extend(_pack_bigru_layer(layer, H))
    wc1, sh1 = _fold_conv_bn(params['conv1'], eps)
    wc2, sh2 = _fold_conv_bn(params['conv2'], eps)
    wfc1, shfc1 = _fold_fc1_bn(params['fc1'], kmax_k, eps)
    inputs += [wc1, sh1, wc2, sh2, wfc1, shfc1,
               params['fc2']['w'].T, params['fc2']['b'].reshape(1, class_num)]

    vmem = pl.BlockSpec(memory_space=pltpu.MemorySpace.VMEM)
    kernel = functools.partial(gru_cnn_kernel, S, B, H, kmax_k, n_layers)

    # TODO(synk): everything is VMEM-resident (fine at these sizes); production
    # shapes need a batch-tile "parallel" grid axis + time-chunk pipelining to
    # stay under v7x's 64 MiB VMEM, plus bf16 MXU operands.
    return pl.pallas_call(
        kernel,
        out_shape=jax.ShapeDtypeStruct((B, class_num), jnp.float32),
        in_specs=[vmem] * len(inputs),
        out_specs=vmem,
        scratch_shapes=[
            pltpu.VMEM((S, B, H), jnp.float32),      # fwd per-step outputs
            pltpu.VMEM((S, B, H), jnp.float32),      # bwd per-step outputs (un-reversed)
        ],
    )(*inputs)


# ----------------------------------------------------------------------------
# Pure-JAX reference (mirrors the PyTorch module, inference mode).
# ----------------------------------------------------------------------------
def reference_forward(sentence, params, *, kmax_k, eps=1e-5):
    hp = lax.Precision.HIGHEST
    ids_t = sentence.T                                               # (S, B)
    embeds = jnp.take(params['embedding'], ids_t, axis=0)            # (S, B, E)

    def gru_dir(x, p):
        Hh = p['w_hh'].shape[1]

        def step(h, x_t):
            gi = jnp.dot(x_t, p['w_ih'].T, precision=hp) + p['b_ih']
            gh = jnp.dot(h, p['w_hh'].T, precision=hp) + p['b_hh']
            r = jax.nn.sigmoid(gi[:, :Hh] + gh[:, :Hh])
            z = jax.nn.sigmoid(gi[:, Hh:2 * Hh] + gh[:, Hh:2 * Hh])
            n = jnp.tanh(gi[:, 2 * Hh:] + r * gh[:, 2 * Hh:])
            h_new = (1.0 - z) * n + z * h
            return h_new, h_new

        h0 = jnp.zeros((x.shape[1], Hh), jnp.float32)
        _, out = lax.scan(step, h0, x)
        return out

    layer_in = embeds
    for layer in params['gru']:
        out_f = gru_dir(layer_in, layer['fwd'])
        out_b = gru_dir(layer_in[::-1], layer['bwd'])[::-1]
        layer_in = jnp.concatenate([out_f, out_b], axis=-1)
    gru_out = layer_in                                               # (S, B, 2H)

    # out.permute(1,2,0) cat embed.permute(1,2,0) along channels
    x = jnp.transpose(jnp.concatenate([gru_out, embeds], axis=-1), (1, 2, 0))

    def conv_bn_relu(x, p):
        y = lax.conv_general_dilated(x, p['w'], window_strides=(1,), padding='VALID',
                                     dimension_numbers=('NCH', 'OIH', 'NCH'),
                                     precision=hp)
        y = y + p['b'][None, :, None]
        s = p['bn_gamma'] / jnp.sqrt(p['bn_var'] + eps)
        y = (y - p['bn_mean'][None, :, None]) * s[None, :, None] + p['bn_beta'][None, :, None]
        return jnp.maximum(y, 0.0)

    y = conv_bn_relu(x, params['conv1'])
    y = conv_bn_relu(y, params['conv2'])                             # (B, RC, S-4)

    # kmax_pooling(x, dim=2, k): top-k values kept in original temporal order
    _, idx = lax.top_k(y, kmax_k)
    idx = jnp.sort(idx, axis=-1)
    pooled = jnp.take_along_axis(y, idx, axis=-1)                    # (B, RC, k)
    flat = pooled.reshape(pooled.shape[0], -1)                       # (B, RC*k)

    p1 = params['fc1']
    z = jnp.dot(flat, p1['w'].T, precision=hp) + p1['b']
    s = p1['bn_gamma'] / jnp.sqrt(p1['bn_var'] + eps)
    z = (z - p1['bn_mean']) * s + p1['bn_beta']
    z = jnp.maximum(z, 0.0)
    p2 = params['fc2']
    return jnp.dot(z, p2['w'].T, precision=hp) + p2['b']


# ----------------------------------------------------------------------------
# Deterministic parameter construction (shapes follow the nn.Module __init__).
# ----------------------------------------------------------------------------
def make_params(key, *, embed_num, embed_dim, hidden_dim, lstm_layers,
                rcnn_kernel, kmax_pooling, linear_hidden_size, class_num):
    keys = iter(jax.random.split(key, 64))

    def unif(shape, a):
        return jax.random.uniform(next(keys), shape, jnp.float32, -a, a)

    def bn(n):
        return {'bn_gamma': jax.random.uniform(next(keys), (n,), jnp.float32, 0.8, 1.2),
                'bn_beta': unif((n,), 0.1),
                'bn_mean': unif((n,), 0.1),
                'bn_var': jax.random.uniform(next(keys), (n,), jnp.float32, 0.5, 1.5)}

    H = hidden_dim
    params = {'embedding': jax.random.normal(next(keys), (embed_num, embed_dim),
                                             jnp.float32)}

    gb = 1.0 / float(H) ** 0.5
    gru = []
    for l in range(lstm_layers):
        din = embed_dim if l == 0 else 2 * H
        gru.append({d: {'w_ih': unif((3 * H, din), gb), 'w_hh': unif((3 * H, H), gb),
                        'b_ih': unif((3 * H,), gb), 'b_hh': unif((3 * H,), gb)}
                    for d in ('fwd', 'bwd')})
    params['gru'] = gru

    c0 = 2 * H + embed_dim
    cb = 1.0 / float(3 * c0) ** 0.5
    params['conv1'] = {'w': unif((rcnn_kernel, c0, 3), cb), 'b': unif((rcnn_kernel,), cb),
                       **bn(rcnn_kernel)}
    cb = 1.0 / float(3 * rcnn_kernel) ** 0.5
    params['conv2'] = {'w': unif((rcnn_kernel, rcnn_kernel, 3), cb),
                       'b': unif((rcnn_kernel,), cb), **bn(rcnn_kernel)}

    fb = 1.0 / float(kmax_pooling * rcnn_kernel) ** 0.5
    params['fc1'] = {'w': unif((linear_hidden_size, kmax_pooling * rcnn_kernel), fb),
                     'b': unif((linear_hidden_size,), fb), **bn(linear_hidden_size)}
    fb = 1.0 / float(linear_hidden_size) ** 0.5
    params['fc2'] = {'w': unif((class_num, linear_hidden_size), fb),
                     'b': unif((class_num,), fb)}
    return params


if __name__ == "__main__":
    batch, seq = 2, 16
    args = dict(embed_num=50, embed_dim=16, hidden_dim=16, lstm_layers=2,
                rcnn_kernel=32, kmax_pooling=2, linear_hidden_size=64, class_num=4)

    key = jax.random.PRNGKey(0)
    k_param, k_tok = jax.random.split(key)
    params = make_params(k_param, **args)
    sentence = jax.random.randint(k_tok, (batch, seq), 0, args['embed_num'], jnp.int32)

    y = jax.block_until_ready(
        gru_cnn_forward(sentence, params, kmax_k=args['kmax_pooling']))
    assert y.shape == (batch, args['class_num'])

    y_ref = jax.block_until_ready(
        reference_forward(sentence, params, kmax_k=args['kmax_pooling']))
    assert jnp.allclose(y, y_ref, rtol=2e-2, atol=2e-2), (y, y_ref)

    print("KERNEL_OK")
</pallas_src>

<mosaic_0001>
module attributes {stable_mosaic.version = 11 : i64} {
  func.func @gru_cnn_kernel(%arg0: memref<32x1xi32, #tpu.memory_space<vmem>>, %arg1: memref<50x16xf32, #tpu.memory_space<vmem>>, %arg2: memref<16x96xf32, #tpu.memory_space<vmem>>, %arg3: memref<32x96xf32, #tpu.memory_space<vmem>>, %arg4: memref<1x96xf32, #tpu.memory_space<vmem>>, %arg5: memref<1x96xf32, #tpu.memory_space<vmem>>, %arg6: memref<32x96xf32, #tpu.memory_space<vmem>>, %arg7: memref<32x96xf32, #tpu.memory_space<vmem>>, %arg8: memref<1x96xf32, #tpu.memory_space<vmem>>, %arg9: memref<1x96xf32, #tpu.memory_space<vmem>>, %arg10: memref<144x32xf32, #tpu.memory_space<vmem>>, %arg11: memref<1x32xf32, #tpu.memory_space<vmem>>, %arg12: memref<96x32xf32, #tpu.memory_space<vmem>>, %arg13: memref<1x32xf32, #tpu.memory_space<vmem>>, %arg14: memref<2x32x64xf32, #tpu.memory_space<vmem>>, %arg15: memref<1x64xf32, #tpu.memory_space<vmem>>, %arg16: memref<64x4xf32, #tpu.memory_space<vmem>>, %arg17: memref<1x4xf32, #tpu.memory_space<vmem>>, %arg18: memref<2x4xf32, #tpu.memory_space<vmem>>, %arg19: memref<16x2x16xf32, #tpu.memory_space<vmem>>, %arg20: memref<16x2x16xf32, #tpu.memory_space<vmem>>) attributes {dimension_semantics = [], scalar_prefetch = 0 : i64, scratch_operands = 2 : i64, tpu.core_type = #tpu.core_type<tc>} {
    %c0 = arith.constant 0 : index
    %c0_0 = arith.constant 0 : index
    %0 = vector.load %arg0[%c0, %c0_0] : memref<32x1xi32, #tpu.memory_space<vmem>>, vector<32x1xi32>
    %1 = tpu.iota {dimensions = array<i32: 1>} : vector<32x50xi32>
    %2 = vector.broadcast %0 : vector<32x1xi32> to vector<32x50xi32>
    %3 = arith.cmpi eq, %2, %1 : vector<32x50xi32>
    %4 = arith.extui %3 : vector<32x50xi1> to vector<32x50xi32>
    %5 = arith.sitofp %4 : vector<32x50xi32> to vector<32x50xf32>
    %c0_1 = arith.constant 0 : index
    %c0_2 = arith.constant 0 : index
    %6 = vector.load %arg1[%c0_1, %c0_2] : memref<50x16xf32, #tpu.memory_space<vmem>>, vector<50x16xf32>
    %cst = arith.constant dense<0.000000e+00> : vector<32x16xf32>
    %7 = tpu.matmul %5, %6, %cst {dimension_numbers = #tpu.dot_dimension_numbers<[1], [0], [0], [1], [0, 0, 1, 1], [], []>} : vector<32x50xf32>, vector<50x16xf32>, vector<32x16xf32> -> vector<32x16xf32>
    %8 = vector.shape_cast %7 : vector<32x16xf32> to vector<16x2x16xf32>
    %9 = vector.shape_cast %8 : vector<16x2x16xf32> to vector<32x16xf32>
    %c0_3 = arith.constant 0 : index
    %c0_4 = arith.constant 0 : index
    %10 = vector.load %arg2[%c0_3, %c0_4] : memref<16x96xf32, #tpu.memory_space<vmem>>, vector<16x96xf32>
    %cst_5 = arith.constant dense<0.000000e+00> : vector<32x96xf32>
    %11 = tpu.matmul %9, %10, %cst_5 {dimension_numbers = #tpu.dot_dimension_numbers<[1], [0], [0], [1], [0, 0, 1, 1], [], []>} : vector<32x16xf32>, vector<16x96xf32>, vector<32x96xf32> -> vector<32x96xf32>
    %c0_6 = arith.constant 0 : index
    %c0_7 = arith.constant 0 : index
    %12 = vector.load %arg4[%c0_6, %c0_7] : memref<1x96xf32, #tpu.memory_space<vmem>>, vector<1x96xf32>
    %13 = vector.broadcast %12 : vector<1x96xf32> to vector<32x96xf32>
    %14 = arith.addf %11, %13 : vector<32x96xf32>
    %15 = vector.shape_cast %14 : vector<32x96xf32> to vector<16x2x96xf32>
    %c0_8 = arith.constant 0 : index
    %c0_9 = arith.constant 0 : index
    %16 = vector.load %arg3[%c0_8, %c0_9] : memref<32x96xf32, #tpu.memory_space<vmem>>, vector<32x96xf32>
    %c0_10 = arith.constant 0 : index
    %c0_11 = arith.constant 0 : index
    %17 = vector.load %arg5[%c0_10, %c0_11] : memref<1x96xf32, #tpu.memory_space<vmem>>, vector<1x96xf32>
    %cst_12 = arith.constant 0.000000e+00 : f32
    %18 = vector.broadcast %cst_12 : f32 to vector<2x32xf32>
    %cst_13 = arith.constant dense<0.000000e+00> : vector<2x96xf32>
    %19 = tpu.matmul %18, %16, %cst_13 {dimension_numbers = #tpu.dot_dimension_numbers<[1], [0], [0], [1], [0, 0, 1, 1], [], []>} : vector<2x32xf32>, vector<32x96xf32>, vector<2x96xf32> -> vector<2x96xf32>
    %20 = vector.broadcast %17 : vector<1x96xf32> to vector<2x96xf32>
    %21 = arith.addf %19, %20 : vector<2x96xf32>
    %22 = vector.extract_strided_slice %15 {offsets = [0, 0, 0], sizes = [1, 2, 96], strides = [1, 1, 1]} : vector<16x2x96xf32> to vector<1x2x96xf32>
    %23 = vector.shape_cast %22 : vector<1x2x96xf32> to vector<2x96xf32>
    %24 = vector.extract_strided_slice %23 {offsets = [0, 0], sizes = [2, 48], strides = [1, 1]} : vector<2x96xf32> to vector<2x48xf32>
    %25 = vector.extract_strided_slice %21 {offsets = [0, 0], sizes = [2, 48], strides = [1, 1]} : vector<2x96xf32> to vector<2x48xf32>
    %26 = vector.extract_strided_slice %18 {offsets = [0, 0], sizes = [2, 16], strides = [1, 1]} : vector<2x32xf32> to vector<2x16xf32>
    %27 = vector.extract_strided_slice %24 {offsets = [0, 0], sizes = [2, 16], strides = [1, 1]} : vector<2x48xf32> to vector<2x16xf32>
    %28 = vector.extract_strided_slice %25 {offsets = [0, 0], sizes = [2, 16], strides = [1, 1]} : vector<2x48xf32> to vector<2x16xf32>
    %29 = arith.addf %27, %28 : vector<2x16xf32>
    %30 = arith.negf %29 : vector<2x16xf32>
    %31 = math.exp %30 : vector<2x16xf32>
    %cst_14 = arith.constant 1.000000e+00 : f32
    %32 = vector.broadcast %cst_14 : f32 to vector<2x16xf32>
    %33 = arith.addf %32, %31 : vector<2x16xf32>
    %34 = arith.divf %32, %33 : vector<2x16xf32>
    %35 = vector.extract_strided_slice %24 {offsets = [0, 16], sizes = [2, 16], strides = [1, 1]} : vector<2x48xf32> to vector<2x16xf32>
    %36 = vector.extract_strided_slice %25 {offsets = [0, 16], sizes = [2, 16], strides = [1, 1]} : vector<2x48xf32> to vector<2x16xf32>
    %37 = arith.addf %35, %36 : vector<2x16xf32>
    %38 = arith.negf %37 : vector<2x16xf32>
    %39 = math.exp %38 : vector<2x16xf32>
    %cst_15 = arith.constant 1.000000e+00 : f32
    %40 = vector.broadcast %cst_15 : f32 to vector<2x16xf32>
    %41 = arith.addf %40, %39 : vector<2x16xf32>
    %42 = arith.divf %40, %41 : vector<2x16xf32>
    %43 = vector.extract_strided_slice %24 {offsets = [0, 32], sizes = [2, 16], strides = [1, 1]} : vector<2x48xf32> to vector<2x16xf32>
    %44 = vector.extract_strided_slice %25 {offsets = [0, 32], sizes = [2, 16], strides = [1, 1]} : vector<2x48xf32> to vector<2x16xf32>
    %45 = arith.mulf %34, %44 : vector<2x16xf32>
    %46 = arith.addf %43, %45 : vector<2x16xf32>
    %47 = math.tanh %46 : vector<2x16xf32>
    %cst_16 = arith.constant 1.000000e+00 : f32
    %48 = vector.broadcast %cst_16 : f32 to vector<2x16xf32>
    %49 = arith.subf %48, %42 : vector<2x16xf32>
    %50 = arith.mulf %49, %47 : vector<2x16xf32>
    %51 = arith.mulf %42, %26 : vector<2x16xf32>
    %52 = arith.addf %50, %51 : vector<2x16xf32>
    %53 = vector.extract_strided_slice %15 {offsets = [15, 0, 0], sizes = [1, 2, 96], strides = [1, 1, 1]} : vector<16x2x96xf32> to vector<1x2x96xf32>
    %54 = vector.shape_cast %53 : vector<1x2x96xf32> to vector<2x96xf32>
    %55 = vector.extract_strided_slice %54 {offsets = [0, 48], sizes = [2, 48], strides = [1, 1]} : vector<2x96xf32> to vector<2x48xf32>
    %56 = vector.extract_strided_slice %21 {offsets = [0, 48], sizes = [2, 48], strides = [1, 1]} : vector<2x96xf32> to vector<2x48xf32>
    %57 = vector.extract_strided_slice %18 {offsets = [0, 16], sizes = [2, 16], strides = [1, 1]} : vector<2x32xf32> to vector<2x16xf32>
    %58 = vector.extract_strided_slice %55 {offsets = [0, 0], sizes = [2, 16], strides = [1, 1]} : vector<2x48xf32> to vector<2x16xf32>
    %59 = vector.extract_strided_slice %56 {offsets = [0, 0], sizes = [2, 16], strides = [1, 1]} : vector<2x48xf32> to vector<2x16xf32>
    %60 = arith.addf %58, %59 : vector<2x16xf32>
    %61 = arith.negf %60 : vector<2x16xf32>
    %62 = math.exp %61 : vector<2x16xf32>
    %cst_17 = arith.constant 1.000000e+00 : f32
    %63 = vector.broadcast %cst_17 : f32 to vector<2x16xf32>
    %64 = arith.addf %63, %62 : vector<2x16xf32>
    %65 = arith.divf %63, %64 : vector<2x16xf32>
    %66 = vector.extract_strided_slice %55 {offsets = [0, 16], sizes = [2, 16], strides = [1, 1]} : vector<2x48xf32> to vector<2x16xf32>
    %67 = vector.extract_strided_slice %56 {offsets = [0, 16], sizes = [2, 16], strides = [1, 1]} : vector<2x48xf32> to vector<2x16xf32>
    %68 = arith.addf %66, %67 : vector<2x16xf32>
    %69 = arith.negf %68 : vector<2x16xf32>
    %70 = math.exp %69 : vector<2x16xf32>
    %cst_18 = arith.constant 1.000000e+00 : f32
    %71 = vector.broadcast %cst_18 : f32 to vector<2x16xf32>
    %72 = arith.addf %71, %70 : vector<2x16xf32>
    %73 = arith.divf %71, %72 : vector<2x16xf32>
    %74 = vector.extract_strided_slice %55 {offsets = [0, 32], sizes = [2, 16], strides = [1, 1]} : vector<2x48xf32> to vector<2x16xf32>
    %75 = vector.extract_strided_slice %56 {offsets = [0, 32], sizes = [2, 16], strides = [1, 1]} : vector<2x48xf32> to vector<2x16xf32>
    %76 = arith.mulf %65, %75 : vector<2x16xf32>
    %77 = arith.addf %74, %76 : vector<2x16xf32>
    %78 = math.tanh %77 : vector<2x16xf32>
    %cst_19 = arith.constant 1.000000e+00 : f32
    %79 = vector.broadcast %cst_19 : f32 to vector<2x16xf32>
    %80 = arith.subf %79, %73 : vector<2x16xf32>
    %81 = arith.mulf %80, %78 : vector<2x16xf32>
    %82 = arith.mulf %73, %57 : vector<2x16xf32>
    %83 = arith.addf %81, %82 : vector<2x16xf32>
    %84 = tpu.concatenate %52, %83 in 1 : vector<2x16xf32>, vector<2x16xf32> -> vector<2x32xf32>
    %c0_20 = arith.constant 0 : index
    %c0_21 = arith.constant 0 : index
    %c0_22 = arith.constant 0 : index
    %85 = vector.load %arg19[%c0_20, %c0_21, %c0_22] : memref<16x2x16xf32, #tpu.memory_space<vmem>>, vector<1x2x16xf32>
    %86 = vector.shape_cast %85 : vector<1x2x16xf32> to vector<2x16xf32>
    %87 = vector.shape_cast %52 : vector<2x16xf32> to vector<1x2x16xf32>
    tpu.vector_store %arg19[%c0_20, %c0_21, %c0_22], %87 {strides = array<i32>} : memref<16x2x16xf32, #tpu.memory_space<vmem>>, vector<1x2x16xf32>,
    %c15 = arith.constant 15 : index
    %c0_23 = arith.constant 0 : index
    %c0_24 = arith.constant 0 : index
    %88 = vector.load %arg20[%c15, %c0_23, %c0_24] : memref<16x2x16xf32, #tpu.memory_space<vmem>>, vector<1x2x16xf32>
    %89 = vector.shape_cast %88 : vector<1x2x16xf32> to vector<2x16xf32>
    %90 = vector.shape_cast %83 : vector<2x16xf32> to vector<1x2x16xf32>
    tpu.vector_store %arg20[%c15, %c0_23, %c0_24], %90 {strides = array<i32>} : memref<16x2x16xf32, #tpu.memory_space<vmem>>, vector<1x2x16xf32>,
    %cst_25 = arith.constant dense<0.000000e+00> : vector<2x96xf32>
    %91 = tpu.matmul %84, %16, %cst_25 {dimension_numbers = #tpu.dot_dimension_numbers<[1], [0], [0], [1], [0, 0, 1, 1], [], []>} : vector<2x32xf32>, vector<32x96xf32>, vector<2x96xf32> -> vector<2x96xf32>
    %92 = vector.broadcast %17 : vector<1x96xf32> to vector<2x96xf32>
    %93 = arith.addf %91, %92 : vector<2x96xf32>
    %94 = vector.extract_strided_slice %15 {offsets = [1, 0, 0], sizes = [1, 2, 96], strides = [1, 1, 1]} : vector<16x2x96xf32> to vector<1x2x96xf32>
    %95 = vector.shape_cast %94 : vector<1x2x96xf32> to vector<2x96xf32>
    %96 = vector.extract_strided_slice %95 {offsets = [0, 0], sizes = [2, 48], strides = [1, 1]} : vector<2x96xf32> to vector<2x48xf32>
    %97 = vector.extract_strided_slice %93 {offsets = [0, 0], sizes = [2, 48], strides = [1, 1]} : vector<2x96xf32> to vector<2x48xf32>
    %98 = vector.extract_strided_slice %84 {offsets = [0, 0], sizes = [2, 16], strides = [1, 1]} : vector<2x32xf32> to vector<2x16xf32>
    %99 = vector.extract_strided_slice %96 {offsets = [0, 0], sizes = [2, 16], strides = [1, 1]} : vector<2x48xf32> to vector<2x16xf32>
    %100 = vector.extract_strided_slice %97 {offsets = [0, 0], sizes = [2, 16], strides = [1, 1]} : vector<2x48xf32> to vector<2x16xf32>
    %101 = arith.addf %99, %100 : vector<2x16xf32>
    %102 = arith.negf %101 : vector<2x16xf32>
    %103 = math.exp %102 : vector<2x16xf32>
    %cst_26 = arith.constant 1.000000e+00 : f32
    %104 = vector.broadcast %cst_26 : f32 to vector<2x16xf32>
    %105 = arith.addf %104, %103 : vector<2x16xf32>
    %106 = arith.divf %104, %105 : vector<2x16xf32>
    %107 = vector.extract_strided_slice %96 {offsets = [0, 16], sizes = [2, 16], strides = [1, 1]} : vector<2x48xf32> to vector<2x16xf32>
    %108 = vector.extract_strided_slice %97 {offsets = [0, 16], sizes = [2, 16], strides = [1, 1]} : vector<2x48xf32> to vector<2x16xf32>
    %109 = arith.addf %107, %108 : vector<2x16xf32>
    %110 = arith.negf %109 : vector<2x16xf32>
    %111 = math.exp %110 : vector<2x16xf32>
    %cst_27 = arith.constant 1.000000e+00 : f32
    %112 = vector.broadcast %cst_27 : f32 to vector<2x16xf32>
    %113 = arith.addf %112, %111 : vector<2x16xf32>
    %114 = arith.divf %112, %113 : vector<2x16xf32>
    %115 = vector.extract_strided_slice %96 {offsets = [0, 32], sizes = [2, 16], strides = [1, 1]} : vector<2x48xf32> to vector<2x16xf32>
    %116 = vector.extract_strided_slice %97 {offsets = [0, 32], sizes = [2, 16], strides = [1, 1]} : vector<2x48xf32> to vector<2x16xf32>
    %117 = arith.mulf %106, %116 : vector<2x16xf32>
    %118 = arith.addf %115, %117 : vector<2x16xf32>
    %119 = math.tanh %118 : vector<2x16xf32>
    %cst_28 = arith.constant 1.000000e+00 : f32
    %120 = vector.broadcast %cst_28 : f32 to vector<2x16xf32>
    %121 = arith.subf %120, %114 : vector<2x16xf32>
    %122 = arith.mulf %121, %119 : vector<2x16xf32>
    %123 = arith.mulf %114, %98 : vector<2x16xf32>
    %124 = arith.addf %122, %123 : vector<2x16xf32>
    %125 = vector.extract_strided_slice %15 {offsets = [14, 0, 0], sizes = [1, 2, 96], strides = [1, 1, 1]} : vector<16x2x96xf32> to vector<1x2x96xf32>
    %126 = vector.shape_cast %125 : vector<1x2x96xf32> to vector<2x96xf32>
    %127 = vector.extract_strided_slice %126 {offsets = [0, 48], sizes = [2, 48], strides = [1, 1]} : vector<2x96xf32> to vector<2x48xf32>
    %128 = vector.extract_strided_slice %93 {offsets = [0, 48], sizes = [2, 48], strides = [1, 1]} : vector<2x96xf32> to vector<2x48xf32>
    %129 = vector.extract_strided_slice %84 {offsets = [0, 16], sizes = [2, 16], strides = [1, 1]} : vector<2x32xf32> to vector<2x16xf32>
    %130 = vector.extract_strided_slice %127 {offsets = [0, 0], sizes = [2, 16], strides = [1, 1]} : vector<2x48xf32> to vector<2x16xf32>
    %131 = vector.extract_strided_slice %128 {offsets = [0, 0], sizes = [2, 16], strides = [1, 1]} : vector<2x48xf32> to vector<2x16xf32>
    %132 = arith.addf %130, %131 : vector<2x16xf32>
    %133 = arith.negf %132 : vector<2x16xf32>
    %134 = math.exp %133 : vector<2x16xf32>
    %cst_29 = arith.constant 1.000000e+00 : f32
    %135 = vector.broadcast %cst_29 : f32 to vector<2x16xf32>
    %136 = arith.addf %135, %134 : vector<2x16xf32>
    %137 = arith.divf %135, %136 : vector<2x16xf32>
    %138 = vector.extract_strided_slice %127 {offsets = [0, 16], sizes = [2, 16], strides = [1, 1]} : vector<2x48xf32> to vector<2x16xf32>
    %139 = vector.extract_strided_slice %128 {offsets = [0, 16], sizes = [2, 16], strides = [1, 1]} : vector<2x48xf32> to vector<2x16xf32>
    %140 = arith.addf %138, %139 : vector<2x16xf32>
    %141 = arith.negf %140 : vector<2x16xf32>
    %142 = math.exp %141 : vector<2x16xf32>
    %cst_30 = arith.constant 1.000000e+00 : f32
    %143 = vector.broadcast %cst_30 : f32 to vector<2x16xf32>
    %144 = arith.addf %143, %142 : vector<2x16xf32>
    %145 = arith.divf %143, %144 : vector<2x16xf32>
    %146 = vector.extract_strided_slice %127 {offsets = [0, 32], sizes = [2, 16], strides = [1, 1]} : vector<2x48xf32> to vector<2x16xf32>
    %147 = vector.extract_strided_slice %128 {offsets = [0, 32], sizes = [2, 16], strides = [1, 1]} : vector<2x48xf32> to vector<2x16xf32>
    %148 = arith.mulf %137, %147 : vector<2x16xf32>
    %149 = arith.addf %146, %148 : vector<2x16xf32>
    %150 = math.tanh %149 : vector<2x16xf32>
    %cst_31 = arith.constant 1.000000e+00 : f32
    %151 = vector.broadcast %cst_31 : f32 to vector<2x16xf32>
    %152 = arith.subf %151, %145 : vector<2x16xf32>
    %153 = arith.mulf %152, %150 : vector<2x16xf32>
    %154 = arith.mulf %145, %129 : vector<2x16xf32>
    %155 = arith.addf %153, %154 : vector<2x16xf32>
    %156 = tpu.concatenate %124, %155 in 1 : vector<2x16xf32>, vector<2x16xf32> -> vector<2x32xf32>
    %c1 = arith.constant 1 : index
    %c0_32 = arith.constant 0 : index
    %c0_33 = arith.constant 0 : index
    %157 = vector.load %arg19[%c1, %c0_32, %c0_33] : memref<16x2x16xf32, #tpu.memory_space<vmem>>, vector<1x2x16xf32>
    %158 = vector.shape_cast %157 : vector<1x2x16xf32> to vector<2x16xf32>
    %159 = vector.shape_cast %124 : vector<2x16xf32> to vector<1x2x16xf32>
    tpu.vector_store %arg19[%c1, %c0_32, %c0_33], %159 {strides = array<i32>} : memref<16x2x16xf32, #tpu.memory_space<vmem>>, vector<1x2x16xf32>,
    %c14 = arith.constant 14 : index
    %c0_34 = arith.constant 0 : index
    %c0_35 = arith.constant 0 : index
    %160 = vector.load %arg20[%c14, %c0_34, %c0_35] : memref<16x2x16xf32, #tpu.memory_space<vmem>>, vector<1x2x16xf32>
    %161 = vector.shape_cast %160 : vector<1x2x16xf32> to vector<2x16xf32>
    %162 = vector.shape_cast %155 : vector<2x16xf32> to vector<1x2x16xf32>
    tpu.vector_store %arg20[%c14, %c0_34, %c0_35], %162 {strides = array<i32>} : memref<16x2x16xf32, #tpu.memory_space<vmem>>, vector<1x2x16xf32>,
    %cst_36 = arith.constant dense<0.000000e+00> : vector<2x96xf32>
    %163 = tpu.matmul %156, %16, %cst_36 {dimension_numbers = #tpu.dot_dimension_numbers<[1], [0], [0], [1], [0, 0, 1, 1], [], []>} : vector<2x32xf32>, vector<32x96xf32>, vector<2x96xf32> -> vector<2x96xf32>
    %164 = vector.broadcast %17 : vector<1x96xf32> to vector<2x96xf32>
    %165 = arith.addf %163, %164 : vector<2x96xf32>
    %166 = vector.extract_strided_slice %15 {offsets = [2, 0, 0], sizes = [1, 2, 96], strides = [1, 1, 1]} : vector<16x2x96xf32> to vector<1x2x96xf32>
    %167 = vector.shape_cast %166 : vector<1x2x96xf32> to vector<2x96xf32>
    %168 = vector.extract_strided_slice %167 {offsets = [0, 0], sizes = [2, 48], strides = [1, 1]} : vector<2x96xf32> to vector<2x48xf32>
    %169 = vector.extract_strided_slice %165 {offsets = [0, 0], sizes = [2, 48], strides = [1, 1]} : vector<2x96xf32> to vector<2x48xf32>
    %170 = vector.extract_strided_slice %156 {offsets = [0, 0], sizes = [2, 16], strides = [1, 1]} : vector<2x32xf32> to vector<2x16xf32>
    %171 = vector.extract_strided_slice %168 {offsets = [0, 0], sizes = [2, 16], strides = [1, 1]} : vector<2x48xf32> to vector<2x16xf32>
    %172 = vector.extract_strided_slice %169 {offsets = [0, 0], sizes = [2, 16], strides = [1, 1]} : vector<2x48xf32> to vector<2x16xf32>
    %173 = arith.addf %171, %172 : vector<2x16xf32>
    %174 = arith.negf %173 : vector<2x16xf32>
    %175 = math.exp %174 : vector<2x16xf32>
    %cst_37 = arith.constant 1.000000e+00 : f32
    %176 = vector.broadcast %cst_37 : f32 to vector<2x16xf32>
    %177 = arith.addf %176, %175 : vector<2x16xf32>
    %178 = arith.divf %176, %177 : vector<2x16xf32>
    %179 = vector.extract_strided_slice %168 {offsets = [0, 16], sizes = [2, 16], strides = [1, 1]} : vector<2x48xf32> to vector<2x16xf32>
    %180 = vector.extract_strided_slice %169 {offsets = [0, 16], sizes = [2, 16], strides = [1, 1]} : vector<2x48xf32> to vector<2x16xf32>
    %181 = arith.addf %179, %180 : vector<2x16xf32>
    %182 = arith.negf %181 : vector<2x16xf32>
    %183 = math.exp %182 : vector<2x16xf32>
    %cst_38 = arith.constant 1.000000e+00 : f32
    %184 = vector.broadcast %cst_38 : f32 to vector<2x16xf32>
    %185 = arith.addf %184, %183 : vector<2x16xf32>
    %186 = arith.divf %184, %185 : vector<2x16xf32>
    %187 = vector.extract_strided_slice %168 {offsets = [0, 32], sizes = [2, 16], strides = [1, 1]} : vector<2x48xf32> to vector<2x16xf32>
    %188 = vector.extract_strided_slice %169 {offsets = [0, 32], sizes = [2, 16], strides = [1, 1]} : vector<2x48xf32> to vector<2x16xf32>
    %189 = arith.mulf %178, %188 : vector<2x16xf32>
    %190 = arith.addf %187, %189 : vector<2x16xf32>
    %191 = math.tanh %190 : vector<2x16xf32>
    %cst_39 = arith.constant 1.000000e+00 : f32
    %192 = vector.broadcast %cst_39 : f32 to vector<2x16xf32>
    %193 = arith.subf %192, %186 : vector<2x16xf32>
    %194 = arith.mulf %193, %191 : vector<2x16xf32>
    %195 = arith.mulf %186, %170 : vector<2x16xf32>
    %196 = arith.addf %194, %195 : vector<2x16xf32>
    %197 = vector.extract_strided_slice %15 {offsets = [13, 0, 0], sizes = [1, 2, 96], strides = [1, 1, 1]} : vector<16x2x96xf32> to vector<1x2x96xf32>
    %198 = vector.shape_cast %197 : vector<1x2x96xf32> to vector<2x96xf32>
    %199 = vector.extract_strided_slice %198 {offsets = [0, 48], sizes = [2, 48], strides = [1, 1]} : vector<2x96xf32> to vector<2x48xf32>
    %200 = vector.extract_strided_slice %165 {offsets = [0, 48], sizes = [2, 48], strides = [1, 1]} : vector<2x96xf32> to vector<2x48xf32>
    %201 = vector.extract_strided_slice %156 {offsets = [0, 16], sizes = [2, 16], strides = [1, 1]} : vector<2x32xf32> to vector<2x16xf32>
    %202 = vector.extract_strided_slice %199 {offsets = [0, 0], sizes = [2, 16], strides = [1, 1]} : vector<2x48xf32> to vector<2x16xf32>
    %203 = vector.extract_strided_slice %200 {offsets = [0, 0], sizes = [2, 16], strides = [1, 1]} : vector<2x48xf32> to vector<2x16xf32>
    %204 = arith.addf %202, %203 : vector<2x16xf32>
    %205 = arith.negf %204 : vector<2x16xf32>
    %206 = math.exp %205 : vector<2x16xf32>
    %cst_40 = arith.constant 1.000000e+00 : f32
    %207 = vector.broadcast %cst_40 : f32 to vector<2x16xf32>
    %208 = arith.addf %207, %206 : vector<2x16xf32>
    %209 = arith.divf %207, %208 : vector<2x16xf32>
    %210 = vector.extract_strided_slice %199 {offsets = [0, 16], sizes = [2, 16], strides = [1, 1]} : vector<2x48xf32> to vector<2x16xf32>
    %211 = vector.extract_strided_slice %200 {offsets = [0, 16], sizes = [2, 16], strides = [1, 1]} : vector<2x48xf32> to vector<2x16xf32>
    %212 = arith.addf %210, %211 : vector<2x16xf32>
    %213 = arith.negf %212 : vector<2x16xf32>
    %214 = math.exp %213 : vector<2x16xf32>
    %cst_41 = arith.constant 1.000000e+00 : f32
    %215 = vector.broadcast %cst_41 : f32 to vector<2x16xf32>
    %216 = arith.addf %215, %214 : vector<2x16xf32>
    %217 = arith.divf %215, %216 : vector<2x16xf32>
    %218 = vector.extract_strided_slice %199 {offsets = [0, 32], sizes = [2, 16], strides = [1, 1]} : vector<2x48xf32> to vector<2x16xf32>
    %219 = vector.extract_strided_slice %200 {offsets = [0, 32], sizes = [2, 16], strides = [1, 1]} : vector<2x48xf32> to vector<2x16xf32>
    %220 = arith.mulf %209, %219 : vector<2x16xf32>
    %221 = arith.addf %218, %220 : vector<2x16xf32>
    %222 = math.tanh %221 : vector<2x16xf32>
    %cst_42 = arith.constant 1.000000e+00 : f32
    %223 = vector.broadcast %cst_42 : f32 to vector<2x16xf32>
    %224 = arith.subf %223, %217 : vector<2x16xf32>
    %225 = arith.mulf %224, %222 : vector<2x16xf32>
    %226 = arith.mulf %217, %201 : vector<2x16xf32>
    %227 = arith.addf %225, %226 : vector<2x16xf32>
    %228 = tpu.concatenate %196, %227 in 1 : vector<2x16xf32>, vector<2x16xf32> -> vector<2x32xf32>
    %c2 = arith.constant 2 : index
    %c0_43 = arith.constant 0 : index
    %c0_44 = arith.constant 0 : index
    %229 = vector.load %arg19[%c2, %c0_43, %c0_44] : memref<16x2x16xf32, #tpu.memory_space<vmem>>, vector<1x2x16xf32>
    %230 = vector.shape_cast %229 : vector<1x2x16xf32> to vector<2x16xf32>
    %231 = vector.shape_cast %196 : vector<2x16xf32> to vector<1x2x16xf32>
    tpu.vector_store %arg19[%c2, %c0_43, %c0_44], %231 {strides = array<i32>} : memref<16x2x16xf32, #tpu.memory_space<vmem>>, vector<1x2x16xf32>,
    %c13 = arith.constant 13 : index
    %c0_45 = arith.constant 0 : index
    %c0_46 = arith.constant 0 : index
    %232 = vector.load %arg20[%c13, %c0_45, %c0_46] : memref<16x2x16xf32, #tpu.memory_space<vmem>>, vector<1x2x16xf32>
    %233 = vector.shape_cast %232 : vector<1x2x16xf32> to vector<2x16xf32>
    %234 = vector.shape_cast %227 : vector<2x16xf32> to vector<1x2x16xf32>
    tpu.vector_store %arg20[%c13, %c0_45, %c0_46], %234 {strides = array<i32>} : memref<16x2x16xf32, #tpu.memory_space<vmem>>, vector<1x2x16xf32>,
    %cst_47 = arith.constant dense<0.000000e+00> : vector<2x96xf32>
    %235 = tpu.matmul %228, %16, %cst_47 {dimension_numbers = #tpu.dot_dimension_numbers<[1], [0], [0], [1], [0, 0, 1, 1], [], []>} : vector<2x32xf32>, vector<32x96xf32>, vector<2x96xf32> -> vector<2x96xf32>
    %236 = vector.broadcast %17 : vector<1x96xf32> to vector<2x96xf32>
    %237 = arith.addf %235, %236 : vector<2x96xf32>
    %238 = vector.extract_strided_slice %15 {offsets = [3, 0, 0], sizes = [1, 2, 96], strides = [1, 1, 1]} : vector<16x2x96xf32> to vector<1x2x96xf32>
    %239 = vector.shape_cast %238 : vector<1x2x96xf32> to vector<2x96xf32>
    %240 = vector.extract_strided_slice %239 {offsets = [0, 0], sizes = [2, 48], strides = [1, 1]} : vector<2x96xf32> to vector<2x48xf32>
    %241 = vector.extract_strided_slice %237 {offsets = [0, 0], sizes = [2, 48], strides = [1, 1]} : vector<2x96xf32> to vector<2x48xf32>
    %242 = vector.extract_strided_slice %228 {offsets = [0, 0], sizes = [2, 16], strides = [1, 1]} : vector<2x32xf32> to vector<2x16xf32>
    %243 = vector.extract_strided_slice %240 {offsets = [0, 0], sizes = [2, 16], strides = [1, 1]} : vector<2x48xf32> to vector<2x16xf32>
    %244 = vector.extract_strided_slice %241 {offsets = [0, 0], sizes = [2, 16], strides = [1, 1]} : vector<2x48xf32> to vector<2x16xf32>
    %245 = arith.addf %243, %244 : vector<2x16xf32>
    %246 = arith.negf %245 : vector<2x16xf32>
    %247 = math.exp %246 : vector<2x16xf32>
    %cst_48 = arith.constant 1.000000e+00 : f32
    %248 = vector.broadcast %cst_48 : f32 to vector<2x16xf32>
    %249 = arith.addf %248, %247 : vector<2x16xf32>
    %250 = arith.divf %248, %249 : vector<2x16xf32>
    %251 = vector.extract_strided_slice %240 {offsets = [0, 16], sizes = [2, 16], strides = [1, 1]} : vector<2x48xf32> to vector<2x16xf32>
    %252 = vector.extract_strided_slice %241 {offsets = [0, 16], sizes = [2, 16], strides = [1, 1]} : vector<2x48xf32> to vector<2x16xf32>
    %253 = arith.addf %251, %252 : vector<2x16xf32>
    %254 = arith.negf %253 : vector<2x16xf32>
    %255 = math.exp %254 : vector<2x16xf32>
    %cst_49 = arith.constant 1.000000e+00 : f32
    %256 = vector.broadcast %cst_49 : f32 to vector<2x16xf32>
    %257 = arith.addf %256, %255 : vector<2x16xf32>
    %258 = arith.divf %256, %257 : vector<2x16xf32>
    %259 = vector.extract_strided_slice %240 {offsets = [0, 32], sizes = [2, 16], strides = [1, 1]} : vector<2x48xf32> to vector<2x16xf32>
    %260 = vector.extract_strided_slice %241 {offsets = [0, 32], sizes = [2, 16], strides = [1, 1]} : vector<2x48xf32> to vector<2x16xf32>
    %261 = arith.mulf %250, %260 : vector<2x16xf32>
    %262 = arith.addf %259, %261 : vector<2x16xf32>
    %263 = math.tanh %262 : vector<2x16xf32>
    %cst_50 = arith.constant 1.000000e+00 : f32
    %264 = vector.broadcast %cst_50 : f32 to vector<2x16xf32>
    %265 = arith.subf %264, %258 : vector<2x16xf32>
    %266 = arith.mulf %265, %263 : vector<2x16xf32>
    %267 = arith.mulf %258, %242 : vector<2x16xf32>
    %268 = arith.addf %266, %267 : vector<2x16xf32>
    %269 = vector.extract_strided_slice %15 {offsets = [12, 0, 0], sizes = [1, 2, 96], strides = [1, 1, 1]} : vector<16x2x96xf32> to vector<1x2x96xf32>
    %270 = vector.shape_cast %269 : vector<1x2x96xf32> to vector<2x96xf32>
    %271 = vector.extract_strided_slice %270 {offsets = [0, 48], sizes = [2, 48], strides = [1, 1]} : vector<2x96xf32> to vector<2x48xf32>
    %272 = vector.extract_strided_slice %237 {offsets = [0, 48], sizes = [2, 48], strides = [1, 1]} : vector<2x96xf32> to vector<2x48xf32>
    %273 = vector.extract_strided_slice %228 {offsets = [0, 16], sizes = [2, 16], strides = [1, 1]} : vector<2x32xf32> to vector<2x16xf32>
    %274 = vector.extract_strided_slice %271 {offsets = [0, 0], sizes = [2, 16], strides = [1, 1]} : vector<2x48xf32> to vector<2x16xf32>
    %275 = vector.extract_strided_slice %272 {offsets = [0, 0], sizes = [2, 16], strides = [1, 1]} : vector<2x48xf32> to vector<2x16xf32>
    %276 = arith.addf %274, %275 : vector<2x16xf32>
    %277 = arith.negf %276 : vector<2x16xf32>
    %278 = math.exp %277 : vector<2x16xf32>
    %cst_51 = arith.constant 1.000000e+00 : f32
    %279 = vector.broadcast %cst_51 : f32 to vector<2x16xf32>
    %280 = arith.addf %279, %278 : vector<2x16xf32>
    %281 = arith.divf %279, %280 : vector<2x16xf32>
    %282 = vector.extract_strided_slice %271 {offsets = [0, 16], sizes = [2, 16], strides = [1, 1]} : vector<2x48xf32> to vector<2x16xf32>
    %283 = vector.extract_strided_slice %272 {offsets = [0, 16], sizes = [2, 16], strides = [1, 1]} : vector<2x48xf32> to vector<2x16xf32>
    %284 = arith.addf %282, %283 : vector<2x16xf32>
    %285 = arith.negf %284 : vector<2x16xf32>
    %286 = math.exp %285 : vector<2x16xf32>
    %cst_52 = arith.constant 1.000000e+00 : f32
    %287 = vector.broadcast %cst_52 : f32 to vector<2x16xf32>
    %288 = arith.addf %287, %286 : vector<2x16xf32>
    %289 = arith.divf %287, %288 : vector<2x16xf32>
    %290 = vector.extract_strided_slice %271 {offsets = [0, 32], sizes = [2, 16], strides = [1, 1]} : vector<2x48xf32> to vector<2x16xf32>
    %291 = vector.extract_strided_slice %272 {offsets = [0, 32], sizes = [2, 16], strides = [1, 1]} : vector<2x48xf32> to vector<2x16xf32>
    %292 = arith.mulf %281, %291 : vector<2x16xf32>
    %293 = arith.addf %290, %292 : vector<2x16xf32>
    %294 = math.tanh %293 : vector<2x16xf32>
    %cst_53 = arith.constant 1.000000e+00 : f32
    %295 = vector.broadcast %cst_53 : f32 to vector<2x16xf32>
    %296 = arith.subf %295, %289 : vector<2x16xf32>
    %297 = arith.mulf %296, %294 : vector<2x16xf32>
    %298 = arith.mulf %289, %273 : vector<2x16xf32>
    %299 = arith.addf %297, %298 : vector<2x16xf32>
    %300 = tpu.concatenate %268, %299 in 1 : vector<2x16xf32>, vector<2x16xf32> -> vector<2x32xf32>
    %c3 = arith.constant 3 : index
    %c0_54 = arith.constant 0 : index
    %c0_55 = arith.constant 0 : index
    %301 = vector.load %arg19[%c3, %c0_54, %c0_55] : memref<16x2x16xf32, #tpu.memory_space<vmem>>, vector<1x2x16xf32>
    %302 = vector.shape_cast %301 : vector<1x2x16xf32> to vector<2x16xf32>
    %303 = vector.shape_cast %268 : vector<2x16xf32> to vector<1x2x16xf32>
    tpu.vector_store %arg19[%c3, %c0_54, %c0_55], %303 {strides = array<i32>} : memref<16x2x16xf32, #tpu.memory_space<vmem>>, vector<1x2x16xf32>,
    %c12 = arith.constant 12 : index
    %c0_56 = arith.constant 0 : index
    %c0_57 = arith.constant 0 : index
    %304 = vector.load %arg20[%c12, %c0_56, %c0_57] : memref<16x2x16xf32, #tpu.memory_space<vmem>>, vector<1x2x16xf32>
    %305 = vector.shape_cast %304 : vector<1x2x16xf32> to vector<2x16xf32>
    %306 = vector.shape_cast %299 : vector<2x16xf32> to vector<1x2x16xf32>
    tpu.vector_store %arg20[%c12, %c0_56, %c0_57], %306 {strides = array<i32>} : memref<16x2x16xf32, #tpu.memory_space<vmem>>, vector<1x2x16xf32>,
    %cst_58 = arith.constant dense<0.000000e+00> : vector<2x96xf32>
    %307 = tpu.matmul %300, %16, %cst_58 {dimension_numbers = #tpu.dot_dimension_numbers<[1], [0], [0], [1], [0, 0, 1, 1], [], []>} : vector<2x32xf32>, vector<32x96xf32>, vector<2x96xf32> -> vector<2x96xf32>
    %308 = vector.broadcast %17 : vector<1x96xf32> to vector<2x96xf32>
    %309 = arith.addf %307, %308 : vector<2x96xf32>
    %310 = vector.extract_strided_slice %15 {offsets = [4, 0, 0], sizes = [1, 2, 96], strides = [1, 1, 1]} : vector<16x2x96xf32> to vector<1x2x96xf32>
    %311 = vector.shape_cast %310 : vector<1x2x96xf32> to vector<2x96xf32>
    %312 = vector.extract_strided_slice %311 {offsets = [0, 0], sizes = [2, 48], strides = [1, 1]} : vector<2x96xf32> to vector<2x48xf32>
    %313 = vector.extract_strided_slice %309 {offsets = [0, 0], sizes = [2, 48], strides = [1, 1]} : vector<2x96xf32> to vector<2x48xf32>
    %314 = vector.extract_strided_slice %300 {offsets = [0, 0], sizes = [2, 16], strides = [1, 1]} : vector<2x32xf32> to vector<2x16xf32>
    %315 = vector.extract_strided_slice %312 {offsets = [0, 0], sizes = [2, 16], strides = [1, 1]} : vector<2x48xf32> to vector<2x16xf32>
    %316 = vector.extract_strided_slice %313 {offsets = [0, 0], sizes = [2, 16], strides = [1, 1]} : vector<2x48xf32> to vector<2x16xf32>
    %317 = arith.addf %315, %316 : vector<2x16xf32>
    %318 = arith.negf %317 : vector<2x16xf32>
    %319 = math.exp %318 : vector<2x16xf32>
    %cst_59 = arith.constant 1.000000e+00 : f32
    %320 = vector.broadcast %cst_59 : f32 to vector<2x16xf32>
    %321 = arith.addf %320, %319 : vector<2x16xf32>
    %322 = arith.divf %320, %321 : vector<2x16xf32>
    %323 = vector.extract_strided_slice %312 {offsets = [0, 16], sizes = [2, 16], strides = [1, 1]} : vector<2x48xf32> to vector<2x16xf32>
    %324 = vector.extract_strided_slice %313 {offsets = [0, 16], sizes = [2, 16], strides = [1, 1]} : vector<2x48xf32> to vector<2x16xf32>
    %325 = arith.addf %323, %324 : vector<2x16xf32>
    %326 = arith.negf %325 : vector<2x16xf32>
    %327 = math.exp %326 : vector<2x16xf32>
    %cst_60 = arith.constant 1.000000e+00 : f32
    %328 = vector.broadcast %cst_60 : f32 to vector<2x16xf32>
    %329 = arith.addf %328, %327 : vector<2x16xf32>
    %330 = arith.divf %328, %329 : vector<2x16xf32>
    %331 = vector.extract_strided_slice %312 {offsets = [0, 32], sizes = [2, 16], strides = [1, 1]} : vector<2x48xf32> to vector<2x16xf32>
    %332 = vector.extract_strided_slice %313 {offsets = [0, 32], sizes = [2, 16], strides = [1, 1]} : vector<2x48xf32> to vector<2x16xf32>
    %333 = arith.mulf %322, %332 : vector<2x16xf32>
    %334 = arith.addf %331, %333 : vector<2x16xf32>
    %335 = math.tanh %334 : vector<2x16xf32>
    %cst_61 = arith.constant 1.000000e+00 : f32
    %336 = vector.broadcast %cst_61 : f32 to vector<2x16xf32>
    %337 = arith.subf %336, %330 : vector<2x16xf32>
    %338 = arith.mulf %337, %335 : vector<2x16xf32>
    %339 = arith.mulf %330, %314 : vector<2x16xf32>
    %340 = arith.addf %338, %339 : vector<2x16xf32>
    %341 = vector.extract_strided_slice %15 {offsets = [11, 0, 0], sizes = [1, 2, 96], strides = [1, 1, 1]} : vector<16x2x96xf32> to vector<1x2x96xf32>
    %342 = vector.shape_cast %341 : vector<1x2x96xf32> to vector<2x96xf32>
    %343 = vector.extract_strided_slice %342 {offsets = [0, 48], sizes = [2, 48], strides = [1, 1]} : vector<2x96xf32> to vector<2x48xf32>
    %344 = vector.extract_strided_slice %309 {offsets = [0, 48], sizes = [2, 48], strides = [1, 1]} : vector<2x96xf32> to vector<2x48xf32>
    %345 = vector.extract_strided_slice %300 {offsets = [0, 16], sizes = [2, 16], strides = [1, 1]} : vector<2x32xf32> to vector<2x16xf32>
    %346 = vector.extract_strided_slice %343 {offsets = [0, 0], sizes = [2, 16], strides = [1, 1]} : vector<2x48xf32> to vector<2x16xf32>
    %347 = vector.extract_strided_slice %344 {offsets = [0, 0], sizes = [2, 16], strides = [1, 1]} : vector<2x48xf32> to vector<2x16xf32>
    %348 = arith.addf %346, %347 : vector<2x16xf32>
    %349 = arith.negf %348 : vector<2x16xf32>
    %350 = math.exp %349 : vector<2x16xf32>
    %cst_62 = arith.constant 1.000000e+00 : f32
    %351 = vector.broadcast %cst_62 : f32 to vector<2x16xf32>
    %352 = arith.addf %351, %350 : vector<2x16xf32>
    %353 = arith.divf %351, %352 : vector<2x16xf32>
    %354 = vector.extract_strided_slice %343 {offsets = [0, 16], sizes = [2, 16], strides = [1, 1]} : vector<2x48xf32> to vector<2x16xf32>
    %355 = vector.extract_strided_slice %344 {offsets = [0, 16], sizes = [2, 16], strides = [1, 1]} : vector<2x48xf32> to vector<2x16xf32>
    %356 = arith.addf %354, %355 : vector<2x16xf32>
    %357 = arith.negf %356 : vector<2x16xf32>
    %358 = math.exp %357 : vector<2x16xf32>
    %cst_63 = arith.constant 1.000000e+00 : f32
    %359 = vector.broadcast %cst_63 : f32 to vector<2x16xf32>
    %360 = arith.addf %359, %358 : vector<2x16xf32>
    %361 = arith.divf %359, %360 : vector<2x16xf32>
    %362 = vector.extract_strided_slice %343 {offsets = [0, 32], sizes = [2, 16], strides = [1, 1]} : vector<2x48xf32> to vector<2x16xf32>
    %363 = vector.extract_strided_slice %344 {offsets = [0, 32], sizes = [2, 16], strides = [1, 1]} : vector<2x48xf32> to vector<2x16xf32>
    %364 = arith.mulf %353, %363 : vector<2x16xf32>
    %365 = arith.addf %362, %364 : vector<2x16xf32>
    %366 = math.tanh %365 : vector<2x16xf32>
    %cst_64 = arith.constant 1.000000e+00 : f32
    %367 = vector.broadcast %cst_64 : f32 to vector<2x16xf32>
    %368 = arith.subf %367, %361 : vector<2x16xf32>
    %369 = arith.mulf %368, %366 : vector<2x16xf32>
    %370 = arith.mulf %361, %345 : vector<2x16xf32>
    %371 = arith.addf %369, %370 : vector<2x16xf32>
    %372 = tpu.concatenate %340, %371 in 1 : vector<2x16xf32>, vector<2x16xf32> -> vector<2x32xf32>
    %c4 = arith.constant 4 : index
    %c0_65 = arith.constant 0 : index
    %c0_66 = arith.constant 0 : index
    %373 = vector.load %arg19[%c4, %c0_65, %c0_66] : memref<16x2x16xf32, #tpu.memory_space<vmem>>, vector<1x2x16xf32>
    %374 = vector.shape_cast %373 : vector<1x2x16xf32> to vector<2x16xf32>
    %375 = vector.shape_cast %340 : vector<2x16xf32> to vector<1x2x16xf32>
    tpu.vector_store %arg19[%c4, %c0_65, %c0_66], %375 {strides = array<i32>} : memref<16x2x16xf32, #tpu.memory_space<vmem>>, vector<1x2x16xf32>,
    %c11 = arith.constant 11 : index
    %c0_67 = arith.constant 0 : index
    %c0_68 = arith.constant 0 : index
    %376 = vector.load %arg20[%c11, %c0_67, %c0_68] : memref<16x2x16xf32, #tpu.memory_space<vmem>>, vector<1x2x16xf32>
    %377 = vector.shape_cast %376 : vector<1x2x16xf32> to vector<2x16xf32>
    %378 = vector.shape_cast %371 : vector<2x16xf32> to vector<1x2x16xf32>
    tpu.vector_store %arg20[%c11, %c0_67, %c0_68], %378 {strides = array<i32>} : memref<16x2x16xf32, #tpu.memory_space<vmem>>, vector<1x2x16xf32>,
    %cst_69 = arith.constant dense<0.000000e+00> : vector<2x96xf32>
    %379 = tpu.matmul %372, %16, %cst_69 {dimension_numbers = #tpu.dot_dimension_numbers<[1], [0], [0], [1], [0, 0, 1, 1], [], []>} : vector<2x32xf32>, vector<32x96xf32>, vector<2x96xf32> -> vector<2x96xf32>
    %380 = vector.broadcast %17 : vector<1x96xf32> to vector<2x96xf32>
    %381 = arith.addf %379, %380 : vector<2x96xf32>
    %382 = vector.extract_strided_slice %15 {offsets = [5, 0, 0], sizes = [1, 2, 96], strides = [1, 1, 1]} : vector<16x2x96xf32> to vector<1x2x96xf32>
    %383 = vector.shape_cast %382 : vector<1x2x96xf32> to vector<2x96xf32>
    %384 = vector.extract_strided_slice %383 {offsets = [0, 0], sizes = [2, 48], strides = [1, 1]} : vector<2x96xf32> to vector<2x48xf32>
    %385 = vector.extract_strided_slice %381 {offsets = [0, 0], sizes = [2, 48], strides = [1, 1]} : vector<2x96xf32> to vector<2x48xf32>
    %386 = vector.extract_strided_slice %372 {offsets = [0, 0], sizes = [2, 16], strides = [1, 1]} : vector<2x32xf32> to vector<2x16xf32>
    %387 = vector.extract_strided_slice %384 {offsets = [0, 0], sizes = [2, 16], strides = [1, 1]} : vector<2x48xf32> to vector<2x16xf32>
    %388 = vector.extract_strided_slice %385 {offsets = [0, 0], sizes = [2, 16], strides = [1, 1]} : vector<2x48xf32> to vector<2x16xf32>
    %389 = arith.addf %387, %388 : vector<2x16xf32>
    %390 = arith.negf %389 : vector<2x16xf32>
    %391 = math.exp %390 : vector<2x16xf32>
    %cst_70 = arith.constant 1.000000e+00 : f32
    %392 = vector.broadcast %cst_70 : f32 to vector<2x16xf32>
    %393 = arith.addf %392, %391 : vector<2x16xf32>
    %394 = arith.divf %392, %393 : vector<2x16xf32>
    %395 = vector.extract_strided_slice %384 {offsets = [0, 16], sizes = [2, 16], strides = [1, 1]} : vector<2x48xf32> to vector<2x16xf32>
    %396 = vector.extract_strided_slice %385 {offsets = [0, 16], sizes = [2, 16], strides = [1, 1]} : vector<2x48xf32> to vector<2x16xf32>
    %397 = arith.addf %395, %396 : vector<2x16xf32>
    %398 = arith.negf %397 : vector<2x16xf32>
    %399 = math.exp %398 : vector<2x16xf32>
    %cst_71 = arith.constant 1.000000e+00 : f32
    %400 = vector.broadcast %cst_71 : f32 to vector<2x16xf32>
    %401 = arith.addf %400, %399 : vector<2x16xf32>
    %402 = arith.divf %400, %401 : vector<2x16xf32>
    %403 = vector.extract_strided_slice %384 {offsets = [0, 32], sizes = [2, 16], strides = [1, 1]} : vector<2x48xf32> to vector<2x16xf32>
    %404 = vector.extract_strided_slice %385 {offsets = [0, 32], sizes = [2, 16], strides = [1, 1]} : vector<2x48xf32> to vector<2x16xf32>
    %405 = arith.mulf %394, %404 : vector<2x16xf32>
    %406 = arith.addf %403, %405 : vector<2x16xf32>
    %407 = math.tanh %406 : vector<2x16xf32>
    %cst_72 = arith.constant 1.000000e+00 : f32
    %408 = vector.broadcast %cst_72 : f32 to vector<2x16xf32>
    %409 = arith.subf %408, %402 : vector<2x16xf32>
    %410 = arith.mulf %409, %407 : vector<2x16xf32>
    %411 = arith.mulf %402, %386 : vector<2x16xf32>
    %412 = arith.addf %410, %411 : vector<2x16xf32>
    %413 = vector.extract_strided_slice %15 {offsets = [10, 0, 0], sizes = [1, 2, 96], strides = [1, 1, 1]} : vector<16x2x96xf32> to vector<1x2x96xf32>
    %414 = vector.shape_cast %413 : vector<1x2x96xf32> to vector<2x96xf32>
    %415 = vector.extract_strided_slice %414 {offsets = [0, 48], sizes = [2, 48], strides = [1, 1]} : vector<2x96xf32> to vector<2x48xf32>
    %416 = vector.extract_strided_slice %381 {offsets = [0, 48], sizes = [2, 48], strides = [1, 1]} : vector<2x96xf32> to vector<2x48xf32>
    %417 = vector.extract_strided_slice %372 {offsets = [0, 16], sizes = [2, 16], strides = [1, 1]} : vector<2x32xf32> to vector<2x16xf32>
    %418 = vector.extract_strided_slice %415 {offsets = [0, 0], sizes = [2, 16], strides = [1, 1]} : vector<2x48xf32> to vector<2x16xf32>
    %419 = vector.extract_strided_slice %416 {offsets = [0, 0], sizes = [2, 16], strides = [1, 1]} : vector<2x48xf32> to vector<2x16xf32>
    %420 = arith.addf %418, %419 : vector<2x16xf32>
    %421 = arith.negf %420 : vector<2x16xf32>
    %422 = math.exp %421 : vector<2x16xf32>
    %cst_73 = arith.constant 1.000000e+00 : f32
    %423 = vector.broadcast %cst_73 : f32 to vector<2x16xf32>
    %424 = arith.addf %423, %422 : vector<2x16xf32>
    %425 = arith.divf %423, %424 : vector<2x16xf32>
    %426 = vector.extract_strided_slice %415 {offsets = [0, 16], sizes = [2, 16], strides = [1, 1]} : vector<2x48xf32> to vector<2x16xf32>
    %427 = vector.extract_strided_slice %416 {offsets = [0, 16], sizes = [2, 16], strides = [1, 1]} : vector<2x48xf32> to vector<2x16xf32>
    %428 = arith.addf %426, %427 : vector<2x16xf32>
    %429 = arith.negf %428 : vector<2x16xf32>
    %430 = math.exp %429 : vector<2x16xf32>
    %cst_74 = arith.constant 1.000000e+00 : f32
    %431 = vector.broadcast %cst_74 : f32 to vector<2x16xf32>
    %432 = arith.addf %431, %430 : vector<2x16xf32>
    %433 = arith.divf %431, %432 : vector<2x16xf32>
    %434 = vector.extract_strided_slice %415 {offsets = [0, 32], sizes = [2, 16], strides = [1, 1]} : vector<2x48xf32> to vector<2x16xf32>
    %435 = vector.extract_strided_slice %416 {offsets = [0, 32], sizes = [2, 16], strides = [1, 1]} : vector<2x48xf32> to vector<2x16xf32>
    %436 = arith.mulf %425, %435 : vector<2x16xf32>
    %437 = arith.addf %434, %436 : vector<2x16xf32>
    %438 = math.tanh %437 : vector<2x16xf32>
    %cst_75 = arith.constant 1.000000e+00 : f32
    %439 = vector.broadcast %cst_75 : f32 to vector<2x16xf32>
    %440 = arith.subf %439, %433 : vector<2x16xf32>
    %441 = arith.mulf %440, %438 : vector<2x16xf32>
    %442 = arith.mulf %433, %417 : vector<2x16xf32>
    %443 = arith.addf %441, %442 : vector<2x16xf32>
    %444 = tpu.concatenate %412, %443 in 1 : vector<2x16xf32>, vector<2x16xf32> -> vector<2x32xf32>
    %c5 = arith.constant 5 : index
    %c0_76 = arith.constant 0 : index
    %c0_77 = arith.constant 0 : index
    %445 = vector.load %arg19[%c5, %c0_76, %c0_77] : memref<16x2x16xf32, #tpu.memory_space<vmem>>, vector<1x2x16xf32>
    %446 = vector.shape_cast %445 : vector<1x2x16xf32> to vector<2x16xf32>
    %447 = vector.shape_cast %412 : vector<2x16xf32> to vector<1x2x16xf32>
    tpu.vector_store %arg19[%c5, %c0_76, %c0_77], %447 {strides = array<i32>} : memref<16x2x16xf32, #tpu.memory_space<vmem>>, vector<1x2x16xf32>,
    %c10 = arith.constant 10 : index
    %c0_78 = arith.constant 0 : index
    %c0_79 = arith.constant 0 : index
    %448 = vector.load %arg20[%c10, %c0_78, %c0_79] : memref<16x2x16xf32, #tpu.memory_space<vmem>>, vector<1x2x16xf32>
    %449 = vector.shape_cast %448 : vector<1x2x16xf32> to vector<2x16xf32>
    %450 = vector.shape_cast %443 : vector<2x16xf32> to vector<1x2x16xf32>
    tpu.vector_store %arg20[%c10, %c0_78, %c0_79], %450 {strides = array<i32>} : memref<16x2x16xf32, #tpu.memory_space<vmem>>, vector<1x2x16xf32>,
    %cst_80 = arith.constant dense<0.000000e+00> : vector<2x96xf32>
    %451 = tpu.matmul %444, %16, %cst_80 {dimension_numbers = #tpu.dot_dimension_numbers<[1], [0], [0], [1], [0, 0, 1, 1], [], []>} : vector<2x32xf32>, vector<32x96xf32>, vector<2x96xf32> -> vector<2x96xf32>
    %452 = vector.broadcast %17 : vector<1x96xf32> to vector<2x96xf32>
    %453 = arith.addf %451, %452 : vector<2x96xf32>
    %454 = vector.extract_strided_slice %15 {offsets = [6, 0, 0], sizes = [1, 2, 96], strides = [1, 1, 1]} : vector<16x2x96xf32> to vector<1x2x96xf32>
    %455 = vector.shape_cast %454 : vector<1x2x96xf32> to vector<2x96xf32>
    %456 = vector.extract_strided_slice %455 {offsets = [0, 0], sizes = [2, 48], strides = [1, 1]} : vector<2x96xf32> to vector<2x48xf32>
    %457 = vector.extract_strided_slice %453 {offsets = [0, 0], sizes = [2, 48], strides = [1, 1]} : vector<2x96xf32> to vector<2x48xf32>
    %458 = vector.extract_strided_slice %444 {offsets = [0, 0], sizes = [2, 16], strides = [1, 1]} : vector<2x32xf32> to vector<2x16xf32>
    %459 = vector.extract_strided_slice %456 {offsets = [0, 0], sizes = [2, 16], strides = [1, 1]} : vector<2x48xf32> to vector<2x16xf32>
    %460 = vector.extract_strided_slice %457 {offsets = [0, 0], sizes = [2, 16], strides = [1, 1]} : vector<2x48xf32> to vector<2x16xf32>
    %461 = arith.addf %459, %460 : vector<2x16xf32>
    %462 = arith.negf %461 : vector<2x16xf32>
    %463 = math.exp %462 : vector<2x16xf32>
    %cst_81 = arith.constant 1.000000e+00 : f32
    %464 = vector.broadcast %cst_81 : f32 to vector<2x16xf32>
    %465 = arith.addf %464, %463 : vector<2x16xf32>
    %466 = arith.divf %464, %465 : vector<2x16xf32>
    %467 = vector.extract_strided_slice %456 {offsets = [0, 16], sizes = [2, 16], strides = [1, 1]} : vector<2x48xf32> to vector<2x16xf32>
    %468 = vector.extract_strided_slice %457 {offsets = [0, 16], sizes = [2, 16], strides = [1, 1]} : vector<2x48xf32> to vector<2x16xf32>
    %469 = arith.addf %467, %468 : vector<2x16xf32>
    %470 = arith.negf %469 : vector<2x16xf32>
    %471 = math.exp %470 : vector<2x16xf32>
    %cst_82 = arith.constant 1.000000e+00 : f32
    %472 = vector.broadcast %cst_82 : f32 to vector<2x16xf32>
    %473 = arith.addf %472, %471 : vector<2x16xf32>
    %474 = arith.divf %472, %473 : vector<2x16xf32>
    %475 = vector.extract_strided_slice %456 {offsets = [0, 32], sizes = [2, 16], strides = [1, 1]} : vector<2x48xf32> to vector<2x16xf32>
    %476 = vector.extract_strided_slice %457 {offsets = [0, 32], sizes = [2, 16], strides = [1, 1]} : vector<2x48xf32> to vector<2x16xf32>
    %477 = arith.mulf %466, %476 : vector<2x16xf32>
    %478 = arith.addf %475, %477 : vector<2x16xf32>
    %479 = math.tanh %478 : vector<2x16xf32>
    %cst_83 = arith.constant 1.000000e+00 : f32
    %480 = vector.broadcast %cst_83 : f32 to vector<2x16xf32>
    %481 = arith.subf %480, %474 : vector<2x16xf32>
    %482 = arith.mulf %481, %479 : vector<2x16xf32>
    %483 = arith.mulf %474, %458 : vector<2x16xf32>
    %484 = arith.addf %482, %483 : vector<2x16xf32>
    %485 = vector.extract_strided_slice %15 {offsets = [9, 0, 0], sizes = [1, 2, 96], strides = [1, 1, 1]} : vector<16x2x96xf32> to vector<1x2x96xf32>
    %486 = vector.shape_cast %485 : vector<1x2x96xf32> to vector<2x96xf32>
    %487 = vector.extract_strided_slice %486 {offsets = [0, 48], sizes = [2, 48], strides = [1, 1]} : vector<2x96xf32> to vector<2x48xf32>
    %488 = vector.extract_strided_slice %453 {offsets = [0, 48], sizes = [2, 48], strides = [1, 1]} : vector<2x96xf32> to vector<2x48xf32>
    %489 = vector.extract_strided_slice %444 {offsets = [0, 16], sizes = [2, 16], strides = [1, 1]} : vector<2x32xf32> to vector<2x16xf32>
    %490 = vector.extract_strided_slice %487 {offsets = [0, 0], sizes = [2, 16], strides = [1, 1]} : vector<2x48xf32> to vector<2x16xf32>
    %491 = vector.extract_strided_slice %488 {offsets = [0, 0], sizes = [2, 16], strides = [1, 1]} : vector<2x48xf32> to vector<2x16xf32>
    %492 = arith.addf %490, %491 : vector<2x16xf32>
    %493 = arith.negf %492 : vector<2x16xf32>
    %494 = math.exp %493 : vector<2x16xf32>
    %cst_84 = arith.constant 1.000000e+00 : f32
    %495 = vector.broadcast %cst_84 : f32 to vector<2x16xf32>
    %496 = arith.addf %495, %494 : vector<2x16xf32>
    %497 = arith.divf %495, %496 : vector<2x16xf32>
    %498 = vector.extract_strided_slice %487 {offsets = [0, 16], sizes = [2, 16], strides = [1, 1]} : vector<2x48xf32> to vector<2x16xf32>
    %499 = vector.extract_strided_slice %488 {offsets = [0, 16], sizes = [2, 16], strides = [1, 1]} : vector<2x48xf32> to vector<2x16xf32>
    %500 = arith.addf %498, %499 : vector<2x16xf32>
    %501 = arith.negf %500 : vector<2x16xf32>
    %502 = math.exp %501 : vector<2x16xf32>
    %cst_85 = arith.constant 1.000000e+00 : f32
    %503 = vector.broadcast %cst_85 : f32 to vector<2x16xf32>
    %504 = arith.addf %503, %502 : vector<2x16xf32>
    %505 = arith.divf %503, %504 : vector<2x16xf32>
    %506 = vector.extract_strided_slice %487 {offsets = [0, 32], sizes = [2, 16], strides = [1, 1]} : vector<2x48xf32> to vector<2x16xf32>
    %507 = vector.extract_strided_slice %488 {offsets = [0, 32], sizes = [2, 16], strides = [1, 1]} : vector<2x48xf32> to vector<2x16xf32>
    %508 = arith.mulf %497, %507 : vector<2x16xf32>
    %509 = arith.addf %506, %508 : vector<2x16xf32>
    %510 = math.tanh %509 : vector<2x16xf32>
    %cst_86 = arith.constant 1.000000e+00 : f32
    %511 = vector.broadcast %cst_86 : f32 to vector<2x16xf32>
    %512 = arith.subf %511, %505 : vector<2x16xf32>
    %513 = arith.mulf %512, %510 : vector<2x16xf32>
    %514 = arith.mulf %505, %489 : vector<2x16xf32>
    %515 = arith.addf %513, %514 : vector<2x16xf32>
    %516 = tpu.concatenate %484, %515 in 1 : vector<2x16xf32>, vector<2x16xf32> -> vector<2x32xf32>
    %c6 = arith.constant 6 : index
    %c0_87 = arith.constant 0 : index
    %c0_88 = arith.constant 0 : index
    %517 = vector.load %arg19[%c6, %c0_87, %c0_88] : memref<16x2x16xf32, #tpu.memory_space<vmem>>, vector<1x2x16xf32>
    %518 = vector.shape_cast %517 : vector<1x2x16xf32> to vector<2x16xf32>
    %519 = vector.shape_cast %484 : vector<2x16xf32> to vector<1x2x16xf32>
    tpu.vector_store %arg19[%c6, %c0_87, %c0_88], %519 {strides = array<i32>} : memref<16x2x16xf32, #tpu.memory_space<vmem>>, vector<1x2x16xf32>,
    %c9 = arith.constant 9 : index
    %c0_89 = arith.constant 0 : index
    %c0_90 = arith.constant 0 : index
    %520 = vector.load %arg20[%c9, %c0_89, %c0_90] : memref<16x2x16xf32, #tpu.memory_space<vmem>>, vector<1x2x16xf32>
    %521 = vector.shape_cast %520 : vector<1x2x16xf32> to vector<2x16xf32>
    %522 = vector.shape_cast %515 : vector<2x16xf32> to vector<1x2x16xf32>
    tpu.vector_store %arg20[%c9, %c0_89, %c0_90], %522 {strides = array<i32>} : memref<16x2x16xf32, #tpu.memory_space<vmem>>, vector<1x2x16xf32>,
    %cst_91 = arith.constant dense<0.000000e+00> : vector<2x96xf32>
    %523 = tpu.matmul %516, %16, %cst_91 {dimension_numbers = #tpu.dot_dimension_numbers<[1], [0], [0], [1], [0, 0, 1, 1], [], []>} : vector<2x32xf32>, vector<32x96xf32>, vector<2x96xf32> -> vector<2x96xf32>
    %524 = vector.broadcast %17 : vector<1x96xf32> to vector<2x96xf32>
    %525 = arith.addf %523, %524 : vector<2x96xf32>
    %526 = vector.extract_strided_slice %15 {offsets = [7, 0, 0], sizes = [1, 2, 96], strides = [1, 1, 1]} : vector<16x2x96xf32> to vector<1x2x96xf32>
    %527 = vector.shape_cast %526 : vector<1x2x96xf32> to vector<2x96xf32>
    %528 = vector.extract_strided_slice %527 {offsets = [0, 0], sizes = [2, 48], strides = [1, 1]} : vector<2x96xf32> to vector<2x48xf32>
    %529 = vector.extract_strided_slice %525 {offsets = [0, 0], sizes = [2, 48], strides = [1, 1]} : vector<2x96xf32> to vector<2x48xf32>
    %530 = vector.extract_strided_slice %516 {offsets = [0, 0], sizes = [2, 16], strides = [1, 1]} : vector<2x32xf32> to vector<2x16xf32>
    %531 = vector.extract_strided_slice %528 {offsets = [0, 0], sizes = [2, 16], strides = [1, 1]} : vector<2x48xf32> to vector<2x16xf32>
    %532 = vector.extract_strided_slice %529 {offsets = [0, 0], sizes = [2, 16], strides = [1, 1]} : vector<2x48xf32> to vector<2x16xf32>
    %533 = arith.addf %531, %532 : vector<2x16xf32>
    %534 = arith.negf %533 : vector<2x16xf32>
    %535 = math.exp %534 : vector<2x16xf32>
    %cst_92 = arith.constant 1.000000e+00 : f32
    %536 = vector.broadcast %cst_92 : f32 to vector<2x16xf32>
    %537 = arith.addf %536, %535 : vector<2x16xf32>
    %538 = arith.divf %536, %537 : vector<2x16xf32>
    %539 = vector.extract_strided_slice %528 {offsets = [0, 16], sizes = [2, 16], strides = [1, 1]} : vector<2x48xf32> to vector<2x16xf32>
    %540 = vector.extract_strided_slice %529 {offsets = [0, 16], sizes = [2, 16], strides = [1, 1]} : vector<2x48xf32> to vector<2x16xf32>
    %541 = arith.addf %539, %540 : vector<2x16xf32>
    %542 = arith.negf %541 : vector<2x16xf32>
    %543 = math.exp %542 : vector<2x16xf32>
    %cst_93 = arith.constant 1.000000e+00 : f32
    %544 = vector.broadcast %cst_93 : f32 to vector<2x16xf32>
    %545 = arith.addf %544, %543 : vector<2x16xf32>
    %546 = arith.divf %544, %545 : vector<2x16xf32>
    %547 = vector.extract_strided_slice %528 {offsets = [0, 32], sizes = [2, 16], strides = [1, 1]} : vector<2x48xf32> to vector<2x16xf32>
    %548 = vector.extract_strided_slice %529 {offsets = [0, 32], sizes = [2, 16], strides = [1, 1]} : vector<2x48xf32> to vector<2x16xf32>
    %549 = arith.mulf %538, %548 : vector<2x16xf32>
    %550 = arith.addf %547, %549 : vector<2x16xf32>
    %551 = math.tanh %550 : vector<2x16xf32>
    %cst_94 = arith.constant 1.000000e+00 : f32
    %552 = vector.broadcast %cst_94 : f32 to vector<2x16xf32>
    %553 = arith.subf %552, %546 : vector<2x16xf32>
    %554 = arith.mulf %553, %551 : vector<2x16xf32>
    %555 = arith.mulf %546, %530 : vector<2x16xf32>
    %556 = arith.addf %554, %555 : vector<2x16xf32>
    %557 = vector.extract_strided_slice %15 {offsets = [8, 0, 0], sizes = [1, 2, 96], strides = [1, 1, 1]} : vector<16x2x96xf32> to vector<1x2x96xf32>
    %558 = vector.shape_cast %557 : vector<1x2x96xf32> to vector<2x96xf32>
    %559 = vector.extract_strided_slice %558 {offsets = [0, 48], sizes = [2, 48], strides = [1, 1]} : vector<2x96xf32> to vector<2x48xf32>
    %560 = vector.extract_strided_slice %525 {offsets = [0, 48], sizes = [2, 48], strides = [1, 1]} : vector<2x96xf32> to vector<2x48xf32>
    %561 = vector.extract_strided_slice %516 {offsets = [0, 16], sizes = [2, 16], strides = [1, 1]} : vector<2x32xf32> to vector<2x16xf32>
    %562 = vector.extract_strided_slice %559 {offsets = [0, 0], sizes = [2, 16], strides = [1, 1]} : vector<2x48xf32> to vector<2x16xf32>
    %563 = vector.extract_strided_slice %560 {offsets = [0, 0], sizes = [2, 16], strides = [1, 1]} : vector<2x48xf32> to vector<2x16xf32>
    %564 = arith.addf %562, %563 : vector<2x16xf32>
    %565 = arith.negf %564 : vector<2x16xf32>
    %566 = math.exp %565 : vector<2x16xf32>
    %cst_95 = arith.constant 1.000000e+00 : f32
    %567 = vector.broadcast %cst_95 : f32 to vector<2x16xf32>
    %568 = arith.addf %567, %566 : vector<2x16xf32>
    %569 = arith.divf %567, %568 : vector<2x16xf32>
    %570 = vector.extract_strided_slice %559 {offsets = [0, 16], sizes = [2, 16], strides = [1, 1]} : vector<2x48xf32> to vector<2x16xf32>
    %571 = vector.extract_strided_slice %560 {offsets = [0, 16], sizes = [2, 16], strides = [1, 1]} : vector<2x48xf32> to vector<2x16xf32>
    %572 = arith.addf %570, %571 : vector<2x16xf32>
    %573 = arith.negf %572 : vector<2x16xf32>
    %574 = math.exp %573 : vector<2x16xf32>
    %cst_96 = arith.constant 1.000000e+00 : f32
    %575 = vector.broadcast %cst_96 : f32 to vector<2x16xf32>
    %576 = arith.addf %575, %574 : vector<2x16xf32>
    %577 = arith.divf %575, %576 : vector<2x16xf32>
    %578 = vector.extract_strided_slice %559 {offsets = [0, 32], sizes = [2, 16], strides = [1, 1]} : vector<2x48xf32> to vector<2x16xf32>
    %579 = vector.extract_strided_slice %560 {offsets = [0, 32], sizes = [2, 16], strides = [1, 1]} : vector<2x48xf32> to vector<2x16xf32>
    %580 = arith.mulf %569, %579 : vector<2x16xf32>
    %581 = arith.addf %578, %580 : vector<2x16xf32>
    %582 = math.tanh %581 : vector<2x16xf32>
    %cst_97 = arith.constant 1.000000e+00 : f32
    %583 = vector.broadcast %cst_97 : f32 to vector<2x16xf32>
    %584 = arith.subf %583, %577 : vector<2x16xf32>
    %585 = arith.mulf %584, %582 : vector<2x16xf32>
    %586 = arith.mulf %577, %561 : vector<2x16xf32>
    %587 = arith.addf %585, %586 : vector<2x16xf32>
    %588 = tpu.concatenate %556, %587 in 1 : vector<2x16xf32>, vector<2x16xf32> -> vector<2x32xf32>
    %c7 = arith.constant 7 : index
    %c0_98 = arith.constant 0 : index
    %c0_99 = arith.constant 0 : index
    %589 = vector.load %arg19[%c7, %c0_98, %c0_99] : memref<16x2x16xf32, #tpu.memory_space<vmem>>, vector<1x2x16xf32>
    %590 = vector.shape_cast %589 : vector<1x2x16xf32> to vector<2x16xf32>
    %591 = vector.shape_cast %556 : vector<2x16xf32> to vector<1x2x16xf32>
    tpu.vector_store %arg19[%c7, %c0_98, %c0_99], %591 {strides = array<i32>} : memref<16x2x16xf32, #tpu.memory_space<vmem>>, vector<1x2x16xf32>,
    %c8 = arith.constant 8 : index
    %c0_100 = arith.constant 0 : index
    %c0_101 = arith.constant 0 : index
    %592 = vector.load %arg20[%c8, %c0_100, %c0_101] : memref<16x2x16xf32, #tpu.memory_space<vmem>>, vector<1x2x16xf32>
    %593 = vector.shape_cast %592 : vector<1x2x16xf32> to vector<2x16xf32>
    %594 = vector.shape_cast %587 : vector<2x16xf32> to vector<1x2x16xf32>
    tpu.vector_store %arg20[%c8, %c0_100, %c0_101], %594 {strides = array<i32>} : memref<16x2x16xf32, #tpu.memory_space<vmem>>, vector<1x2x16xf32>,
    %cst_102 = arith.constant dense<0.000000e+00> : vector<2x96xf32>
    %595 = tpu.matmul %588, %16, %cst_102 {dimension_numbers = #tpu.dot_dimension_numbers<[1], [0], [0], [1], [0, 0, 1, 1], [], []>} : vector<2x32xf32>, vector<32x96xf32>, vector<2x96xf32> -> vector<2x96xf32>
    %596 = vector.broadcast %17 : vector<1x96xf32> to vector<2x96xf32>
    %597 = arith.addf %595, %596 : vector<2x96xf32>
    %598 = vector.extract_strided_slice %15 {offsets = [8, 0, 0], sizes = [1, 2, 96], strides = [1, 1, 1]} : vector<16x2x96xf32> to vector<1x2x96xf32>
    %599 = vector.shape_cast %598 : vector<1x2x96xf32> to vector<2x96xf32>
    %600 = vector.extract_strided_slice %599 {offsets = [0, 0], sizes = [2, 48], strides = [1, 1]} : vector<2x96xf32> to vector<2x48xf32>
    %601 = vector.extract_strided_slice %597 {offsets = [0, 0], sizes = [2, 48], strides = [1, 1]} : vector<2x96xf32> to vector<2x48xf32>
    %602 = vector.extract_strided_slice %588 {offsets = [0, 0], sizes = [2, 16], strides = [1, 1]} : vector<2x32xf32> to vector<2x16xf32>
    %603 = vector.extract_strided_slice %600 {offsets = [0, 0], sizes = [2, 16], strides = [1, 1]} : vector<2x48xf32> to vector<2x16xf32>
    %604 = vector.extract_strided_slice %601 {offsets = [0, 0], sizes = [2, 16], strides = [1, 1]} : vector<2x48xf32> to vector<2x16xf32>
    %605 = arith.addf %603, %604 : vector<2x16xf32>
    %606 = arith.negf %605 : vector<2x16xf32>
    %607 = math.exp %606 : vector<2x16xf32>
    %cst_103 = arith.constant 1.000000e+00 : f32
    %608 = vector.broadcast %cst_103 : f32 to vector<2x16xf32>
    %609 = arith.addf %608, %607 : vector<2x16xf32>
    %610 = arith.divf %608, %609 : vector<2x16xf32>
    %611 = vector.extract_strided_slice %600 {offsets = [0, 16], sizes = [2, 16], strides = [1, 1]} : vector<2x48xf32> to vector<2x16xf32>
    %612 = vector.extract_strided_slice %601 {offsets = [0, 16], sizes = [2, 16], strides = [1, 1]} : vector<2x48xf32> to vector<2x16xf32>
    %613 = arith.addf %611, %612 : vector<2x16xf32>
    %614 = arith.negf %613 : vector<2x16xf32>
    %615 = math.exp %614 : vector<2x16xf32>
    %cst_104 = arith.constant 1.000000e+00 : f32
    %616 = vector.broadcast %cst_104 : f32 to vector<2x16xf32>
    %617 = arith.addf %616, %615 : vector<2x16xf32>
    %618 = arith.divf %616, %617 : vector<2x16xf32>
    %619 = vector.extract_strided_slice %600 {offsets = [0, 32], sizes = [2, 16], strides = [1, 1]} : vector<2x48xf32> to vector<2x16xf32>
    %620 = vector.extract_strided_slice %601 {offsets = [0, 32], sizes = [2, 16], strides = [1, 1]} : vector<2x48xf32> to vector<2x16xf32>
    %621 = arith.mulf %610, %620 : vector<2x16xf32>
    %622 = arith.addf %619, %621 : vector<2x16xf32>
    %623 = math.tanh %622 : vector<2x16xf32>
    %cst_105 = arith.constant 1.000000e+00 : f32
    %624 = vector.broadcast %cst_105 : f32 to vector<2x16xf32>
    %625 = arith.subf %624, %618 : vector<2x16xf32>
    %626 = arith.mulf %625, %623 : vector<2x16xf32>
    %627 = arith.mulf %618, %602 : vector<2x16xf32>
    %628 = arith.addf %626, %627 : vector<2x16xf32>
    %629 = vector.extract_strided_slice %15 {offsets = [7, 0, 0], sizes = [1, 2, 96], strides = [1, 1, 1]} : vector<16x2x96xf32> to vector<1x2x96xf32>
    %630 = vector.shape_cast %629 : vector<1x2x96xf32> to vector<2x96xf32>
    %631 = vector.extract_strided_slice %630 {offsets = [0, 48], sizes = [2, 48], strides = [1, 1]} : vector<2x96xf32> to vector<2x48xf32>
    %632 = vector.extract_strided_slice %597 {offsets = [0, 48], sizes = [2, 48], strides = [1, 1]} : vector<2x96xf32> to vector<2x48xf32>
    %633 = vector.extract_strided_slice %588 {offsets = [0, 16], sizes = [2, 16], strides = [1, 1]} : vector<2x32xf32> to vector<2x16xf32>
    %634 = vector.extract_strided_slice %631 {offsets = [0, 0], sizes = [2, 16], strides = [1, 1]} : vector<2x48xf32> to vector<2x16xf32>
    %635 = vector.extract_strided_slice %632 {offsets = [0, 0], sizes = [2, 16], strides = [1, 1]} : vector<2x48xf32> to vector<2x16xf32>
    %636 = arith.addf %634, %635 : vector<2x16xf32>
    %637 = arith.negf %636 : vector<2x16xf32>
    %638 = math.exp %637 : vector<2x16xf32>
    %cst_106 = arith.constant 1.000000e+00 : f32
    %639 = vector.broadcast %cst_106 : f32 to vector<2x16xf32>
    %640 = arith.addf %639, %638 : vector<2x16xf32>
    %641 = arith.divf %639, %640 : vector<2x16xf32>
    %642 = vector.extract_strided_slice %631 {offsets = [0, 16], sizes = [2, 16], strides = [1, 1]} : vector<2x48xf32> to vector<2x16xf32>
    %643 = vector.extract_strided_slice %632 {offsets = [0, 16], sizes = [2, 16], strides = [1, 1]} : vector<2x48xf32> to vector<2x16xf32>
    %644 = arith.addf %642, %643 : vector<2x16xf32>
    %645 = arith.negf %644 : vector<2x16xf32>
    %646 = math.exp %645 : vector<2x16xf32>
    %cst_107 = arith.constant 1.000000e+00 : f32
    %647 = vector.broadcast %cst_107 : f32 to vector<2x16xf32>
    %648 = arith.addf %647, %646 : vector<2x16xf32>
    %649 = arith.divf %647, %648 : vector<2x16xf32>
    %650 = vector.extract_strided_slice %631 {offsets = [0, 32], sizes = [2, 16], strides = [1, 1]} : vector<2x48xf32> to vector<2x16xf32>
    %651 = vector.extract_strided_slice %632 {offsets = [0, 32], sizes = [2, 16], strides = [1, 1]} : vector<2x48xf32> to vector<2x16xf32>
    %652 = arith.mulf %641, %651 : vector<2x16xf32>
    %653 = arith.addf %650, %652 : vector<2x16xf32>
    %654 = math.tanh %653 : vector<2x16xf32>
    %cst_108 = arith.constant 1.000000e+00 : f32
    %655 = vector.broadcast %cst_108 : f32 to vector<2x16xf32>
    %656 = arith.subf %655, %649 : vector<2x16xf32>
    %657 = arith.mulf %656, %654 : vector<2x16xf32>
    %658 = arith.mulf %649, %633 : vector<2x16xf32>
    %659 = arith.addf %657, %658 : vector<2x16xf32>
    %660 = tpu.concatenate %628, %659 in 1 : vector<2x16xf32>, vector<2x16xf32> -> vector<2x32xf32>
    %c8_109 = arith.constant 8 : index
    %c0_110 = arith.constant 0 : index
    %c0_111 = arith.constant 0 : index
    %661 = vector.load %arg19[%c8_109, %c0_110, %c0_111] : memref<16x2x16xf32, #tpu.memory_space<vmem>>, vector<1x2x16xf32>
    %662 = vector.shape_cast %661 : vector<1x2x16xf32> to vector<2x16xf32>
    %663 = vector.shape_cast %628 : vector<2x16xf32> to vector<1x2x16xf32>
    tpu.vector_store %arg19[%c8_109, %c0_110, %c0_111], %663 {strides = array<i32>} : memref<16x2x16xf32, #tpu.memory_space<vmem>>, vector<1x2x16xf32>,
    %c7_112 = arith.constant 7 : index
    %c0_113 = arith.constant 0 : index
    %c0_114 = arith.constant 0 : index
    %664 = vector.load %arg20[%c7_112, %c0_113, %c0_114] : memref<16x2x16xf32, #tpu.memory_space<vmem>>, vector<1x2x16xf32>
    %665 = vector.shape_cast %664 : vector<1x2x16xf32> to vector<2x16xf32>
    %666 = vector.shape_cast %659 : vector<2x16xf32> to vector<1x2x16xf32>
    tpu.vector_store %arg20[%c7_112, %c0_113, %c0_114], %666 {strides = array<i32>} : memref<16x2x16xf32, #tpu.memory_space<vmem>>, vector<1x2x16xf32>,
    %cst_115 = arith.constant dense<0.000000e+00> : vector<2x96xf32>
    %667 = tpu.matmul %660, %16, %cst_115 {dimension_numbers = #tpu.dot_dimension_numbers<[1], [0], [0], [1], [0, 0, 1, 1], [], []>} : vector<2x32xf32>, vector<32x96xf32>, vector<2x96xf32> -> vector<2x96xf32>
    %668 = vector.broadcast %17 : vector<1x96xf32> to vector<2x96xf32>
    %669 = arith.addf %667, %668 : vector<2x96xf32>
    %670 = vector.extract_strided_slice %15 {offsets = [9, 0, 0], sizes = [1, 2, 96], strides = [1, 1, 1]} : vector<16x2x96xf32> to vector<1x2x96xf32>
    %671 = vector.shape_cast %670 : vector<1x2x96xf32> to vector<2x96xf32>
    %672 = vector.extract_strided_slice %671 {offsets = [0, 0], sizes = [2, 48], strides = [1, 1]} : vector<2x96xf32> to vector<2x48xf32>
    %673 = vector.extract_strided_slice %669 {offsets = [0, 0], sizes = [2, 48], strides = [1, 1]} : vector<2x96xf32> to vector<2x48xf32>
    %674 = vector.extract_strided_slice %660 {offsets = [0, 0], sizes = [2, 16], strides = [1, 1]} : vector<2x32xf32> to vector<2x16xf32>
    %675 = vector.extract_strided_slice %672 {offsets = [0, 0], sizes = [2, 16], strides = [1, 1]} : vector<2x48xf32> to vector<2x16xf32>
    %676 = vector.extract_strided_slice %673 {offsets = [0, 0], sizes = [2, 16], strides = [1, 1]} : vector<2x48xf32> to vector<2x16xf32>
    %677 = arith.addf %675, %676 : vector<2x16xf32>
    %678 = arith.negf %677 : vector<2x16xf32>
    %679 = math.exp %678 : vector<2x16xf32>
    %cst_116 = arith.constant 1.000000e+00 : f32
    %680 = vector.broadcast %cst_116 : f32 to vector<2x16xf32>
    %681 = arith.addf %680, %679 : vector<2x16xf32>
    %682 = arith.divf %680, %681 : vector<2x16xf32>
    %683 = vector.extract_strided_slice %672 {offsets = [0, 16], sizes = [2, 16], strides = [1, 1]} : vector<2x48xf32> to vector<2x16xf32>
    %684 = vector.extract_strided_slice %673 {offsets = [0, 16], sizes = [2, 16], strides = [1, 1]} : vector<2x48xf32> to vector<2x16xf32>
    %685 = arith.addf %683, %684 : vector<2x16xf32>
    %686 = arith.negf %685 : vector<2x16xf32>
    %687 = math.exp %686 : vector<2x16xf32>
    %cst_117 = arith.constant 1.000000e+00 : f32
    %688 = vector.broadcast %cst_117 : f32 to vector<2x16xf32>
    %689 = arith.addf %688, %687 : vector<2x16xf32>
    %690 = arith.divf %688, %689 : vector<2x16xf32>
    %691 = vector.extract_strided_slice %672 {offsets = [0, 32], sizes = [2, 16], strides = [1, 1]} : vector<2x48xf32> to vector<2x16xf32>
    %692 = vector.extract_strided_slice %673 {offsets = [0, 32], sizes = [2, 16], strides = [1, 1]} : vector<2x48xf32> to vector<2x16xf32>
    %693 = arith.mulf %682, %692 : vector<2x16xf32>
    %694 = arith.addf %691, %693 : vector<2x16xf32>
    %695 = math.tanh %694 : vector<2x16xf32>
    %cst_118 = arith.constant 1.000000e+00 : f32
    %696 = vector.broadcast %cst_118 : f32 to vector<2x16xf32>
    %697 = arith.subf %696, %690 : vector<2x16xf32>
    %698 = arith.mulf %697, %695 : vector<2x16xf32>
    %699 = arith.mulf %690, %674 : vector<2x16xf32>
    %700 = arith.addf %698, %699 : vector<2x16xf32>
    %701 = vector.extract_strided_slice %15 {offsets = [6, 0, 0], sizes = [1, 2, 96], strides = [1, 1, 1]} : vector<16x2x96xf32> to vector<1x2x96xf32>
    %702 = vector.shape_cast %701 : vector<1x2x96xf32> to vector<2x96xf32>
    %703 = vector.extract_strided_slice %702 {offsets = [0, 48], sizes = [2, 48], strides = [1, 1]} : vector<2x96xf32> to vector<2x48xf32>
    %704 = vector.extract_strided_slice %669 {offsets = [0, 48], sizes = [2, 48], strides = [1, 1]} : vector<2x96xf32> to vector<2x48xf32>
    %705 = vector.extract_strided_slice %660 {offsets = [0, 16], sizes = [2, 16], strides = [1, 1]} : vector<2x32xf32> to vector<2x16xf32>
    %706 = vector.extract_strided_slice %703 {offsets = [0, 0], sizes = [2, 16], strides = [1, 1]} : vector<2x48xf32> to vector<2x16xf32>
    %707 = vector.extract_strided_slice %704 {offsets = [0, 0], sizes = [2, 16], strides = [1, 1]} : vector<2x48xf32> to vector<2x16xf32>
    %708 = arith.addf %706, %707 : vector<2x16xf32>
    %709 = arith.negf %708 : vector<2x16xf32>
    %710 = math.exp %709 : vector<2x16xf32>
    %cst_119 = arith.constant 1.000000e+00 : f32
    %711 = vector.broadcast %cst_119 : f32 to vector<2x16xf32>
    %712 = arith.addf %711, %710 : vector<2x16xf32>
    %713 = arith.divf %711, %712 : vector<2x16xf32>
    %714 = vector.extract_strided_slice %703 {offsets = [0, 16], sizes = [2, 16], strides = [1, 1]} : vector<2x48xf32> to vector<2x16xf32>
    %715 = vector.extract_strided_slice %704 {offsets = [0, 16], sizes = [2, 16], strides = [1, 1]} : vector<2x48xf32> to vector<2x16xf32>
    %716 = arith.addf %714, %715 : vector<2x16xf32>
    %717 = arith.negf %716 : vector<2x16xf32>
    %718 = math.exp %717 : vector<2x16xf32>
    %cst_120 = arith.constant 1.000000e+00 : f32
    %719 = vector.broadcast %cst_120 : f32 to vector<2x16xf32>
    %720 = arith.addf %719, %718 : vector<2x16xf32>
    %721 = arith.divf %719, %720 : vector<2x16xf32>
    %722 = vector.extract_strided_slice %703 {offsets = [0, 32], sizes = [2, 16], strides = [1, 1]} : vector<2x48xf32> to vector<2x16xf32>
    %723 = vector.extract_strided_slice %704 {offsets = [0, 32], sizes = [2, 16], strides = [1, 1]} : vector<2x48xf32> to vector<2x16xf32>
    %724 = arith.mulf %713, %723 : vector<2x16xf32>
    %725 = arith.addf %722, %724 : vector<2x16xf32>
    %726 = math.tanh %725 : vector<2x16xf32>
    %cst_121 = arith.constant 1.000000e+00 : f32
    %727 = vector.broadcast %cst_121 : f32 to vector<2x16xf32>
    %728 = arith.subf %727, %721 : vector<2x16xf32>
    %729 = arith.mulf %728, %726 : vector<2x16xf32>
    %730 = arith.mulf %721, %705 : vector<2x16xf32>
    %731 = arith.addf %729, %730 : vector<2x16xf32>
    %732 = tpu.concatenate %700, %731 in 1 : vector<2x16xf32>, vector<2x16xf32> -> vector<2x32xf32>
    %c9_122 = arith.constant 9 : index
    %c0_123 = arith.constant 0 : index
    %c0_124 = arith.constant 0 : index
    %733 = vector.load %arg19[%c9_122, %c0_123, %c0_124] : memref<16x2x16xf32, #tpu.memory_space<vmem>>, vector<1x2x16xf32>
    %734 = vector.shape_cast %733 : vector<1x2x16xf32> to vector<2x16xf32>
    %735 = vector.shape_cast %700 : vector<2x16xf32> to vector<1x2x16xf32>
    tpu.vector_store %arg19[%c9_122, %c0_123, %c0_124], %735 {strides = array<i32>} : memref<16x2x16xf32, #tpu.memory_space<vmem>>, vector<1x2x16xf32>,
    %c6_125 = arith.constant 6 : index
    %c0_126 = arith.constant 0 : index
    %c0_127 = arith.constant 0 : index
    %736 = vector.load %arg20[%c6_125, %c0_126, %c0_127] : memref<16x2x16xf32, #tpu.memory_space<vmem>>, vector<1x2x16xf32>
    %737 = vector.shape_cast %736 : vector<1x2x16xf32> to vector<2x16xf32>
    %738 = vector.shape_cast %731 : vector<2x16xf32> to vector<1x2x16xf32>
    tpu.vector_store %arg20[%c6_125, %c0_126, %c0_127], %738 {strides = array<i32>} : memref<16x2x16xf32, #tpu.memory_space<vmem>>, vector<1x2x16xf32>,
    %cst_128 = arith.constant dense<0.000000e+00> : vector<2x96xf32>
    %739 = tpu.matmul %732, %16, %cst_128 {dimension_numbers = #tpu.dot_dimension_numbers<[1], [0], [0], [1], [0, 0, 1, 1], [], []>} : vector<2x32xf32>, vector<32x96xf32>, vector<2x96xf32> -> vector<2x96xf32>
    %740 = vector.broadcast %17 : vector<1x96xf32> to vector<2x96xf32>
    %741 = arith.addf %739, %740 : vector<2x96xf32>
    %742 = vector.extract_strided_slice %15 {offsets = [10, 0, 0], sizes = [1, 2, 96], strides = [1, 1, 1]} : vector<16x2x96xf32> to vector<1x2x96xf32>
    %743 = vector.shape_cast %742 : vector<1x2x96xf32> to vector<2x96xf32>
    %744 = vector.extract_strided_slice %743 {offsets = [0, 0], sizes = [2, 48], strides = [1, 1]} : vector<2x96xf32> to vector<2x48xf32>
    %745 = vector.extract_strided_slice %741 {offsets = [0, 0], sizes = [2, 48], strides = [1, 1]} : vector<2x96xf32> to vector<2x48xf32>
    %746 = vector.extract_strided_slice %732 {offsets = [0, 0], sizes = [2, 16], strides = [1, 1]} : vector<2x32xf32> to vector<2x16xf32>
    %747 = vector.extract_strided_slice %744 {offsets = [0, 0], sizes = [2, 16], strides = [1, 1]} : vector<2x48xf32> to vector<2x16xf32>
    %748 = vector.extract_strided_slice %745 {offsets = [0, 0], sizes = [2, 16], strides = [1, 1]} : vector<2x48xf32> to vector<2x16xf32>
    %749 = arith.addf %747, %748 : vector<2x16xf32>
    %750 = arith.negf %749 : vector<2x16xf32>
    %751 = math.exp %750 : vector<2x16xf32>
    %cst_129 = arith.constant 1.000000e+00 : f32
    %752 = vector.broadcast %cst_129 : f32 to vector<2x16xf32>
    %753 = arith.addf %752, %751 : vector<2x16xf32>
    %754 = arith.divf %752, %753 : vector<2x16xf32>
    %755 = vector.extract_strided_slice %744 {offsets = [0, 16], sizes = [2, 16], strides = [1, 1]} : vector<2x48xf32> to vector<2x16xf32>
    %756 = vector.extract_strided_slice %745 {offsets = [0, 16], sizes = [2, 16], strides = [1, 1]} : vector<2x48xf32> to vector<2x16xf32>
    %757 = arith.addf %755, %756 : vector<2x16xf32>
    %758 = arith.negf %757 : vector<2x16xf32>
    %759 = math.exp %758 : vector<2x16xf32>
    %cst_130 = arith.constant 1.000000e+00 : f32
    %760 = vector.broadcast %cst_130 : f32 to vector<2x16xf32>
    %761 = arith.addf %760, %759 : vector<2x16xf32>
    %762 = arith.divf %760, %761 : vector<2x16xf32>
    %763 = vector.extract_strided_slice %744 {offsets = [0, 32], sizes = [2, 16], strides = [1, 1]} : vector<2x48xf32> to vector<2x16xf32>
    %764 = vector.extract_strided_slice %745 {offsets = [0, 32], sizes = [2, 16], strides = [1, 1]} : vector<2x48xf32> to vector<2x16xf32>
    %765 = arith.mulf %754, %764 : vector<2x16xf32>
    %766 = arith.addf %763, %765 : vector<2x16xf32>
    %767 = math.tanh %766 : vector<2x16xf32>
    %cst_131 = arith.constant 1.000000e+00 : f32
    %768 = vector.broadcast %cst_131 : f32 to vector<2x16xf32>
    %769 = arith.subf %768, %762 : vector<2x16xf32>
    %770 = arith.mulf %769, %767 : vector<2x16xf32>
    %771 = arith.mulf %762, %746 : vector<2x16xf32>
    %772 = arith.addf %770, %771 : vector<2x16xf32>
    %773 = vector.extract_strided_slice %15 {offsets = [5, 0, 0], sizes = [1, 2, 96], strides = [1, 1, 1]} : vector<16x2x96xf32> to vector<1x2x96xf32>
    %774 = vector.shape_cast %773 : vector<1x2x96xf32> to vector<2x96xf32>
    %775 = vector.extract_strided_slice %774 {offsets = [0, 48], sizes = [2, 48], strides = [1, 1]} : vector<2x96xf32> to vector<2x48xf32>
    %776 = vector.extract_strided_slice %741 {offsets = [0, 48], sizes = [2, 48], strides = [1, 1]} : vector<2x96xf32> to vector<2x48xf32>
    %777 = vector.extract_strided_slice %732 {offsets = [0, 16], sizes = [2, 16], strides = [1, 1]} : vector<2x32xf32> to vector<2x16xf32>
    %778 = vector.extract_strided_slice %775 {offsets = [0, 0], sizes = [2, 16], strides = [1, 1]} : vector<2x48xf32> to vector<2x16xf32>
    %779 = vector.extract_strided_slice %776 {offsets = [0, 0], sizes = [2, 16], strides = [1, 1]} : vector<2x48xf32> to vector<2x16xf32>
    %780 = arith.addf %778, %779 : vector<2x16xf32>
    %781 = arith.negf %780 : vector<2x16xf32>
    %782 = math.exp %781 : vector<2x16xf32>
    %cst_132 = arith.constant 1.000000e+00 : f32
    %783 = vector.broadcast %cst_132 : f32 to vector<2x16xf32>
    %784 = arith.addf %783, %782 : vector<2x16xf32>
    %785 = arith.divf %783, %784 : vector<2x16xf32>
    %786 = vector.extract_strided_slice %775 {offsets = [0, 16], sizes = [2, 16], strides = [1, 1]} : vector<2x48xf32> to vector<2x16xf32>
    %787 = vector.extract_strided_slice %776 {offsets = [0, 16], sizes = [2, 16], strides = [1, 1]} : vector<2x48xf32> to vector<2x16xf32>
    %788 = arith.addf %786, %787 : vector<2x16xf32>
    %789 = arith.negf %788 : vector<2x16xf32>
    %790 = math.exp %789 : vector<2x16xf32>
    %cst_133 = arith.constant 1.000000e+00 : f32
    %791 = vector.broadcast %cst_133 : f32 to vector<2x16xf32>
    %792 = arith.addf %791, %790 : vector<2x16xf32>
    %793 = arith.divf %791, %792 : vector<2x16xf32>
    %794 = vector.extract_strided_slice %775 {offsets = [0, 32], sizes = [2, 16], strides = [1, 1]} : vector<2x48xf32> to vector<2x16xf32>
    %795 = vector.extract_strided_slice %776 {offsets = [0, 32], sizes = [2, 16], strides = [1, 1]} : vector<2x48xf32> to vector<2x16xf32>
    %796 = arith.mulf %785, %795 : vector<2x16xf32>
    %797 = arith.addf %794, %796 : vector<2x16xf32>
    %798 = math.tanh %797 : vector<2x16xf32>
    %cst_134 = arith.constant 1.000000e+00 : f32
    %799 = vector.broadcast %cst_134 : f32 to vector<2x16xf32>
    %800 = arith.subf %799, %793 : vector<2x16xf32>
    %801 = arith.mulf %800, %798 : vector<2x16xf32>
    %802 = arith.mulf %793, %777 : vector<2x16xf32>
    %803 = arith.addf %801, %802 : vector<2x16xf32>
    %804 = tpu.concatenate %772, %803 in 1 : vector<2x16xf32>, vector<2x16xf32> -> vector<2x32xf32>
    %c10_135 = arith.constant 10 : index
    %c0_136 = arith.constant 0 : index
    %c0_137 = arith.constant 0 : index
    %805 = vector.load %arg19[%c10_135, %c0_136, %c0_137] : memref<16x2x16xf32, #tpu.memory_space<vmem>>, vector<1x2x16xf32>
    %806 = vector.shape_cast %805 : vector<1x2x16xf32> to vector<2x16xf32>
    %807 = vector.shape_cast %772 : vector<2x16xf32> to vector<1x2x16xf32>
    tpu.vector_store %arg19[%c10_135, %c0_136, %c0_137], %807 {strides = array<i32>} : memref<16x2x16xf32, #tpu.memory_space<vmem>>, vector<1x2x16xf32>,
    %c5_138 = arith.constant 5 : index
    %c0_139 = arith.constant 0 : index
    %c0_140 = arith.constant 0 : index
    %808 = vector.load %arg20[%c5_138, %c0_139, %c0_140] : memref<16x2x16xf32, #tpu.memory_space<vmem>>, vector<1x2x16xf32>
    %809 = vector.shape_cast %808 : vector<1x2x16xf32> to vector<2x16xf32>
    %810 = vector.shape_cast %803 : vector<2x16xf32> to vector<1x2x16xf32>
    tpu.vector_store %arg20[%c5_138, %c0_139, %c0_140], %810 {strides = array<i32>} : memref<16x2x16xf32, #tpu.memory_space<vmem>>, vector<1x2x16xf32>,
    %cst_141 = arith.constant dense<0.000000e+00> : vector<2x96xf32>
    %811 = tpu.matmul %804, %16, %cst_141 {dimension_numbers = #tpu.dot_dimension_numbers<[1], [0], [0], [1], [0, 0, 1, 1], [], []>} : vector<2x32xf32>, vector<32x96xf32>, vector<2x96xf32> -> vector<2x96xf32>
    %812 = vector.broadcast %17 : vector<1x96xf32> to vector<2x96xf32>
    %813 = arith.addf %811, %812 : vector<2x96xf32>
    %814 = vector.extract_strided_slice %15 {offsets = [11, 0, 0], sizes = [1, 2, 96], strides = [1, 1, 1]} : vector<16x2x96xf32> to vector<1x2x96xf32>
    %815 = vector.shape_cast %814 : vector<1x2x96xf32> to vector<2x96xf32>
    %816 = vector.extract_strided_slice %815 {offsets = [0, 0], sizes = [2, 48], strides = [1, 1]} : vector<2x96xf32> to vector<2x48xf32>
    %817 = vector.extract_strided_slice %813 {offsets = [0, 0], sizes = [2, 48], strides = [1, 1]} : vector<2x96xf32> to vector<2x48xf32>
    %818 = vector.extract_strided_slice %804 {offsets = [0, 0], sizes = [2, 16], strides = [1, 1]} : vector<2x32xf32> to vector<2x16xf32>
    %819 = vector.extract_strided_slice %816 {offsets = [0, 0], sizes = [2, 16], strides = [1, 1]} : vector<2x48xf32> to vector<2x16xf32>
    %820 = vector.extract_strided_slice %817 {offsets = [0, 0], sizes = [2, 16], strides = [1, 1]} : vector<2x48xf32> to vector<2x16xf32>
    %821 = arith.addf %819, %820 : vector<2x16xf32>
    %822 = arith.negf %821 : vector<2x16xf32>
    %823 = math.exp %822 : vector<2x16xf32>
    %cst_142 = arith.constant 1.000000e+00 : f32
    %824 = vector.broadcast %cst_142 : f32 to vector<2x16xf32>
    %825 = arith.addf %824, %823 : vector<2x16xf32>
    %826 = arith.divf %824, %825 : vector<2x16xf32>
    %827 = vector.extract_strided_slice %816 {offsets = [0, 16], sizes = [2, 16], strides = [1, 1]} : vector<2x48xf32> to vector<2x16xf32>
    %828 = vector.extract_strided_slice %817 {offsets = [0, 16], sizes = [2, 16], strides = [1, 1]} : vector<2x48xf32> to vector<2x16xf32>
    %829 = arith.addf %827, %828 : vector<2x16xf32>
    %830 = arith.negf %829 : vector<2x16xf32>
    %831 = math.exp %830 : vector<2x16xf32>
    %cst_143 = arith.constant 1.000000e+00 : f32
    %832 = vector.broadcast %cst_143 : f32 to vector<2x16xf32>
    %833 = arith.addf %832, %831 : vector<2x16xf32>
    %834 = arith.divf %832, %833 : vector<2x16xf32>
    %835 = vector.extract_strided_slice %816 {offsets = [0, 32], sizes = [2, 16], strides = [1, 1]} : vector<2x48xf32> to vector<2x16xf32>
    %836 = vector.extract_strided_slice %817 {offsets = [0, 32], sizes = [2, 16], strides = [1, 1]} : vector<2x48xf32> to vector<2x16xf32>
    %837 = arith.mulf %826, %836 : vector<2x16xf32>
    %838 = arith.addf %835, %837 : vector<2x16xf32>
    %839 = math.tanh %838 : vector<2x16xf32>
    %cst_144 = arith.constant 1.000000e+00 : f32
    %840 = vector.broadcast %cst_144 : f32 to vector<2x16xf32>
    %841 = arith.subf %840, %834 : vector<2x16xf32>
    %842 = arith.mulf %841, %839 : vector<2x16xf32>
    %843 = arith.mulf %834, %818 : vector<2x16xf32>
    %844 = arith.addf %842, %843 : vector<2x16xf32>
    %845 = vector.extract_strided_slice %15 {offsets = [4, 0, 0], sizes = [1, 2, 96], strides = [1, 1, 1]} : vector<16x2x96xf32> to vector<1x2x96xf32>
    %846 = vector.shape_cast %845 : vector<1x2x96xf32> to vector<2x96xf32>
    %847 = vector.extract_strided_slice %846 {offsets = [0, 48], sizes = [2, 48], strides = [1, 1]} : vector<2x96xf32> to vector<2x48xf32>
    %848 = vector.extract_strided_slice %813 {offsets = [0, 48], sizes = [2, 48], strides = [1, 1]} : vector<2x96xf32> to vector<2x48xf32>
    %849 = vector.extract_strided_slice %804 {offsets = [0, 16], sizes = [2, 16], strides = [1, 1]} : vector<2x32xf32> to vector<2x16xf32>
    %850 = vector.extract_strided_slice %847 {offsets = [0, 0], sizes = [2, 16], strides = [1, 1]} : vector<2x48xf32> to vector<2x16xf32>
    %851 = vector.extract_strided_slice %848 {offsets = [0, 0], sizes = [2, 16], strides = [1, 1]} : vector<2x48xf32> to vector<2x16xf32>
    %852 = arith.addf %850, %851 : vector<2x16xf32>
    %853 = arith.negf %852 : vector<2x16xf32>
    %854 = math.exp %853 : vector<2x16xf32>
    %cst_145 = arith.constant 1.000000e+00 : f32
    %855 = vector.broadcast %cst_145 : f32 to vector<2x16xf32>
    %856 = arith.addf %855, %854 : vector<2x16xf32>
    %857 = arith.divf %855, %856 : vector<2x16xf32>
    %858 = vector.extract_strided_slice %847 {offsets = [0, 16], sizes = [2, 16], strides = [1, 1]} : vector<2x48xf32> to vector<2x16xf32>
    %859 = vector.extract_strided_slice %848 {offsets = [0, 16], sizes = [2, 16], strides = [1, 1]} : vector<2x48xf32> to vector<2x16xf32>
    %860 = arith.addf %858, %859 : vector<2x16xf32>
    %861 = arith.negf %860 : vector<2x16xf32>
    %862 = math.exp %861 : vector<2x16xf32>
    %cst_146 = arith.constant 1.000000e+00 : f32
    %863 = vector.broadcast %cst_146 : f32 to vector<2x16xf32>
    %864 = arith.addf %863, %862 : vector<2x16xf32>
    %865 = arith.divf %863, %864 : vector<2x16xf32>
    %866 = vector.extract_strided_slice %847 {offsets = [0, 32], sizes = [2, 16], strides = [1, 1]} : vector<2x48xf32> to vector<2x16xf32>
    %867 = vector.extract_strided_slice %848 {offsets = [0, 32], sizes = [2, 16], strides = [1, 1]} : vector<2x48xf32> to vector<2x16xf32>
    %868 = arith.mulf %857, %867 : vector<2x16xf32>
    %869 = arith.addf %866, %868 : vector<2x16xf32>
    %870 = math.tanh %869 : vector<2x16xf32>
    %cst_147 = arith.constant 1.000000e+00 : f32
    %871 = vector.broadcast %cst_147 : f32 to vector<2x16xf32>
    %872 = arith.subf %871, %865 : vector<2x16xf32>
    %873 = arith.mulf %872, %870 : vector<2x16xf32>
    %874 = arith.mulf %865, %849 : vector<2x16xf32>
    %875 = arith.addf %873, %874 : vector<2x16xf32>
    %876 = tpu.concatenate %844, %875 in 1 : vector<2x16xf32>, vector<2x16xf32> -> vector<2x32xf32>
    %c11_148 = arith.constant 11 : index
    %c0_149 = arith.constant 0 : index
    %c0_150 = arith.constant 0 : index
    %877 = vector.load %arg19[%c11_148, %c0_149, %c0_150] : memref<16x2x16xf32, #tpu.memory_space<vmem>>, vector<1x2x16xf32>
    %878 = vector.shape_cast %877 : vector<1x2x16xf32> to vector<2x16xf32>
    %879 = vector.shape_cast %844 : vector<2x16xf32> to vector<1x2x16xf32>
    tpu.vector_store %arg19[%c11_148, %c0_149, %c0_150], %879 {strides = array<i32>} : memref<16x2x16xf32, #tpu.memory_space<vmem>>, vector<1x2x16xf32>,
    %c4_151 = arith.constant 4 : index
    %c0_152 = arith.constant 0 : index
    %c0_153 = arith.constant 0 : index
    %880 = vector.load %arg20[%c4_151, %c0_152, %c0_153] : memref<16x2x16xf32, #tpu.memory_space<vmem>>, vector<1x2x16xf32>
    %881 = vector.shape_cast %880 : vector<1x2x16xf32> to vector<2x16xf32>
    %882 = vector.shape_cast %875 : vector<2x16xf32> to vector<1x2x16xf32>
    tpu.vector_store %arg20[%c4_151, %c0_152, %c0_153], %882 {strides = array<i32>} : memref<16x2x16xf32, #tpu.memory_space<vmem>>, vector<1x2x16xf32>,
    %cst_154 = arith.constant dense<0.000000e+00> : vector<2x96xf32>
    %883 = tpu.matmul %876, %16, %cst_154 {dimension_numbers = #tpu.dot_dimension_numbers<[1], [0], [0], [1], [0, 0, 1, 1], [], []>} : vector<2x32xf32>, vector<32x96xf32>, vector<2x96xf32> -> vector<2x96xf32>
    %884 = vector.broadcast %17 : vector<1x96xf32> to vector<2x96xf32>
    %885 = arith.addf %883, %884 : vector<2x96xf32>
    %886 = vector.extract_strided_slice %15 {offsets = [12, 0, 0], sizes = [1, 2, 96], strides = [1, 1, 1]} : vector<16x2x96xf32> to vector<1x2x96xf32>
    %887 = vector.shape_cast %886 : vector<1x2x96xf32> to vector<2x96xf32>
    %888 = vector.extract_strided_slice %887 {offsets = [0, 0], sizes = [2, 48], strides = [1, 1]} : vector<2x96xf32> to vector<2x48xf32>
    %889 = vector.extract_strided_slice %885 {offsets = [0, 0], sizes = [2, 48], strides = [1, 1]} : vector<2x96xf32> to vector<2x48xf32>
    %890 = vector.extract_strided_slice %876 {offsets = [0, 0], sizes = [2, 16], strides = [1, 1]} : vector<2x32xf32> to vector<2x16xf32>
    %891 = vector.extract_strided_slice %888 {offsets = [0, 0], sizes = [2, 16], strides = [1, 1]} : vector<2x48xf32> to vector<2x16xf32>
    %892 = vector.extract_strided_slice %889 {offsets = [0, 0], sizes = [2, 16], strides = [1, 1]} : vector<2x48xf32> to vector<2x16xf32>
    %893 = arith.addf %891, %892 : vector<2x16xf32>
    %894 = arith.negf %893 : vector<2x16xf32>
    %895 = math.exp %894 : vector<2x16xf32>
    %cst_155 = arith.constant 1.000000e+00 : f32
    %896 = vector.broadcast %cst_155 : f32 to vector<2x16xf32>
    %897 = arith.addf %896, %895 : vector<2x16xf32>
    %898 = arith.divf %896, %897 : vector<2x16xf32>
    %899 = vector.extract_strided_slice %888 {offsets = [0, 16], sizes = [2, 16], strides = [1, 1]} : vector<2x48xf32> to vector<2x16xf32>
    %900 = vector.extract_strided_slice %889 {offsets = [0, 16], sizes = [2, 16], strides = [1, 1]} : vector<2x48xf32> to vector<2x16xf32>
    %901 = arith.addf %899, %900 : vector<2x16xf32>
    %902 = arith.negf %901 : vector<2x16xf32>
    %903 = math.exp %902 : vector<2x16xf32>
    %cst_156 = arith.constant 1.000000e+00 : f32
    %904 = vector.broadcast %cst_156 : f32 to vector<2x16xf32>
    %905 = arith.addf %904, %903 : vector<2x16xf32>
    %906 = arith.divf %904, %905 : vector<2x16xf32>
    %907 = vector.extract_strided_slice %888 {offsets = [0, 32], sizes = [2, 16], strides = [1, 1]} : vector<2x48xf32> to vector<2x16xf32>
    %908 = vector.extract_strided_slice %889 {offsets = [0, 32], sizes = [2, 16], strides = [1, 1]} : vector<2x48xf32> to vector<2x16xf32>
    %909 = arith.mulf %898, %908 : vector<2x16xf32>
    %910 = arith.addf %907, %909 : vector<2x16xf32>
    %911 = math.tanh %910 : vector<2x16xf32>
    %cst_157 = arith.constant 1.000000e+00 : f32
    %912 = vector.broadcast %cst_157 : f32 to vector<2x16xf32>
    %913 = arith.subf %912, %906 : vector<2x16xf32>
    %914 = arith.mulf %913, %911 : vector<2x16xf32>
    %915 = arith.mulf %906, %890 : vector<2x16xf32>
    %916 = arith.addf %914, %915 : vector<2x16xf32>
    %917 = vector.extract_strided_slice %15 {offsets = [3, 0, 0], sizes = [1, 2, 96], strides = [1, 1, 1]} : vector<16x2x96xf32> to vector<1x2x96xf32>
    %918 = vector.shape_cast %917 : vector<1x2x96xf32> to vector<2x96xf32>
    %919 = vector.extract_strided_slice %918 {offsets = [0, 48], sizes = [2, 48], strides = [1, 1]} : vector<2x96xf32> to vector<2x48xf32>
    %920 = vector.extract_strided_slice %885 {offsets = [0, 48], sizes = [2, 48], strides = [1, 1]} : vector<2x96xf32> to vector<2x48xf32>
    %921 = vector.extract_strided_slice %876 {offsets = [0, 16], sizes = [2, 16], strides = [1, 1]} : vector<2x32xf32> to vector<2x16xf32>
    %922 = vector.extract_strided_slice %919 {offsets = [0, 0], sizes = [2, 16], strides = [1, 1]} : vector<2x48xf32> to vector<2x16xf32>
    %923 = vector.extract_strided_slice %920 {offsets = [0, 0], sizes = [2, 16], strides = [1, 1]} : vector<2x48xf32> to vector<2x16xf32>
    %924 = arith.addf %922, %923 : vector<2x16xf32>
    %925 = arith.negf %924 : vector<2x16xf32>
    %926 = math.exp %925 : vector<2x16xf32>
    %cst_158 = arith.constant 1.000000e+00 : f32
    %927 = vector.broadcast %cst_158 : f32 to vector<2x16xf32>
    %928 = arith.addf %927, %926 : vector<2x16xf32>
    %929 = arith.divf %927, %928 : vector<2x16xf32>
    %930 = vector.extract_strided_slice %919 {offsets = [0, 16], sizes = [2, 16], strides = [1, 1]} : vector<2x48xf32> to vector<2x16xf32>
    %931 = vector.extract_strided_slice %920 {offsets = [0, 16], sizes = [2, 16], strides = [1, 1]} : vector<2x48xf32> to vector<2x16xf32>
    %932 = arith.addf %930, %931 : vector<2x16xf32>
    %933 = arith.negf %932 : vector<2x16xf32>
    %934 = math.exp %933 : vector<2x16xf32>
    %cst_159 = arith.constant 1.000000e+00 : f32
    %935 = vector.broadcast %cst_159 : f32 to vector<2x16xf32>
    %936 = arith.addf %935, %934 : vector<2x16xf32>
    %937 = arith.divf %935, %936 : vector<2x16xf32>
    %938 = vector.extract_strided_slice %919 {offsets = [0, 32], sizes = [2, 16], strides = [1, 1]} : vector<2x48xf32> to vector<2x16xf32>
    %939 = vector.extract_strided_slice %920 {offsets = [0, 32], sizes = [2, 16], strides = [1, 1]} : vector<2x48xf32> to vector<2x16xf32>
    %940 = arith.mulf %929, %939 : vector<2x16xf32>
    %941 = arith.addf %938, %940 : vector<2x16xf32>
    %942 = math.tanh %941 : vector<2x16xf32>
    %cst_160 = arith.constant 1.000000e+00 : f32
    %943 = vector.broadcast %cst_160 : f32 to vector<2x16xf32>
    %944 = arith.subf %943, %937 : vector<2x16xf32>
    %945 = arith.mulf %944, %942 : vector<2x16xf32>
    %946 = arith.mulf %937, %921 : vector<2x16xf32>
    %947 = arith.addf %945, %946 : vector<2x16xf32>
    %948 = tpu.concatenate %916, %947 in 1 : vector<2x16xf32>, vector<2x16xf32> -> vector<2x32xf32>
    %c12_161 = arith.constant 12 : index
    %c0_162 = arith.constant 0 : index
    %c0_163 = arith.constant 0 : index
    %949 = vector.load %arg19[%c12_161, %c0_162, %c0_163] : memref<16x2x16xf32, #tpu.memory_space<vmem>>, vector<1x2x16xf32>
    %950 = vector.shape_cast %949 : vector<1x2x16xf32> to vector<2x16xf32>
    %951 = vector.shape_cast %916 : vector<2x16xf32> to vector<1x2x16xf32>
    tpu.vector_store %arg19[%c12_161, %c0_162, %c0_163], %951 {strides = array<i32>} : memref<16x2x16xf32, #tpu.memory_space<vmem>>, vector<1x2x16xf32>,
    %c3_164 = arith.constant 3 : index
    %c0_165 = arith.constant 0 : index
    %c0_166 = arith.constant 0 : index
    %952 = vector.load %arg20[%c3_164, %c0_165, %c0_166] : memref<16x2x16xf32, #tpu.memory_space<vmem>>, vector<1x2x16xf32>
    %953 = vector.shape_cast %952 : vector<1x2x16xf32> to vector<2x16xf32>
    %954 = vector.shape_cast %947 : vector<2x16xf32> to vector<1x2x16xf32>
    tpu.vector_store %arg20[%c3_164, %c0_165, %c0_166], %954 {strides = array<i32>} : memref<16x2x16xf32, #tpu.memory_space<vmem>>, vector<1x2x16xf32>,
    %cst_167 = arith.constant dense<0.000000e+00> : vector<2x96xf32>
    %955 = tpu.matmul %948, %16, %cst_167 {dimension_numbers = #tpu.dot_dimension_numbers<[1], [0], [0], [1], [0, 0, 1, 1], [], []>} : vector<2x32xf32>, vector<32x96xf32>, vector<2x96xf32> -> vector<2x96xf32>
    %956 = vector.broadcast %17 : vector<1x96xf32> to vector<2x96xf32>
    %957 = arith.addf %955, %956 : vector<2x96xf32>
    %958 = vector.extract_strided_slice %15 {offsets = [13, 0, 0], sizes = [1, 2, 96], strides = [1, 1, 1]} : vector<16x2x96xf32> to vector<1x2x96xf32>
    %959 = vector.shape_cast %958 : vector<1x2x96xf32> to vector<2x96xf32>
    %960 = vector.extract_strided_slice %959 {offsets = [0, 0], sizes = [2, 48], strides = [1, 1]} : vector<2x96xf32> to vector<2x48xf32>
    %961 = vector.extract_strided_slice %957 {offsets = [0, 0], sizes = [2, 48], strides = [1, 1]} : vector<2x96xf32> to vector<2x48xf32>
    %962 = vector.extract_strided_slice %948 {offsets = [0, 0], sizes = [2, 16], strides = [1, 1]} : vector<2x32xf32> to vector<2x16xf32>
    %963 = vector.extract_strided_slice %960 {offsets = [0, 0], sizes = [2, 16], strides = [1, 1]} : vector<2x48xf32> to vector<2x16xf32>
    %964 = vector.extract_strided_slice %961 {offsets = [0, 0], sizes = [2, 16], strides = [1, 1]} : vector<2x48xf32> to vector<2x16xf32>
    %965 = arith.addf %963, %964 : vector<2x16xf32>
    %966 = arith.negf %965 : vector<2x16xf32>
    %967 = math.exp %966 : vector<2x16xf32>
    %cst_168 = arith.constant 1.000000e+00 : f32
    %968 = vector.broadcast %cst_168 : f32 to vector<2x16xf32>
    %969 = arith.addf %968, %967 : vector<2x16xf32>
    %970 = arith.divf %968, %969 : vector<2x16xf32>
    %971 = vector.extract_strided_slice %960 {offsets = [0, 16], sizes = [2, 16], strides = [1, 1]} : vector<2x48xf32> to vector<2x16xf32>
    %972 = vector.extract_strided_slice %961 {offsets = [0, 16], sizes = [2, 16], strides = [1, 1]} : vector<2x48xf32> to vector<2x16xf32>
    %973 = arith.addf %971, %972 : vector<2x16xf32>
    %974 = arith.negf %973 : vector<2x16xf32>
    %975 = math.exp %974 : vector<2x16xf32>
    %cst_169 = arith.constant 1.000000e+00 : f32
    %976 = vector.broadcast %cst_169 : f32 to vector<2x16xf32>
    %977 = arith.addf %976, %975 : vector<2x16xf32>
    %978 = arith.divf %976, %977 : vector<2x16xf32>
    %979 = vector.extract_strided_slice %960 {offsets = [0, 32], sizes = [2, 16], strides = [1, 1]} : vector<2x48xf32> to vector<2x16xf32>
    %980 = vector.extract_strided_slice %961 {offsets = [0, 32], sizes = [2, 16], strides = [1, 1]} : vector<2x48xf32> to vector<2x16xf32>
    %981 = arith.mulf %970, %980 : vector<2x16xf32>
    %982 = arith.addf %979, %981 : vector<2x16xf32>
    %983 = math.tanh %982 : vector<2x16xf32>
    %cst_170 = arith.constant 1.000000e+00 : f32
    %984 = vector.broadcast %cst_170 : f32 to vector<2x16xf32>
    %985 = arith.subf %984, %978 : vector<2x16xf32>
    %986 = arith.mulf %985, %983 : vector<2x16xf32>
    %987 = arith.mulf %978, %962 : vector<2x16xf32>
    %988 = arith.addf %986, %987 : vector<2x16xf32>
    %989 = vector.extract_strided_slice %15 {offsets = [2, 0, 0], sizes = [1, 2, 96], strides = [1, 1, 1]} : vector<16x2x96xf32> to vector<1x2x96xf32>
    %990 = vector.shape_cast %989 : vector<1x2x96xf32> to vector<2x96xf32>
    %991 = vector.extract_strided_slice %990 {offsets = [0, 48], sizes = [2, 48], strides = [1, 1]} : vector<2x96xf32> to vector<2x48xf32>
    %992 = vector.extract_strided_slice %957 {offsets = [0, 48], sizes = [2, 48], strides = [1, 1]} : vector<2x96xf32> to vector<2x48xf32>
    %993 = vector.extract_strided_slice %948 {offsets = [0, 16], sizes = [2, 16], strides = [1, 1]} : vector<2x32xf32> to vector<2x16xf32>
    %994 = vector.extract_strided_slice %991 {offsets = [0, 0], sizes = [2, 16], strides = [1, 1]} : vector<2x48xf32> to vector<2x16xf32>
    %995 = vector.extract_strided_slice %992 {offsets = [0, 0], sizes = [2, 16], strides = [1, 1]} : vector<2x48xf32> to vector<2x16xf32>
    %996 = arith.addf %994, %995 : vector<2x16xf32>
    %997 = arith.negf %996 : vector<2x16xf32>
    %998 = math.exp %997 : vector<2x16xf32>
    %cst_171 = arith.constant 1.000000e+00 : f32
    %999 = vector.broadcast %cst_171 : f32 to vector<2x16xf32>
    %1000 = arith.addf %999, %998 : vector<2x16xf32>
    %1001 = arith.divf %999, %1000 : vector<2x16xf32>
    %1002 = vector.extract_strided_slice %991 {offsets = [0, 16], sizes = [2, 16], strides = [1, 1]} : vector<2x48xf32> to vector<2x16xf32>
    %1003 = vector.extract_strided_slice %992 {offsets = [0, 16], sizes = [2, 16], strides = [1, 1]} : vector<2x48xf32> to vector<2x16xf32>
    %1004 = arith.addf %1002, %1003 : vector<2x16xf32>
    %1005 = arith.negf %1004 : vector<2x16xf32>
    %1006 = math.exp %1005 : vector<2x16xf32>
    %cst_172 = arith.constant 1.000000e+00 : f32
    %1007 = vector.broadcast %cst_172 : f32 to vector<2x16xf32>
    %1008 = arith.addf %1007, %1006 : vector<2x16xf32>
    %1009 = arith.divf %1007, %1008 : vector<2x16xf32>
    %1010 = vector.extract_strided_slice %991 {offsets = [0, 32], sizes = [2, 16], strides = [1, 1]} : vector<2x48xf32> to vector<2x16xf32>
    %1011 = vector.extract_strided_slice %992 {offsets = [0, 32], sizes = [2, 16], strides = [1, 1]} : vector<2x48xf32> to vector<2x16xf32>
    %1012 = arith.mulf %1001, %1011 : vector<2x16xf32>
    %1013 = arith.addf %1010, %1012 : vector<2x16xf32>
    %1014 = math.tanh %1013 : vector<2x16xf32>
    %cst_173 = arith.constant 1.000000e+00 : f32
    %1015 = vector.broadcast %cst_173 : f32 to vector<2x16xf32>
    %1016 = arith.subf %1015, %1009 : vector<2x16xf32>
    %1017 = arith.mulf %1016, %1014 : vector<2x16xf32>
    %1018 = arith.mulf %1009, %993 : vector<2x16xf32>
    %1019 = arith.addf %1017, %1018 : vector<2x16xf32>
    %1020 = tpu.concatenate %988, %1019 in 1 : vector<2x16xf32>, vector<2x16xf32> -> vector<2x32xf32>
    %c13_174 = arith.constant 13 : index
    %c0_175 = arith.constant 0 : index
    %c0_176 = arith.constant 0 : index
    %1021 = vector.load %arg19[%c13_174, %c0_175, %c0_176] : memref<16x2x16xf32, #tpu.memory_space<vmem>>, vector<1x2x16xf32>
    %1022 = vector.shape_cast %1021 : vector<1x2x16xf32> to vector<2x16xf32>
    %1023 = vector.shape_cast %988 : vector<2x16xf32> to vector<1x2x16xf32>
    tpu.vector_store %arg19[%c13_174, %c0_175, %c0_176], %1023 {strides = array<i32>} : memref<16x2x16xf32, #tpu.memory_space<vmem>>, vector<1x2x16xf32>,
    %c2_177 = arith.constant 2 : index
    %c0_178 = arith.constant 0 : index
    %c0_179 = arith.constant 0 : index
    %1024 = vector.load %arg20[%c2_177, %c0_178, %c0_179] : memref<16x2x16xf32, #tpu.memory_space<vmem>>, vector<1x2x16xf32>
    %1025 = vector.shape_cast %1024 : vector<1x2x16xf32> to vector<2x16xf32>
    %1026 = vector.shape_cast %1019 : vector<2x16xf32> to vector<1x2x16xf32>
    tpu.vector_store %arg20[%c2_177, %c0_178, %c0_179], %1026 {strides = array<i32>} : memref<16x2x16xf32, #tpu.memory_space<vmem>>, vector<1x2x16xf32>,
    %cst_180 = arith.constant dense<0.000000e+00> : vector<2x96xf32>
    %1027 = tpu.matmul %1020, %16, %cst_180 {dimension_numbers = #tpu.dot_dimension_numbers<[1], [0], [0], [1], [0, 0, 1, 1], [], []>} : vector<2x32xf32>, vector<32x96xf32>, vector<2x96xf32> -> vector<2x96xf32>
    %1028 = vector.broadcast %17 : vector<1x96xf32> to vector<2x96xf32>
    %1029 = arith.addf %1027, %1028 : vector<2x96xf32>
    %1030 = vector.extract_strided_slice %15 {offsets = [14, 0, 0], sizes = [1, 2, 96], strides = [1, 1, 1]} : vector<16x2x96xf32> to vector<1x2x96xf32>
    %1031 = vector.shape_cast %1030 : vector<1x2x96xf32> to vector<2x96xf32>
    %1032 = vector.extract_strided_slice %1031 {offsets = [0, 0], sizes = [2, 48], strides = [1, 1]} : vector<2x96xf32> to vector<2x48xf32>
    %1033 = vector.extract_strided_slice %1029 {offsets = [0, 0], sizes = [2, 48], strides = [1, 1]} : vector<2x96xf32> to vector<2x48xf32>
    %1034 = vector.extract_strided_slice %1020 {offsets = [0, 0], sizes = [2, 16], strides = [1, 1]} : vector<2x32xf32> to vector<2x16xf32>
    %1035 = vector.extract_strided_slice %1032 {offsets = [0, 0], sizes = [2, 16], strides = [1, 1]} : vector<2x48xf32> to vector<2x16xf32>
    %1036 = vector.extract_strided_slice %1033 {offsets = [0, 0], sizes = [2, 16], strides = [1, 1]} : vector<2x48xf32> to vector<2x16xf32>
    %1037 = arith.addf %1035, %1036 : vector<2x16xf32>
    %1038 = arith.negf %1037 : vector<2x16xf32>
    %1039 = math.exp %1038 : vector<2x16xf32>
    %cst_181 = arith.constant 1.000000e+00 : f32
    %1040 = vector.broadcast %cst_181 : f32 to vector<2x16xf32>
    %1041 = arith.addf %1040, %1039 : vector<2x16xf32>
    %1042 = arith.divf %1040, %1041 : vector<2x16xf32>
    %1043 = vector.extract_strided_slice %1032 {offsets = [0, 16], sizes = [2, 16], strides = [1, 1]} : vector<2x48xf32> to vector<2x16xf32>
    %1044 = vector.extract_strided_slice %1033 {offsets = [0, 16], sizes = [2, 16], strides = [1, 1]} : vector<2x48xf32> to vector<2x16xf32>
    %1045 = arith.addf %1043, %1044 : vector<2x16xf32>
    %1046 = arith.negf %1045 : vector<2x16xf32>
    %1047 = math.exp %1046 : vector<2x16xf32>
    %cst_182 = arith.constant 1.000000e+00 : f32
    %1048 = vector.broadcast %cst_182 : f32 to vector<2x16xf32>
    %1049 = arith.addf %1048, %1047 : vector<2x16xf32>
    %1050 = arith.divf %1048, %1049 : vector<2x16xf32>
    %1051 = vector.extract_strided_slice %1032 {offsets = [0, 32], sizes = [2, 16], strides = [1, 1]} : vector<2x48xf32> to vector<2x16xf32>
    %1052 = vector.extract_strided_slice %1033 {offsets = [0, 32], sizes = [2, 16], strides = [1, 1]} : vector<2x48xf32> to vector<2x16xf32>
    %1053 = arith.mulf %1042, %1052 : vector<2x16xf32>
    %1054 = arith.addf %1051, %1053 : vector<2x16xf32>
    %1055 = math.tanh %1054 : vector<2x16xf32>
    %cst_183 = arith.constant 1.000000e+00 : f32
    %1056 = vector.broadcast %cst_183 : f32 to vector<2x16xf32>
    %1057 = arith.subf %1056, %1050 : vector<2x16xf32>
    %1058 = arith.mulf %1057, %1055 : vector<2x16xf32>
    %1059 = arith.mulf %1050, %1034 : vector<2x16xf32>
    %1060 = arith.addf %1058, %1059 : vector<2x16xf32>
    %1061 = vector.extract_strided_slice %15 {offsets = [1, 0, 0], sizes = [1, 2, 96], strides = [1, 1, 1]} : vector<16x2x96xf32> to vector<1x2x96xf32>
    %1062 = vector.shape_cast %1061 : vector<1x2x96xf32> to vector<2x96xf32>
    %1063 = vector.extract_strided_slice %1062 {offsets = [0, 48], sizes = [2, 48], strides = [1, 1]} : vector<2x96xf32> to vector<2x48xf32>
    %1064 = vector.extract_strided_slice %1029 {offsets = [0, 48], sizes = [2, 48], strides = [1, 1]} : vector<2x96xf32> to vector<2x48xf32>
    %1065 = vector.extract_strided_slice %1020 {offsets = [0, 16], sizes = [2, 16], strides = [1, 1]} : vector<2x32xf32> to vector<2x16xf32>
    %1066 = vector.extract_strided_slice %1063 {offsets = [0, 0], sizes = [2, 16], strides = [1, 1]} : vector<2x48xf32> to vector<2x16xf32>
    %1067 = vector.extract_strided_slice %1064 {offsets = [0, 0], sizes = [2, 16], strides = [1, 1]} : vector<2x48xf32> to vector<2x16xf32>
    %1068 = arith.addf %1066, %1067 : vector<2x16xf32>
    %1069 = arith.negf %1068 : vector<2x16xf32>
    %1070 = math.exp %1069 : vector<2x16xf32>
    %cst_184 = arith.constant 1.000000e+00 : f32
    %1071 = vector.broadcast %cst_184 : f32 to vector<2x16xf32>
    %1072 = arith.addf %1071, %1070 : vector<2x16xf32>
    %1073 = arith.divf %1071, %1072 : vector<2x16xf32>
    %1074 = vector.extract_strided_slice %1063 {offsets = [0, 16], sizes = [2, 16], strides = [1, 1]} : vector<2x48xf32> to vector<2x16xf32>
    %1075 = vector.extract_strided_slice %1064 {offsets = [0, 16], sizes = [2, 16], strides = [1, 1]} : vector<2x48xf32> to vector<2x16xf32>
    %1076 = arith.addf %1074, %1075 : vector<2x16xf32>
    %1077 = arith.negf %1076 : vector<2x16xf32>
    %1078 = math.exp %1077 : vector<2x16xf32>
    %cst_185 = arith.constant 1.000000e+00 : f32
    %1079 = vector.broadcast %cst_185 : f32 to vector<2x16xf32>
    %1080 = arith.addf %1079, %1078 : vector<2x16xf32>
    %1081 = arith.divf %1079, %1080 : vector<2x16xf32>
    %1082 = vector.extract_strided_slice %1063 {offsets = [0, 32], sizes = [2, 16], strides = [1, 1]} : vector<2x48xf32> to vector<2x16xf32>
    %1083 = vector.extract_strided_slice %1064 {offsets = [0, 32], sizes = [2, 16], strides = [1, 1]} : vector<2x48xf32> to vector<2x16xf32>
    %1084 = arith.mulf %1073, %1083 : vector<2x16xf32>
    %1085 = arith.addf %1082, %1084 : vector<2x16xf32>
    %1086 = math.tanh %1085 : vector<2x16xf32>
    %cst_186 = arith.constant 1.000000e+00 : f32
    %1087 = vector.broadcast %cst_186 : f32 to vector<2x16xf32>
    %1088 = arith.subf %1087, %1081 : vector<2x16xf32>
    %1089 = arith.mulf %1088, %1086 : vector<2x16xf32>
    %1090 = arith.mulf %1081, %1065 : vector<2x16xf32>
    %1091 = arith.addf %1089, %1090 : vector<2x16xf32>
    %1092 = tpu.concatenate %1060, %1091 in 1 : vector<2x16xf32>, vector<2x16xf32> -> vector<2x32xf32>
    %c14_187 = arith.constant 14 : index
    %c0_188 = arith.constant 0 : index
    %c0_189 = arith.constant 0 : index
    %1093 = vector.load %arg19[%c14_187, %c0_188, %c0_189] : memref<16x2x16xf32, #tpu.memory_space<vmem>>, vector<1x2x16xf32>
    %1094 = vector.shape_cast %1093 : vector<1x2x16xf32> to vector<2x16xf32>
    %1095 = vector.shape_cast %1060 : vector<2x16xf32> to vector<1x2x16xf32>
    tpu.vector_store %arg19[%c14_187, %c0_188, %c0_189], %1095 {strides = array<i32>} : memref<16x2x16xf32, #tpu.memory_space<vmem>>, vector<1x2x16xf32>,
    %c1_190 = arith.constant 1 : index
    %c0_191 = arith.constant 0 : index
    %c0_192 = arith.constant 0 : index
    %1096 = vector.load %arg20[%c1_190, %c0_191, %c0_192] : memref<16x2x16xf32, #tpu.memory_space<vmem>>, vector<1x2x16xf32>
    %1097 = vector.shape_cast %1096 : vector<1x2x16xf32> to vector<2x16xf32>
    %1098 = vector.shape_cast %1091 : vector<2x16xf32> to vector<1x2x16xf32>
    tpu.vector_store %arg20[%c1_190, %c0_191, %c0_192], %1098 {strides = array<i32>} : memref<16x2x16xf32, #tpu.memory_space<vmem>>, vector<1x2x16xf32>,
    %cst_193 = arith.constant dense<0.000000e+00> : vector<2x96xf32>
    %1099 = tpu.matmul %1092, %16, %cst_193 {dimension_numbers = #tpu.dot_dimension_numbers<[1], [0], [0], [1], [0, 0, 1, 1], [], []>} : vector<2x32xf32>, vector<32x96xf32>, vector<2x96xf32> -> vector<2x96xf32>
    %1100 = vector.broadcast %17 : vector<1x96xf32> to vector<2x96xf32>
    %1101 = arith.addf %1099, %1100 : vector<2x96xf32>
    %1102 = vector.extract_strided_slice %15 {offsets = [15, 0, 0], sizes = [1, 2, 96], strides = [1, 1, 1]} : vector<16x2x96xf32> to vector<1x2x96xf32>
    %1103 = vector.shape_cast %1102 : vector<1x2x96xf32> to vector<2x96xf32>
    %1104 = vector.extract_strided_slice %1103 {offsets = [0, 0], sizes = [2, 48], strides = [1, 1]} : vector<2x96xf32> to vector<2x48xf32>
    %1105 = vector.extract_strided_slice %1101 {offsets = [0, 0], sizes = [2, 48], strides = [1, 1]} : vector<2x96xf32> to vector<2x48xf32>
    %1106 = vector.extract_strided_slice %1092 {offsets = [0, 0], sizes = [2, 16], strides = [1, 1]} : vector<2x32xf32> to vector<2x16xf32>
    %1107 = vector.extract_strided_slice %1104 {offsets = [0, 0], sizes = [2, 16], strides = [1, 1]} : vector<2x48xf32> to vector<2x16xf32>
    %1108 = vector.extract_strided_slice %1105 {offsets = [0, 0], sizes = [2, 16], strides = [1, 1]} : vector<2x48xf32> to vector<2x16xf32>
    %1109 = arith.addf %1107, %1108 : vector<2x16xf32>
    %1110 = arith.negf %1109 : vector<2x16xf32>
    %1111 = math.exp %1110 : vector<2x16xf32>
    %cst_194 = arith.constant 1.000000e+00 : f32
    %1112 = vector.broadcast %cst_194 : f32 to vector<2x16xf32>
    %1113 = arith.addf %1112, %1111 : vector<2x16xf32>
    %1114 = arith.divf %1112, %1113 : vector<2x16xf32>
    %1115 = vector.extract_strided_slice %1104 {offsets = [0, 16], sizes = [2, 16], strides = [1, 1]} : vector<2x48xf32> to vector<2x16xf32>
    %1116 = vector.extract_strided_slice %1105 {offsets = [0, 16], sizes = [2, 16], strides = [1, 1]} : vector<2x48xf32> to vector<2x16xf32>
    %1117 = arith.addf %1115, %1116 : vector<2x16xf32>
    %1118 = arith.negf %1117 : vector<2x16xf32>
    %1119 = math.exp %1118 : vector<2x16xf32>
    %cst_195 = arith.constant 1.000000e+00 : f32
    %1120 = vector.broadcast %cst_195 : f32 to vector<2x16xf32>
    %1121 = arith.addf %1120, %1119 : vector<2x16xf32>
    %1122 = arith.divf %1120, %1121 : vector<2x16xf32>
    %1123 = vector.extract_strided_slice %1104 {offsets = [0, 32], sizes = [2, 16], strides = [1, 1]} : vector<2x48xf32> to vector<2x16xf32>
    %1124 = vector.extract_strided_slice %1105 {offsets = [0, 32], sizes = [2, 16], strides = [1, 1]} : vector<2x48xf32> to vector<2x16xf32>
    %1125 = arith.mulf %1114, %1124 : vector<2x16xf32>
    %1126 = arith.addf %1123, %1125 : vector<2x16xf32>
    %1127 = math.tanh %1126 : vector<2x16xf32>
    %cst_196 = arith.constant 1.000000e+00 : f32
    %1128 = vector.broadcast %cst_196 : f32 to vector<2x16xf32>
    %1129 = arith.subf %1128, %1122 : vector<2x16xf32>
    %1130 = arith.mulf %1129, %1127 : vector<2x16xf32>
    %1131 = arith.mulf %1122, %1106 : vector<2x16xf32>
    %1132 = arith.addf %1130, %1131 : vector<2x16xf32>
    %1133 = vector.extract_strided_slice %15 {offsets = [0, 0, 0], sizes = [1, 2, 96], strides = [1, 1, 1]} : vector<16x2x96xf32> to vector<1x2x96xf32>
    %1134 = vector.shape_cast %1133 : vector<1x2x96xf32> to vector<2x96xf32>
    %1135 = vector.extract_strided_slice %1134 {offsets = [0, 48], sizes = [2, 48], strides = [1, 1]} : vector<2x96xf32> to vector<2x48xf32>
    %1136 = vector.extract_strided_slice %1101 {offsets = [0, 48], sizes = [2, 48], strides = [1, 1]} : vector<2x96xf32> to vector<2x48xf32>
    %1137 = vector.extract_strided_slice %1092 {offsets = [0, 16], sizes = [2, 16], strides = [1, 1]} : vector<2x32xf32> to vector<2x16xf32>
    %1138 = vector.extract_strided_slice %1135 {offsets = [0, 0], sizes = [2, 16], strides = [1, 1]} : vector<2x48xf32> to vector<2x16xf32>
    %1139 = vector.extract_strided_slice %1136 {offsets = [0, 0], sizes = [2, 16], strides = [1, 1]} : vector<2x48xf32> to vector<2x16xf32>
    %1140 = arith.addf %1138, %1139 : vector<2x16xf32>
    %1141 = arith.negf %1140 : vector<2x16xf32>
    %1142 = math.exp %1141 : vector<2x16xf32>
    %cst_197 = arith.constant 1.000000e+00 : f32
    %1143 = vector.broadcast %cst_197 : f32 to vector<2x16xf32>
    %1144 = arith.addf %1143, %1142 : vector<2x16xf32>
    %1145 = arith.divf %1143, %1144 : vector<2x16xf32>
    %1146 = vector.extract_strided_slice %1135 {offsets = [0, 16], sizes = [2, 16], strides = [1, 1]} : vector<2x48xf32> to vector<2x16xf32>
    %1147 = vector.extract_strided_slice %1136 {offsets = [0, 16], sizes = [2, 16], strides = [1, 1]} : vector<2x48xf32> to vector<2x16xf32>
    %1148 = arith.addf %1146, %1147 : vector<2x16xf32>
    %1149 = arith.negf %1148 : vector<2x16xf32>
    %1150 = math.exp %1149 : vector<2x16xf32>
    %cst_198 = arith.constant 1.000000e+00 : f32
    %1151 = vector.broadcast %cst_198 : f32 to vector<2x16xf32>
    %1152 = arith.addf %1151, %1150 : vector<2x16xf32>
    %1153 = arith.divf %1151, %1152 : vector<2x16xf32>
    %1154 = vector.extract_strided_slice %1135 {offsets = [0, 32], sizes = [2, 16], strides = [1, 1]} : vector<2x48xf32> to vector<2x16xf32>
    %1155 = vector.extract_strided_slice %1136 {offsets = [0, 32], sizes = [2, 16], strides = [1, 1]} : vector<2x48xf32> to vector<2x16xf32>
    %1156 = arith.mulf %1145, %1155 : vector<2x16xf32>
    %1157 = arith.addf %1154, %1156 : vector<2x16xf32>
    %1158 = math.tanh %1157 : vector<2x16xf32>
    %cst_199 = arith.constant 1.000000e+00 : f32
    %1159 = vector.broadcast %cst_199 : f32 to vector<2x16xf32>
    %1160 = arith.subf %1159, %1153 : vector<2x16xf32>
    %1161 = arith.mulf %1160, %1158 : vector<2x16xf32>
    %1162 = arith.mulf %1153, %1137 : vector<2x16xf32>
    %1163 = arith.addf %1161, %1162 : vector<2x16xf32>
    %c15_200 = arith.constant 15 : index
    %c0_201 = arith.constant 0 : index
    %c0_202 = arith.constant 0 : index
    %1164 = vector.load %arg19[%c15_200, %c0_201, %c0_202] : memref<16x2x16xf32, #tpu.memory_space<vmem>>, vector<1x2x16xf32>
    %1165 = vector.shape_cast %1164 : vector<1x2x16xf32> to vector<2x16xf32>
    %1166 = vector.shape_cast %1132 : vector<2x16xf32> to vector<1x2x16xf32>
    tpu.vector_store %arg19[%c15_200, %c0_201, %c0_202], %1166 {strides = array<i32>} : memref<16x2x16xf32, #tpu.memory_space<vmem>>, vector<1x2x16xf32>,
    %c0_203 = arith.constant 0 : index
    %c0_204 = arith.constant 0 : index
    %c0_205 = arith.constant 0 : index
    %1167 = vector.load %arg20[%c0_203, %c0_204, %c0_205] : memref<16x2x16xf32, #tpu.memory_space<vmem>>, vector<1x2x16xf32>
    %1168 = vector.shape_cast %1167 : vector<1x2x16xf32> to vector<2x16xf32>
    %1169 = vector.shape_cast %1163 : vector<2x16xf32> to vector<1x2x16xf32>
    tpu.vector_store %arg20[%c0_203, %c0_204, %c0_205], %1169 {strides = array<i32>} : memref<16x2x16xf32, #tpu.memory_space<vmem>>, vector<1x2x16xf32>,
    %c0_206 = arith.constant 0 : index
    %c0_207 = arith.constant 0 : index
    %c0_208 = arith.constant 0 : index
    %1170 = vector.load %arg19[%c0_206, %c0_207, %c0_208] : memref<16x2x16xf32, #tpu.memory_space<vmem>>, vector<16x2x16xf32>
    %c0_209 = arith.constant 0 : index
    %c0_210 = arith.constant 0 : index
    %c0_211 = arith.constant 0 : index
    %1171 = vector.load %arg20[%c0_209, %c0_210, %c0_211] : memref<16x2x16xf32, #tpu.memory_space<vmem>>, vector<16x2x16xf32>
    %1172 = tpu.concatenate %1170, %1171 in 2 : vector<16x2x16xf32>, vector<16x2x16xf32> -> vector<16x2x32xf32>
    %1173 = vector.shape_cast %1172 : vector<16x2x32xf32> to vector<32x32xf32>
    %c0_212 = arith.constant 0 : index
    %c0_213 = arith.constant 0 : index
    %1174 = vector.load %arg6[%c0_212, %c0_213] : memref<32x96xf32, #tpu.memory_space<vmem>>, vector<32x96xf32>
    %cst_214 = arith.constant dense<0.000000e+00> : vector<32x96xf32>
    %1175 = tpu.matmul %1173, %1174, %cst_214 {dimension_numbers = #tpu.dot_dimension_numbers<[1], [0], [0], [1], [0, 0, 1, 1], [], []>} : vector<32x32xf32>, vector<32x96xf32>, vector<32x96xf32> -> vector<32x96xf32>
    %c0_215 = arith.constant 0 : index
    %c0_216 = arith.constant 0 : index
    %1176 = vector.load %arg8[%c0_215, %c0_216] : memref<1x96xf32, #tpu.memory_space<vmem>>, vector<1x96xf32>
    %1177 = vector.broadcast %1176 : vector<1x96xf32> to vector<32x96xf32>
    %1178 = arith.addf %1175, %1177 : vector<32x96xf32>
    %1179 = vector.shape_cast %1178 : vector<32x96xf32> to vector<16x2x96xf32>
    %c0_217 = arith.constant 0 : index
    %c0_218 = arith.constant 0 : index
    %1180 = vector.load %arg7[%c0_217, %c0_218] : memref<32x96xf32, #tpu.memory_space<vmem>>, vector<32x96xf32>
    %c0_219 = arith.constant 0 : index
    %c0_220 = arith.constant 0 : index
    %1181 = vector.load %arg9[%c0_219, %c0_220] : memref<1x96xf32, #tpu.memory_space<vmem>>, vector<1x96xf32>
    %cst_221 = arith.constant 0.000000e+00 : f32
    %1182 = vector.broadcast %cst_221 : f32 to vector<2x32xf32>
    %cst_222 = arith.constant dense<0.000000e+00> : vector<2x96xf32>
    %1183 = tpu.matmul %1182, %1180, %cst_222 {dimension_numbers = #tpu.dot_dimension_numbers<[1], [0], [0], [1], [0, 0, 1, 1], [], []>} : vector<2x32xf32>, vector<32x96xf32>, vector<2x96xf32> -> vector<2x96xf32>
    %1184 = vector.broadcast %1181 : vector<1x96xf32> to vector<2x96xf32>
    %1185 = arith.addf %1183, %1184 : vector<2x96xf32>
    %1186 = vector.extract_strided_slice %1179 {offsets = [0, 0, 0], sizes = [1, 2, 96], strides = [1, 1, 1]} : vector<16x2x96xf32> to vector<1x2x96xf32>
    %1187 = vector.shape_cast %1186 : vector<1x2x96xf32> to vector<2x96xf32>
    %1188 = vector.extract_strided_slice %1187 {offsets = [0, 0], sizes = [2, 48], strides = [1, 1]} : vector<2x96xf32> to vector<2x48xf32>
    %1189 = vector.extract_strided_slice %1185 {offsets = [0, 0], sizes = [2, 48], strides = [1, 1]} : vector<2x96xf32> to vector<2x48xf32>
    %1190 = vector.extract_strided_slice %1182 {offsets = [0, 0], sizes = [2, 16], strides = [1, 1]} : vector<2x32xf32> to vector<2x16xf32>
    %1191 = vector.extract_strided_slice %1188 {offsets = [0, 0], sizes = [2, 16], strides = [1, 1]} : vector<2x48xf32> to vector<2x16xf32>
    %1192 = vector.extract_strided_slice %1189 {offsets = [0, 0], sizes = [2, 16], strides = [1, 1]} : vector<2x48xf32> to vector<2x16xf32>
    %1193 = arith.addf %1191, %1192 : vector<2x16xf32>
    %1194 = arith.negf %1193 : vector<2x16xf32>
    %1195 = math.exp %1194 : vector<2x16xf32>
    %cst_223 = arith.constant 1.000000e+00 : f32
    %1196 = vector.broadcast %cst_223 : f32 to vector<2x16xf32>
    %1197 = arith.addf %1196, %1195 : vector<2x16xf32>
    %1198 = arith.divf %1196, %1197 : vector<2x16xf32>
    %1199 = vector.extract_strided_slice %1188 {offsets = [0, 16], sizes = [2, 16], strides = [1, 1]} : vector<2x48xf32> to vector<2x16xf32>
    %1200 = vector.extract_strided_slice %1189 {offsets = [0, 16], sizes = [2, 16], strides = [1, 1]} : vector<2x48xf32> to vector<2x16xf32>
    %1201 = arith.addf %1199, %1200 : vector<2x16xf32>
    %1202 = arith.negf %1201 : vector<2x16xf32>
    %1203 = math.exp %1202 : vector<2x16xf32>
    %cst_224 = arith.constant 1.000000e+00 : f32
    %1204 = vector.broadcast %cst_224 : f32 to vector<2x16xf32>
    %1205 = arith.addf %1204, %1203 : vector<2x16xf32>
    %1206 = arith.divf %1204, %1205 : vector<2x16xf32>
    %1207 = vector.extract_strided_slice %1188 {offsets = [0, 32], sizes = [2, 16], strides = [1, 1]} : vector<2x48xf32> to vector<2x16xf32>
    %1208 = vector.extract_strided_slice %1189 {offsets = [0, 32], sizes = [2, 16], strides = [1, 1]} : vector<2x48xf32> to vector<2x16xf32>
    %1209 = arith.mulf %1198, %1208 : vector<2x16xf32>
    %1210 = arith.addf %1207, %1209 : vector<2x16xf32>
    %1211 = math.tanh %1210 : vector<2x16xf32>
    %cst_225 = arith.constant 1.000000e+00 : f32
    %1212 = vector.broadcast %cst_225 : f32 to vector<2x16xf32>
    %1213 = arith.subf %1212, %1206 : vector<2x16xf32>
    %1214 = arith.mulf %1213, %1211 : vector<2x16xf32>
    %1215 = arith.mulf %1206, %1190 : vector<2x16xf32>
    %1216 = arith.addf %1214, %1215 : vector<2x16xf32>
    %1217 = vector.extract_strided_slice %1179 {offsets = [15, 0, 0], sizes = [1, 2, 96], strides = [1, 1, 1]} : vector<16x2x96xf32> to vector<1x2x96xf32>
    %1218 = vector.shape_cast %1217 : vector<1x2x96xf32> to vector<2x96xf32>
    %1219 = vector.extract_strided_slice %1218 {offsets = [0, 48], sizes = [2, 48], strides = [1, 1]} : vector<2x96xf32> to vector<2x48xf32>
    %1220 = vector.extract_strided_slice %1185 {offsets = [0, 48], sizes = [2, 48], strides = [1, 1]} : vector<2x96xf32> to vector<2x48xf32>
    %1221 = vector.extract_strided_slice %1182 {offsets = [0, 16], sizes = [2, 16], strides = [1, 1]} : vector<2x32xf32> to vector<2x16xf32>
    %1222 = vector.extract_strided_slice %1219 {offsets = [0, 0], sizes = [2, 16], strides = [1, 1]} : vector<2x48xf32> to vector<2x16xf32>
    %1223 = vector.extract_strided_slice %1220 {offsets = [0, 0], sizes = [2, 16], strides = [1, 1]} : vector<2x48xf32> to vector<2x16xf32>
    %1224 = arith.addf %1222, %1223 : vector<2x16xf32>
    %1225 = arith.negf %1224 : vector<2x16xf32>
    %1226 = math.exp %1225 : vector<2x16xf32>
    %cst_226 = arith.constant 1.000000e+00 : f32
    %1227 = vector.broadcast %cst_226 : f32 to vector<2x16xf32>
    %1228 = arith.addf %1227, %1226 : vector<2x16xf32>
    %1229 = arith.divf %1227, %1228 : vector<2x16xf32>
    %1230 = vector.extract_strided_slice %1219 {offsets = [0, 16], sizes = [2, 16], strides = [1, 1]} : vector<2x48xf32> to vector<2x16xf32>
    %1231 = vector.extract_strided_slice %1220 {offsets = [0, 16], sizes = [2, 16], strides = [1, 1]} : vector<2x48xf32> to vector<2x16xf32>
    %1232 = arith.addf %1230, %1231 : vector<2x16xf32>
    %1233 = arith.negf %1232 : vector<2x16xf32>
    %1234 = math.exp %1233 : vector<2x16xf32>
    %cst_227 = arith.constant 1.000000e+00 : f32
    %1235 = vector.broadcast %cst_227 : f32 to vector<2x16xf32>
    %1236 = arith.addf %1235, %1234 : vector<2x16xf32>
    %1237 = arith.divf %1235, %1236 : vector<2x16xf32>
    %1238 = vector.extract_strided_slice %1219 {offsets = [0, 32], sizes = [2, 16], strides = [1, 1]} : vector<2x48xf32> to vector<2x16xf32>
    %1239 = vector.extract_strided_slice %1220 {offsets = [0, 32], sizes = [2, 16], strides = [1, 1]} : vector<2x48xf32> to vector<2x16xf32>
    %1240 = arith.mulf %1229, %1239 : vector<2x16xf32>
    %1241 = arith.addf %1238, %1240 : vector<2x16xf32>
    %1242 = math.tanh %1241 : vector<2x16xf32>
    %cst_228 = arith.constant 1.000000e+00 : f32
    %1243 = vector.broadcast %cst_228 : f32 to vector<2x16xf32>
    %1244 = arith.subf %1243, %1237 : vector<2x16xf32>
    %1245 = arith.mulf %1244, %1242 : vector<2x16xf32>
    %1246 = arith.mulf %1237, %1221 : vector<2x16xf32>
    %1247 = arith.addf %1245, %1246 : vector<2x16xf32>
    %1248 = tpu.concatenate %1216, %1247 in 1 : vector<2x16xf32>, vector<2x16xf32> -> vector<2x32xf32>
    %c0_229 = arith.constant 0 : index
    %c0_230 = arith.constant 0 : index
    %c0_231 = arith.constant 0 : index
    %1249 = vector.load %arg19[%c0_229, %c0_230, %c0_231] : memref<16x2x16xf32, #tpu.memory_space<vmem>>, vector<1x2x16xf32>
    %1250 = vector.shape_cast %1249 : vector<1x2x16xf32> to vector<2x16xf32>
    %1251 = vector.shape_cast %1216 : vector<2x16xf32> to vector<1x2x16xf32>
    tpu.vector_store %arg19[%c0_229, %c0_230, %c0_231], %1251 {strides = array<i32>} : memref<16x2x16xf32, #tpu.memory_space<vmem>>, vector<1x2x16xf32>,
    %c15_232 = arith.constant 15 : index
    %c0_233 = arith.constant 0 : index
    %c0_234 = arith.constant 0 : index
    %1252 = vector.load %arg20[%c15_232, %c0_233, %c0_234] : memref<16x2x16xf32, #tpu.memory_space<vmem>>, vector<1x2x16xf32>
    %1253 = vector.shape_cast %1252 : vector<1x2x16xf32> to vector<2x16xf32>
    %1254 = vector.shape_cast %1247 : vector<2x16xf32> to vector<1x2x16xf32>
    tpu.vector_store %arg20[%c15_232, %c0_233, %c0_234], %1254 {strides = array<i32>} : memref<16x2x16xf32, #tpu.memory_space<vmem>>, vector<1x2x16xf32>,
    %cst_235 = arith.constant dense<0.000000e+00> : vector<2x96xf32>
    %1255 = tpu.matmul %1248, %1180, %cst_235 {dimension_numbers = #tpu.dot_dimension_numbers<[1], [0], [0], [1], [0, 0, 1, 1], [], []>} : vector<2x32xf32>, vector<32x96xf32>, vector<2x96xf32> -> vector<2x96xf32>
    %1256 = vector.broadcast %1181 : vector<1x96xf32> to vector<2x96xf32>
    %1257 = arith.addf %1255, %1256 : vector<2x96xf32>
    %1258 = vector.extract_strided_slice %1179 {offsets = [1, 0, 0], sizes = [1, 2, 96], strides = [1, 1, 1]} : vector<16x2x96xf32> to vector<1x2x96xf32>
    %1259 = vector.shape_cast %1258 : vector<1x2x96xf32> to vector<2x96xf32>
    %1260 = vector.extract_strided_slice %1259 {offsets = [0, 0], sizes = [2, 48], strides = [1, 1]} : vector<2x96xf32> to vector<2x48xf32>
    %1261 = vector.extract_strided_slice %1257 {offsets = [0, 0], sizes = [2, 48], strides = [1, 1]} : vector<2x96xf32> to vector<2x48xf32>
    %1262 = vector.extract_strided_slice %1248 {offsets = [0, 0], sizes = [2, 16], strides = [1, 1]} : vector<2x32xf32> to vector<2x16xf32>
    %1263 = vector.extract_strided_slice %1260 {offsets = [0, 0], sizes = [2, 16], strides = [1, 1]} : vector<2x48xf32> to vector<2x16xf32>
    %1264 = vector.extract_strided_slice %1261 {offsets = [0, 0], sizes = [2, 16], strides = [1, 1]} : vector<2x48xf32> to vector<2x16xf32>
    %1265 = arith.addf %1263, %1264 : vector<2x16xf32>
    %1266 = arith.negf %1265 : vector<2x16xf32>
    %1267 = math.exp %1266 : vector<2x16xf32>
    %cst_236 = arith.constant 1.000000e+00 : f32
    %1268 = vector.broadcast %cst_236 : f32 to vector<2x16xf32>
    %1269 = arith.addf %1268, %1267 : vector<2x16xf32>
    %1270 = arith.divf %1268, %1269 : vector<2x16xf32>
    %1271 = vector.extract_strided_slice %1260 {offsets = [0, 16], sizes = [2, 16], strides = [1, 1]} : vector<2x48xf32> to vector<2x16xf32>
    %1272 = vector.extract_strided_slice %1261 {offsets = [0, 16], sizes = [2, 16], strides = [1, 1]} : vector<2x48xf32> to vector<2x16xf32>
    %1273 = arith.addf %1271, %1272 : vector<2x16xf32>
    %1274 = arith.negf %1273 : vector<2x16xf32>
    %1275 = math.exp %1274 : vector<2x16xf32>
    %cst_237 = arith.constant 1.000000e+00 : f32
    %1276 = vector.broadcast %cst_237 : f32 to vector<2x16xf32>
    %1277 = arith.addf %1276, %1275 : vector<2x16xf32>
    %1278 = arith.divf %1276, %1277 : vector<2x16xf32>
    %1279 = vector.extract_strided_slice %1260 {offsets = [0, 32], sizes = [2, 16], strides = [1, 1]} : vector<2x48xf32> to vector<2x16xf32>
    %1280 = vector.extract_strided_slice %1261 {offsets = [0, 32], sizes = [2, 16], strides = [1, 1]} : vector<2x48xf32> to vector<2x16xf32>
    %1281 = arith.mulf %1270, %1280 : vector<2x16xf32>
    %1282 = arith.addf %1279, %1281 : vector<2x16xf32>
    %1283 = math.tanh %1282 : vector<2x16xf32>
    %cst_238 = arith.constant 1.000000e+00 : f32
    %1284 = vector.broadcast %cst_238 : f32 to vector<2x16xf32>
    %1285 = arith.subf %1284, %1278 : vector<2x16xf32>
    %1286 = arith.mulf %1285, %1283 : vector<2x16xf32>
    %1287 = arith.mulf %1278, %1262 : vector<2x16xf32>
    %1288 = arith.addf %1286, %1287 : vector<2x16xf32>
    %1289 = vector.extract_strided_slice %1179 {offsets = [14, 0, 0], sizes = [1, 2, 96], strides = [1, 1, 1]} : vector<16x2x96xf32> to vector<1x2x96xf32>
    %1290 = vector.shape_cast %1289 : vector<1x2x96xf32> to vector<2x96xf32>
    %1291 = vector.extract_strided_slice %1290 {offsets = [0, 48], sizes = [2, 48], strides = [1, 1]} : vector<2x96xf32> to vector<2x48xf32>
    %1292 = vector.extract_strided_slice %1257 {offsets = [0, 48], sizes = [2, 48], strides = [1, 1]} : vector<2x96xf32> to vector<2x48xf32>
    %1293 = vector.extract_strided_slice %1248 {offsets = [0, 16], sizes = [2, 16], strides = [1, 1]} : vector<2x32xf32> to vector<2x16xf32>
    %1294 = vector.extract_strided_slice %1291 {offsets = [0, 0], sizes = [2, 16], strides = [1, 1]} : vector<2x48xf32> to vector<2x16xf32>
    %1295 = vector.extract_strided_slice %1292 {offsets = [0, 0], sizes = [2, 16], strides = [1, 1]} : vector<2x48xf32> to vector<2x16xf32>
    %1296 = arith.addf %1294, %1295 : vector<2x16xf32>
    %1297 = arith.negf %1296 : vector<2x16xf32>
    %1298 = math.exp %1297 : vector<2x16xf32>
    %cst_239 = arith.constant 1.000000e+00 : f32
    %1299 = vector.broadcast %cst_239 : f32 to vector<2x16xf32>
    %1300 = arith.addf %1299, %1298 : vector<2x16xf32>
    %1301 = arith.divf %1299, %1300 : vector<2x16xf32>
    %1302 = vector.extract_strided_slice %1291 {offsets = [0, 16], sizes = [2, 16], strides = [1, 1]} : vector<2x48xf32> to vector<2x16xf32>
    %1303 = vector.extract_strided_slice %1292 {offsets = [0, 16], sizes = [2, 16], strides = [1, 1]} : vector<2x48xf32> to vector<2x16xf32>
    %1304 = arith.addf %1302, %1303 : vector<2x16xf32>
    %1305 = arith.negf %1304 : vector<2x16xf32>
    %1306 = math.exp %1305 : vector<2x16xf32>
    %cst_240 = arith.constant 1.000000e+00 : f32
    %1307 = vector.broadcast %cst_240 : f32 to vector<2x16xf32>
    %1308 = arith.addf %1307, %1306 : vector<2x16xf32>
    %1309 = arith.divf %1307, %1308 : vector<2x16xf32>
    %1310 = vector.extract_strided_slice %1291 {offsets = [0, 32], sizes = [2, 16], strides = [1, 1]} : vector<2x48xf32> to vector<2x16xf32>
    %1311 = vector.extract_strided_slice %1292 {offsets = [0, 32], sizes = [2, 16], strides = [1, 1]} : vector<2x48xf32> to vector<2x16xf32>
    %1312 = arith.mulf %1301, %1311 : vector<2x16xf32>
    %1313 = arith.addf %1310, %1312 : vector<2x16xf32>
    %1314 = math.tanh %1313 : vector<2x16xf32>
    %cst_241 = arith.constant 1.000000e+00 : f32
    %1315 = vector.broadcast %cst_241 : f32 to vector<2x16xf32>
    %1316 = arith.subf %1315, %1309 : vector<2x16xf32>
    %1317 = arith.mulf %1316, %1314 : vector<2x16xf32>
    %1318 = arith.mulf %1309, %1293 : vector<2x16xf32>
    %1319 = arith.addf %1317, %1318 : vector<2x16xf32>
    %1320 = tpu.concatenate %1288, %1319 in 1 : vector<2x16xf32>, vector<2x16xf32> -> vector<2x32xf32>
    %c1_242 = arith.constant 1 : index
    %c0_243 = arith.constant 0 : index
    %c0_244 = arith.constant 0 : index
    %1321 = vector.load %arg19[%c1_242, %c0_243, %c0_244] : memref<16x2x16xf32, #tpu.memory_space<vmem>>, vector<1x2x16xf32>
    %1322 = vector.shape_cast %1321 : vector<1x2x16xf32> to vector<2x16xf32>
    %1323 = vector.shape_cast %1288 : vector<2x16xf32> to vector<1x2x16xf32>
    tpu.vector_store %arg19[%c1_242, %c0_243, %c0_244], %1323 {strides = array<i32>} : memref<16x2x16xf32, #tpu.memory_space<vmem>>, vector<1x2x16xf32>,
    %c14_245 = arith.constant 14 : index
    %c0_246 = arith.constant 0 : index
    %c0_247 = arith.constant 0 : index
    %1324 = vector.load %arg20[%c14_245, %c0_246, %c0_247] : memref<16x2x16xf32, #tpu.memory_space<vmem>>, vector<1x2x16xf32>
    %1325 = vector.shape_cast %1324 : vector<1x2x16xf32> to vector<2x16xf32>
    %1326 = vector.shape_cast %1319 : vector<2x16xf32> to vector<1x2x16xf32>
    tpu.vector_store %arg20[%c14_245, %c0_246, %c0_247], %1326 {strides = array<i32>} : memref<16x2x16xf32, #tpu.memory_space<vmem>>, vector<1x2x16xf32>,
    %cst_248 = arith.constant dense<0.000000e+00> : vector<2x96xf32>
    %1327 = tpu.matmul %1320, %1180, %cst_248 {dimension_numbers = #tpu.dot_dimension_numbers<[1], [0], [0], [1], [0, 0, 1, 1], [], []>} : vector<2x32xf32>, vector<32x96xf32>, vector<2x96xf32> -> vector<2x96xf32>
    %1328 = vector.broadcast %1181 : vector<1x96xf32> to vector<2x96xf32>
    %1329 = arith.addf %1327, %1328 : vector<2x96xf32>
    %1330 = vector.extract_strided_slice %1179 {offsets = [2, 0, 0], sizes = [1, 2, 96], strides = [1, 1, 1]} : vector<16x2x96xf32> to vector<1x2x96xf32>
    %1331 = vector.shape_cast %1330 : vector<1x2x96xf32> to vector<2x96xf32>
    %1332 = vector.extract_strided_slice %1331 {offsets = [0, 0], sizes = [2, 48], strides = [1, 1]} : vector<2x96xf32> to vector<2x48xf32>
    %1333 = vector.extract_strided_slice %1329 {offsets = [0, 0], sizes = [2, 48], strides = [1, 1]} : vector<2x96xf32> to vector<2x48xf32>
    %1334 = vector.extract_strided_slice %1320 {offsets = [0, 0], sizes = [2, 16], strides = [1, 1]} : vector<2x32xf32> to vector<2x16xf32>
    %1335 = vector.extract_strided_slice %1332 {offsets = [0, 0], sizes = [2, 16], strides = [1, 1]} : vector<2x48xf32> to vector<2x16xf32>
    %1336 = vector.extract_strided_slice %1333 {offsets = [0, 0], sizes = [2, 16], strides = [1, 1]} : vector<2x48xf32> to vector<2x16xf32>
    %1337 = arith.addf %1335, %1336 : vector<2x16xf32>
    %1338 = arith.negf %1337 : vector<2x16xf32>
    %1339 = math.exp %1338 : vector<2x16xf32>
    %cst_249 = arith.constant 1.000000e+00 : f32
    %1340 = vector.broadcast %cst_249 : f32 to vector<2x16xf32>
    %1341 = arith.addf %1340, %1339 : vector<2x16xf32>
    %1342 = arith.divf %1340, %1341 : vector<2x16xf32>
    %1343 = vector.extract_strided_slice %1332 {offsets = [0, 16], sizes = [2, 16], strides = [1, 1]} : vector<2x48xf32> to vector<2x16xf32>
    %1344 = vector.extract_strided_slice %1333 {offsets = [0, 16], sizes = [2, 16], strides = [1, 1]} : vector<2x48xf32> to vector<2x16xf32>
    %1345 = arith.addf %1343, %1344 : vector<2x16xf32>
    %1346 = arith.negf %1345 : vector<2x16xf32>
    %1347 = math.exp %1346 : vector<2x16xf32>
    %cst_250 = arith.constant 1.000000e+00 : f32
    %1348 = vector.broadcast %cst_250 : f32 to vector<2x16xf32>
    %1349 = arith.addf %1348, %1347 : vector<2x16xf32>
    %1350 = arith.divf %1348, %1349 : vector<2x16xf32>
    %1351 = vector.extract_strided_slice %1332 {offsets = [0, 32], sizes = [2, 16], strides = [1, 1]} : vector<2x48xf32> to vector<2x16xf32>
    %1352 = vector.extract_strided_slice %1333 {offsets = [0, 32], sizes = [2, 16], strides = [1, 1]} : vector<2x48xf32> to vector<2x16xf32>
    %1353 = arith.mulf %1342, %1352 : vector<2x16xf32>
    %1354 = arith.addf %1351, %1353 : vector<2x16xf32>
    %1355 = math.tanh %1354 : vector<2x16xf32>
    %cst_251 = arith.constant 1.000000e+00 : f32
    %1356 = vector.broadcast %cst_251 : f32 to vector<2x16xf32>
    %1357 = arith.subf %1356, %1350 : vector<2x16xf32>
    %1358 = arith.mulf %1357, %1355 : vector<2x16xf32>
    %1359 = arith.mulf %1350, %1334 : vector<2x16xf32>
    %1360 = arith.addf %1358, %1359 : vector<2x16xf32>
    %1361 = vector.extract_strided_slice %1179 {offsets = [13, 0, 0], sizes = [1, 2, 96], strides = [1, 1, 1]} : vector<16x2x96xf32> to vector<1x2x96xf32>
    %1362 = vector.shape_cast %1361 : vector<1x2x96xf32> to vector<2x96xf32>
    %1363 = vector.extract_strided_slice %1362 {offsets = [0, 48], sizes = [2, 48], strides = [1, 1]} : vector<2x96xf32> to vector<2x48xf32>
    %1364 = vector.extract_strided_slice %1329 {offsets = [0, 48], sizes = [2, 48], strides = [1, 1]} : vector<2x96xf32> to vector<2x48xf32>
    %1365 = vector.extract_strided_slice %1320 {offsets = [0, 16], sizes = [2, 16], strides = [1, 1]} : vector<2x32xf32> to vector<2x16xf32>
    %1366 = vector.extract_strided_slice %1363 {offsets = [0, 0], sizes = [2, 16], strides = [1, 1]} : vector<2x48xf32> to vector<2x16xf32>
    %1367 = vector.extract_strided_slice %1364 {offsets = [0, 0], sizes = [2, 16], strides = [1, 1]} : vector<2x48xf32> to vector<2x16xf32>
    %1368 = arith.addf %1366, %1367 : vector<2x16xf32>
    %1369 = arith.negf %1368 : vector<2x16xf32>
    %1370 = math.exp %1369 : vector<2x16xf32>
    %cst_252 = arith.constant 1.000000e+00 : f32
    %1371 = vector.broadcast %cst_252 : f32 to vector<2x16xf32>
    %1372 = arith.addf %1371, %1370 : vector<2x16xf32>
    %1373 = arith.divf %1371, %1372 : vector<2x16xf32>
    %1374 = vector.extract_strided_slice %1363 {offsets = [0, 16], sizes = [2, 16], strides = [1, 1]} : vector<2x48xf32> to vector<2x16xf32>
    %1375 = vector.extract_strided_slice %1364 {offsets = [0, 16], sizes = [2, 16], strides = [1, 1]} : vector<2x48xf32> to vector<2x16xf32>
    %1376 = arith.addf %1374, %1375 : vector<2x16xf32>
    %1377 = arith.negf %1376 : vector<2x16xf32>
    %1378 = math.exp %1377 : vector<2x16xf32>
    %cst_253 = arith.constant 1.000000e+00 : f32
    %1379 = vector.broadcast %cst_253 : f32 to vector<2x16xf32>
    %1380 = arith.addf %1379, %1378 : vector<2x16xf32>
    %1381 = arith.divf %1379, %1380 : vector<2x16xf32>
    %1382 = vector.extract_strided_slice %1363 {offsets = [0, 32], sizes = [2, 16], strides = [1, 1]} : vector<2x48xf32> to vector<2x16xf32>
    %1383 = vector.extract_strided_slice %1364 {offsets = [0, 32], sizes = [2, 16], strides = [1, 1]} : vector<2x48xf32> to vector<2x16xf32>
    %1384 = arith.mulf %1373, %1383 : vector<2x16xf32>
    %1385 = arith.addf %1382, %1384 : vector<2x16xf32>
    %1386 = math.tanh %1385 : vector<2x16xf32>
    %cst_254 = arith.constant 1.000000e+00 : f32
    %1387 = vector.broadcast %cst_254 : f32 to vector<2x16xf32>
    %1388 = arith.subf %1387, %1381 : vector<2x16xf32>
    %1389 = arith.mulf %1388, %1386 : vector<2x16xf32>
    %1390 = arith.mulf %1381, %1365 : vector<2x16xf32>
    %1391 = arith.addf %1389, %1390 : vector<2x16xf32>
    %1392 = tpu.concatenate %1360, %1391 in 1 : vector<2x16xf32>, vector<2x16xf32> -> vector<2x32xf32>
    %c2_255 = arith.constant 2 : index
    %c0_256 = arith.constant 0 : index
    %c0_257 = arith.constant 0 : index
    %1393 = vector.load %arg19[%c2_255, %c0_256, %c0_257] : memref<16x2x16xf32, #tpu.memory_space<vmem>>, vector<1x2x16xf32>
    %1394 = vector.shape_cast %1393 : vector<1x2x16xf32> to vector<2x16xf32>
    %1395 = vector.shape_cast %1360 : vector<2x16xf32> to vector<1x2x16xf32>
    tpu.vector_store %arg19[%c2_255, %c0_256, %c0_257], %1395 {strides = array<i32>} : memref<16x2x16xf32, #tpu.memory_space<vmem>>, vector<1x2x16xf32>,
    %c13_258 = arith.constant 13 : index
    %c0_259 = arith.constant 0 : index
    %c0_260 = arith.constant 0 : index
    %1396 = vector.load %arg20[%c13_258, %c0_259, %c0_260] : memref<16x2x16xf32, #tpu.memory_space<vmem>>, vector<1x2x16xf32>
    %1397 = vector.shape_cast %1396 : vector<1x2x16xf32> to vector<2x16xf32>
    %1398 = vector.shape_cast %1391 : vector<2x16xf32> to vector<1x2x16xf32>
    tpu.vector_store %arg20[%c13_258, %c0_259, %c0_260], %1398 {strides = array<i32>} : memref<16x2x16xf32, #tpu.memory_space<vmem>>, vector<1x2x16xf32>,
    %cst_261 = arith.constant dense<0.000000e+00> : vector<2x96xf32>
    %1399 = tpu.matmul %1392, %1180, %cst_261 {dimension_numbers = #tpu.dot_dimension_numbers<[1], [0], [0], [1], [0, 0, 1, 1], [], []>} : vector<2x32xf32>, vector<32x96xf32>, vector<2x96xf32> -> vector<2x96xf32>
    %1400 = vector.broadcast %1181 : vector<1x96xf32> to vector<2x96xf32>
    %1401 = arith.addf %1399, %1400 : vector<2x96xf32>
    %1402 = vector.extract_strided_slice %1179 {offsets = [3, 0, 0], sizes = [1, 2, 96], strides = [1, 1, 1]} : vector<16x2x96xf32> to vector<1x2x96xf32>
    %1403 = vector.shape_cast %1402 : vector<1x2x96xf32> to vector<2x96xf32>
    %1404 = vector.extract_strided_slice %1403 {offsets = [0, 0], sizes = [2, 48], strides = [1, 1]} : vector<2x96xf32> to vector<2x48xf32>
    %1405 = vector.extract_strided_slice %1401 {offsets = [0, 0], sizes = [2, 48], strides = [1, 1]} : vector<2x96xf32> to vector<2x48xf32>
    %1406 = vector.extract_strided_slice %1392 {offsets = [0, 0], sizes = [2, 16], strides = [1, 1]} : vector<2x32xf32> to vector<2x16xf32>
    %1407 = vector.extract_strided_slice %1404 {offsets = [0, 0], sizes = [2, 16], strides = [1, 1]} : vector<2x48xf32> to vector<2x16xf32>
    %1408 = vector.extract_strided_slice %1405 {offsets = [0, 0], sizes = [2, 16], strides = [1, 1]} : vector<2x48xf32> to vector<2x16xf32>
    %1409 = arith.addf %1407, %1408 : vector<2x16xf32>
    %1410 = arith.negf %1409 : vector<2x16xf32>
    %1411 = math.exp %1410 : vector<2x16xf32>
    %cst_262 = arith.constant 1.000000e+00 : f32
    %1412 = vector.broadcast %cst_262 : f32 to vector<2x16xf32>
    %1413 = arith.addf %1412, %1411 : vector<2x16xf32>
    %1414 = arith.divf %1412, %1413 : vector<2x16xf32>
    %1415 = vector.extract_strided_slice %1404 {offsets = [0, 16], sizes = [2, 16], strides = [1, 1]} : vector<2x48xf32> to vector<2x16xf32>
    %1416 = vector.extract_strided_slice %1405 {offsets = [0, 16], sizes = [2, 16], strides = [1, 1]} : vector<2x48xf32> to vector<2x16xf32>
    %1417 = arith.addf %1415, %1416 : vector<2x16xf32>
    %1418 = arith.negf %1417 : vector<2x16xf32>
    %1419 = math.exp %1418 : vector<2x16xf32>
    %cst_263 = arith.constant 1.000000e+00 : f32
    %1420 = vector.broadcast %cst_263 : f32 to vector<2x16xf32>
    %1421 = arith.addf %1420, %1419 : vector<2x16xf32>
    %1422 = arith.divf %1420, %1421 : vector<2x16xf32>
    %1423 = vector.extract_strided_slice %1404 {offsets = [0, 32], sizes = [2, 16], strides = [1, 1]} : vector<2x48xf32> to vector<2x16xf32>
    %1424 = vector.extract_strided_slice %1405 {offsets = [0, 32], sizes = [2, 16], strides = [1, 1]} : vector<2x48xf32> to vector<2x16xf32>
    %1425 = arith.mulf %1414, %1424 : vector<2x16xf32>
    %1426 = arith.addf %1423, %1425 : vector<2x16xf32>
    %1427 = math.tanh %1426 : vector<2x16xf32>
    %cst_264 = arith.constant 1.000000e+00 : f32
    %1428 = vector.broadcast %cst_264 : f32 to vector<2x16xf32>
    %1429 = arith.subf %1428, %1422 : vector<2x16xf32>
    %1430 = arith.mulf %1429, %1427 : vector<2x16xf32>
    %1431 = arith.mulf %1422, %1406 : vector<2x16xf32>
    %1432 = arith.addf %1430, %1431 : vector<2x16xf32>
    %1433 = vector.extract_strided_slice %1179 {offsets = [12, 0, 0], sizes = [1, 2, 96], strides = [1, 1, 1]} : vector<16x2x96xf32> to vector<1x2x96xf32>
    %1434 = vector.shape_cast %1433 : vector<1x2x96xf32> to vector<2x96xf32>
    %1435 = vector.extract_strided_slice %1434 {offsets = [0, 48], sizes = [2, 48], strides = [1, 1]} : vector<2x96xf32> to vector<2x48xf32>
    %1436 = vector.extract_strided_slice %1401 {offsets = [0, 48], sizes = [2, 48], strides = [1, 1]} : vector<2x96xf32> to vector<2x48xf32>
    %1437 = vector.extract_strided_slice %1392 {offsets = [0, 16], sizes = [2, 16], strides = [1, 1]} : vector<2x32xf32> to vector<2x16xf32>
    %1438 = vector.extract_strided_slice %1435 {offsets = [0, 0], sizes = [2, 16], strides = [1, 1]} : vector<2x48xf32> to vector<2x16xf32>
    %1439 = vector.extract_strided_slice %1436 {offsets = [0, 0], sizes = [2, 16], strides = [1, 1]} : vector<2x48xf32> to vector<2x16xf32>
    %1440 = arith.addf %1438, %1439 : vector<2x16xf32>
    %1441 = arith.negf %1440 : vector<2x16xf32>
    %1442 = math.exp %1441 : vector<2x16xf32>
    %cst_265 = arith.constant 1.000000e+00 : f32
    %1443 = vector.broadcast %cst_265 : f32 to vector<2x16xf32>
    %1444 = arith.addf %1443, %1442 : vector<2x16xf32>
    %1445 = arith.divf %1443, %1444 : vector<2x16xf32>
    %1446 = vector.extract_strided_slice %1435 {offsets = [0, 16], sizes = [2, 16], strides = [1, 1]} : vector<2x48xf32> to vector<2x16xf32>
    %1447 = vector.extract_strided_slice %1436 {offsets = [0, 16], sizes = [2, 16], strides = [1, 1]} : vector<2x48xf32> to vector<2x16xf32>
    %1448 = arith.addf %1446, %1447 : vector<2x16xf32>
    %1449 = arith.negf %1448 : vector<2x16xf32>
    %1450 = math.exp %1449 : vector<2x16xf32>
    %cst_266 = arith.constant 1.000000e+00 : f32
    %1451 = vector.broadcast %cst_266 : f32 to vector<2x16xf32>
    %1452 = arith.addf %1451, %1450 : vector<2x16xf32>
    %1453 = arith.divf %1451, %1452 : vector<2x16xf32>
    %1454 = vector.extract_strided_slice %1435 {offsets = [0, 32], sizes = [2, 16], strides = [1, 1]} : vector<2x48xf32> to vector<2x16xf32>
    %1455 = vector.extract_strided_slice %1436 {offsets = [0, 32], sizes = [2, 16], strides = [1, 1]} : vector<2x48xf32> to vector<2x16xf32>
    %1456 = arith.mulf %1445, %1455 : vector<2x16xf32>
    %1457 = arith.addf %1454, %1456 : vector<2x16xf32>
    %1458 = math.tanh %1457 : vector<2x16xf32>
    %cst_267 = arith.constant 1.000000e+00 : f32
    %1459 = vector.broadcast %cst_267 : f32 to vector<2x16xf32>
    %1460 = arith.subf %1459, %1453 : vector<2x16xf32>
    %1461 = arith.mulf %1460, %1458 : vector<2x16xf32>
    %1462 = arith.mulf %1453, %1437 : vector<2x16xf32>
    %1463 = arith.addf %1461, %1462 : vector<2x16xf32>
    %1464 = tpu.concatenate %1432, %1463 in 1 : vector<2x16xf32>, vector<2x16xf32> -> vector<2x32xf32>
    %c3_268 = arith.constant 3 : index
    %c0_269 = arith.constant 0 : index
    %c0_270 = arith.constant 0 : index
    %1465 = vector.load %arg19[%c3_268, %c0_269, %c0_270] : memref<16x2x16xf32, #tpu.memory_space<vmem>>, vector<1x2x16xf32>
    %1466 = vector.shape_cast %1465 : vector<1x2x16xf32> to vector<2x16xf32>
    %1467 = vector.shape_cast %1432 : vector<2x16xf32> to vector<1x2x16xf32>
    tpu.vector_store %arg19[%c3_268, %c0_269, %c0_270], %1467 {strides = array<i32>} : memref<16x2x16xf32, #tpu.memory_space<vmem>>, vector<1x2x16xf32>,
    %c12_271 = arith.constant 12 : index
    %c0_272 = arith.constant 0 : index
    %c0_273 = arith.constant 0 : index
    %1468 = vector.load %arg20[%c12_271, %c0_272, %c0_273] : memref<16x2x16xf32, #tpu.memory_space<vmem>>, vector<1x2x16xf32>
    %1469 = vector.shape_cast %1468 : vector<1x2x16xf32> to vector<2x16xf32>
    %1470 = vector.shape_cast %1463 : vector<2x16xf32> to vector<1x2x16xf32>
    tpu.vector_store %arg20[%c12_271, %c0_272, %c0_273], %1470 {strides = array<i32>} : memref<16x2x16xf32, #tpu.memory_space<vmem>>, vector<1x2x16xf32>,
    %cst_274 = arith.constant dense<0.000000e+00> : vector<2x96xf32>
    %1471 = tpu.matmul %1464, %1180, %cst_274 {dimension_numbers = #tpu.dot_dimension_numbers<[1], [0], [0], [1], [0, 0, 1, 1], [], []>} : vector<2x32xf32>, vector<32x96xf32>, vector<2x96xf32> -> vector<2x96xf32>
    %1472 = vector.broadcast %1181 : vector<1x96xf32> to vector<2x96xf32>
    %1473 = arith.addf %1471, %1472 : vector<2x96xf32>
    %1474 = vector.extract_strided_slice %1179 {offsets = [4, 0, 0], sizes = [1, 2, 96], strides = [1, 1, 1]} : vector<16x2x96xf32> to vector<1x2x96xf32>
    %1475 = vector.shape_cast %1474 : vector<1x2x96xf32> to vector<2x96xf32>
    %1476 = vector.extract_strided_slice %1475 {offsets = [0, 0], sizes = [2, 48], strides = [1, 1]} : vector<2x96xf32> to vector<2x48xf32>
    %1477 = vector.extract_strided_slice %1473 {offsets = [0, 0], sizes = [2, 48], strides = [1, 1]} : vector<2x96xf32> to vector<2x48xf32>
    %1478 = vector.extract_strided_slice %1464 {offsets = [0, 0], sizes = [2, 16], strides = [1, 1]} : vector<2x32xf32> to vector<2x16xf32>
    %1479 = vector.extract_strided_slice %1476 {offsets = [0, 0], sizes = [2, 16], strides = [1, 1]} : vector<2x48xf32> to vector<2x16xf32>
    %1480 = vector.extract_strided_slice %1477 {offsets = [0, 0], sizes = [2, 16], strides = [1, 1]} : vector<2x48xf32> to vector<2x16xf32>
    %1481 = arith.addf %1479, %1480 : vector<2x16xf32>
    %1482 = arith.negf %1481 : vector<2x16xf32>
    %1483 = math.exp %1482 : vector<2x16xf32>
    %cst_275 = arith.constant 1.000000e+00 : f32
    %1484 = vector.broadcast %cst_275 : f32 to vector<2x16xf32>
    %1485 = arith.addf %1484, %1483 : vector<2x16xf32>
    %1486 = arith.divf %1484, %1485 : vector<2x16xf32>
    %1487 = vector.extract_strided_slice %1476 {offsets = [0, 16], sizes = [2, 16], strides = [1, 1]} : vector<2x48xf32> to vector<2x16xf32>
    %1488 = vector.extract_strided_slice %1477 {offsets = [0, 16], sizes = [2, 16], strides = [1, 1]} : vector<2x48xf32> to vector<2x16xf32>
    %1489 = arith.addf %1487, %1488 : vector<2x16xf32>
    %1490 = arith.negf %1489 : vector<2x16xf32>
    %1491 = math.exp %1490 : vector<2x16xf32>
    %cst_276 = arith.constant 1.000000e+00 : f32
    %1492 = vector.broadcast %cst_276 : f32 to vector<2x16xf32>
    %1493 = arith.addf %1492, %1491 : vector<2x16xf32>
    %1494 = arith.divf %1492, %1493 : vector<2x16xf32>
    %1495 = vector.extract_strided_slice %1476 {offsets = [0, 32], sizes = [2, 16], strides = [1, 1]} : vector<2x48xf32> to vector<2x16xf32>
    %1496 = vector.extract_strided_slice %1477 {offsets = [0, 32], sizes = [2, 16], strides = [1, 1]} : vector<2x48xf32> to vector<2x16xf32>
    %1497 = arith.mulf %1486, %1496 : vector<2x16xf32>
    %1498 = arith.addf %1495, %1497 : vector<2x16xf32>
    %1499 = math.tanh %1498 : vector<2x16xf32>
    %cst_277 = arith.constant 1.000000e+00 : f32
    %1500 = vector.broadcast %cst_277 : f32 to vector<2x16xf32>
    %1501 = arith.subf %1500, %1494 : vector<2x16xf32>
    %1502 = arith.mulf %1501, %1499 : vector<2x16xf32>
    %1503 = arith.mulf %1494, %1478 : vector<2x16xf32>
    %1504 = arith.addf %1502, %1503 : vector<2x16xf32>
    %1505 = vector.extract_strided_slice %1179 {offsets = [11, 0, 0], sizes = [1, 2, 96], strides = [1, 1, 1]} : vector<16x2x96xf32> to vector<1x2x96xf32>
    %1506 = vector.shape_cast %1505 : vector<1x2x96xf32> to vector<2x96xf32>
    %1507 = vector.extract_strided_slice %1506 {offsets = [0, 48], sizes = [2, 48], strides = [1, 1]} : vector<2x96xf32> to vector<2x48xf32>
    %1508 = vector.extract_strided_slice %1473 {offsets = [0, 48], sizes = [2, 48], strides = [1, 1]} : vector<2x96xf32> to vector<2x48xf32>
    %1509 = vector.extract_strided_slice %1464 {offsets = [0, 16], sizes = [2, 16], strides = [1, 1]} : vector<2x32xf32> to vector<2x16xf32>
    %1510 = vector.extract_strided_slice %1507 {offsets = [0, 0], sizes = [2, 16], strides = [1, 1]} : vector<2x48xf32> to vector<2x16xf32>
    %1511 = vector.extract_strided_slice %1508 {offsets = [0, 0], sizes = [2, 16], strides = [1, 1]} : vector<2x48xf32> to vector<2x16xf32>
    %1512 = arith.addf %1510, %1511 : vector<2x16xf32>
    %1513 = arith.negf %1512 : vector<2x16xf32>
    %1514 = math.exp %1513 : vector<2x16xf32>
    %cst_278 = arith.constant 1.000000e+00 : f32
    %1515 = vector.broadcast %cst_278 : f32 to vector<2x16xf32>
    %1516 = arith.addf %1515, %1514 : vector<2x16xf32>
    %1517 = arith.divf %1515, %1516 : vector<2x16xf32>
    %1518 = vector.extract_strided_slice %1507 {offsets = [0, 16], sizes = [2, 16], strides = [1, 1]} : vector<2x48xf32> to vector<2x16xf32>
    %1519 = vector.extract_strided_slice %1508 {offsets = [0, 16], sizes = [2, 16], strides = [1, 1]} : vector<2x48xf32> to vector<2x16xf32>
    %1520 = arith.addf %1518, %1519 : vector<2x16xf32>
    %1521 = arith.negf %1520 : vector<2x16xf32>
    %1522 = math.exp %1521 : vector<2x16xf32>
    %cst_279 = arith.constant 1.000000e+00 : f32
    %1523 = vector.broadcast %cst_279 : f32 to vector<2x16xf32>
    %1524 = arith.addf %1523, %1522 : vector<2x16xf32>
    %1525 = arith.divf %1523, %1524 : vector<2x16xf32>
    %1526 = vector.extract_strided_slice %1507 {offsets = [0, 32], sizes = [2, 16], strides = [1, 1]} : vector<2x48xf32> to vector<2x16xf32>
    %1527 = vector.extract_strided_slice %1508 {offsets = [0, 32], sizes = [2, 16], strides = [1, 1]} : vector<2x48xf32> to vector<2x16xf32>
    %1528 = arith.mulf %1517, %1527 : vector<2x16xf32>
    %1529 = arith.addf %1526, %1528 : vector<2x16xf32>
    %1530 = math.tanh %1529 : vector<2x16xf32>
    %cst_280 = arith.constant 1.000000e+00 : f32
    %1531 = vector.broadcast %cst_280 : f32 to vector<2x16xf32>
    %1532 = arith.subf %1531, %1525 : vector<2x16xf32>
    %1533 = arith.mulf %1532, %1530 : vector<2x16xf32>
    %1534 = arith.mulf %1525, %1509 : vector<2x16xf32>
    %1535 = arith.addf %1533, %1534 : vector<2x16xf32>
    %1536 = tpu.concatenate %1504, %1535 in 1 : vector<2x16xf32>, vector<2x16xf32> -> vector<2x32xf32>
    %c4_281 = arith.constant 4 : index
    %c0_282 = arith.constant 0 : index
    %c0_283 = arith.constant 0 : index
    %1537 = vector.load %arg19[%c4_281, %c0_282, %c0_283] : memref<16x2x16xf32, #tpu.memory_space<vmem>>, vector<1x2x16xf32>
    %1538 = vector.shape_cast %1537 : vector<1x2x16xf32> to vector<2x16xf32>
    %1539 = vector.shape_cast %1504 : vector<2x16xf32> to vector<1x2x16xf32>
    tpu.vector_store %arg19[%c4_281, %c0_282, %c0_283], %1539 {strides = array<i32>} : memref<16x2x16xf32, #tpu.memory_space<vmem>>, vector<1x2x16xf32>,
    %c11_284 = arith.constant 11 : index
    %c0_285 = arith.constant 0 : index
    %c0_286 = arith.constant 0 : index
    %1540 = vector.load %arg20[%c11_284, %c0_285, %c0_286] : memref<16x2x16xf32, #tpu.memory_space<vmem>>, vector<1x2x16xf32>
    %1541 = vector.shape_cast %1540 : vector<1x2x16xf32> to vector<2x16xf32>
    %1542 = vector.shape_cast %1535 : vector<2x16xf32> to vector<1x2x16xf32>
    tpu.vector_store %arg20[%c11_284, %c0_285, %c0_286], %1542 {strides = array<i32>} : memref<16x2x16xf32, #tpu.memory_space<vmem>>, vector<1x2x16xf32>,
    %cst_287 = arith.constant dense<0.000000e+00> : vector<2x96xf32>
    %1543 = tpu.matmul %1536, %1180, %cst_287 {dimension_numbers = #tpu.dot_dimension_numbers<[1], [0], [0], [1], [0, 0, 1, 1], [], []>} : vector<2x32xf32>, vector<32x96xf32>, vector<2x96xf32> -> vector<2x96xf32>
    %1544 = vector.broadcast %1181 : vector<1x96xf32> to vector<2x96xf32>
    %1545 = arith.addf %1543, %1544 : vector<2x96xf32>
    %1546 = vector.extract_strided_slice %1179 {offsets = [5, 0, 0], sizes = [1, 2, 96], strides = [1, 1, 1]} : vector<16x2x96xf32> to vector<1x2x96xf32>
    %1547 = vector.shape_cast %1546 : vector<1x2x96xf32> to vector<2x96xf32>
    %1548 = vector.extract_strided_slice %1547 {offsets = [0, 0], sizes = [2, 48], strides = [1, 1]} : vector<2x96xf32> to vector<2x48xf32>
    %1549 = vector.extract_strided_slice %1545 {offsets = [0, 0], sizes = [2, 48], strides = [1, 1]} : vector<2x96xf32> to vector<2x48xf32>
    %1550 = vector.extract_strided_slice %1536 {offsets = [0, 0], sizes = [2, 16], strides = [1, 1]} : vector<2x32xf32> to vector<2x16xf32>
    %1551 = vector.extract_strided_slice %1548 {offsets = [0, 0], sizes = [2, 16], strides = [1, 1]} : vector<2x48xf32> to vector<2x16xf32>
    %1552 = vector.extract_strided_slice %1549 {offsets = [0, 0], sizes = [2, 16], strides = [1, 1]} : vector<2x48xf32> to vector<2x16xf32>
    %1553 = arith.addf %1551, %1552 : vector<2x16xf32>
    %1554 = arith.negf %1553 : vector<2x16xf32>
    %1555 = math.exp %1554 : vector<2x16xf32>
    %cst_288 = arith.constant 1.000000e+00 : f32
    %1556 = vector.broadcast %cst_288 : f32 to vector<2x16xf32>
    %1557 = arith.addf %1556, %1555 : vector<2x16xf32>
    %1558 = arith.divf %1556, %1557 : vector<2x16xf32>
    %1559 = vector.extract_strided_slice %1548 {offsets = [0, 16], sizes = [2, 16], strides = [1, 1]} : vector<2x48xf32> to vector<2x16xf32>
    %1560 = vector.extract_strided_slice %1549 {offsets = [0, 16], sizes = [2, 16], strides = [1, 1]} : vector<2x48xf32> to vector<2x16xf32>
    %1561 = arith.addf %1559, %1560 : vector<2x16xf32>
    %1562 = arith.negf %1561 : vector<2x16xf32>
    %1563 = math.exp %1562 : vector<2x16xf32>
    %cst_289 = arith.constant 1.000000e+00 : f32
    %1564 = vector.broadcast %cst_289 : f32 to vector<2x16xf32>
    %1565 = arith.addf %1564, %1563 : vector<2x16xf32>
    %1566 = arith.divf %1564, %1565 : vector<2x16xf32>
    %1567 = vector.extract_strided_slice %1548 {offsets = [0, 32], sizes = [2, 16], strides = [1, 1]} : vector<2x48xf32> to vector<2x16xf32>
    %1568 = vector.extract_strided_slice %1549 {offsets = [0, 32], sizes = [2, 16], strides = [1, 1]} : vector<2x48xf32> to vector<2x16xf32>
    %1569 = arith.mulf %1558, %1568 : vector<2x16xf32>
    %1570 = arith.addf %1567, %1569 : vector<2x16xf32>
    %1571 = math.tanh %1570 : vector<2x16xf32>
    %cst_290 = arith.constant 1.000000e+00 : f32
    %1572 = vector.broadcast %cst_290 : f32 to vector<2x16xf32>
    %1573 = arith.subf %1572, %1566 : vector<2x16xf32>
    %1574 = arith.mulf %1573, %1571 : vector<2x16xf32>
    %1575 = arith.mulf %1566, %1550 : vector<2x16xf32>
    %1576 = arith.addf %1574, %1575 : vector<2x16xf32>
    %1577 = vector.extract_strided_slice %1179 {offsets = [10, 0, 0], sizes = [1, 2, 96], strides = [1, 1, 1]} : vector<16x2x96xf32> to vector<1x2x96xf32>
    %1578 = vector.shape_cast %1577 : vector<1x2x96xf32> to vector<2x96xf32>
    %1579 = vector.extract_strided_slice %1578 {offsets = [0, 48], sizes = [2, 48], strides = [1, 1]} : vector<2x96xf32> to vector<2x48xf32>
    %1580 = vector.extract_strided_slice %1545 {offsets = [0, 48], sizes = [2, 48], strides = [1, 1]} : vector<2x96xf32> to vector<2x48xf32>
    %1581 = vector.extract_strided_slice %1536 {offsets = [0, 16], sizes = [2, 16], strides = [1, 1]} : vector<2x32xf32> to vector<2x16xf32>
    %1582 = vector.extract_strided_slice %1579 {offsets = [0, 0], sizes = [2, 16], strides = [1, 1]} : vector<2x48xf32> to vector<2x16xf32>
    %1583 = vector.extract_strided_slice %1580 {offsets = [0, 0], sizes = [2, 16], strides = [1, 1]} : vector<2x48xf32> to vector<2x16xf32>
    %1584 = arith.addf %1582, %1583 : vector<2x16xf32>
    %1585 = arith.negf %1584 : vector<2x16xf32>
    %1586 = math.exp %1585 : vector<2x16xf32>
    %cst_291 = arith.constant 1.000000e+00 : f32
    %1587 = vector.broadcast %cst_291 : f32 to vector<2x16xf32>
    %1588 = arith.addf %1587, %1586 : vector<2x16xf32>
    %1589 = arith.divf %1587, %1588 : vector<2x16xf32>
    %1590 = vector.extract_strided_slice %1579 {offsets = [0, 16], sizes = [2, 16], strides = [1, 1]} : vector<2x48xf32> to vector<2x16xf32>
    %1591 = vector.extract_strided_slice %1580 {offsets = [0, 16], sizes = [2, 16], strides = [1, 1]} : vector<2x48xf32> to vector<2x16xf32>
    %1592 = arith.addf %1590, %1591 : vector<2x16xf32>
    %1593 = arith.negf %1592 : vector<2x16xf32>
    %1594 = math.exp %1593 : vector<2x16xf32>
    %cst_292 = arith.constant 1.000000e+00 : f32
    %1595 = vector.broadcast %cst_292 : f32 to vector<2x16xf32>
    %1596 = arith.addf %1595, %1594 : vector<2x16xf32>
    %1597 = arith.divf %1595, %1596 : vector<2x16xf32>
    %1598 = vector.extract_strided_slice %1579 {offsets = [0, 32], sizes = [2, 16], strides = [1, 1]} : vector<2x48xf32> to vector<2x16xf32>
    %1599 = vector.extract_strided_slice %1580 {offsets = [0, 32], sizes = [2, 16], strides = [1, 1]} : vector<2x48xf32> to vector<2x16xf32>
    %1600 = arith.mulf %1589, %1599 : vector<2x16xf32>
    %1601 = arith.addf %1598, %1600 : vector<2x16xf32>
    %1602 = math.tanh %1601 : vector<2x16xf32>
    %cst_293 = arith.constant 1.000000e+00 : f32
    %1603 = vector.broadcast %cst_293 : f32 to vector<2x16xf32>
    %1604 = arith.subf %1603, %1597 : vector<2x16xf32>
    %1605 = arith.mulf %1604, %1602 : vector<2x16xf32>
    %1606 = arith.mulf %1597, %1581 : vector<2x16xf32>
    %1607 = arith.addf %1605, %1606 : vector<2x16xf32>
    %1608 = tpu.concatenate %1576, %1607 in 1 : vector<2x16xf32>, vector<2x16xf32> -> vector<2x32xf32>
    %c5_294 = arith.constant 5 : index
    %c0_295 = arith.constant 0 : index
    %c0_296 = arith.constant 0 : index
    %1609 = vector.load %arg19[%c5_294, %c0_295, %c0_296] : memref<16x2x16xf32, #tpu.memory_space<vmem>>, vector<1x2x16xf32>
    %1610 = vector.shape_cast %1609 : vector<1x2x16xf32> to vector<2x16xf32>
    %1611 = vector.shape_cast %1576 : vector<2x16xf32> to vector<1x2x16xf32>
    tpu.vector_store %arg19[%c5_294, %c0_295, %c0_296], %1611 {strides = array<i32>} : memref<16x2x16xf32, #tpu.memory_space<vmem>>, vector<1x2x16xf32>,
    %c10_297 = arith.constant 10 : index
    %c0_298 = arith.constant 0 : index
    %c0_299 = arith.constant 0 : index
    %1612 = vector.load %arg20[%c10_297, %c0_298, %c0_299] : memref<16x2x16xf32, #tpu.memory_space<vmem>>, vector<1x2x16xf32>
    %1613 = vector.shape_cast %1612 : vector<1x2x16xf32> to vector<2x16xf32>
    %1614 = vector.shape_cast %1607 : vector<2x16xf32> to vector<1x2x16xf32>
    tpu.vector_store %arg20[%c10_297, %c0_298, %c0_299], %1614 {strides = array<i32>} : memref<16x2x16xf32, #tpu.memory_space<vmem>>, vector<1x2x16xf32>,
    %cst_300 = arith.constant dense<0.000000e+00> : vector<2x96xf32>
    %1615 = tpu.matmul %1608, %1180, %cst_300 {dimension_numbers = #tpu.dot_dimension_numbers<[1], [0], [0], [1], [0, 0, 1, 1], [], []>} : vector<2x32xf32>, vector<32x96xf32>, vector<2x96xf32> -> vector<2x96xf32>
    %1616 = vector.broadcast %1181 : vector<1x96xf32> to vector<2x96xf32>
    %1617 = arith.addf %1615, %1616 : vector<2x96xf32>
    %1618 = vector.extract_strided_slice %1179 {offsets = [6, 0, 0], sizes = [1, 2, 96], strides = [1, 1, 1]} : vector<16x2x96xf32> to vector<1x2x96xf32>
    %1619 = vector.shape_cast %1618 : vector<1x2x96xf32> to vector<2x96xf32>
    %1620 = vector.extract_strided_slice %1619 {offsets = [0, 0], sizes = [2, 48], strides = [1, 1]} : vector<2x96xf32> to vector<2x48xf32>
    %1621 = vector.extract_strided_slice %1617 {offsets = [0, 0], sizes = [2, 48], strides = [1, 1]} : vector<2x96xf32> to vector<2x48xf32>
    %1622 = vector.extract_strided_slice %1608 {offsets = [0, 0], sizes = [2, 16], strides = [1, 1]} : vector<2x32xf32> to vector<2x16xf32>
    %1623 = vector.extract_strided_slice %1620 {offsets = [0, 0], sizes = [2, 16], strides = [1, 1]} : vector<2x48xf32> to vector<2x16xf32>
    %1624 = vector.extract_strided_slice %1621 {offsets = [0, 0], sizes = [2, 16], strides = [1, 1]} : vector<2x48xf32> to vector<2x16xf32>
    %1625 = arith.addf %1623, %1624 : vector<2x16xf32>
    %1626 = arith.negf %1625 : vector<2x16xf32>
    %1627 = math.exp %1626 : vector<2x16xf32>
    %cst_301 = arith.constant 1.000000e+00 : f32
    %1628 = vector.broadcast %cst_301 : f32 to vector<2x16xf32>
    %1629 = arith.addf %1628, %1627 : vector<2x16xf32>
    %1630 = arith.divf %1628, %1629 : vector<2x16xf32>
    %1631 = vector.extract_strided_slice %1620 {offsets = [0, 16], sizes = [2, 16], strides = [1, 1]} : vector<2x48xf32> to vector<2x16xf32>
    %1632 = vector.extract_strided_slice %1621 {offsets = [0, 16], sizes = [2, 16], strides = [1, 1]} : vector<2x48xf32> to vector<2x16xf32>
    %1633 = arith.addf %1631, %1632 : vector<2x16xf32>
    %1634 = arith.negf %1633 : vector<2x16xf32>
    %1635 = math.exp %1634 : vector<2x16xf32>
    %cst_302 = arith.constant 1.000000e+00 : f32
    %1636 = vector.broadcast %cst_302 : f32 to vector<2x16xf32>
    %1637 = arith.addf %1636, %1635 : vector<2x16xf32>
    %1638 = arith.divf %1636, %1637 : vector<2x16xf32>
    %1639 = vector.extract_strided_slice %1620 {offsets = [0, 32], sizes = [2, 16], strides = [1, 1]} : vector<2x48xf32> to vector<2x16xf32>
    %1640 = vector.extract_strided_slice %1621 {offsets = [0, 32], sizes = [2, 16], strides = [1, 1]} : vector<2x48xf32> to vector<2x16xf32>
    %1641 = arith.mulf %1630, %1640 : vector<2x16xf32>
    %1642 = arith.addf %1639, %1641 : vector<2x16xf32>
    %1643 = math.tanh %1642 : vector<2x16xf32>
    %cst_303 = arith.constant 1.000000e+00 : f32
    %1644 = vector.broadcast %cst_303 : f32 to vector<2x16xf32>
    %1645 = arith.subf %1644, %1638 : vector<2x16xf32>
    %1646 = arith.mulf %1645, %1643 : vector<2x16xf32>
    %1647 = arith.mulf %1638, %1622 : vector<2x16xf32>
    %1648 = arith.addf %1646, %1647 : vector<2x16xf32>
    %1649 = vector.extract_strided_slice %1179 {offsets = [9, 0, 0], sizes = [1, 2, 96], strides = [1, 1, 1]} : vector<16x2x96xf32> to vector<1x2x96xf32>
    %1650 = vector.shape_cast %1649 : vector<1x2x96xf32> to vector<2x96xf32>
    %1651 = vector.extract_strided_slice %1650 {offsets = [0, 48], sizes = [2, 48], strides = [1, 1]} : vector<2x96xf32> to vector<2x48xf32>
    %1652 = vector.extract_strided_slice %1617 {offsets = [0, 48], sizes = [2, 48], strides = [1, 1]} : vector<2x96xf32> to vector<2x48xf32>
    %1653 = vector.extract_strided_slice %1608 {offsets = [0, 16], sizes = [2, 16], strides = [1, 1]} : vector<2x32xf32> to vector<2x16xf32>
    %1654 = vector.extract_strided_slice %1651 {offsets = [0, 0], sizes = [2, 16], strides = [1, 1]} : vector<2x48xf32> to vector<2x16xf32>
    %1655 = vector.extract_strided_slice %1652 {offsets = [0, 0], sizes = [2, 16], strides = [1, 1]} : vector<2x48xf32> to vector<2x16xf32>
    %1656 = arith.addf %1654, %1655 : vector<2x16xf32>
    %1657 = arith.negf %1656 : vector<2x16xf32>
    %1658 = math.exp %1657 : vector<2x16xf32>
    %cst_304 = arith.constant 1.000000e+00 : f32
    %1659 = vector.broadcast %cst_304 : f32 to vector<2x16xf32>
    %1660 = arith.addf %1659, %1658 : vector<2x16xf32>
    %1661 = arith.divf %1659, %1660 : vector<2x16xf32>
    %1662 = vector.extract_strided_slice %1651 {offsets = [0, 16], sizes = [2, 16], strides = [1, 1]} : vector<2x48xf32> to vector<2x16xf32>
    %1663 = vector.extract_strided_slice %1652 {offsets = [0, 16], sizes = [2, 16], strides = [1, 1]} : vector<2x48xf32> to vector<2x16xf32>
    %1664 = arith.addf %1662, %1663 : vector<2x16xf32>
    %1665 = arith.negf %1664 : vector<2x16xf32>
    %1666 = math.exp %1665 : vector<2x16xf32>
    %cst_305 = arith.constant 1.000000e+00 : f32
    %1667 = vector.broadcast %cst_305 : f32 to vector<2x16xf32>
    %1668 = arith.addf %1667, %1666 : vector<2x16xf32>
    %1669 = arith.divf %1667, %1668 : vector<2x16xf32>
    %1670 = vector.extract_strided_slice %1651 {offsets = [0, 32], sizes = [2, 16], strides = [1, 1]} : vector<2x48xf32> to vector<2x16xf32>
    %1671 = vector.extract_strided_slice %1652 {offsets = [0, 32], sizes = [2, 16], strides = [1, 1]} : vector<2x48xf32> to vector<2x16xf32>
    %1672 = arith.mulf %1661, %1671 : vector<2x16xf32>
    %1673 = arith.addf %1670, %1672 : vector<2x16xf32>
    %1674 = math.tanh %1673 : vector<2x16xf32>
    %cst_306 = arith.constant 1.000000e+00 : f32
    %1675 = vector.broadcast %cst_306 : f32 to vector<2x16xf32>
    %1676 = arith.subf %1675, %1669 : vector<2x16xf32>
    %1677 = arith.mulf %1676, %1674 : vector<2x16xf32>
    %1678 = arith.mulf %1669, %1653 : vector<2x16xf32>
    %1679 = arith.addf %1677, %1678 : vector<2x16xf32>
    %1680 = tpu.concatenate %1648, %1679 in 1 : vector<2x16xf32>, vector<2x16xf32> -> vector<2x32xf32>
    %c6_307 = arith.constant 6 : index
    %c0_308 = arith.constant 0 : index
    %c0_309 = arith.constant 0 : index
    %1681 = vector.load %arg19[%c6_307, %c0_308, %c0_309] : memref<16x2x16xf32, #tpu.memory_space<vmem>>, vector<1x2x16xf32>
    %1682 = vector.shape_cast %1681 : vector<1x2x16xf32> to vector<2x16xf32>
    %1683 = vector.shape_cast %1648 : vector<2x16xf32> to vector<1x2x16xf32>
    tpu.vector_store %arg19[%c6_307, %c0_308, %c0_309], %1683 {strides = array<i32>} : memref<16x2x16xf32, #tpu.memory_space<vmem>>, vector<1x2x16xf32>,
    %c9_310 = arith.constant 9 : index
    %c0_311 = arith.constant 0 : index
    %c0_312 = arith.constant 0 : index
    %1684 = vector.load %arg20[%c9_310, %c0_311, %c0_312] : memref<16x2x16xf32, #tpu.memory_space<vmem>>, vector<1x2x16xf32>
    %1685 = vector.shape_cast %1684 : vector<1x2x16xf32> to vector<2x16xf32>
    %1686 = vector.shape_cast %1679 : vector<2x16xf32> to vector<1x2x16xf32>
    tpu.vector_store %arg20[%c9_310, %c0_311, %c0_312], %1686 {strides = array<i32>} : memref<16x2x16xf32, #tpu.memory_space<vmem>>, vector<1x2x16xf32>,
    %cst_313 = arith.constant dense<0.000000e+00> : vector<2x96xf32>
    %1687 = tpu.matmul %1680, %1180, %cst_313 {dimension_numbers = #tpu.dot_dimension_numbers<[1], [0], [0], [1], [0, 0, 1, 1], [], []>} : vector<2x32xf32>, vector<32x96xf32>, vector<2x96xf32> -> vector<2x96xf32>
    %1688 = vector.broadcast %1181 : vector<1x96xf32> to vector<2x96xf32>
    %1689 = arith.addf %1687, %1688 : vector<2x96xf32>
    %1690 = vector.extract_strided_slice %1179 {offsets = [7, 0, 0], sizes = [1, 2, 96], strides = [1, 1, 1]} : vector<16x2x96xf32> to vector<1x2x96xf32>
    %1691 = vector.shape_cast %1690 : vector<1x2x96xf32> to vector<2x96xf32>
    %1692 = vector.extract_strided_slice %1691 {offsets = [0, 0], sizes = [2, 48], strides = [1, 1]} : vector<2x96xf32> to vector<2x48xf32>
    %1693 = vector.extract_strided_slice %1689 {offsets = [0, 0], sizes = [2, 48], strides = [1, 1]} : vector<2x96xf32> to vector<2x48xf32>
    %1694 = vector.extract_strided_slice %1680 {offsets = [0, 0], sizes = [2, 16], strides = [1, 1]} : vector<2x32xf32> to vector<2x16xf32>
    %1695 = vector.extract_strided_slice %1692 {offsets = [0, 0], sizes = [2, 16], strides = [1, 1]} : vector<2x48xf32> to vector<2x16xf32>
    %1696 = vector.extract_strided_slice %1693 {offsets = [0, 0], sizes = [2, 16], strides = [1, 1]} : vector<2x48xf32> to vector<2x16xf32>
    %1697 = arith.addf %1695, %1696 : vector<2x16xf32>
    %1698 = arith.negf %1697 : vector<2x16xf32>
    %1699 = math.exp %1698 : vector<2x16xf32>
    %cst_314 = arith.constant 1.000000e+00 : f32
    %1700 = vector.broadcast %cst_314 : f32 to vector<2x16xf32>
    %1701 = arith.addf %1700, %1699 : vector<2x16xf32>
    %1702 = arith.divf %1700, %1701 : vector<2x16xf32>
    %1703 = vector.extract_strided_slice %1692 {offsets = [0, 16], sizes = [2, 16], strides = [1, 1]} : vector<2x48xf32> to vector<2x16xf32>
    %1704 = vector.extract_strided_slice %1693 {offsets = [0, 16], sizes = [2, 16], strides = [1, 1]} : vector<2x48xf32> to vector<2x16xf32>
    %1705 = arith.addf %1703, %1704 : vector<2x16xf32>
    %1706 = arith.negf %1705 : vector<2x16xf32>
    %1707 = math.exp %1706 : vector<2x16xf32>
    %cst_315 = arith.constant 1.000000e+00 : f32
    %1708 = vector.broadcast %cst_315 : f32 to vector<2x16xf32>
    %1709 = arith.addf %1708, %1707 : vector<2x16xf32>
    %1710 = arith.divf %1708, %1709 : vector<2x16xf32>
    %1711 = vector.extract_strided_slice %1692 {offsets = [0, 32], sizes = [2, 16], strides = [1, 1]} : vector<2x48xf32> to vector<2x16xf32>
    %1712 = vector.extract_strided_slice %1693 {offsets = [0, 32], sizes = [2, 16], strides = [1, 1]} : vector<2x48xf32> to vector<2x16xf32>
    %1713 = arith.mulf %1702, %1712 : vector<2x16xf32>
    %1714 = arith.addf %1711, %1713 : vector<2x16xf32>
    %1715 = math.tanh %1714 : vector<2x16xf32>
    %cst_316 = arith.constant 1.000000e+00 : f32
    %1716 = vector.broadcast %cst_316 : f32 to vector<2x16xf32>
    %1717 = arith.subf %1716, %1710 : vector<2x16xf32>
    %1718 = arith.mulf %1717, %1715 : vector<2x16xf32>
    %1719 = arith.mulf %1710, %1694 : vector<2x16xf32>
    %1720 = arith.addf %1718, %1719 : vector<2x16xf32>
    %1721 = vector.extract_strided_slice %1179 {offsets = [8, 0, 0], sizes = [1, 2, 96], strides = [1, 1, 1]} : vector<16x2x96xf32> to vector<1x2x96xf32>
    %1722 = vector.shape_cast %1721 : vector<1x2x96xf32> to vector<2x96xf32>
    %1723 = vector.extract_strided_slice %1722 {offsets = [0, 48], sizes = [2, 48], strides = [1, 1]} : vector<2x96xf32> to vector<2x48xf32>
    %1724 = vector.extract_strided_slice %1689 {offsets = [0, 48], sizes = [2, 48], strides = [1, 1]} : vector<2x96xf32> to vector<2x48xf32>
    %1725 = vector.extract_strided_slice %1680 {offsets = [0, 16], sizes = [2, 16], strides = [1, 1]} : vector<2x32xf32> to vector<2x16xf32>
    %1726 = vector.extract_strided_slice %1723 {offsets = [0, 0], sizes = [2, 16], strides = [1, 1]} : vector<2x48xf32> to vector<2x16xf32>
    %1727 = vector.extract_strided_slice %1724 {offsets = [0, 0], sizes = [2, 16], strides = [1, 1]} : vector<2x48xf32> to vector<2x16xf32>
    %1728 = arith.addf %1726, %1727 : vector<2x16xf32>
    %1729 = arith.negf %1728 : vector<2x16xf32>
    %1730 = math.exp %1729 : vector<2x16xf32>
    %cst_317 = arith.constant 1.000000e+00 : f32
    %1731 = vector.broadcast %cst_317 : f32 to vector<2x16xf32>
    %1732 = arith.addf %1731, %1730 : vector<2x16xf32>
    %1733 = arith.divf %1731, %1732 : vector<2x16xf32>
    %1734 = vector.extract_strided_slice %1723 {offsets = [0, 16], sizes = [2, 16], strides = [1, 1]} : vector<2x48xf32> to vector<2x16xf32>
    %1735 = vector.extract_strided_slice %1724 {offsets = [0, 16], sizes = [2, 16], strides = [1, 1]} : vector<2x48xf32> to vector<2x16xf32>
    %1736 = arith.addf %1734, %1735 : vector<2x16xf32>
    %1737 = arith.negf %1736 : vector<2x16xf32>
    %1738 = math.exp %1737 : vector<2x16xf32>
    %cst_318 = arith.constant 1.000000e+00 : f32
    %1739 = vector.broadcast %cst_318 : f32 to vector<2x16xf32>
    %1740 = arith.addf %1739, %1738 : vector<2x16xf32>
    %1741 = arith.divf %1739, %1740 : vector<2x16xf32>
    %1742 = vector.extract_strided_slice %1723 {offsets = [0, 32], sizes = [2, 16], strides = [1, 1]} : vector<2x48xf32> to vector<2x16xf32>
    %1743 = vector.extract_strided_slice %1724 {offsets = [0, 32], sizes = [2, 16], strides = [1, 1]} : vector<2x48xf32> to vector<2x16xf32>
    %1744 = arith.mulf %1733, %1743 : vector<2x16xf32>
    %1745 = arith.addf %1742, %1744 : vector<2x16xf32>
    %1746 = math.tanh %1745 : vector<2x16xf32>
    %cst_319 = arith.constant 1.000000e+00 : f32
    %1747 = vector.broadcast %cst_319 : f32 to vector<2x16xf32>
    %1748 = arith.subf %1747, %1741 : vector<2x16xf32>
    %1749 = arith.mulf %1748, %1746 : vector<2x16xf32>
    %1750 = arith.mulf %1741, %1725 : vector<2x16xf32>
    %1751 = arith.addf %1749, %1750 : vector<2x16xf32>
    %1752 = tpu.concatenate %1720, %1751 in 1 : vector<2x16xf32>, vector<2x16xf32> -> vector<2x32xf32>
    %c7_320 = arith.constant 7 : index
    %c0_321 = arith.constant 0 : index
    %c0_322 = arith.constant 0 : index
    %1753 = vector.load %arg19[%c7_320, %c0_321, %c0_322] : memref<16x2x16xf32, #tpu.memory_space<vmem>>, vector<1x2x16xf32>
    %1754 = vector.shape_cast %1753 : vector<1x2x16xf32> to vector<2x16xf32>
    %1755 = vector.shape_cast %1720 : vector<2x16xf32> to vector<1x2x16xf32>
    tpu.vector_store %arg19[%c7_320, %c0_321, %c0_322], %1755 {strides = array<i32>} : memref<16x2x16xf32, #tpu.memory_space<vmem>>, vector<1x2x16xf32>,
    %c8_323 = arith.constant 8 : index
    %c0_324 = arith.constant 0 : index
    %c0_325 = arith.constant 0 : index
    %1756 = vector.load %arg20[%c8_323, %c0_324, %c0_325] : memref<16x2x16xf32, #tpu.memory_space<vmem>>, vector<1x2x16xf32>
    %1757 = vector.shape_cast %1756 : vector<1x2x16xf32> to vector<2x16xf32>
    %1758 = vector.shape_cast %1751 : vector<2x16xf32> to vector<1x2x16xf32>
    tpu.vector_store %arg20[%c8_323, %c0_324, %c0_325], %1758 {strides = array<i32>} : memref<16x2x16xf32, #tpu.memory_space<vmem>>, vector<1x2x16xf32>,
    %cst_326 = arith.constant dense<0.000000e+00> : vector<2x96xf32>
    %1759 = tpu.matmul %1752, %1180, %cst_326 {dimension_numbers = #tpu.dot_dimension_numbers<[1], [0], [0], [1], [0, 0, 1, 1], [], []>} : vector<2x32xf32>, vector<32x96xf32>, vector<2x96xf32> -> vector<2x96xf32>
    %1760 = vector.broadcast %1181 : vector<1x96xf32> to vector<2x96xf32>
    %1761 = arith.addf %1759, %1760 : vector<2x96xf32>
    %1762 = vector.extract_strided_slice %1179 {offsets = [8, 0, 0], sizes = [1, 2, 96], strides = [1, 1, 1]} : vector<16x2x96xf32> to vector<1x2x96xf32>
    %1763 = vector.shape_cast %1762 : vector<1x2x96xf32> to vector<2x96xf32>
    %1764 = vector.extract_strided_slice %1763 {offsets = [0, 0], sizes = [2, 48], strides = [1, 1]} : vector<2x96xf32> to vector<2x48xf32>
    %1765 = vector.extract_strided_slice %1761 {offsets = [0, 0], sizes = [2, 48], strides = [1, 1]} : vector<2x96xf32> to vector<2x48xf32>
    %1766 = vector.extract_strided_slice %1752 {offsets = [0, 0], sizes = [2, 16], strides = [1, 1]} : vector<2x32xf32> to vector<2x16xf32>
    %1767 = vector.extract_strided_slice %1764 {offsets = [0, 0], sizes = [2, 16], strides = [1, 1]} : vector<2x48xf32> to vector<2x16xf32>
    %1768 = vector.extract_strided_slice %1765 {offsets = [0, 0], sizes = [2, 16], strides = [1, 1]} : vector<2x48xf32> to vector<2x16xf32>
    %1769 = arith.addf %1767, %1768 : vector<2x16xf32>
    %1770 = arith.negf %1769 : vector<2x16xf32>
    %1771 = math.exp %1770 : vector<2x16xf32>
    %cst_327 = arith.constant 1.000000e+00 : f32
    %1772 = vector.broadcast %cst_327 : f32 to vector<2x16xf32>
    %1773 = arith.addf %1772, %1771 : vector<2x16xf32>
    %1774 = arith.divf %1772, %1773 : vector<2x16xf32>
    %1775 = vector.extract_strided_slice %1764 {offsets = [0, 16], sizes = [2, 16], strides = [1, 1]} : vector<2x48xf32> to vector<2x16xf32>
    %1776 = vector.extract_strided_slice %1765 {offsets = [0, 16], sizes = [2, 16], strides = [1, 1]} : vector<2x48xf32> to vector<2x16xf32>
    %1777 = arith.addf %1775, %1776 : vector<2x16xf32>
    %1778 = arith.negf %1777 : vector<2x16xf32>
    %1779 = math.exp %1778 : vector<2x16xf32>
    %cst_328 = arith.constant 1.000000e+00 : f32
    %1780 = vector.broadcast %cst_328 : f32 to vector<2x16xf32>
    %1781 = arith.addf %1780, %1779 : vector<2x16xf32>
    %1782 = arith.divf %1780, %1781 : vector<2x16xf32>
    %1783 = vector.extract_strided_slice %1764 {offsets = [0, 32], sizes = [2, 16], strides = [1, 1]} : vector<2x48xf32> to vector<2x16xf32>
    %1784 = vector.extract_strided_slice %1765 {offsets = [0, 32], sizes = [2, 16], strides = [1, 1]} : vector<2x48xf32> to vector<2x16xf32>
    %1785 = arith.mulf %1774, %1784 : vector<2x16xf32>
    %1786 = arith.addf %1783, %1785 : vector<2x16xf32>
    %1787 = math.tanh %1786 : vector<2x16xf32>
    %cst_329 = arith.constant 1.000000e+00 : f32
    %1788 = vector.broadcast %cst_329 : f32 to vector<2x16xf32>
    %1789 = arith.subf %1788, %1782 : vector<2x16xf32>
    %1790 = arith.mulf %1789, %1787 : vector<2x16xf32>
    %1791 = arith.mulf %1782, %1766 : vector<2x16xf32>
    %1792 = arith.addf %1790, %1791 : vector<2x16xf32>
    %1793 = vector.extract_strided_slice %1179 {offsets = [7, 0, 0], sizes = [1, 2, 96], strides = [1, 1, 1]} : vector<16x2x96xf32> to vector<1x2x96xf32>
    %1794 = vector.shape_cast %1793 : vector<1x2x96xf32> to vector<2x96xf32>
    %1795 = vector.extract_strided_slice %1794 {offsets = [0, 48], sizes = [2, 48], strides = [1, 1]} : vector<2x96xf32> to vector<2x48xf32>
    %1796 = vector.extract_strided_slice %1761 {offsets = [0, 48], sizes = [2, 48], strides = [1, 1]} : vector<2x96xf32> to vector<2x48xf32>
    %1797 = vector.extract_strided_slice %1752 {offsets = [0, 16], sizes = [2, 16], strides = [1, 1]} : vector<2x32xf32> to vector<2x16xf32>
    %1798 = vector.extract_strided_slice %1795 {offsets = [0, 0], sizes = [2, 16], strides = [1, 1]} : vector<2x48xf32> to vector<2x16xf32>
    %1799 = vector.extract_strided_slice %1796 {offsets = [0, 0], sizes = [2, 16], strides = [1, 1]} : vector<2x48xf32> to vector<2x16xf32>
    %1800 = arith.addf %1798, %1799 : vector<2x16xf32>
    %1801 = arith.negf %1800 : vector<2x16xf32>
    %1802 = math.exp %1801 : vector<2x16xf32>
    %cst_330 = arith.constant 1.000000e+00 : f32
    %1803 = vector.broadcast %cst_330 : f32 to vector<2x16xf32>
    %1804 = arith.addf %1803, %1802 : vector<2x16xf32>
    %1805 = arith.divf %1803, %1804 : vector<2x16xf32>
    %1806 = vector.extract_strided_slice %1795 {offsets = [0, 16], sizes = [2, 16], strides = [1, 1]} : vector<2x48xf32> to vector<2x16xf32>
    %1807 = vector.extract_strided_slice %1796 {offsets = [0, 16], sizes = [2, 16], strides = [1, 1]} : vector<2x48xf32> to vector<2x16xf32>
    %1808 = arith.addf %1806, %1807 : vector<2x16xf32>
    %1809 = arith.negf %1808 : vector<2x16xf32>
    %1810 = math.exp %1809 : vector<2x16xf32>
    %cst_331 = arith.constant 1.000000e+00 : f32
    %1811 = vector.broadcast %cst_331 : f32 to vector<2x16xf32>
    %1812 = arith.addf %1811, %1810 : vector<2x16xf32>
    %1813 = arith.divf %1811, %1812 : vector<2x16xf32>
    %1814 = vector.extract_strided_slice %1795 {offsets = [0, 32], sizes = [2, 16], strides = [1, 1]} : vector<2x48xf32> to vector<2x16xf32>
    %1815 = vector.extract_strided_slice %1796 {offsets = [0, 32], sizes = [2, 16], strides = [1, 1]} : vector<2x48xf32> to vector<2x16xf32>
    %1816 = arith.mulf %1805, %1815 : vector<2x16xf32>
    %1817 = arith.addf %1814, %1816 : vector<2x16xf32>
    %1818 = math.tanh %1817 : vector<2x16xf32>
    %cst_332 = arith.constant 1.000000e+00 : f32
    %1819 = vector.broadcast %cst_332 : f32 to vector<2x16xf32>
    %1820 = arith.subf %1819, %1813 : vector<2x16xf32>
    %1821 = arith.mulf %1820, %1818 : vector<2x16xf32>
    %1822 = arith.mulf %1813, %1797 : vector<2x16xf32>
    %1823 = arith.addf %1821, %1822 : vector<2x16xf32>
    %1824 = tpu.concatenate %1792, %1823 in 1 : vector<2x16xf32>, vector<2x16xf32> -> vector<2x32xf32>
    %c8_333 = arith.constant 8 : index
    %c0_334 = arith.constant 0 : index
    %c0_335 = arith.constant 0 : index
    %1825 = vector.load %arg19[%c8_333, %c0_334, %c0_335] : memref<16x2x16xf32, #tpu.memory_space<vmem>>, vector<1x2x16xf32>
    %1826 = vector.shape_cast %1825 : vector<1x2x16xf32> to vector<2x16xf32>
    %1827 = vector.shape_cast %1792 : vector<2x16xf32> to vector<1x2x16xf32>
    tpu.vector_store %arg19[%c8_333, %c0_334, %c0_335], %1827 {strides = array<i32>} : memref<16x2x16xf32, #tpu.memory_space<vmem>>, vector<1x2x16xf32>,
    %c7_336 = arith.constant 7 : index
    %c0_337 = arith.constant 0 : index
    %c0_338 = arith.constant 0 : index
    %1828 = vector.load %arg20[%c7_336, %c0_337, %c0_338] : memref<16x2x16xf32, #tpu.memory_space<vmem>>, vector<1x2x16xf32>
    %1829 = vector.shape_cast %1828 : vector<1x2x16xf32> to vector<2x16xf32>
    %1830 = vector.shape_cast %1823 : vector<2x16xf32> to vector<1x2x16xf32>
    tpu.vector_store %arg20[%c7_336, %c0_337, %c0_338], %1830 {strides = array<i32>} : memref<16x2x16xf32, #tpu.memory_space<vmem>>, vector<1x2x16xf32>,
    %cst_339 = arith.constant dense<0.000000e+00> : vector<2x96xf32>
    %1831 = tpu.matmul %1824, %1180, %cst_339 {dimension_numbers = #tpu.dot_dimension_numbers<[1], [0], [0], [1], [0, 0, 1, 1], [], []>} : vector<2x32xf32>, vector<32x96xf32>, vector<2x96xf32> -> vector<2x96xf32>
    %1832 = vector.broadcast %1181 : vector<1x96xf32> to vector<2x96xf32>
    %1833 = arith.addf %1831, %1832 : vector<2x96xf32>
    %1834 = vector.extract_strided_slice %1179 {offsets = [9, 0, 0], sizes = [1, 2, 96], strides = [1, 1, 1]} : vector<16x2x96xf32> to vector<1x2x96xf32>
    %1835 = vector.shape_cast %1834 : vector<1x2x96xf32> to vector<2x96xf32>
    %1836 = vector.extract_strided_slice %1835 {offsets = [0, 0], sizes = [2, 48], strides = [1, 1]} : vector<2x96xf32> to vector<2x48xf32>
    %1837 = vector.extract_strided_slice %1833 {offsets = [0, 0], sizes = [2, 48], strides = [1, 1]} : vector<2x96xf32> to vector<2x48xf32>
    %1838 = vector.extract_strided_slice %1824 {offsets = [0, 0], sizes = [2, 16], strides = [1, 1]} : vector<2x32xf32> to vector<2x16xf32>
    %1839 = vector.extract_strided_slice %1836 {offsets = [0, 0], sizes = [2, 16], strides = [1, 1]} : vector<2x48xf32> to vector<2x16xf32>
    %1840 = vector.extract_strided_slice %1837 {offsets = [0, 0], sizes = [2, 16], strides = [1, 1]} : vector<2x48xf32> to vector<2x16xf32>
    %1841 = arith.addf %1839, %1840 : vector<2x16xf32>
    %1842 = arith.negf %1841 : vector<2x16xf32>
    %1843 = math.exp %1842 : vector<2x16xf32>
    %cst_340 = arith.constant 1.000000e+00 : f32
    %1844 = vector.broadcast %cst_340 : f32 to vector<2x16xf32>
    %1845 = arith.addf %1844, %1843 : vector<2x16xf32>
    %1846 = arith.divf %1844, %1845 : vector<2x16xf32>
    %1847 = vector.extract_strided_slice %1836 {offsets = [0, 16], sizes = [2, 16], strides = [1, 1]} : vector<2x48xf32> to vector<2x16xf32>
    %1848 = vector.extract_strided_slice %1837 {offsets = [0, 16], sizes = [2, 16], strides = [1, 1]} : vector<2x48xf32> to vector<2x16xf32>
    %1849 = arith.addf %1847, %1848 : vector<2x16xf32>
    %1850 = arith.negf %1849 : vector<2x16xf32>
    %1851 = math.exp %1850 : vector<2x16xf32>
    %cst_341 = arith.constant 1.000000e+00 : f32
    %1852 = vector.broadcast %cst_341 : f32 to vector<2x16xf32>
    %1853 = arith.addf %1852, %1851 : vector<2x16xf32>
    %1854 = arith.divf %1852, %1853 : vector<2x16xf32>
    %1855 = vector.extract_strided_slice %1836 {offsets = [0, 32], sizes = [2, 16], strides = [1, 1]} : vector<2x48xf32> to vector<2x16xf32>
    %1856 = vector.extract_strided_slice %1837 {offsets = [0, 32], sizes = [2, 16], strides = [1, 1]} : vector<2x48xf32> to vector<2x16xf32>
    %1857 = arith.mulf %1846, %1856 : vector<2x16xf32>
    %1858 = arith.addf %1855, %1857 : vector<2x16xf32>
    %1859 = math.tanh %1858 : vector<2x16xf32>
    %cst_342 = arith.constant 1.000000e+00 : f32
    %1860 = vector.broadcast %cst_342 : f32 to vector<2x16xf32>
    %1861 = arith.subf %1860, %1854 : vector<2x16xf32>
    %1862 = arith.mulf %1861, %1859 : vector<2x16xf32>
    %1863 = arith.mulf %1854, %1838 : vector<2x16xf32>
    %1864 = arith.addf %1862, %1863 : vector<2x16xf32>
    %1865 = vector.extract_strided_slice %1179 {offsets = [6, 0, 0], sizes = [1, 2, 96], strides = [1, 1, 1]} : vector<16x2x96xf32> to vector<1x2x96xf32>
    %1866 = vector.shape_cast %1865 : vector<1x2x96xf32> to vector<2x96xf32>
    %1867 = vector.extract_strided_slice %1866 {offsets = [0, 48], sizes = [2, 48], strides = [1, 1]} : vector<2x96xf32> to vector<2x48xf32>
    %1868 = vector.extract_strided_slice %1833 {offsets = [0, 48], sizes = [2, 48], strides = [1, 1]} : vector<2x96xf32> to vector<2x48xf32>
    %1869 = vector.extract_strided_slice %1824 {offsets = [0, 16], sizes = [2, 16], strides = [1, 1]} : vector<2x32xf32> to vector<2x16xf32>
    %1870 = vector.extract_strided_slice %1867 {offsets = [0, 0], sizes = [2, 16], strides = [1, 1]} : vector<2x48xf32> to vector<2x16xf32>
    %1871 = vector.extract_strided_slice %1868 {offsets = [0, 0], sizes = [2, 16], strides = [1, 1]} : vector<2x48xf32> to vector<2x16xf32>
    %1872 = arith.addf %1870, %1871 : vector<2x16xf32>
    %1873 = arith.negf %1872 : vector<2x16xf32>
    %1874 = math.exp %1873 : vector<2x16xf32>
    %cst_343 = arith.constant 1.000000e+00 : f32
    %1875 = vector.broadcast %cst_343 : f32 to vector<2x16xf32>
    %1876 = arith.addf %1875, %1874 : vector<2x16xf32>
    %1877 = arith.divf %1875, %1876 : vector<2x16xf32>
    %1878 = vector.extract_strided_slice %1867 {offsets = [0, 16], sizes = [2, 16], strides = [1, 1]} : vector<2x48xf32> to vector<2x16xf32>
    %1879 = vector.extract_strided_slice %1868 {offsets = [0, 16], sizes = [2, 16], strides = [1, 1]} : vector<2x48xf32> to vector<2x16xf32>
    %1880 = arith.addf %1878, %1879 : vector<2x16xf32>
    %1881 = arith.negf %1880 : vector<2x16xf32>
    %1882 = math.exp %1881 : vector<2x16xf32>
    %cst_344 = arith.constant 1.000000e+00 : f32
    %1883 = vector.broadcast %cst_344 : f32 to vector<2x16xf32>
    %1884 = arith.addf %1883, %1882 : vector<2x16xf32>
    %1885 = arith.divf %1883, %1884 : vector<2x16xf32>
    %1886 = vector.extract_strided_slice %1867 {offsets = [0, 32], sizes = [2, 16], strides = [1, 1]} : vector<2x48xf32> to vector<2x16xf32>
    %1887 = vector.extract_strided_slice %1868 {offsets = [0, 32], sizes = [2, 16], strides = [1, 1]} : vector<2x48xf32> to vector<2x16xf32>
    %1888 = arith.mulf %1877, %1887 : vector<2x16xf32>
    %1889 = arith.addf %1886, %1888 : vector<2x16xf32>
    %1890 = math.tanh %1889 : vector<2x16xf32>
    %cst_345 = arith.constant 1.000000e+00 : f32
    %1891 = vector.broadcast %cst_345 : f32 to vector<2x16xf32>
    %1892 = arith.subf %1891, %1885 : vector<2x16xf32>
    %1893 = arith.mulf %1892, %1890 : vector<2x16xf32>
    %1894 = arith.mulf %1885, %1869 : vector<2x16xf32>
    %1895 = arith.addf %1893, %1894 : vector<2x16xf32>
    %1896 = tpu.concatenate %1864, %1895 in 1 : vector<2x16xf32>, vector<2x16xf32> -> vector<2x32xf32>
    %c9_346 = arith.constant 9 : index
    %c0_347 = arith.constant 0 : index
    %c0_348 = arith.constant 0 : index
    %1897 = vector.load %arg19[%c9_346, %c0_347, %c0_348] : memref<16x2x16xf32, #tpu.memory_space<vmem>>, vector<1x2x16xf32>
    %1898 = vector.shape_cast %1897 : vector<1x2x16xf32> to vector<2x16xf32>
    %1899 = vector.shape_cast %1864 : vector<2x16xf32> to vector<1x2x16xf32>
    tpu.vector_store %arg19[%c9_346, %c0_347, %c0_348], %1899 {strides = array<i32>} : memref<16x2x16xf32, #tpu.memory_space<vmem>>, vector<1x2x16xf32>,
    %c6_349 = arith.constant 6 : index
    %c0_350 = arith.constant 0 : index
    %c0_351 = arith.constant 0 : index
    %1900 = vector.load %arg20[%c6_349, %c0_350, %c0_351] : memref<16x2x16xf32, #tpu.memory_space<vmem>>, vector<1x2x16xf32>
    %1901 = vector.shape_cast %1900 : vector<1x2x16xf32> to vector<2x16xf32>
    %1902 = vector.shape_cast %1895 : vector<2x16xf32> to vector<1x2x16xf32>
    tpu.vector_store %arg20[%c6_349, %c0_350, %c0_351], %1902 {strides = array<i32>} : memref<16x2x16xf32, #tpu.memory_space<vmem>>, vector<1x2x16xf32>,
    %cst_352 = arith.constant dense<0.000000e+00> : vector<2x96xf32>
    %1903 = tpu.matmul %1896, %1180, %cst_352 {dimension_numbers = #tpu.dot_dimension_numbers<[1], [0], [0], [1], [0, 0, 1, 1], [], []>} : vector<2x32xf32>, vector<32x96xf32>, vector<2x96xf32> -> vector<2x96xf32>
    %1904 = vector.broadcast %1181 : vector<1x96xf32> to vector<2x96xf32>
    %1905 = arith.addf %1903, %1904 : vector<2x96xf32>
    %1906 = vector.extract_strided_slice %1179 {offsets = [10, 0, 0], sizes = [1, 2, 96], strides = [1, 1, 1]} : vector<16x2x96xf32> to vector<1x2x96xf32>
    %1907 = vector.shape_cast %1906 : vector<1x2x96xf32> to vector<2x96xf32>
    %1908 = vector.extract_strided_slice %1907 {offsets = [0, 0], sizes = [2, 48], strides = [1, 1]} : vector<2x96xf32> to vector<2x48xf32>
    %1909 = vector.extract_strided_slice %1905 {offsets = [0, 0], sizes = [2, 48], strides = [1, 1]} : vector<2x96xf32> to vector<2x48xf32>
    %1910 = vector.extract_strided_slice %1896 {offsets = [0, 0], sizes = [2, 16], strides = [1, 1]} : vector<2x32xf32> to vector<2x16xf32>
    %1911 = vector.extract_strided_slice %1908 {offsets = [0, 0], sizes = [2, 16], strides = [1, 1]} : vector<2x48xf32> to vector<2x16xf32>
    %1912 = vector.extract_strided_slice %1909 {offsets = [0, 0], sizes = [2, 16], strides = [1, 1]} : vector<2x48xf32> to vector<2x16xf32>
    %1913 = arith.addf %1911, %1912 : vector<2x16xf32>
    %1914 = arith.negf %1913 : vector<2x16xf32>
    %1915 = math.exp %1914 : vector<2x16xf32>
    %cst_353 = arith.constant 1.000000e+00 : f32
    %1916 = vector.broadcast %cst_353 : f32 to vector<2x16xf32>
    %1917 = arith.addf %1916, %1915 : vector<2x16xf32>
    %1918 = arith.divf %1916, %1917 : vector<2x16xf32>
    %1919 = vector.extract_strided_slice %1908 {offsets = [0, 16], sizes = [2, 16], strides = [1, 1]} : vector<2x48xf32> to vector<2x16xf32>
    %1920 = vector.extract_strided_slice %1909 {offsets = [0, 16], sizes = [2, 16], strides = [1, 1]} : vector<2x48xf32> to vector<2x16xf32>
    %1921 = arith.addf %1919, %1920 : vector<2x16xf32>
    %1922 = arith.negf %1921 : vector<2x16xf32>
    %1923 = math.exp %1922 : vector<2x16xf32>
    %cst_354 = arith.constant 1.000000e+00 : f32
    %1924 = vector.broadcast %cst_354 : f32 to vector<2x16xf32>
    %1925 = arith.addf %1924, %1923 : vector<2x16xf32>
    %1926 = arith.divf %1924, %1925 : vector<2x16xf32>
    %1927 = vector.extract_strided_slice %1908 {offsets = [0, 32], sizes = [2, 16], strides = [1, 1]} : vector<2x48xf32> to vector<2x16xf32>
    %1928 = vector.extract_strided_slice %1909 {offsets = [0, 32], sizes = [2, 16], strides = [1, 1]} : vector<2x48xf32> to vector<2x16xf32>
    %1929 = arith.mulf %1918, %1928 : vector<2x16xf32>
    %1930 = arith.addf %1927, %1929 : vector<2x16xf32>
    %1931 = math.tanh %1930 : vector<2x16xf32>
    %cst_355 = arith.constant 1.000000e+00 : f32
    %1932 = vector.broadcast %cst_355 : f32 to vector<2x16xf32>
    %1933 = arith.subf %1932, %1926 : vector<2x16xf32>
    %1934 = arith.mulf %1933, %1931 : vector<2x16xf32>
    %1935 = arith.mulf %1926, %1910 : vector<2x16xf32>
    %1936 = arith.addf %1934, %1935 : vector<2x16xf32>
    %1937 = vector.extract_strided_slice %1179 {offsets = [5, 0, 0], sizes = [1, 2, 96], strides = [1, 1, 1]} : vector<16x2x96xf32> to vector<1x2x96xf32>
    %1938 = vector.shape_cast %1937 : vector<1x2x96xf32> to vector<2x96xf32>
    %1939 = vector.extract_strided_slice %1938 {offsets = [0, 48], sizes = [2, 48], strides = [1, 1]} : vector<2x96xf32> to vector<2x48xf32>
    %1940 = vector.extract_strided_slice %1905 {offsets = [0, 48], sizes = [2, 48], strides = [1, 1]} : vector<2x96xf32> to vector<2x48xf32>
    %1941 = vector.extract_strided_slice %1896 {offsets = [0, 16], sizes = [2, 16], strides = [1, 1]} : vector<2x32xf32> to vector<2x16xf32>
    %1942 = vector.extract_strided_slice %1939 {offsets = [0, 0], sizes = [2, 16], strides = [1, 1]} : vector<2x48xf32> to vector<2x16xf32>
    %1943 = vector.extract_strided_slice %1940 {offsets = [0, 0], sizes = [2, 16], strides = [1, 1]} : vector<2x48xf32> to vector<2x16xf32>
    %1944 = arith.addf %1942, %1943 : vector<2x16xf32>
    %1945 = arith.negf %1944 : vector<2x16xf32>
    %1946 = math.exp %1945 : vector<2x16xf32>
    %cst_356 = arith.constant 1.000000e+00 : f32
    %1947 = vector.broadcast %cst_356 : f32 to vector<2x16xf32>
    %1948 = arith.addf %1947, %1946 : vector<2x16xf32>
    %1949 = arith.divf %1947, %1948 : vector<2x16xf32>
    %1950 = vector.extract_strided_slice %1939 {offsets = [0, 16], sizes = [2, 16], strides = [1, 1]} : vector<2x48xf32> to vector<2x16xf32>
    %1951 = vector.extract_strided_slice %1940 {offsets = [0, 16], sizes = [2, 16], strides = [1, 1]} : vector<2x48xf32> to vector<2x16xf32>
    %1952 = arith.addf %1950, %1951 : vector<2x16xf32>
    %1953 = arith.negf %1952 : vector<2x16xf32>
    %1954 = math.exp %1953 : vector<2x16xf32>
    %cst_357 = arith.constant 1.000000e+00 : f32
    %1955 = vector.broadcast %cst_357 : f32 to vector<2x16xf32>
    %1956 = arith.addf %1955, %1954 : vector<2x16xf32>
    %1957 = arith.divf %1955, %1956 : vector<2x16xf32>
    %1958 = vector.extract_strided_slice %1939 {offsets = [0, 32], sizes = [2, 16], strides = [1, 1]} : vector<2x48xf32> to vector<2x16xf32>
    %1959 = vector.extract_strided_slice %1940 {offsets = [0, 32], sizes = [2, 16], strides = [1, 1]} : vector<2x48xf32> to vector<2x16xf32>
    %1960 = arith.mulf %1949, %1959 : vector<2x16xf32>
    %1961 = arith.addf %1958, %1960 : vector<2x16xf32>
    %1962 = math.tanh %1961 : vector<2x16xf32>
    %cst_358 = arith.constant 1.000000e+00 : f32
    %1963 = vector.broadcast %cst_358 : f32 to vector<2x16xf32>
    %1964 = arith.subf %1963, %1957 : vector<2x16xf32>
    %1965 = arith.mulf %1964, %1962 : vector<2x16xf32>
    %1966 = arith.mulf %1957, %1941 : vector<2x16xf32>
    %1967 = arith.addf %1965, %1966 : vector<2x16xf32>
    %1968 = tpu.concatenate %1936, %1967 in 1 : vector<2x16xf32>, vector<2x16xf32> -> vector<2x32xf32>
    %c10_359 = arith.constant 10 : index
    %c0_360 = arith.constant 0 : index
    %c0_361 = arith.constant 0 : index
    %1969 = vector.load %arg19[%c10_359, %c0_360, %c0_361] : memref<16x2x16xf32, #tpu.memory_space<vmem>>, vector<1x2x16xf32>
    %1970 = vector.shape_cast %1969 : vector<1x2x16xf32> to vector<2x16xf32>
    %1971 = vector.shape_cast %1936 : vector<2x16xf32> to vector<1x2x16xf32>
    tpu.vector_store %arg19[%c10_359, %c0_360, %c0_361], %1971 {strides = array<i32>} : memref<16x2x16xf32, #tpu.memory_space<vmem>>, vector<1x2x16xf32>,
    %c5_362 = arith.constant 5 : index
    %c0_363 = arith.constant 0 : index
    %c0_364 = arith.constant 0 : index
    %1972 = vector.load %arg20[%c5_362, %c0_363, %c0_364] : memref<16x2x16xf32, #tpu.memory_space<vmem>>, vector<1x2x16xf32>
    %1973 = vector.shape_cast %1972 : vector<1x2x16xf32> to vector<2x16xf32>
    %1974 = vector.shape_cast %1967 : vector<2x16xf32> to vector<1x2x16xf32>
    tpu.vector_store %arg20[%c5_362, %c0_363, %c0_364], %1974 {strides = array<i32>} : memref<16x2x16xf32, #tpu.memory_space<vmem>>, vector<1x2x16xf32>,
    %cst_365 = arith.constant dense<0.000000e+00> : vector<2x96xf32>
    %1975 = tpu.matmul %1968, %1180, %cst_365 {dimension_numbers = #tpu.dot_dimension_numbers<[1], [0], [0], [1], [0, 0, 1, 1], [], []>} : vector<2x32xf32>, vector<32x96xf32>, vector<2x96xf32> -> vector<2x96xf32>
    %1976 = vector.broadcast %1181 : vector<1x96xf32> to vector<2x96xf32>
    %1977 = arith.addf %1975, %1976 : vector<2x96xf32>
    %1978 = vector.extract_strided_slice %1179 {offsets = [11, 0, 0], sizes = [1, 2, 96], strides = [1, 1, 1]} : vector<16x2x96xf32> to vector<1x2x96xf32>
    %1979 = vector.shape_cast %1978 : vector<1x2x96xf32> to vector<2x96xf32>
    %1980 = vector.extract_strided_slice %1979 {offsets = [0, 0], sizes = [2, 48], strides = [1, 1]} : vector<2x96xf32> to vector<2x48xf32>
    %1981 = vector.extract_strided_slice %1977 {offsets = [0, 0], sizes = [2, 48], strides = [1, 1]} : vector<2x96xf32> to vector<2x48xf32>
    %1982 = vector.extract_strided_slice %1968 {offsets = [0, 0], sizes = [2, 16], strides = [1, 1]} : vector<2x32xf32> to vector<2x16xf32>
    %1983 = vector.extract_strided_slice %1980 {offsets = [0, 0], sizes = [2, 16], strides = [1, 1]} : vector<2x48xf32> to vector<2x16xf32>
    %1984 = vector.extract_strided_slice %1981 {offsets = [0, 0], sizes = [2, 16], strides = [1, 1]} : vector<2x48xf32> to vector<2x16xf32>
    %1985 = arith.addf %1983, %1984 : vector<2x16xf32>
    %1986 = arith.negf %1985 : vector<2x16xf32>
    %1987 = math.exp %1986 : vector<2x16xf32>
    %cst_366 = arith.constant 1.000000e+00 : f32
    %1988 = vector.broadcast %cst_366 : f32 to vector<2x16xf32>
    %1989 = arith.addf %1988, %1987 : vector<2x16xf32>
    %1990 = arith.divf %1988, %1989 : vector<2x16xf32>
    %1991 = vector.extract_strided_slice %1980 {offsets = [0, 16], sizes = [2, 16], strides = [1, 1]} : vector<2x48xf32> to vector<2x16xf32>
    %1992 = vector.extract_strided_slice %1981 {offsets = [0, 16], sizes = [2, 16], strides = [1, 1]} : vector<2x48xf32> to vector<2x16xf32>
    %1993 = arith.addf %1991, %1992 : vector<2x16xf32>
    %1994 = arith.negf %1993 : vector<2x16xf32>
    %1995 = math.exp %1994 : vector<2x16xf32>
    %cst_367 = arith.constant 1.000000e+00 : f32
    %1996 = vector.broadcast %cst_367 : f32 to vector<2x16xf32>
    %1997 = arith.addf %1996, %1995 : vector<2x16xf32>
    %1998 = arith.divf %1996, %1997 : vector<2x16xf32>
    %1999 = vector.extract_strided_slice %1980 {offsets = [0, 32], sizes = [2, 16], strides = [1, 1]} : vector<2x48xf32> to vector<2x16xf32>
    %2000 = vector.extract_strided_slice %1981 {offsets = [0, 32], sizes = [2, 16], strides = [1, 1]} : vector<2x48xf32> to vector<2x16xf32>
    %2001 = arith.mulf %1990, %2000 : vector<2x16xf32>
    %2002 = arith.addf %1999, %2001 : vector<2x16xf32>
    %2003 = math.tanh %2002 : vector<2x16xf32>
    %cst_368 = arith.constant 1.000000e+00 : f32
    %2004 = vector.broadcast %cst_368 : f32 to vector<2x16xf32>
    %2005 = arith.subf %2004, %1998 : vector<2x16xf32>
    %2006 = arith.mulf %2005, %2003 : vector<2x16xf32>
    %2007 = arith.mulf %1998, %1982 : vector<2x16xf32>
    %2008 = arith.addf %2006, %2007 : vector<2x16xf32>
    %2009 = vector.extract_strided_slice %1179 {offsets = [4, 0, 0], sizes = [1, 2, 96], strides = [1, 1, 1]} : vector<16x2x96xf32> to vector<1x2x96xf32>
    %2010 = vector.shape_cast %2009 : vector<1x2x96xf32> to vector<2x96xf32>
    %2011 = vector.extract_strided_slice %2010 {offsets = [0, 48], sizes = [2, 48], strides = [1, 1]} : vector<2x96xf32> to vector<2x48xf32>
    %2012 = vector.extract_strided_slice %1977 {offsets = [0, 48], sizes = [2, 48], strides = [1, 1]} : vector<2x96xf32> to vector<2x48xf32>
    %2013 = vector.extract_strided_slice %1968 {offsets = [0, 16], sizes = [2, 16], strides = [1, 1]} : vector<2x32xf32> to vector<2x16xf32>
    %2014 = vector.extract_strided_slice %2011 {offsets = [0, 0], sizes = [2, 16], strides = [1, 1]} : vector<2x48xf32> to vector<2x16xf32>
    %2015 = vector.extract_strided_slice %2012 {offsets = [0, 0], sizes = [2, 16], strides = [1, 1]} : vector<2x48xf32> to vector<2x16xf32>
    %2016 = arith.addf %2014, %2015 : vector<2x16xf32>
    %2017 = arith.negf %2016 : vector<2x16xf32>
    %2018 = math.exp %2017 : vector<2x16xf32>
    %cst_369 = arith.constant 1.000000e+00 : f32
    %2019 = vector.broadcast %cst_369 : f32 to vector<2x16xf32>
    %2020 = arith.addf %2019, %2018 : vector<2x16xf32>
    %2021 = arith.divf %2019, %2020 : vector<2x16xf32>
    %2022 = vector.extract_strided_slice %2011 {offsets = [0, 16], sizes = [2, 16], strides = [1, 1]} : vector<2x48xf32> to vector<2x16xf32>
    %2023 = vector.extract_strided_slice %2012 {offsets = [0, 16], sizes = [2, 16], strides = [1, 1]} : vector<2x48xf32> to vector<2x16xf32>
    %2024 = arith.addf %2022, %2023 : vector<2x16xf32>
    %2025 = arith.negf %2024 : vector<2x16xf32>
    %2026 = math.exp %2025 : vector<2x16xf32>
    %cst_370 = arith.constant 1.000000e+00 : f32
    %2027 = vector.broadcast %cst_370 : f32 to vector<2x16xf32>
    %2028 = arith.addf %2027, %2026 : vector<2x16xf32>
    %2029 = arith.divf %2027, %2028 : vector<2x16xf32>
    %2030 = vector.extract_strided_slice %2011 {offsets = [0, 32], sizes = [2, 16], strides = [1, 1]} : vector<2x48xf32> to vector<2x16xf32>
    %2031 = vector.extract_strided_slice %2012 {offsets = [0, 32], sizes = [2, 16], strides = [1, 1]} : vector<2x48xf32> to vector<2x16xf32>
    %2032 = arith.mulf %2021, %2031 : vector<2x16xf32>
    %2033 = arith.addf %2030, %2032 : vector<2x16xf32>
    %2034 = math.tanh %2033 : vector<2x16xf32>
    %cst_371 = arith.constant 1.000000e+00 : f32
    %2035 = vector.broadcast %cst_371 : f32 to vector<2x16xf32>
    %2036 = arith.subf %2035, %2029 : vector<2x16xf32>
    %2037 = arith.mulf %2036, %2034 : vector<2x16xf32>
    %2038 = arith.mulf %2029, %2013 : vector<2x16xf32>
    %2039 = arith.addf %2037, %2038 : vector<2x16xf32>
    %2040 = tpu.concatenate %2008, %2039 in 1 : vector<2x16xf32>, vector<2x16xf32> -> vector<2x32xf32>
    %c11_372 = arith.constant 11 : index
    %c0_373 = arith.constant 0 : index
    %c0_374 = arith.constant 0 : index
    %2041 = vector.load %arg19[%c11_372, %c0_373, %c0_374] : memref<16x2x16xf32, #tpu.memory_space<vmem>>, vector<1x2x16xf32>
    %2042 = vector.shape_cast %2041 : vector<1x2x16xf32> to vector<2x16xf32>
    %2043 = vector.shape_cast %2008 : vector<2x16xf32> to vector<1x2x16xf32>
    tpu.vector_store %arg19[%c11_372, %c0_373, %c0_374], %2043 {strides = array<i32>} : memref<16x2x16xf32, #tpu.memory_space<vmem>>, vector<1x2x16xf32>,
    %c4_375 = arith.constant 4 : index
    %c0_376 = arith.constant 0 : index
    %c0_377 = arith.constant 0 : index
    %2044 = vector.load %arg20[%c4_375, %c0_376, %c0_377] : memref<16x2x16xf32, #tpu.memory_space<vmem>>, vector<1x2x16xf32>
    %2045 = vector.shape_cast %2044 : vector<1x2x16xf32> to vector<2x16xf32>
    %2046 = vector.shape_cast %2039 : vector<2x16xf32> to vector<1x2x16xf32>
    tpu.vector_store %arg20[%c4_375, %c0_376, %c0_377], %2046 {strides = array<i32>} : memref<16x2x16xf32, #tpu.memory_space<vmem>>, vector<1x2x16xf32>,
    %cst_378 = arith.constant dense<0.000000e+00> : vector<2x96xf32>
    %2047 = tpu.matmul %2040, %1180, %cst_378 {dimension_numbers = #tpu.dot_dimension_numbers<[1], [0], [0], [1], [0, 0, 1, 1], [], []>} : vector<2x32xf32>, vector<32x96xf32>, vector<2x96xf32> -> vector<2x96xf32>
    %2048 = vector.broadcast %1181 : vector<1x96xf32> to vector<2x96xf32>
    %2049 = arith.addf %2047, %2048 : vector<2x96xf32>
    %2050 = vector.extract_strided_slice %1179 {offsets = [12, 0, 0], sizes = [1, 2, 96], strides = [1, 1, 1]} : vector<16x2x96xf32> to vector<1x2x96xf32>
    %2051 = vector.shape_cast %2050 : vector<1x2x96xf32> to vector<2x96xf32>
    %2052 = vector.extract_strided_slice %2051 {offsets = [0, 0], sizes = [2, 48], strides = [1, 1]} : vector<2x96xf32> to vector<2x48xf32>
    %2053 = vector.extract_strided_slice %2049 {offsets = [0, 0], sizes = [2, 48], strides = [1, 1]} : vector<2x96xf32> to vector<2x48xf32>
    %2054 = vector.extract_strided_slice %2040 {offsets = [0, 0], sizes = [2, 16], strides = [1, 1]} : vector<2x32xf32> to vector<2x16xf32>
    %2055 = vector.extract_strided_slice %2052 {offsets = [0, 0], sizes = [2, 16], strides = [1, 1]} : vector<2x48xf32> to vector<2x16xf32>
    %2056 = vector.extract_strided_slice %2053 {offsets = [0, 0], sizes = [2, 16], strides = [1, 1]} : vector<2x48xf32> to vector<2x16xf32>
    %2057 = arith.addf %2055, %2056 : vector<2x16xf32>
    %2058 = arith.negf %2057 : vector<2x16xf32>
    %2059 = math.exp %2058 : vector<2x16xf32>
    %cst_379 = arith.constant 1.000000e+00 : f32
    %2060 = vector.broadcast %cst_379 : f32 to vector<2x16xf32>
    %2061 = arith.addf %2060, %2059 : vector<2x16xf32>
    %2062 = arith.divf %2060, %2061 : vector<2x16xf32>
    %2063 = vector.extract_strided_slice %2052 {offsets = [0, 16], sizes = [2, 16], strides = [1, 1]} : vector<2x48xf32> to vector<2x16xf32>
    %2064 = vector.extract_strided_slice %2053 {offsets = [0, 16], sizes = [2, 16], strides = [1, 1]} : vector<2x48xf32> to vector<2x16xf32>
    %2065 = arith.addf %2063, %2064 : vector<2x16xf32>
    %2066 = arith.negf %2065 : vector<2x16xf32>
    %2067 = math.exp %2066 : vector<2x16xf32>
    %cst_380 = arith.constant 1.000000e+00 : f32
    %2068 = vector.broadcast %cst_380 : f32 to vector<2x16xf32>
    %2069 = arith.addf %2068, %2067 : vector<2x16xf32>
    %2070 = arith.divf %2068, %2069 : vector<2x16xf32>
    %2071 = vector.extract_strided_slice %2052 {offsets = [0, 32], sizes = [2, 16], strides = [1, 1]} : vector<2x48xf32> to vector<2x16xf32>
    %2072 = vector.extract_strided_slice %2053 {offsets = [0, 32], sizes = [2, 16], strides = [1, 1]} : vector<2x48xf32> to vector<2x16xf32>
    %2073 = arith.mulf %2062, %2072 : vector<2x16xf32>
    %2074 = arith.addf %2071, %2073 : vector<2x16xf32>
    %2075 = math.tanh %2074 : vector<2x16xf32>
    %cst_381 = arith.constant 1.000000e+00 : f32
    %2076 = vector.broadcast %cst_381 : f32 to vector<2x16xf32>
    %2077 = arith.subf %2076, %2070 : vector<2x16xf32>
    %2078 = arith.mulf %2077, %2075 : vector<2x16xf32>
    %2079 = arith.mulf %2070, %2054 : vector<2x16xf32>
    %2080 = arith.addf %2078, %2079 : vector<2x16xf32>
    %2081 = vector.extract_strided_slice %1179 {offsets = [3, 0, 0], sizes = [1, 2, 96], strides = [1, 1, 1]} : vector<16x2x96xf32> to vector<1x2x96xf32>
    %2082 = vector.shape_cast %2081 : vector<1x2x96xf32> to vector<2x96xf32>
    %2083 = vector.extract_strided_slice %2082 {offsets = [0, 48], sizes = [2, 48], strides = [1, 1]} : vector<2x96xf32> to vector<2x48xf32>
    %2084 = vector.extract_strided_slice %2049 {offsets = [0, 48], sizes = [2, 48], strides = [1, 1]} : vector<2x96xf32> to vector<2x48xf32>
    %2085 = vector.extract_strided_slice %2040 {offsets = [0, 16], sizes = [2, 16], strides = [1, 1]} : vector<2x32xf32> to vector<2x16xf32>
    %2086 = vector.extract_strided_slice %2083 {offsets = [0, 0], sizes = [2, 16], strides = [1, 1]} : vector<2x48xf32> to vector<2x16xf32>
    %2087 = vector.extract_strided_slice %2084 {offsets = [0, 0], sizes = [2, 16], strides = [1, 1]} : vector<2x48xf32> to vector<2x16xf32>
    %2088 = arith.addf %2086, %2087 : vector<2x16xf32>
    %2089 = arith.negf %2088 : vector<2x16xf32>
    %2090 = math.exp %2089 : vector<2x16xf32>
    %cst_382 = arith.constant 1.000000e+00 : f32
    %2091 = vector.broadcast %cst_382 : f32 to vector<2x16xf32>
    %2092 = arith.addf %2091, %2090 : vector<2x16xf32>
    %2093 = arith.divf %2091, %2092 : vector<2x16xf32>
    %2094 = vector.extract_strided_slice %2083 {offsets = [0, 16], sizes = [2, 16], strides = [1, 1]} : vector<2x48xf32> to vector<2x16xf32>
    %2095 = vector.extract_strided_slice %2084 {offsets = [0, 16], sizes = [2, 16], strides = [1, 1]} : vector<2x48xf32> to vector<2x16xf32>
    %2096 = arith.addf %2094, %2095 : vector<2x16xf32>
    %2097 = arith.negf %2096 : vector<2x16xf32>
    %2098 = math.exp %2097 : vector<2x16xf32>
    %cst_383 = arith.constant 1.000000e+00 : f32
    %2099 = vector.broadcast %cst_383 : f32 to vector<2x16xf32>
    %2100 = arith.addf %2099, %2098 : vector<2x16xf32>
    %2101 = arith.divf %2099, %2100 : vector<2x16xf32>
    %2102 = vector.extract_strided_slice %2083 {offsets = [0, 32], sizes = [2, 16], strides = [1, 1]} : vector<2x48xf32> to vector<2x16xf32>
    %2103 = vector.extract_strided_slice %2084 {offsets = [0, 32], sizes = [2, 16], strides = [1, 1]} : vector<2x48xf32> to vector<2x16xf32>
    %2104 = arith.mulf %2093, %2103 : vector<2x16xf32>
    %2105 = arith.addf %2102, %2104 : vector<2x16xf32>
    %2106 = math.tanh %2105 : vector<2x16xf32>
    %cst_384 = arith.constant 1.000000e+00 : f32
    %2107 = vector.broadcast %cst_384 : f32 to vector<2x16xf32>
    %2108 = arith.subf %2107, %2101 : vector<2x16xf32>
    %2109 = arith.mulf %2108, %2106 : vector<2x16xf32>
    %2110 = arith.mulf %2101, %2085 : vector<2x16xf32>
    %2111 = arith.addf %2109, %2110 : vector<2x16xf32>
    %2112 = tpu.concatenate %2080, %2111 in 1 : vector<2x16xf32>, vector<2x16xf32> -> vector<2x32xf32>
    %c12_385 = arith.constant 12 : index
    %c0_386 = arith.constant 0 : index
    %c0_387 = arith.constant 0 : index
    %2113 = vector.load %arg19[%c12_385, %c0_386, %c0_387] : memref<16x2x16xf32, #tpu.memory_space<vmem>>, vector<1x2x16xf32>
    %2114 = vector.shape_cast %2113 : vector<1x2x16xf32> to vector<2x16xf32>
    %2115 = vector.shape_cast %2080 : vector<2x16xf32> to vector<1x2x16xf32>
    tpu.vector_store %arg19[%c12_385, %c0_386, %c0_387], %2115 {strides = array<i32>} : memref<16x2x16xf32, #tpu.memory_space<vmem>>, vector<1x2x16xf32>,
    %c3_388 = arith.constant 3 : index
    %c0_389 = arith.constant 0 : index
    %c0_390 = arith.constant 0 : index
    %2116 = vector.load %arg20[%c3_388, %c0_389, %c0_390] : memref<16x2x16xf32, #tpu.memory_space<vmem>>, vector<1x2x16xf32>
    %2117 = vector.shape_cast %2116 : vector<1x2x16xf32> to vector<2x16xf32>
    %2118 = vector.shape_cast %2111 : vector<2x16xf32> to vector<1x2x16xf32>
    tpu.vector_store %arg20[%c3_388, %c0_389, %c0_390], %2118 {strides = array<i32>} : memref<16x2x16xf32, #tpu.memory_space<vmem>>, vector<1x2x16xf32>,
    %cst_391 = arith.constant dense<0.000000e+00> : vector<2x96xf32>
    %2119 = tpu.matmul %2112, %1180, %cst_391 {dimension_numbers = #tpu.dot_dimension_numbers<[1], [0], [0], [1], [0, 0, 1, 1], [], []>} : vector<2x32xf32>, vector<32x96xf32>, vector<2x96xf32> -> vector<2x96xf32>
    %2120 = vector.broadcast %1181 : vector<1x96xf32> to vector<2x96xf32>
    %2121 = arith.addf %2119, %2120 : vector<2x96xf32>
    %2122 = vector.extract_strided_slice %1179 {offsets = [13, 0, 0], sizes = [1, 2, 96], strides = [1, 1, 1]} : vector<16x2x96xf32> to vector<1x2x96xf32>
    %2123 = vector.shape_cast %2122 : vector<1x2x96xf32> to vector<2x96xf32>
    %2124 = vector.extract_strided_slice %2123 {offsets = [0, 0], sizes = [2, 48], strides = [1, 1]} : vector<2x96xf32> to vector<2x48xf32>
    %2125 = vector.extract_strided_slice %2121 {offsets = [0, 0], sizes = [2, 48], strides = [1, 1]} : vector<2x96xf32> to vector<2x48xf32>
    %2126 = vector.extract_strided_slice %2112 {offsets = [0, 0], sizes = [2, 16], strides = [1, 1]} : vector<2x32xf32> to vector<2x16xf32>
    %2127 = vector.extract_strided_slice %2124 {offsets = [0, 0], sizes = [2, 16], strides = [1, 1]} : vector<2x48xf32> to vector<2x16xf32>
    %2128 = vector.extract_strided_slice %2125 {offsets = [0, 0], sizes = [2, 16], strides = [1, 1]} : vector<2x48xf32> to vector<2x16xf32>
    %2129 = arith.addf %2127, %2128 : vector<2x16xf32>
    %2130 = arith.negf %2129 : vector<2x16xf32>
    %2131 = math.exp %2130 : vector<2x16xf32>
    %cst_392 = arith.constant 1.000000e+00 : f32
    %2132 = vector.broadcast %cst_392 : f32 to vector<2x16xf32>
    %2133 = arith.addf %2132, %2131 : vector<2x16xf32>
    %2134 = arith.divf %2132, %2133 : vector<2x16xf32>
    %2135 = vector.extract_strided_slice %2124 {offsets = [0, 16], sizes = [2, 16], strides = [1, 1]} : vector<2x48xf32> to vector<2x16xf32>
    %2136 = vector.extract_strided_slice %2125 {offsets = [0, 16], sizes = [2, 16], strides = [1, 1]} : vector<2x48xf32> to vector<2x16xf32>
    %2137 = arith.addf %2135, %2136 : vector<2x16xf32>
    %2138 = arith.negf %2137 : vector<2x16xf32>
    %2139 = math.exp %2138 : vector<2x16xf32>
    %cst_393 = arith.constant 1.000000e+00 : f32
    %2140 = vector.broadcast %cst_393 : f32 to vector<2x16xf32>
    %2141 = arith.addf %2140, %2139 : vector<2x16xf32>
    %2142 = arith.divf %2140, %2141 : vector<2x16xf32>
    %2143 = vector.extract_strided_slice %2124 {offsets = [0, 32], sizes = [2, 16], strides = [1, 1]} : vector<2x48xf32> to vector<2x16xf32>
    %2144 = vector.extract_strided_slice %2125 {offsets = [0, 32], sizes = [2, 16], strides = [1, 1]} : vector<2x48xf32> to vector<2x16xf32>
    %2145 = arith.mulf %2134, %2144 : vector<2x16xf32>
    %2146 = arith.addf %2143, %2145 : vector<2x16xf32>
    %2147 = math.tanh %2146 : vector<2x16xf32>
    %cst_394 = arith.constant 1.000000e+00 : f32
    %2148 = vector.broadcast %cst_394 : f32 to vector<2x16xf32>
    %2149 = arith.subf %2148, %2142 : vector<2x16xf32>
    %2150 = arith.mulf %2149, %2147 : vector<2x16xf32>
    %2151 = arith.mulf %2142, %2126 : vector<2x16xf32>
    %2152 = arith.addf %2150, %2151 : vector<2x16xf32>
    %2153 = vector.extract_strided_slice %1179 {offsets = [2, 0, 0], sizes = [1, 2, 96], strides = [1, 1, 1]} : vector<16x2x96xf32> to vector<1x2x96xf32>
    %2154 = vector.shape_cast %2153 : vector<1x2x96xf32> to vector<2x96xf32>
    %2155 = vector.extract_strided_slice %2154 {offsets = [0, 48], sizes = [2, 48], strides = [1, 1]} : vector<2x96xf32> to vector<2x48xf32>
    %2156 = vector.extract_strided_slice %2121 {offsets = [0, 48], sizes = [2, 48], strides = [1, 1]} : vector<2x96xf32> to vector<2x48xf32>
    %2157 = vector.extract_strided_slice %2112 {offsets = [0, 16], sizes = [2, 16], strides = [1, 1]} : vector<2x32xf32> to vector<2x16xf32>
    %2158 = vector.extract_strided_slice %2155 {offsets = [0, 0], sizes = [2, 16], strides = [1, 1]} : vector<2x48xf32> to vector<2x16xf32>
    %2159 = vector.extract_strided_slice %2156 {offsets = [0, 0], sizes = [2, 16], strides = [1, 1]} : vector<2x48xf32> to vector<2x16xf32>
    %2160 = arith.addf %2158, %2159 : vector<2x16xf32>
    %2161 = arith.negf %2160 : vector<2x16xf32>
    %2162 = math.exp %2161 : vector<2x16xf32>
    %cst_395 = arith.constant 1.000000e+00 : f32
    %2163 = vector.broadcast %cst_395 : f32 to vector<2x16xf32>
    %2164 = arith.addf %2163, %2162 : vector<2x16xf32>
    %2165 = arith.divf %2163, %2164 : vector<2x16xf32>
    %2166 = vector.extract_strided_slice %2155 {offsets = [0, 16], sizes = [2, 16], strides = [1, 1]} : vector<2x48xf32> to vector<2x16xf32>
    %2167 = vector.extract_strided_slice %2156 {offsets = [0, 16], sizes = [2, 16], strides = [1, 1]} : vector<2x48xf32> to vector<2x16xf32>
    %2168 = arith.addf %2166, %2167 : vector<2x16xf32>
    %2169 = arith.negf %2168 : vector<2x16xf32>
    %2170 = math.exp %2169 : vector<2x16xf32>
    %cst_396 = arith.constant 1.000000e+00 : f32
    %2171 = vector.broadcast %cst_396 : f32 to vector<2x16xf32>
    %2172 = arith.addf %2171, %2170 : vector<2x16xf32>
    %2173 = arith.divf %2171, %2172 : vector<2x16xf32>
    %2174 = vector.extract_strided_slice %2155 {offsets = [0, 32], sizes = [2, 16], strides = [1, 1]} : vector<2x48xf32> to vector<2x16xf32>
    %2175 = vector.extract_strided_slice %2156 {offsets = [0, 32], sizes = [2, 16], strides = [1, 1]} : vector<2x48xf32> to vector<2x16xf32>
    %2176 = arith.mulf %2165, %2175 : vector<2x16xf32>
    %2177 = arith.addf %2174, %2176 : vector<2x16xf32>
    %2178 = math.tanh %2177 : vector<2x16xf32>
    %cst_397 = arith.constant 1.000000e+00 : f32
    %2179 = vector.broadcast %cst_397 : f32 to vector<2x16xf32>
    %2180 = arith.subf %2179, %2173 : vector<2x16xf32>
    %2181 = arith.mulf %2180, %2178 : vector<2x16xf32>
    %2182 = arith.mulf %2173, %2157 : vector<2x16xf32>
    %2183 = arith.addf %2181, %2182 : vector<2x16xf32>
    %2184 = tpu.concatenate %2152, %2183 in 1 : vector<2x16xf32>, vector<2x16xf32> -> vector<2x32xf32>
    %c13_398 = arith.constant 13 : index
    %c0_399 = arith.constant 0 : index
    %c0_400 = arith.constant 0 : index
    %2185 = vector.load %arg19[%c13_398, %c0_399, %c0_400] : memref<16x2x16xf32, #tpu.memory_space<vmem>>, vector<1x2x16xf32>
    %2186 = vector.shape_cast %2185 : vector<1x2x16xf32> to vector<2x16xf32>
    %2187 = vector.shape_cast %2152 : vector<2x16xf32> to vector<1x2x16xf32>
    tpu.vector_store %arg19[%c13_398, %c0_399, %c0_400], %2187 {strides = array<i32>} : memref<16x2x16xf32, #tpu.memory_space<vmem>>, vector<1x2x16xf32>,
    %c2_401 = arith.constant 2 : index
    %c0_402 = arith.constant 0 : index
    %c0_403 = arith.constant 0 : index
    %2188 = vector.load %arg20[%c2_401, %c0_402, %c0_403] : memref<16x2x16xf32, #tpu.memory_space<vmem>>, vector<1x2x16xf32>
    %2189 = vector.shape_cast %2188 : vector<1x2x16xf32> to vector<2x16xf32>
    %2190 = vector.shape_cast %2183 : vector<2x16xf32> to vector<1x2x16xf32>
    tpu.vector_store %arg20[%c2_401, %c0_402, %c0_403], %2190 {strides = array<i32>} : memref<16x2x16xf32, #tpu.memory_space<vmem>>, vector<1x2x16xf32>,
    %cst_404 = arith.constant dense<0.000000e+00> : vector<2x96xf32>
    %2191 = tpu.matmul %2184, %1180, %cst_404 {dimension_numbers = #tpu.dot_dimension_numbers<[1], [0], [0], [1], [0, 0, 1, 1], [], []>} : vector<2x32xf32>, vector<32x96xf32>, vector<2x96xf32> -> vector<2x96xf32>
    %2192 = vector.broadcast %1181 : vector<1x96xf32> to vector<2x96xf32>
    %2193 = arith.addf %2191, %2192 : vector<2x96xf32>
    %2194 = vector.extract_strided_slice %1179 {offsets = [14, 0, 0], sizes = [1, 2, 96], strides = [1, 1, 1]} : vector<16x2x96xf32> to vector<1x2x96xf32>
    %2195 = vector.shape_cast %2194 : vector<1x2x96xf32> to vector<2x96xf32>
    %2196 = vector.extract_strided_slice %2195 {offsets = [0, 0], sizes = [2, 48], strides = [1, 1]} : vector<2x96xf32> to vector<2x48xf32>
    %2197 = vector.extract_strided_slice %2193 {offsets = [0, 0], sizes = [2, 48], strides = [1, 1]} : vector<2x96xf32> to vector<2x48xf32>
    %2198 = vector.extract_strided_slice %2184 {offsets = [0, 0], sizes = [2, 16], strides = [1, 1]} : vector<2x32xf32> to vector<2x16xf32>
    %2199 = vector.extract_strided_slice %2196 {offsets = [0, 0], sizes = [2, 16], strides = [1, 1]} : vector<2x48xf32> to vector<2x16xf32>
    %2200 = vector.extract_strided_slice %2197 {offsets = [0, 0], sizes = [2, 16], strides = [1, 1]} : vector<2x48xf32> to vector<2x16xf32>
    %2201 = arith.addf %2199, %2200 : vector<2x16xf32>
    %2202 = arith.negf %2201 : vector<2x16xf32>
    %2203 = math.exp %2202 : vector<2x16xf32>
    %cst_405 = arith.constant 1.000000e+00 : f32
    %2204 = vector.broadcast %cst_405 : f32 to vector<2x16xf32>
    %2205 = arith.addf %2204, %2203 : vector<2x16xf32>
    %2206 = arith.divf %2204, %2205 : vector<2x16xf32>
    %2207 = vector.extract_strided_slice %2196 {offsets = [0, 16], sizes = [2, 16], strides = [1, 1]} : vector<2x48xf32> to vector<2x16xf32>
    %2208 = vector.extract_strided_slice %2197 {offsets = [0, 16], sizes = [2, 16], strides = [1, 1]} : vector<2x48xf32> to vector<2x16xf32>
    %2209 = arith.addf %2207, %2208 : vector<2x16xf32>
    %2210 = arith.negf %2209 : vector<2x16xf32>
    %2211 = math.exp %2210 : vector<2x16xf32>
    %cst_406 = arith.constant 1.000000e+00 : f32
    %2212 = vector.broadcast %cst_406 : f32 to vector<2x16xf32>
    %2213 = arith.addf %2212, %2211 : vector<2x16xf32>
    %2214 = arith.divf %2212, %2213 : vector<2x16xf32>
    %2215 = vector.extract_strided_slice %2196 {offsets = [0, 32], sizes = [2, 16], strides = [1, 1]} : vector<2x48xf32> to vector<2x16xf32>
    %2216 = vector.extract_strided_slice %2197 {offsets = [0, 32], sizes = [2, 16], strides = [1, 1]} : vector<2x48xf32> to vector<2x16xf32>
    %2217 = arith.mulf %2206, %2216 : vector<2x16xf32>
    %2218 = arith.addf %2215, %2217 : vector<2x16xf32>
    %2219 = math.tanh %2218 : vector<2x16xf32>
    %cst_407 = arith.constant 1.000000e+00 : f32
    %2220 = vector.broadcast %cst_407 : f32 to vector<2x16xf32>
    %2221 = arith.subf %2220, %2214 : vector<2x16xf32>
    %2222 = arith.mulf %2221, %2219 : vector<2x16xf32>
    %2223 = arith.mulf %2214, %2198 : vector<2x16xf32>
    %2224 = arith.addf %2222, %2223 : vector<2x16xf32>
    %2225 = vector.extract_strided_slice %1179 {offsets = [1, 0, 0], sizes = [1, 2, 96], strides = [1, 1, 1]} : vector<16x2x96xf32> to vector<1x2x96xf32>
    %2226 = vector.shape_cast %2225 : vector<1x2x96xf32> to vector<2x96xf32>
    %2227 = vector.extract_strided_slice %2226 {offsets = [0, 48], sizes = [2, 48], strides = [1, 1]} : vector<2x96xf32> to vector<2x48xf32>
    %2228 = vector.extract_strided_slice %2193 {offsets = [0, 48], sizes = [2, 48], strides = [1, 1]} : vector<2x96xf32> to vector<2x48xf32>
    %2229 = vector.extract_strided_slice %2184 {offsets = [0, 16], sizes = [2, 16], strides = [1, 1]} : vector<2x32xf32> to vector<2x16xf32>
    %2230 = vector.extract_strided_slice %2227 {offsets = [0, 0], sizes = [2, 16], strides = [1, 1]} : vector<2x48xf32> to vector<2x16xf32>
    %2231 = vector.extract_strided_slice %2228 {offsets = [0, 0], sizes = [2, 16], strides = [1, 1]} : vector<2x48xf32> to vector<2x16xf32>
    %2232 = arith.addf %2230, %2231 : vector<2x16xf32>
    %2233 = arith.negf %2232 : vector<2x16xf32>
    %2234 = math.exp %2233 : vector<2x16xf32>
    %cst_408 = arith.constant 1.000000e+00 : f32
    %2235 = vector.broadcast %cst_408 : f32 to vector<2x16xf32>
    %2236 = arith.addf %2235, %2234 : vector<2x16xf32>
    %2237 = arith.divf %2235, %2236 : vector<2x16xf32>
    %2238 = vector.extract_strided_slice %2227 {offsets = [0, 16], sizes = [2, 16], strides = [1, 1]} : vector<2x48xf32> to vector<2x16xf32>
    %2239 = vector.extract_strided_slice %2228 {offsets = [0, 16], sizes = [2, 16], strides = [1, 1]} : vector<2x48xf32> to vector<2x16xf32>
    %2240 = arith.addf %2238, %2239 : vector<2x16xf32>
    %2241 = arith.negf %2240 : vector<2x16xf32>
    %2242 = math.exp %2241 : vector<2x16xf32>
    %cst_409 = arith.constant 1.000000e+00 : f32
    %2243 = vector.broadcast %cst_409 : f32 to vector<2x16xf32>
    %2244 = arith.addf %2243, %2242 : vector<2x16xf32>
    %2245 = arith.divf %2243, %2244 : vector<2x16xf32>
    %2246 = vector.extract_strided_slice %2227 {offsets = [0, 32], sizes = [2, 16], strides = [1, 1]} : vector<2x48xf32> to vector<2x16xf32>
    %2247 = vector.extract_strided_slice %2228 {offsets = [0, 32], sizes = [2, 16], strides = [1, 1]} : vector<2x48xf32> to vector<2x16xf32>
    %2248 = arith.mulf %2237, %2247 : vector<2x16xf32>
    %2249 = arith.addf %2246, %2248 : vector<2x16xf32>
    %2250 = math.tanh %2249 : vector<2x16xf32>
    %cst_410 = arith.constant 1.000000e+00 : f32
    %2251 = vector.broadcast %cst_410 : f32 to vector<2x16xf32>
    %2252 = arith.subf %2251, %2245 : vector<2x16xf32>
    %2253 = arith.mulf %2252, %2250 : vector<2x16xf32>
    %2254 = arith.mulf %2245, %2229 : vector<2x16xf32>
    %2255 = arith.addf %2253, %2254 : vector<2x16xf32>
    %2256 = tpu.concatenate %2224, %2255 in 1 : vector<2x16xf32>, vector<2x16xf32> -> vector<2x32xf32>
    %c14_411 = arith.constant 14 : index
    %c0_412 = arith.constant 0 : index
    %c0_413 = arith.constant 0 : index
    %2257 = vector.load %arg19[%c14_411, %c0_412, %c0_413] : memref<16x2x16xf32, #tpu.memory_space<vmem>>, vector<1x2x16xf32>
    %2258 = vector.shape_cast %2257 : vector<1x2x16xf32> to vector<2x16xf32>
    %2259 = vector.shape_cast %2224 : vector<2x16xf32> to vector<1x2x16xf32>
    tpu.vector_store %arg19[%c14_411, %c0_412, %c0_413], %2259 {strides = array<i32>} : memref<16x2x16xf32, #tpu.memory_space<vmem>>, vector<1x2x16xf32>,
    %c1_414 = arith.constant 1 : index
    %c0_415 = arith.constant 0 : index
    %c0_416 = arith.constant 0 : index
    %2260 = vector.load %arg20[%c1_414, %c0_415, %c0_416] : memref<16x2x16xf32, #tpu.memory_space<vmem>>, vector<1x2x16xf32>
    %2261 = vector.shape_cast %2260 : vector<1x2x16xf32> to vector<2x16xf32>
    %2262 = vector.shape_cast %2255 : vector<2x16xf32> to vector<1x2x16xf32>
    tpu.vector_store %arg20[%c1_414, %c0_415, %c0_416], %2262 {strides = array<i32>} : memref<16x2x16xf32, #tpu.memory_space<vmem>>, vector<1x2x16xf32>,
    %cst_417 = arith.constant dense<0.000000e+00> : vector<2x96xf32>
    %2263 = tpu.matmul %2256, %1180, %cst_417 {dimension_numbers = #tpu.dot_dimension_numbers<[1], [0], [0], [1], [0, 0, 1, 1], [], []>} : vector<2x32xf32>, vector<32x96xf32>, vector<2x96xf32> -> vector<2x96xf32>
    %2264 = vector.broadcast %1181 : vector<1x96xf32> to vector<2x96xf32>
    %2265 = arith.addf %2263, %2264 : vector<2x96xf32>
    %2266 = vector.extract_strided_slice %1179 {offsets = [15, 0, 0], sizes = [1, 2, 96], strides = [1, 1, 1]} : vector<16x2x96xf32> to vector<1x2x96xf32>
    %2267 = vector.shape_cast %2266 : vector<1x2x96xf32> to vector<2x96xf32>
    %2268 = vector.extract_strided_slice %2267 {offsets = [0, 0], sizes = [2, 48], strides = [1, 1]} : vector<2x96xf32> to vector<2x48xf32>
    %2269 = vector.extract_strided_slice %2265 {offsets = [0, 0], sizes = [2, 48], strides = [1, 1]} : vector<2x96xf32> to vector<2x48xf32>
    %2270 = vector.extract_strided_slice %2256 {offsets = [0, 0], sizes = [2, 16], strides = [1, 1]} : vector<2x32xf32> to vector<2x16xf32>
    %2271 = vector.extract_strided_slice %2268 {offsets = [0, 0], sizes = [2, 16], strides = [1, 1]} : vector<2x48xf32> to vector<2x16xf32>
    %2272 = vector.extract_strided_slice %2269 {offsets = [0, 0], sizes = [2, 16], strides = [1, 1]} : vector<2x48xf32> to vector<2x16xf32>
    %2273 = arith.addf %2271, %2272 : vector<2x16xf32>
    %2274 = arith.negf %2273 : vector<2x16xf32>
    %2275 = math.exp %2274 : vector<2x16xf32>
    %cst_418 = arith.constant 1.000000e+00 : f32
    %2276 = vector.broadcast %cst_418 : f32 to vector<2x16xf32>
    %2277 = arith.addf %2276, %2275 : vector<2x16xf32>
    %2278 = arith.divf %2276, %2277 : vector<2x16xf32>
    %2279 = vector.extract_strided_slice %2268 {offsets = [0, 16], sizes = [2, 16], strides = [1, 1]} : vector<2x48xf32> to vector<2x16xf32>
    %2280 = vector.extract_strided_slice %2269 {offsets = [0, 16], sizes = [2, 16], strides = [1, 1]} : vector<2x48xf32> to vector<2x16xf32>
    %2281 = arith.addf %2279, %2280 : vector<2x16xf32>
    %2282 = arith.negf %2281 : vector<2x16xf32>
    %2283 = math.exp %2282 : vector<2x16xf32>
    %cst_419 = arith.constant 1.000000e+00 : f32
    %2284 = vector.broadcast %cst_419 : f32 to vector<2x16xf32>
    %2285 = arith.addf %2284, %2283 : vector<2x16xf32>
    %2286 = arith.divf %2284, %2285 : vector<2x16xf32>
    %2287 = vector.extract_strided_slice %2268 {offsets = [0, 32], sizes = [2, 16], strides = [1, 1]} : vector<2x48xf32> to vector<2x16xf32>
    %2288 = vector.extract_strided_slice %2269 {offsets = [0, 32], sizes = [2, 16], strides = [1, 1]} : vector<2x48xf32> to vector<2x16xf32>
    %2289 = arith.mulf %2278, %2288 : vector<2x16xf32>
    %2290 = arith.addf %2287, %2289 : vector<2x16xf32>
    %2291 = math.tanh %2290 : vector<2x16xf32>
    %cst_420 = arith.constant 1.000000e+00 : f32
    %2292 = vector.broadcast %cst_420 : f32 to vector<2x16xf32>
    %2293 = arith.subf %2292, %2286 : vector<2x16xf32>
    %2294 = arith.mulf %2293, %2291 : vector<2x16xf32>
    %2295 = arith.mulf %2286, %2270 : vector<2x16xf32>
    %2296 = arith.addf %2294, %2295 : vector<2x16xf32>
    %2297 = vector.extract_strided_slice %1179 {offsets = [0, 0, 0], sizes = [1, 2, 96], strides = [1, 1, 1]} : vector<16x2x96xf32> to vector<1x2x96xf32>
    %2298 = vector.shape_cast %2297 : vector<1x2x96xf32> to vector<2x96xf32>
    %2299 = vector.extract_strided_slice %2298 {offsets = [0, 48], sizes = [2, 48], strides = [1, 1]} : vector<2x96xf32> to vector<2x48xf32>
    %2300 = vector.extract_strided_slice %2265 {offsets = [0, 48], sizes = [2, 48], strides = [1, 1]} : vector<2x96xf32> to vector<2x48xf32>
    %2301 = vector.extract_strided_slice %2256 {offsets = [0, 16], sizes = [2, 16], strides = [1, 1]} : vector<2x32xf32> to vector<2x16xf32>
    %2302 = vector.extract_strided_slice %2299 {offsets = [0, 0], sizes = [2, 16], strides = [1, 1]} : vector<2x48xf32> to vector<2x16xf32>
    %2303 = vector.extract_strided_slice %2300 {offsets = [0, 0], sizes = [2, 16], strides = [1, 1]} : vector<2x48xf32> to vector<2x16xf32>
    %2304 = arith.addf %2302, %2303 : vector<2x16xf32>
    %2305 = arith.negf %2304 : vector<2x16xf32>
    %2306 = math.exp %2305 : vector<2x16xf32>
    %cst_421 = arith.constant 1.000000e+00 : f32
    %2307 = vector.broadcast %cst_421 : f32 to vector<2x16xf32>
    %2308 = arith.addf %2307, %2306 : vector<2x16xf32>
    %2309 = arith.divf %2307, %2308 : vector<2x16xf32>
    %2310 = vector.extract_strided_slice %2299 {offsets = [0, 16], sizes = [2, 16], strides = [1, 1]} : vector<2x48xf32> to vector<2x16xf32>
    %2311 = vector.extract_strided_slice %2300 {offsets = [0, 16], sizes = [2, 16], strides = [1, 1]} : vector<2x48xf32> to vector<2x16xf32>
    %2312 = arith.addf %2310, %2311 : vector<2x16xf32>
    %2313 = arith.negf %2312 : vector<2x16xf32>
    %2314 = math.exp %2313 : vector<2x16xf32>
    %cst_422 = arith.constant 1.000000e+00 : f32
    %2315 = vector.broadcast %cst_422 : f32 to vector<2x16xf32>
    %2316 = arith.addf %2315, %2314 : vector<2x16xf32>
    %2317 = arith.divf %2315, %2316 : vector<2x16xf32>
    %2318 = vector.extract_strided_slice %2299 {offsets = [0, 32], sizes = [2, 16], strides = [1, 1]} : vector<2x48xf32> to vector<2x16xf32>
    %2319 = vector.extract_strided_slice %2300 {offsets = [0, 32], sizes = [2, 16], strides = [1, 1]} : vector<2x48xf32> to vector<2x16xf32>
    %2320 = arith.mulf %2309, %2319 : vector<2x16xf32>
    %2321 = arith.addf %2318, %2320 : vector<2x16xf32>
    %2322 = math.tanh %2321 : vector<2x16xf32>
    %cst_423 = arith.constant 1.000000e+00 : f32
    %2323 = vector.broadcast %cst_423 : f32 to vector<2x16xf32>
    %2324 = arith.subf %2323, %2317 : vector<2x16xf32>
    %2325 = arith.mulf %2324, %2322 : vector<2x16xf32>
    %2326 = arith.mulf %2317, %2301 : vector<2x16xf32>
    %2327 = arith.addf %2325, %2326 : vector<2x16xf32>
    %c15_424 = arith.constant 15 : index
    %c0_425 = arith.constant 0 : index
    %c0_426 = arith.constant 0 : index
    %2328 = vector.load %arg19[%c15_424, %c0_425, %c0_426] : memref<16x2x16xf32, #tpu.memory_space<vmem>>, vector<1x2x16xf32>
    %2329 = vector.shape_cast %2328 : vector<1x2x16xf32> to vector<2x16xf32>
    %2330 = vector.shape_cast %2296 : vector<2x16xf32> to vector<1x2x16xf32>
    tpu.vector_store %arg19[%c15_424, %c0_425, %c0_426], %2330 {strides = array<i32>} : memref<16x2x16xf32, #tpu.memory_space<vmem>>, vector<1x2x16xf32>,
    %c0_427 = arith.constant 0 : index
    %c0_428 = arith.constant 0 : index
    %c0_429 = arith.constant 0 : index
    %2331 = vector.load %arg20[%c0_427, %c0_428, %c0_429] : memref<16x2x16xf32, #tpu.memory_space<vmem>>, vector<1x2x16xf32>
    %2332 = vector.shape_cast %2331 : vector<1x2x16xf32> to vector<2x16xf32>
    %2333 = vector.shape_cast %2327 : vector<2x16xf32> to vector<1x2x16xf32>
    tpu.vector_store %arg20[%c0_427, %c0_428, %c0_429], %2333 {strides = array<i32>} : memref<16x2x16xf32, #tpu.memory_space<vmem>>, vector<1x2x16xf32>,
    %c0_430 = arith.constant 0 : index
    %c0_431 = arith.constant 0 : index
    %c0_432 = arith.constant 0 : index
    %2334 = vector.load %arg19[%c0_430, %c0_431, %c0_432] : memref<16x2x16xf32, #tpu.memory_space<vmem>>, vector<16x2x16xf32>
    %c0_433 = arith.constant 0 : index
    %c0_434 = arith.constant 0 : index
    %c0_435 = arith.constant 0 : index
    %2335 = vector.load %arg20[%c0_433, %c0_434, %c0_435] : memref<16x2x16xf32, #tpu.memory_space<vmem>>, vector<16x2x16xf32>
    %2336 = tpu.concatenate %2334, %2335 in 2 : vector<16x2x16xf32>, vector<16x2x16xf32> -> vector<16x2x32xf32>
    %2337 = tpu.concatenate %2336, %8 in 2 : vector<16x2x32xf32>, vector<16x2x16xf32> -> vector<16x2x48xf32>
    %2338 = vector.extract_strided_slice %2337 {offsets = [0, 0, 0], sizes = [14, 2, 48], strides = [1, 1, 1]} : vector<16x2x48xf32> to vector<14x2x48xf32>
    %2339 = vector.extract_strided_slice %2337 {offsets = [1, 0, 0], sizes = [14, 2, 48], strides = [1, 1, 1]} : vector<16x2x48xf32> to vector<14x2x48xf32>
    %2340 = vector.extract_strided_slice %2337 {offsets = [2, 0, 0], sizes = [14, 2, 48], strides = [1, 1, 1]} : vector<16x2x48xf32> to vector<14x2x48xf32>
    %2341 = tpu.concatenate %2338, %2339, %2340 in 2 : vector<14x2x48xf32>, vector<14x2x48xf32>, vector<14x2x48xf32> -> vector<14x2x144xf32>
    %2342 = vector.shape_cast %2341 : vector<14x2x144xf32> to vector<28x144xf32>
    %c0_436 = arith.constant 0 : index
    %c0_437 = arith.constant 0 : index
    %2343 = vector.load %arg10[%c0_436, %c0_437] : memref<144x32xf32, #tpu.memory_space<vmem>>, vector<144x32xf32>
    %cst_438 = arith.constant dense<0.000000e+00> : vector<28x32xf32>
    %2344 = tpu.matmul %2342, %2343, %cst_438 {dimension_numbers = #tpu.dot_dimension_numbers<[1], [0], [0], [1], [0, 0, 1, 1], [], []>} : vector<28x144xf32>, vector<144x32xf32>, vector<28x32xf32> -> vector<28x32xf32>
    %c0_439 = arith.constant 0 : index
    %c0_440 = arith.constant 0 : index
    %2345 = vector.load %arg11[%c0_439, %c0_440] : memref<1x32xf32, #tpu.memory_space<vmem>>, vector<1x32xf32>
    %2346 = vector.broadcast %2345 : vector<1x32xf32> to vector<28x32xf32>
    %2347 = arith.addf %2344, %2346 : vector<28x32xf32>
    %cst_441 = arith.constant 0.000000e+00 : f32
    %2348 = vector.broadcast %cst_441 : f32 to vector<28x32xf32>
    %2349 = arith.maximumf %2347, %2348 : vector<28x32xf32>
    %2350 = vector.shape_cast %2349 : vector<28x32xf32> to vector<14x2x32xf32>
    %2351 = vector.extract_strided_slice %2350 {offsets = [0, 0, 0], sizes = [12, 2, 32], strides = [1, 1, 1]} : vector<14x2x32xf32> to vector<12x2x32xf32>
    %2352 = vector.extract_strided_slice %2350 {offsets = [1, 0, 0], sizes = [12, 2, 32], strides = [1, 1, 1]} : vector<14x2x32xf32> to vector<12x2x32xf32>
    %2353 = vector.extract_strided_slice %2350 {offsets = [2, 0, 0], sizes = [12, 2, 32], strides = [1, 1, 1]} : vector<14x2x32xf32> to vector<12x2x32xf32>
    %2354 = tpu.concatenate %2351, %2352, %2353 in 2 : vector<12x2x32xf32>, vector<12x2x32xf32>, vector<12x2x32xf32> -> vector<12x2x96xf32>
    %2355 = vector.shape_cast %2354 : vector<12x2x96xf32> to vector<24x96xf32>
    %c0_442 = arith.constant 0 : index
    %c0_443 = arith.constant 0 : index
    %2356 = vector.load %arg12[%c0_442, %c0_443] : memref<96x32xf32, #tpu.memory_space<vmem>>, vector<96x32xf32>
    %cst_444 = arith.constant dense<0.000000e+00> : vector<24x32xf32>
    %2357 = tpu.matmul %2355, %2356, %cst_444 {dimension_numbers = #tpu.dot_dimension_numbers<[1], [0], [0], [1], [0, 0, 1, 1], [], []>} : vector<24x96xf32>, vector<96x32xf32>, vector<24x32xf32> -> vector<24x32xf32>
    %c0_445 = arith.constant 0 : index
    %c0_446 = arith.constant 0 : index
    %2358 = vector.load %arg13[%c0_445, %c0_446] : memref<1x32xf32, #tpu.memory_space<vmem>>, vector<1x32xf32>
    %2359 = vector.broadcast %2358 : vector<1x32xf32> to vector<24x32xf32>
    %2360 = arith.addf %2357, %2359 : vector<24x32xf32>
    %cst_447 = arith.constant 0.000000e+00 : f32
    %2361 = vector.broadcast %cst_447 : f32 to vector<24x32xf32>
    %2362 = arith.maximumf %2360, %2361 : vector<24x32xf32>
    %2363 = vector.shape_cast %2362 : vector<24x32xf32> to vector<12x2x32xf32>
    %2364 = vector.extract_strided_slice %2363 {offsets = [0, 0, 0], sizes = [1, 2, 32], strides = [1, 1, 1]} : vector<12x2x32xf32> to vector<1x2x32xf32>
    %2365 = vector.shape_cast %2364 : vector<1x2x32xf32> to vector<2x32xf32>
    %2366 = vector.extract_strided_slice %2363 {offsets = [1, 0, 0], sizes = [1, 2, 32], strides = [1, 1, 1]} : vector<12x2x32xf32> to vector<1x2x32xf32>
    %2367 = vector.shape_cast %2366 : vector<1x2x32xf32> to vector<2x32xf32>
    %2368 = vector.extract_strided_slice %2363 {offsets = [2, 0, 0], sizes = [1, 2, 32], strides = [1, 1, 1]} : vector<12x2x32xf32> to vector<1x2x32xf32>
    %2369 = vector.shape_cast %2368 : vector<1x2x32xf32> to vector<2x32xf32>
    %2370 = vector.extract_strided_slice %2363 {offsets = [3, 0, 0], sizes = [1, 2, 32], strides = [1, 1, 1]} : vector<12x2x32xf32> to vector<1x2x32xf32>
    %2371 = vector.shape_cast %2370 : vector<1x2x32xf32> to vector<2x32xf32>
    %2372 = vector.extract_strided_slice %2363 {offsets = [4, 0, 0], sizes = [1, 2, 32], strides = [1, 1, 1]} : vector<12x2x32xf32> to vector<1x2x32xf32>
    %2373 = vector.shape_cast %2372 : vector<1x2x32xf32> to vector<2x32xf32>
    %2374 = vector.extract_strided_slice %2363 {offsets = [5, 0, 0], sizes = [1, 2, 32], strides = [1, 1, 1]} : vector<12x2x32xf32> to vector<1x2x32xf32>
    %2375 = vector.shape_cast %2374 : vector<1x2x32xf32> to vector<2x32xf32>
    %2376 = vector.extract_strided_slice %2363 {offsets = [6, 0, 0], sizes = [1, 2, 32], strides = [1, 1, 1]} : vector<12x2x32xf32> to vector<1x2x32xf32>
    %2377 = vector.shape_cast %2376 : vector<1x2x32xf32> to vector<2x32xf32>
    %2378 = vector.extract_strided_slice %2363 {offsets = [7, 0, 0], sizes = [1, 2, 32], strides = [1, 1, 1]} : vector<12x2x32xf32> to vector<1x2x32xf32>
    %2379 = vector.shape_cast %2378 : vector<1x2x32xf32> to vector<2x32xf32>
    %2380 = vector.extract_strided_slice %2363 {offsets = [8, 0, 0], sizes = [1, 2, 32], strides = [1, 1, 1]} : vector<12x2x32xf32> to vector<1x2x32xf32>
    %2381 = vector.shape_cast %2380 : vector<1x2x32xf32> to vector<2x32xf32>
    %2382 = vector.extract_strided_slice %2363 {offsets = [9, 0, 0], sizes = [1, 2, 32], strides = [1, 1, 1]} : vector<12x2x32xf32> to vector<1x2x32xf32>
    %2383 = vector.shape_cast %2382 : vector<1x2x32xf32> to vector<2x32xf32>
    %2384 = vector.extract_strided_slice %2363 {offsets = [10, 0, 0], sizes = [1, 2, 32], strides = [1, 1, 1]} : vector<12x2x32xf32> to vector<1x2x32xf32>
    %2385 = vector.shape_cast %2384 : vector<1x2x32xf32> to vector<2x32xf32>
    %2386 = vector.extract_strided_slice %2363 {offsets = [11, 0, 0], sizes = [1, 2, 32], strides = [1, 1, 1]} : vector<12x2x32xf32> to vector<1x2x32xf32>
    %2387 = vector.shape_cast %2386 : vector<1x2x32xf32> to vector<2x32xf32>
    %false = arith.constant false
    %2388 = vector.broadcast %false : i1 to vector<2x32xi1>
    %false_448 = arith.constant false
    %2389 = vector.broadcast %false_448 : i1 to vector<2x32xi1>
    %false_449 = arith.constant false
    %2390 = vector.broadcast %false_449 : i1 to vector<2x32xi1>
    %false_450 = arith.constant false
    %2391 = vector.broadcast %false_450 : i1 to vector<2x32xi1>
    %false_451 = arith.constant false
    %2392 = vector.broadcast %false_451 : i1 to vector<2x32xi1>
    %false_452 = arith.constant false
    %2393 = vector.broadcast %false_452 : i1 to vector<2x32xi1>
    %false_453 = arith.constant false
    %2394 = vector.broadcast %false_453 : i1 to vector<2x32xi1>
    %false_454 = arith.constant false
    %2395 = vector.broadcast %false_454 : i1 to vector<2x32xi1>
    %false_455 = arith.constant false
    %2396 = vector.broadcast %false_455 : i1 to vector<2x32xi1>
    %false_456 = arith.constant false
    %2397 = vector.broadcast %false_456 : i1 to vector<2x32xi1>
    %false_457 = arith.constant false
    %2398 = vector.broadcast %false_457 : i1 to vector<2x32xi1>
    %false_458 = arith.constant false
    %2399 = vector.broadcast %false_458 : i1 to vector<2x32xi1>
    %cst_459 = arith.constant 0xFF800000 : f32
    %2400 = vector.broadcast %cst_459 : f32 to vector<2x32xf32>
    %2401 = arith.select %2388, %2400, %2365 : vector<2x32xi1>, vector<2x32xf32>
    %cst_460 = arith.constant 0xFF800000 : f32
    %2402 = vector.broadcast %cst_460 : f32 to vector<2x32xf32>
    %2403 = arith.select %2389, %2402, %2367 : vector<2x32xi1>, vector<2x32xf32>
    %cst_461 = arith.constant 0xFF800000 : f32
    %2404 = vector.broadcast %cst_461 : f32 to vector<2x32xf32>
    %2405 = arith.select %2390, %2404, %2369 : vector<2x32xi1>, vector<2x32xf32>
    %cst_462 = arith.constant 0xFF800000 : f32
    %2406 = vector.broadcast %cst_462 : f32 to vector<2x32xf32>
    %2407 = arith.select %2391, %2406, %2371 : vector<2x32xi1>, vector<2x32xf32>
    %cst_463 = arith.constant 0xFF800000 : f32
    %2408 = vector.broadcast %cst_463 : f32 to vector<2x32xf32>
    %2409 = arith.select %2392, %2408, %2373 : vector<2x32xi1>, vector<2x32xf32>
    %cst_464 = arith.constant 0xFF800000 : f32
    %2410 = vector.broadcast %cst_464 : f32 to vector<2x32xf32>
    %2411 = arith.select %2393, %2410, %2375 : vector<2x32xi1>, vector<2x32xf32>
    %cst_465 = arith.constant 0xFF800000 : f32
    %2412 = vector.broadcast %cst_465 : f32 to vector<2x32xf32>
    %2413 = arith.select %2394, %2412, %2377 : vector<2x32xi1>, vector<2x32xf32>
    %cst_466 = arith.constant 0xFF800000 : f32
    %2414 = vector.broadcast %cst_466 : f32 to vector<2x32xf32>
    %2415 = arith.select %2395, %2414, %2379 : vector<2x32xi1>, vector<2x32xf32>
    %cst_467 = arith.constant 0xFF800000 : f32
    %2416 = vector.broadcast %cst_467 : f32 to vector<2x32xf32>
    %2417 = arith.select %2396, %2416, %2381 : vector<2x32xi1>, vector<2x32xf32>
    %cst_468 = arith.constant 0xFF800000 : f32
    %2418 = vector.broadcast %cst_468 : f32 to vector<2x32xf32>
    %2419 = arith.select %2397, %2418, %2383 : vector<2x32xi1>, vector<2x32xf32>
    %cst_469 = arith.constant 0xFF800000 : f32
    %2420 = vector.broadcast %cst_469 : f32 to vector<2x32xf32>
    %2421 = arith.select %2398, %2420, %2385 : vector<2x32xi1>, vector<2x32xf32>
    %cst_470 = arith.constant 0xFF800000 : f32
    %2422 = vector.broadcast %cst_470 : f32 to vector<2x32xf32>
    %2423 = arith.select %2399, %2422, %2387 : vector<2x32xi1>, vector<2x32xf32>
    %2424 = arith.maximumf %2401, %2403 : vector<2x32xf32>
    %2425 = arith.maximumf %2424, %2405 : vector<2x32xf32>
    %2426 = arith.maximumf %2425, %2407 : vector<2x32xf32>
    %2427 = arith.maximumf %2426, %2409 : vector<2x32xf32>
    %2428 = arith.maximumf %2427, %2411 : vector<2x32xf32>
    %2429 = arith.maximumf %2428, %2413 : vector<2x32xf32>
    %2430 = arith.maximumf %2429, %2415 : vector<2x32xf32>
    %2431 = arith.maximumf %2430, %2417 : vector<2x32xf32>
    %2432 = arith.maximumf %2431, %2419 : vector<2x32xf32>
    %2433 = arith.maximumf %2432, %2421 : vector<2x32xf32>
    %2434 = arith.maximumf %2433, %2423 : vector<2x32xf32>
    %false_471 = arith.constant false
    %2435 = vector.broadcast %false_471 : i1 to vector<2x32xi1>
    %2436 = arith.cmpf oeq, %2401, %2434 : vector<2x32xf32>
    %cst_472 = arith.constant dense<true> : vector<2x32xi1>
    %2437 = arith.xori %2435, %cst_472 : vector<2x32xi1>
    %2438 = arith.andi %2436, %2437 : vector<2x32xi1>
    %2439 = arith.ori %2388, %2438 : vector<2x32xi1>
    %2440 = arith.ori %2435, %2438 : vector<2x32xi1>
    %2441 = arith.cmpf oeq, %2403, %2434 : vector<2x32xf32>
    %cst_473 = arith.constant dense<true> : vector<2x32xi1>
    %2442 = arith.xori %2440, %cst_473 : vector<2x32xi1>
    %2443 = arith.andi %2441, %2442 : vector<2x32xi1>
    %2444 = arith.ori %2389, %2443 : vector<2x32xi1>
    %2445 = arith.ori %2440, %2443 : vector<2x32xi1>
    %2446 = arith.cmpf oeq, %2405, %2434 : vector<2x32xf32>
    %cst_474 = arith.constant dense<true> : vector<2x32xi1>
    %2447 = arith.xori %2445, %cst_474 : vector<2x32xi1>
    %2448 = arith.andi %2446, %2447 : vector<2x32xi1>
    %2449 = arith.ori %2390, %2448 : vector<2x32xi1>
    %2450 = arith.ori %2445, %2448 : vector<2x32xi1>
    %2451 = arith.cmpf oeq, %2407, %2434 : vector<2x32xf32>
    %cst_475 = arith.constant dense<true> : vector<2x32xi1>
    %2452 = arith.xori %2450, %cst_475 : vector<2x32xi1>
    %2453 = arith.andi %2451, %2452 : vector<2x32xi1>
    %2454 = arith.ori %2391, %2453 : vector<2x32xi1>
    %2455 = arith.ori %2450, %2453 : vector<2x32xi1>
    %2456 = arith.cmpf oeq, %2409, %2434 : vector<2x32xf32>
    %cst_476 = arith.constant dense<true> : vector<2x32xi1>
    %2457 = arith.xori %2455, %cst_476 : vector<2x32xi1>
    %2458 = arith.andi %2456, %2457 : vector<2x32xi1>
    %2459 = arith.ori %2392, %2458 : vector<2x32xi1>
    %2460 = arith.ori %2455, %2458 : vector<2x32xi1>
    %2461 = arith.cmpf oeq, %2411, %2434 : vector<2x32xf32>
    %cst_477 = arith.constant dense<true> : vector<2x32xi1>
    %2462 = arith.xori %2460, %cst_477 : vector<2x32xi1>
    %2463 = arith.andi %2461, %2462 : vector<2x32xi1>
    %2464 = arith.ori %2393, %2463 : vector<2x32xi1>
    %2465 = arith.ori %2460, %2463 : vector<2x32xi1>
    %2466 = arith.cmpf oeq, %2413, %2434 : vector<2x32xf32>
    %cst_478 = arith.constant dense<true> : vector<2x32xi1>
    %2467 = arith.xori %2465, %cst_478 : vector<2x32xi1>
    %2468 = arith.andi %2466, %2467 : vector<2x32xi1>
    %2469 = arith.ori %2394, %2468 : vector<2x32xi1>
    %2470 = arith.ori %2465, %2468 : vector<2x32xi1>
    %2471 = arith.cmpf oeq, %2415, %2434 : vector<2x32xf32>
    %cst_479 = arith.constant dense<true> : vector<2x32xi1>
    %2472 = arith.xori %2470, %cst_479 : vector<2x32xi1>
    %2473 = arith.andi %2471, %2472 : vector<2x32xi1>
    %2474 = arith.ori %2395, %2473 : vector<2x32xi1>
    %2475 = arith.ori %2470, %2473 : vector<2x32xi1>
    %2476 = arith.cmpf oeq, %2417, %2434 : vector<2x32xf32>
    %cst_480 = arith.constant dense<true> : vector<2x32xi1>
    %2477 = arith.xori %2475, %cst_480 : vector<2x32xi1>
    %2478 = arith.andi %2476, %2477 : vector<2x32xi1>
    %2479 = arith.ori %2396, %2478 : vector<2x32xi1>
    %2480 = arith.ori %2475, %2478 : vector<2x32xi1>
    %2481 = arith.cmpf oeq, %2419, %2434 : vector<2x32xf32>
    %cst_481 = arith.constant dense<true> : vector<2x32xi1>
    %2482 = arith.xori %2480, %cst_481 : vector<2x32xi1>
    %2483 = arith.andi %2481, %2482 : vector<2x32xi1>
    %2484 = arith.ori %2397, %2483 : vector<2x32xi1>
    %2485 = arith.ori %2480, %2483 : vector<2x32xi1>
    %2486 = arith.cmpf oeq, %2421, %2434 : vector<2x32xf32>
    %cst_482 = arith.constant dense<true> : vector<2x32xi1>
    %2487 = arith.xori %2485, %cst_482 : vector<2x32xi1>
    %2488 = arith.andi %2486, %2487 : vector<2x32xi1>
    %2489 = arith.ori %2398, %2488 : vector<2x32xi1>
    %2490 = arith.ori %2485, %2488 : vector<2x32xi1>
    %2491 = arith.cmpf oeq, %2423, %2434 : vector<2x32xf32>
    %cst_483 = arith.constant dense<true> : vector<2x32xi1>
    %2492 = arith.xori %2490, %cst_483 : vector<2x32xi1>
    %2493 = arith.andi %2491, %2492 : vector<2x32xi1>
    %2494 = arith.ori %2399, %2493 : vector<2x32xi1>
    %cst_484 = arith.constant 0xFF800000 : f32
    %2495 = vector.broadcast %cst_484 : f32 to vector<2x32xf32>
    %2496 = arith.select %2439, %2495, %2365 : vector<2x32xi1>, vector<2x32xf32>
    %cst_485 = arith.constant 0xFF800000 : f32
    %2497 = vector.broadcast %cst_485 : f32 to vector<2x32xf32>
    %2498 = arith.select %2444, %2497, %2367 : vector<2x32xi1>, vector<2x32xf32>
    %cst_486 = arith.constant 0xFF800000 : f32
    %2499 = vector.broadcast %cst_486 : f32 to vector<2x32xf32>
    %2500 = arith.select %2449, %2499, %2369 : vector<2x32xi1>, vector<2x32xf32>
    %cst_487 = arith.constant 0xFF800000 : f32
    %2501 = vector.broadcast %cst_487 : f32 to vector<2x32xf32>
    %2502 = arith.select %2454, %2501, %2371 : vector<2x32xi1>, vector<2x32xf32>
    %cst_488 = arith.constant 0xFF800000 : f32
    %2503 = vector.broadcast %cst_488 : f32 to vector<2x32xf32>
    %2504 = arith.select %2459, %2503, %2373 : vector<2x32xi1>, vector<2x32xf32>
    %cst_489 = arith.constant 0xFF800000 : f32
    %2505 = vector.broadcast %cst_489 : f32 to vector<2x32xf32>
    %2506 = arith.select %2464, %2505, %2375 : vector<2x32xi1>, vector<2x32xf32>
    %cst_490 = arith.constant 0xFF800000 : f32
    %2507 = vector.broadcast %cst_490 : f32 to vector<2x32xf32>
    %2508 = arith.select %2469, %2507, %2377 : vector<2x32xi1>, vector<2x32xf32>
    %cst_491 = arith.constant 0xFF800000 : f32
    %2509 = vector.broadcast %cst_491 : f32 to vector<2x32xf32>
    %2510 = arith.select %2474, %2509, %2379 : vector<2x32xi1>, vector<2x32xf32>
    %cst_492 = arith.constant 0xFF800000 : f32
    %2511 = vector.broadcast %cst_492 : f32 to vector<2x32xf32>
    %2512 = arith.select %2479, %2511, %2381 : vector<2x32xi1>, vector<2x32xf32>
    %cst_493 = arith.constant 0xFF800000 : f32
    %2513 = vector.broadcast %cst_493 : f32 to vector<2x32xf32>
    %2514 = arith.select %2484, %2513, %2383 : vector<2x32xi1>, vector<2x32xf32>
    %cst_494 = arith.constant 0xFF800000 : f32
    %2515 = vector.broadcast %cst_494 : f32 to vector<2x32xf32>
    %2516 = arith.select %2489, %2515, %2385 : vector<2x32xi1>, vector<2x32xf32>
    %cst_495 = arith.constant 0xFF800000 : f32
    %2517 = vector.broadcast %cst_495 : f32 to vector<2x32xf32>
    %2518 = arith.select %2494, %2517, %2387 : vector<2x32xi1>, vector<2x32xf32>
    %2519 = arith.maximumf %2496, %2498 : vector<2x32xf32>
    %2520 = arith.maximumf %2519, %2500 : vector<2x32xf32>
    %2521 = arith.maximumf %2520, %2502 : vector<2x32xf32>
    %2522 = arith.maximumf %2521, %2504 : vector<2x32xf32>
    %2523 = arith.maximumf %2522, %2506 : vector<2x32xf32>
    %2524 = arith.maximumf %2523, %2508 : vector<2x32xf32>
    %2525 = arith.maximumf %2524, %2510 : vector<2x32xf32>
    %2526 = arith.maximumf %2525, %2512 : vector<2x32xf32>
    %2527 = arith.maximumf %2526, %2514 : vector<2x32xf32>
    %2528 = arith.maximumf %2527, %2516 : vector<2x32xf32>
    %2529 = arith.maximumf %2528, %2518 : vector<2x32xf32>
    %false_496 = arith.constant false
    %2530 = vector.broadcast %false_496 : i1 to vector<2x32xi1>
    %2531 = arith.cmpf oeq, %2496, %2529 : vector<2x32xf32>
    %cst_497 = arith.constant dense<true> : vector<2x32xi1>
    %2532 = arith.xori %2530, %cst_497 : vector<2x32xi1>
    %2533 = arith.andi %2531, %2532 : vector<2x32xi1>
    %2534 = arith.ori %2439, %2533 : vector<2x32xi1>
    %2535 = arith.ori %2530, %2533 : vector<2x32xi1>
    %2536 = arith.cmpf oeq, %2498, %2529 : vector<2x32xf32>
    %cst_498 = arith.constant dense<true> : vector<2x32xi1>
    %2537 = arith.xori %2535, %cst_498 : vector<2x32xi1>
    %2538 = arith.andi %2536, %2537 : vector<2x32xi1>
    %2539 = arith.ori %2444, %2538 : vector<2x32xi1>
    %2540 = arith.ori %2535, %2538 : vector<2x32xi1>
    %2541 = arith.cmpf oeq, %2500, %2529 : vector<2x32xf32>
    %cst_499 = arith.constant dense<true> : vector<2x32xi1>
    %2542 = arith.xori %2540, %cst_499 : vector<2x32xi1>
    %2543 = arith.andi %2541, %2542 : vector<2x32xi1>
    %2544 = arith.ori %2449, %2543 : vector<2x32xi1>
    %2545 = arith.ori %2540, %2543 : vector<2x32xi1>
    %2546 = arith.cmpf oeq, %2502, %2529 : vector<2x32xf32>
    %cst_500 = arith.constant dense<true> : vector<2x32xi1>
    %2547 = arith.xori %2545, %cst_500 : vector<2x32xi1>
    %2548 = arith.andi %2546, %2547 : vector<2x32xi1>
    %2549 = arith.ori %2454, %2548 : vector<2x32xi1>
    %2550 = arith.ori %2545, %2548 : vector<2x32xi1>
    %2551 = arith.cmpf oeq, %2504, %2529 : vector<2x32xf32>
    %cst_501 = arith.constant dense<true> : vector<2x32xi1>
    %2552 = arith.xori %2550, %cst_501 : vector<2x32xi1>
    %2553 = arith.andi %2551, %2552 : vector<2x32xi1>
    %2554 = arith.ori %2459, %2553 : vector<2x32xi1>
    %2555 = arith.ori %2550, %2553 : vector<2x32xi1>
    %2556 = arith.cmpf oeq, %2506, %2529 : vector<2x32xf32>
    %cst_502 = arith.constant dense<true> : vector<2x32xi1>
    %2557 = arith.xori %2555, %cst_502 : vector<2x32xi1>
    %2558 = arith.andi %2556, %2557 : vector<2x32xi1>
    %2559 = arith.ori %2464, %2558 : vector<2x32xi1>
    %2560 = arith.ori %2555, %2558 : vector<2x32xi1>
    %2561 = arith.cmpf oeq, %2508, %2529 : vector<2x32xf32>
    %cst_503 = arith.constant dense<true> : vector<2x32xi1>
    %2562 = arith.xori %2560, %cst_503 : vector<2x32xi1>
    %2563 = arith.andi %2561, %2562 : vector<2x32xi1>
    %2564 = arith.ori %2469, %2563 : vector<2x32xi1>
    %2565 = arith.ori %2560, %2563 : vector<2x32xi1>
    %2566 = arith.cmpf oeq, %2510, %2529 : vector<2x32xf32>
    %cst_504 = arith.constant dense<true> : vector<2x32xi1>
    %2567 = arith.xori %2565, %cst_504 : vector<2x32xi1>
    %2568 = arith.andi %2566, %2567 : vector<2x32xi1>
    %2569 = arith.ori %2474, %2568 : vector<2x32xi1>
    %2570 = arith.ori %2565, %2568 : vector<2x32xi1>
    %2571 = arith.cmpf oeq, %2512, %2529 : vector<2x32xf32>
    %cst_505 = arith.constant dense<true> : vector<2x32xi1>
    %2572 = arith.xori %2570, %cst_505 : vector<2x32xi1>
    %2573 = arith.andi %2571, %2572 : vector<2x32xi1>
    %2574 = arith.ori %2479, %2573 : vector<2x32xi1>
    %2575 = arith.ori %2570, %2573 : vector<2x32xi1>
    %2576 = arith.cmpf oeq, %2514, %2529 : vector<2x32xf32>
    %cst_506 = arith.constant dense<true> : vector<2x32xi1>
    %2577 = arith.xori %2575, %cst_506 : vector<2x32xi1>
    %2578 = arith.andi %2576, %2577 : vector<2x32xi1>
    %2579 = arith.ori %2484, %2578 : vector<2x32xi1>
    %2580 = arith.ori %2575, %2578 : vector<2x32xi1>
    %2581 = arith.cmpf oeq, %2516, %2529 : vector<2x32xf32>
    %cst_507 = arith.constant dense<true> : vector<2x32xi1>
    %2582 = arith.xori %2580, %cst_507 : vector<2x32xi1>
    %2583 = arith.andi %2581, %2582 : vector<2x32xi1>
    %2584 = arith.ori %2489, %2583 : vector<2x32xi1>
    %2585 = arith.ori %2580, %2583 : vector<2x32xi1>
    %2586 = arith.cmpf oeq, %2518, %2529 : vector<2x32xf32>
    %cst_508 = arith.constant dense<true> : vector<2x32xi1>
    %2587 = arith.xori %2585, %cst_508 : vector<2x32xi1>
    %2588 = arith.andi %2586, %2587 : vector<2x32xi1>
    %2589 = arith.ori %2494, %2588 : vector<2x32xi1>
    %cst_509 = arith.constant 0.000000e+00 : f32
    %2590 = vector.broadcast %cst_509 : f32 to vector<2x32xf32>
    %cst_510 = arith.constant 0.000000e+00 : f32
    %2591 = vector.broadcast %cst_510 : f32 to vector<2x32xf32>
    %cst_511 = arith.constant 0.000000e+00 : f32
    %2592 = vector.broadcast %cst_511 : f32 to vector<2x32xf32>
    %2593 = arith.extui %2534 : vector<2x32xi1> to vector<2x32xi32>
    %2594 = arith.sitofp %2593 : vector<2x32xi32> to vector<2x32xf32>
    %2595 = arith.addf %2590, %2594 : vector<2x32xf32>
    %cst_512 = arith.constant 1.000000e+00 : f32
    %2596 = vector.broadcast %cst_512 : f32 to vector<2x32xf32>
    %2597 = arith.cmpf oeq, %2595, %2596 : vector<2x32xf32>
    %2598 = arith.andi %2534, %2597 : vector<2x32xi1>
    %cst_513 = arith.constant 0.000000e+00 : f32
    %2599 = vector.broadcast %cst_513 : f32 to vector<2x32xf32>
    %2600 = arith.select %2598, %2365, %2599 : vector<2x32xi1>, vector<2x32xf32>
    %2601 = arith.addf %2591, %2600 : vector<2x32xf32>
    %cst_514 = arith.constant 2.000000e+00 : f32
    %2602 = vector.broadcast %cst_514 : f32 to vector<2x32xf32>
    %2603 = arith.cmpf oeq, %2595, %2602 : vector<2x32xf32>
    %2604 = arith.andi %2534, %2603 : vector<2x32xi1>
    %cst_515 = arith.constant 0.000000e+00 : f32
    %2605 = vector.broadcast %cst_515 : f32 to vector<2x32xf32>
    %2606 = arith.select %2604, %2365, %2605 : vector<2x32xi1>, vector<2x32xf32>
    %2607 = arith.addf %2592, %2606 : vector<2x32xf32>
    %2608 = arith.extui %2539 : vector<2x32xi1> to vector<2x32xi32>
    %2609 = arith.sitofp %2608 : vector<2x32xi32> to vector<2x32xf32>
    %2610 = arith.addf %2595, %2609 : vector<2x32xf32>
    %cst_516 = arith.constant 1.000000e+00 : f32
    %2611 = vector.broadcast %cst_516 : f32 to vector<2x32xf32>
    %2612 = arith.cmpf oeq, %2610, %2611 : vector<2x32xf32>
    %2613 = arith.andi %2539, %2612 : vector<2x32xi1>
    %cst_517 = arith.constant 0.000000e+00 : f32
    %2614 = vector.broadcast %cst_517 : f32 to vector<2x32xf32>
    %2615 = arith.select %2613, %2367, %2614 : vector<2x32xi1>, vector<2x32xf32>
    %2616 = arith.addf %2601, %2615 : vector<2x32xf32>
    %cst_518 = arith.constant 2.000000e+00 : f32
    %2617 = vector.broadcast %cst_518 : f32 to vector<2x32xf32>
    %2618 = arith.cmpf oeq, %2610, %2617 : vector<2x32xf32>
    %2619 = arith.andi %2539, %2618 : vector<2x32xi1>
    %cst_519 = arith.constant 0.000000e+00 : f32
    %2620 = vector.broadcast %cst_519 : f32 to vector<2x32xf32>
    %2621 = arith.select %2619, %2367, %2620 : vector<2x32xi1>, vector<2x32xf32>
    %2622 = arith.addf %2607, %2621 : vector<2x32xf32>
    %2623 = arith.extui %2544 : vector<2x32xi1> to vector<2x32xi32>
    %2624 = arith.sitofp %2623 : vector<2x32xi32> to vector<2x32xf32>
    %2625 = arith.addf %2610, %2624 : vector<2x32xf32>
    %cst_520 = arith.constant 1.000000e+00 : f32
    %2626 = vector.broadcast %cst_520 : f32 to vector<2x32xf32>
    %2627 = arith.cmpf oeq, %2625, %2626 : vector<2x32xf32>
    %2628 = arith.andi %2544, %2627 : vector<2x32xi1>
    %cst_521 = arith.constant 0.000000e+00 : f32
    %2629 = vector.broadcast %cst_521 : f32 to vector<2x32xf32>
    %2630 = arith.select %2628, %2369, %2629 : vector<2x32xi1>, vector<2x32xf32>
    %2631 = arith.addf %2616, %2630 : vector<2x32xf32>
    %cst_522 = arith.constant 2.000000e+00 : f32
    %2632 = vector.broadcast %cst_522 : f32 to vector<2x32xf32>
    %2633 = arith.cmpf oeq, %2625, %2632 : vector<2x32xf32>
    %2634 = arith.andi %2544, %2633 : vector<2x32xi1>
    %cst_523 = arith.constant 0.000000e+00 : f32
    %2635 = vector.broadcast %cst_523 : f32 to vector<2x32xf32>
    %2636 = arith.select %2634, %2369, %2635 : vector<2x32xi1>, vector<2x32xf32>
    %2637 = arith.addf %2622, %2636 : vector<2x32xf32>
    %2638 = arith.extui %2549 : vector<2x32xi1> to vector<2x32xi32>
    %2639 = arith.sitofp %2638 : vector<2x32xi32> to vector<2x32xf32>
    %2640 = arith.addf %2625, %2639 : vector<2x32xf32>
    %cst_524 = arith.constant 1.000000e+00 : f32
    %2641 = vector.broadcast %cst_524 : f32 to vector<2x32xf32>
    %2642 = arith.cmpf oeq, %2640, %2641 : vector<2x32xf32>
    %2643 = arith.andi %2549, %2642 : vector<2x32xi1>
    %cst_525 = arith.constant 0.000000e+00 : f32
    %2644 = vector.broadcast %cst_525 : f32 to vector<2x32xf32>
    %2645 = arith.select %2643, %2371, %2644 : vector<2x32xi1>, vector<2x32xf32>
    %2646 = arith.addf %2631, %2645 : vector<2x32xf32>
    %cst_526 = arith.constant 2.000000e+00 : f32
    %2647 = vector.broadcast %cst_526 : f32 to vector<2x32xf32>
    %2648 = arith.cmpf oeq, %2640, %2647 : vector<2x32xf32>
    %2649 = arith.andi %2549, %2648 : vector<2x32xi1>
    %cst_527 = arith.constant 0.000000e+00 : f32
    %2650 = vector.broadcast %cst_527 : f32 to vector<2x32xf32>
    %2651 = arith.select %2649, %2371, %2650 : vector<2x32xi1>, vector<2x32xf32>
    %2652 = arith.addf %2637, %2651 : vector<2x32xf32>
    %2653 = arith.extui %2554 : vector<2x32xi1> to vector<2x32xi32>
    %2654 = arith.sitofp %2653 : vector<2x32xi32> to vector<2x32xf32>
    %2655 = arith.addf %2640, %2654 : vector<2x32xf32>
    %cst_528 = arith.constant 1.000000e+00 : f32
    %2656 = vector.broadcast %cst_528 : f32 to vector<2x32xf32>
    %2657 = arith.cmpf oeq, %2655, %2656 : vector<2x32xf32>
    %2658 = arith.andi %2554, %2657 : vector<2x32xi1>
    %cst_529 = arith.constant 0.000000e+00 : f32
    %2659 = vector.broadcast %cst_529 : f32 to vector<2x32xf32>
    %2660 = arith.select %2658, %2373, %2659 : vector<2x32xi1>, vector<2x32xf32>
    %2661 = arith.addf %2646, %2660 : vector<2x32xf32>
    %cst_530 = arith.constant 2.000000e+00 : f32
    %2662 = vector.broadcast %cst_530 : f32 to vector<2x32xf32>
    %2663 = arith.cmpf oeq, %2655, %2662 : vector<2x32xf32>
    %2664 = arith.andi %2554, %2663 : vector<2x32xi1>
    %cst_531 = arith.constant 0.000000e+00 : f32
    %2665 = vector.broadcast %cst_531 : f32 to vector<2x32xf32>
    %2666 = arith.select %2664, %2373, %2665 : vector<2x32xi1>, vector<2x32xf32>
    %2667 = arith.addf %2652, %2666 : vector<2x32xf32>
    %2668 = arith.extui %2559 : vector<2x32xi1> to vector<2x32xi32>
    %2669 = arith.sitofp %2668 : vector<2x32xi32> to vector<2x32xf32>
    %2670 = arith.addf %2655, %2669 : vector<2x32xf32>
    %cst_532 = arith.constant 1.000000e+00 : f32
    %2671 = vector.broadcast %cst_532 : f32 to vector<2x32xf32>
    %2672 = arith.cmpf oeq, %2670, %2671 : vector<2x32xf32>
    %2673 = arith.andi %2559, %2672 : vector<2x32xi1>
    %cst_533 = arith.constant 0.000000e+00 : f32
    %2674 = vector.broadcast %cst_533 : f32 to vector<2x32xf32>
    %2675 = arith.select %2673, %2375, %2674 : vector<2x32xi1>, vector<2x32xf32>
    %2676 = arith.addf %2661, %2675 : vector<2x32xf32>
    %cst_534 = arith.constant 2.000000e+00 : f32
    %2677 = vector.broadcast %cst_534 : f32 to vector<2x32xf32>
    %2678 = arith.cmpf oeq, %2670, %2677 : vector<2x32xf32>
    %2679 = arith.andi %2559, %2678 : vector<2x32xi1>
    %cst_535 = arith.constant 0.000000e+00 : f32
    %2680 = vector.broadcast %cst_535 : f32 to vector<2x32xf32>
    %2681 = arith.select %2679, %2375, %2680 : vector<2x32xi1>, vector<2x32xf32>
    %2682 = arith.addf %2667, %2681 : vector<2x32xf32>
    %2683 = arith.extui %2564 : vector<2x32xi1> to vector<2x32xi32>
    %2684 = arith.sitofp %2683 : vector<2x32xi32> to vector<2x32xf32>
    %2685 = arith.addf %2670, %2684 : vector<2x32xf32>
    %cst_536 = arith.constant 1.000000e+00 : f32
    %2686 = vector.broadcast %cst_536 : f32 to vector<2x32xf32>
    %2687 = arith.cmpf oeq, %2685, %2686 : vector<2x32xf32>
    %2688 = arith.andi %2564, %2687 : vector<2x32xi1>
    %cst_537 = arith.constant 0.000000e+00 : f32
    %2689 = vector.broadcast %cst_537 : f32 to vector<2x32xf32>
    %2690 = arith.select %2688, %2377, %2689 : vector<2x32xi1>, vector<2x32xf32>
    %2691 = arith.addf %2676, %2690 : vector<2x32xf32>
    %cst_538 = arith.constant 2.000000e+00 : f32
    %2692 = vector.broadcast %cst_538 : f32 to vector<2x32xf32>
    %2693 = arith.cmpf oeq, %2685, %2692 : vector<2x32xf32>
    %2694 = arith.andi %2564, %2693 : vector<2x32xi1>
    %cst_539 = arith.constant 0.000000e+00 : f32
    %2695 = vector.broadcast %cst_539 : f32 to vector<2x32xf32>
    %2696 = arith.select %2694, %2377, %2695 : vector<2x32xi1>, vector<2x32xf32>
    %2697 = arith.addf %2682, %2696 : vector<2x32xf32>
    %2698 = arith.extui %2569 : vector<2x32xi1> to vector<2x32xi32>
    %2699 = arith.sitofp %2698 : vector<2x32xi32> to vector<2x32xf32>
    %2700 = arith.addf %2685, %2699 : vector<2x32xf32>
    %cst_540 = arith.constant 1.000000e+00 : f32
    %2701 = vector.broadcast %cst_540 : f32 to vector<2x32xf32>
    %2702 = arith.cmpf oeq, %2700, %2701 : vector<2x32xf32>
    %2703 = arith.andi %2569, %2702 : vector<2x32xi1>
    %cst_541 = arith.constant 0.000000e+00 : f32
    %2704 = vector.broadcast %cst_541 : f32 to vector<2x32xf32>
    %2705 = arith.select %2703, %2379, %2704 : vector<2x32xi1>, vector<2x32xf32>
    %2706 = arith.addf %2691, %2705 : vector<2x32xf32>
    %cst_542 = arith.constant 2.000000e+00 : f32
    %2707 = vector.broadcast %cst_542 : f32 to vector<2x32xf32>
    %2708 = arith.cmpf oeq, %2700, %2707 : vector<2x32xf32>
    %2709 = arith.andi %2569, %2708 : vector<2x32xi1>
    %cst_543 = arith.constant 0.000000e+00 : f32
    %2710 = vector.broadcast %cst_543 : f32 to vector<2x32xf32>
    %2711 = arith.select %2709, %2379, %2710 : vector<2x32xi1>, vector<2x32xf32>
    %2712 = arith.addf %2697, %2711 : vector<2x32xf32>
    %2713 = arith.extui %2574 : vector<2x32xi1> to vector<2x32xi32>
    %2714 = arith.sitofp %2713 : vector<2x32xi32> to vector<2x32xf32>
    %2715 = arith.addf %2700, %2714 : vector<2x32xf32>
    %cst_544 = arith.constant 1.000000e+00 : f32
    %2716 = vector.broadcast %cst_544 : f32 to vector<2x32xf32>
    %2717 = arith.cmpf oeq, %2715, %2716 : vector<2x32xf32>
    %2718 = arith.andi %2574, %2717 : vector<2x32xi1>
    %cst_545 = arith.constant 0.000000e+00 : f32
    %2719 = vector.broadcast %cst_545 : f32 to vector<2x32xf32>
    %2720 = arith.select %2718, %2381, %2719 : vector<2x32xi1>, vector<2x32xf32>
    %2721 = arith.addf %2706, %2720 : vector<2x32xf32>
    %cst_546 = arith.constant 2.000000e+00 : f32
    %2722 = vector.broadcast %cst_546 : f32 to vector<2x32xf32>
    %2723 = arith.cmpf oeq, %2715, %2722 : vector<2x32xf32>
    %2724 = arith.andi %2574, %2723 : vector<2x32xi1>
    %cst_547 = arith.constant 0.000000e+00 : f32
    %2725 = vector.broadcast %cst_547 : f32 to vector<2x32xf32>
    %2726 = arith.select %2724, %2381, %2725 : vector<2x32xi1>, vector<2x32xf32>
    %2727 = arith.addf %2712, %2726 : vector<2x32xf32>
    %2728 = arith.extui %2579 : vector<2x32xi1> to vector<2x32xi32>
    %2729 = arith.sitofp %2728 : vector<2x32xi32> to vector<2x32xf32>
    %2730 = arith.addf %2715, %2729 : vector<2x32xf32>
    %cst_548 = arith.constant 1.000000e+00 : f32
    %2731 = vector.broadcast %cst_548 : f32 to vector<2x32xf32>
    %2732 = arith.cmpf oeq, %2730, %2731 : vector<2x32xf32>
    %2733 = arith.andi %2579, %2732 : vector<2x32xi1>
    %cst_549 = arith.constant 0.000000e+00 : f32
    %2734 = vector.broadcast %cst_549 : f32 to vector<2x32xf32>
    %2735 = arith.select %2733, %2383, %2734 : vector<2x32xi1>, vector<2x32xf32>
    %2736 = arith.addf %2721, %2735 : vector<2x32xf32>
    %cst_550 = arith.constant 2.000000e+00 : f32
    %2737 = vector.broadcast %cst_550 : f32 to vector<2x32xf32>
    %2738 = arith.cmpf oeq, %2730, %2737 : vector<2x32xf32>
    %2739 = arith.andi %2579, %2738 : vector<2x32xi1>
    %cst_551 = arith.constant 0.000000e+00 : f32
    %2740 = vector.broadcast %cst_551 : f32 to vector<2x32xf32>
    %2741 = arith.select %2739, %2383, %2740 : vector<2x32xi1>, vector<2x32xf32>
    %2742 = arith.addf %2727, %2741 : vector<2x32xf32>
    %2743 = arith.extui %2584 : vector<2x32xi1> to vector<2x32xi32>
    %2744 = arith.sitofp %2743 : vector<2x32xi32> to vector<2x32xf32>
    %2745 = arith.addf %2730, %2744 : vector<2x32xf32>
    %cst_552 = arith.constant 1.000000e+00 : f32
    %2746 = vector.broadcast %cst_552 : f32 to vector<2x32xf32>
    %2747 = arith.cmpf oeq, %2745, %2746 : vector<2x32xf32>
    %2748 = arith.andi %2584, %2747 : vector<2x32xi1>
    %cst_553 = arith.constant 0.000000e+00 : f32
    %2749 = vector.broadcast %cst_553 : f32 to vector<2x32xf32>
    %2750 = arith.select %2748, %2385, %2749 : vector<2x32xi1>, vector<2x32xf32>
    %2751 = arith.addf %2736, %2750 : vector<2x32xf32>
    %cst_554 = arith.constant 2.000000e+00 : f32
    %2752 = vector.broadcast %cst_554 : f32 to vector<2x32xf32>
    %2753 = arith.cmpf oeq, %2745, %2752 : vector<2x32xf32>
    %2754 = arith.andi %2584, %2753 : vector<2x32xi1>
    %cst_555 = arith.constant 0.000000e+00 : f32
    %2755 = vector.broadcast %cst_555 : f32 to vector<2x32xf32>
    %2756 = arith.select %2754, %2385, %2755 : vector<2x32xi1>, vector<2x32xf32>
    %2757 = arith.addf %2742, %2756 : vector<2x32xf32>
    %2758 = arith.extui %2589 : vector<2x32xi1> to vector<2x32xi32>
    %2759 = arith.sitofp %2758 : vector<2x32xi32> to vector<2x32xf32>
    %2760 = arith.addf %2745, %2759 : vector<2x32xf32>
    %cst_556 = arith.constant 1.000000e+00 : f32
    %2761 = vector.broadcast %cst_556 : f32 to vector<2x32xf32>
    %2762 = arith.cmpf oeq, %2760, %2761 : vector<2x32xf32>
    %2763 = arith.andi %2589, %2762 : vector<2x32xi1>
    %cst_557 = arith.constant 0.000000e+00 : f32
    %2764 = vector.broadcast %cst_557 : f32 to vector<2x32xf32>
    %2765 = arith.select %2763, %2387, %2764 : vector<2x32xi1>, vector<2x32xf32>
    %2766 = arith.addf %2751, %2765 : vector<2x32xf32>
    %cst_558 = arith.constant 2.000000e+00 : f32
    %2767 = vector.broadcast %cst_558 : f32 to vector<2x32xf32>
    %2768 = arith.cmpf oeq, %2760, %2767 : vector<2x32xf32>
    %2769 = arith.andi %2589, %2768 : vector<2x32xi1>
    %cst_559 = arith.constant 0.000000e+00 : f32
    %2770 = vector.broadcast %cst_559 : f32 to vector<2x32xf32>
    %2771 = arith.select %2769, %2387, %2770 : vector<2x32xi1>, vector<2x32xf32>
    %2772 = arith.addf %2757, %2771 : vector<2x32xf32>
    %c0_560 = arith.constant 0 : index
    %c0_561 = arith.constant 0 : index
    %2773 = vector.load %arg15[%c0_560, %c0_561] : memref<1x64xf32, #tpu.memory_space<vmem>>, vector<1x64xf32>
    %c0_562 = arith.constant 0 : index
    %c0_563 = arith.constant 0 : index
    %c0_564 = arith.constant 0 : index
    %2774 = vector.load %arg14[%c0_562, %c0_563, %c0_564] : memref<2x32x64xf32, #tpu.memory_space<vmem>>, vector<1x32x64xf32>
    %2775 = vector.shape_cast %2774 : vector<1x32x64xf32> to vector<32x64xf32>
    %cst_565 = arith.constant dense<0.000000e+00> : vector<2x64xf32>
    %2776 = tpu.matmul %2766, %2775, %cst_565 {dimension_numbers = #tpu.dot_dimension_numbers<[1], [0], [0], [1], [0, 0, 1, 1], [], []>} : vector<2x32xf32>, vector<32x64xf32>, vector<2x64xf32> -> vector<2x64xf32>
    %2777 = vector.broadcast %2773 : vector<1x64xf32> to vector<2x64xf32>
    %2778 = arith.addf %2777, %2776 : vector<2x64xf32>
    %c1_566 = arith.constant 1 : index
    %c0_567 = arith.constant 0 : index
    %c0_568 = arith.constant 0 : index
    %2779 = vector.load %arg14[%c1_566, %c0_567, %c0_568] : memref<2x32x64xf32, #tpu.memory_space<vmem>>, vector<1x32x64xf32>
    %2780 = vector.shape_cast %2779 : vector<1x32x64xf32> to vector<32x64xf32>
    %cst_569 = arith.constant dense<0.000000e+00> : vector<2x64xf32>
    %2781 = tpu.matmul %2772, %2780, %cst_569 {dimension_numbers = #tpu.dot_dimension_numbers<[1], [0], [0], [1], [0, 0, 1, 1], [], []>} : vector<2x32xf32>, vector<32x64xf32>, vector<2x64xf32> -> vector<2x64xf32>
    %2782 = arith.addf %2778, %2781 : vector<2x64xf32>
    %cst_570 = arith.constant 0.000000e+00 : f32
    %2783 = vector.broadcast %cst_570 : f32 to vector<2x64xf32>
    %2784 = arith.maximumf %2782, %2783 : vector<2x64xf32>
    %c0_571 = arith.constant 0 : index
    %c0_572 = arith.constant 0 : index
    %2785 = vector.load %arg16[%c0_571, %c0_572] : memref<64x4xf32, #tpu.memory_space<vmem>>, vector<64x4xf32>
    %cst_573 = arith.constant dense<0.000000e+00> : vector<2x4xf32>
    %2786 = tpu.matmul %2784, %2785, %cst_573 {dimension_numbers = #tpu.dot_dimension_numbers<[1], [0], [0], [1], [0, 0, 1, 1], [], []>} : vector<2x64xf32>, vector<64x4xf32>, vector<2x4xf32> -> vector<2x4xf32>
    %c0_574 = arith.constant 0 : index
    %c0_575 = arith.constant 0 : index
    %2787 = vector.load %arg17[%c0_574, %c0_575] : memref<1x4xf32, #tpu.memory_space<vmem>>, vector<1x4xf32>
    %2788 = vector.broadcast %2787 : vector<1x4xf32> to vector<2x4xf32>
    %2789 = arith.addf %2786, %2788 : vector<2x4xf32>
    %c0_576 = arith.constant 0 : index
    %c0_577 = arith.constant 0 : index
    %2790 = vector.load %arg18[%c0_576, %c0_577] : memref<2x4xf32, #tpu.memory_space<vmem>>, vector<2x4xf32>
    tpu.vector_store %arg18[%c0_576, %c0_577], %2789 {strides = array<i32>} : memref<2x4xf32, #tpu.memory_space<vmem>>, vector<2x4xf32>,
    return
  }
}

</mosaic_0001>

<llo_original>
// kernel: tpu_custom_call.1
$region0: #{tpu_custom_call.1}
  #allocation0 [shape = 'u32[]', space=smem, size = 0x4, offset = 0x4, fixed_abs, tag = 'smem constant byte address 0x4 - core index']
  #allocation1 [shape = 'u32[72,128]{1,0:T(1,128)}', space=vmem, size = 0x9000, scoped, tag = 'internal scratch']
  #allocation2 [shape = 'f32[16,2,16]{2,1,0:T(2,128)}', space=vmem, size = 0x4000, scoped, tag = 'scratch operand']
  #allocation3 [shape = 'f32[16,2,16]{2,1,0:T(2,128)}', space=vmem, size = 0x4000, scoped, tag = 'scratch operand']
  %s0 = inlined_call_operand.vmem [shape: s32[32,1], index: 0, kind: input, shape index: {}]
  %s1 = inlined_call_operand.vmem [shape: f32[50,16], index: 1, kind: input, shape index: {}]
  %s2 = inlined_call_operand.vmem [shape: f32[16,96], index: 2, kind: input, shape index: {}]
  %s3 = inlined_call_operand.vmem [shape: f32[32,96], index: 3, kind: input, shape index: {}]
  %s4 = inlined_call_operand.vmem [shape: f32[1,96], index: 4, kind: input, shape index: {}]
  %s5 = inlined_call_operand.vmem [shape: f32[1,96], index: 5, kind: input, shape index: {}]
  %s6 = inlined_call_operand.vmem [shape: f32[32,96], index: 6, kind: input, shape index: {}]
  %s7 = inlined_call_operand.vmem [shape: f32[32,96], index: 7, kind: input, shape index: {}]
  %s8 = inlined_call_operand.vmem [shape: f32[1,96], index: 8, kind: input, shape index: {}]
  %s9 = inlined_call_operand.vmem [shape: f32[1,96], index: 9, kind: input, shape index: {}]
  %s10 = inlined_call_operand.vmem [shape: f32[144,32], index: 10, kind: input, shape index: {}]
  %s11 = inlined_call_operand.vmem [shape: f32[1,32], index: 11, kind: input, shape index: {}]
  %s12 = inlined_call_operand.vmem [shape: f32[96,32], index: 12, kind: input, shape index: {}]
  %s13 = inlined_call_operand.vmem [shape: f32[1,32], index: 13, kind: input, shape index: {}]
  %s14 = inlined_call_operand.vmem [shape: f32[2,32,64], index: 14, kind: input, shape index: {}]
  %s15 = inlined_call_operand.vmem [shape: f32[1,64], index: 15, kind: input, shape index: {}]
  %s16 = inlined_call_operand.vmem [shape: f32[64,4], index: 16, kind: input, shape index: {}]
  %s17 = inlined_call_operand.vmem [shape: f32[1,4], index: 17, kind: input, shape index: {}]
  %s18 = inlined_call_operand.hbm [shape: f32[2,4], index: 18, kind: output, shape index: {}]
  %s19 = sld [smem:[#allocation0]]
  $region82: #{tpu_custom_call.1} parent=0
    _
  %s21 = ssub.s32 1, %s19
  %s22 = scalar_select 0, %s21, %s19
  $region1: #{tpu_custom_call.1} parent=0
    #allocation4 [shape = 'u8[1024]{0}', space=vmem, size = 0x400, scoped, tag = 'output window, operand 0, single buffered']
    #allocation5 [shape = 's32[1]{0}', space=sflag, size = 0x4, scoped, tag = 'scoped memory for tpu_custom_call.1']
    %23 = vsyncpa [#allocation5], 0
    // Predicated region
    $region2: #{tpu_custom_call.1} parent=1 // pred_check
      _
    $region3: #{tpu_custom_call.1} parent=1 // pred_check_branch
      %25 = sbr.rel (0) target = $region5
    $region4: #{tpu_custom_call.1} parent=1 // pred_region
      _
    $region5: #{tpu_custom_call.1} parent=1 // pred_fallthru
      _
    // Predicated region
    $region6: #{tpu_custom_call.1} parent=1 // pred_check
      _
    $region7: #{tpu_custom_call.1} parent=1 // pred_check_branch
      %27 = sbr.rel (0) target = $region9
    $region8: #{tpu_custom_call.1} parent=1 // pred_region
      _
    $region9: #{tpu_custom_call.1} parent=1 // pred_fallthru
      _
    // Predicated region
    $region10: #{tpu_custom_call.1} parent=1 // pred_check
      _
    $region11: #{tpu_custom_call.1} parent=1 // pred_check_branch
      %29 = sbr.rel (0) target = $region13
    $region12: #{tpu_custom_call.1} parent=1 // pred_region
      _
    $region13: #{tpu_custom_call.1} parent=1 // pred_fallthru
      _
    // Predicated region
    $region14: #{tpu_custom_call.1} parent=1 // pred_check
      _
    $region15: #{tpu_custom_call.1} parent=1 // pred_check_branch
      %31 = sbr.rel (0) target = $region17
    $region16: #{tpu_custom_call.1} parent=1 // pred_region
      _
    $region17: #{tpu_custom_call.1} parent=1 // pred_fallthru
      _
    // Predicated region
    $region18: #{tpu_custom_call.1} parent=1 // pred_check
      _
    $region19: #{tpu_custom_call.1} parent=1 // pred_check_branch
      %33 = sbr.rel (0) target = $region21
    $region20: #{tpu_custom_call.1} parent=1 // pred_region
      _
    $region21: #{tpu_custom_call.1} parent=1 // pred_fallthru
      _
    // Predicated region
    $region22: #{tpu_custom_call.1} parent=1 // pred_check
      _
    $region23: #{tpu_custom_call.1} parent=1 // pred_check_branch
      %35 = sbr.rel (0) target = $region25
    $region24: #{tpu_custom_call.1} parent=1 // pred_region
      _
    $region25: #{tpu_custom_call.1} parent=1 // pred_fallthru
      _
    // Predicated region
    $region26: #{tpu_custom_call.1} parent=1 // pred_check
      _
    $region27: #{tpu_custom_call.1} parent=1 // pred_check_branch
      %37 = sbr.rel (0) target = $region29
    $region28: #{tpu_custom_call.1} parent=1 // pred_region
      _
    $region29: #{tpu_custom_call.1} parent=1 // pred_fallthru
      _
    // Predicated region
    $region30: #{tpu_custom_call.1} parent=1 // pred_check
      _
    $region31: #{tpu_custom_call.1} parent=1 // pred_check_branch
      %39 = sbr.rel (0) target = $region33
    $region32: #{tpu_custom_call.1} parent=1 // pred_region
      _
    $region33: #{tpu_custom_call.1} parent=1 // pred_fallthru
      _
    // Predicated region
    $region34: #{tpu_custom_call.1} parent=1 // pred_check
      _
    $region35: #{tpu_custom_call.1} parent=1 // pred_check_branch
      %41 = sbr.rel (0) target = $region37
    $region36: #{tpu_custom_call.1} parent=1 // pred_region
      _
    $region37: #{tpu_custom_call.1} parent=1 // pred_fallthru
      _
    // Predicated region
    $region38: #{tpu_custom_call.1} parent=1 // pred_check
      _
    $region39: #{tpu_custom_call.1} parent=1 // pred_check_branch
      %43 = sbr.rel (0) target = $region41
    $region40: #{tpu_custom_call.1} parent=1 // pred_region
      _
    $region41: #{tpu_custom_call.1} parent=1 // pred_fallthru
      _
    // Predicated region
    $region42: #{tpu_custom_call.1} parent=1 // pred_check
      _
    $region43: #{tpu_custom_call.1} parent=1 // pred_check_branch
      %45 = sbr.rel (0) target = $region45
    $region44: #{tpu_custom_call.1} parent=1 // pred_region
      _
    $region45: #{tpu_custom_call.1} parent=1 // pred_fallthru
      _
    // Predicated region
    $region46: #{tpu_custom_call.1} parent=1 // pred_check
      _
    $region47: #{tpu_custom_call.1} parent=1 // pred_check_branch
      %47 = sbr.rel (0) target = $region49
    $region48: #{tpu_custom_call.1} parent=1 // pred_region
      _
    $region49: #{tpu_custom_call.1} parent=1 // pred_fallthru
      _
    // Predicated region
    $region50: #{tpu_custom_call.1} parent=1 // pred_check
      _
    $region51: #{tpu_custom_call.1} parent=1 // pred_check_branch
      %49 = sbr.rel (0) target = $region53
    $region52: #{tpu_custom_call.1} parent=1 // pred_region
      _
    $region53: #{tpu_custom_call.1} parent=1 // pred_fallthru
      _
    // Predicated region
    $region54: #{tpu_custom_call.1} parent=1 // pred_check
      _
    $region55: #{tpu_custom_call.1} parent=1 // pred_check_branch
      %51 = sbr.rel (0) target = $region57
    $region56: #{tpu_custom_call.1} parent=1 // pred_region
      _
    $region57: #{tpu_custom_call.1} parent=1 // pred_fallthru
      _
    // Predicated region
    $region58: #{tpu_custom_call.1} parent=1 // pred_check
      _
    $region59: #{tpu_custom_call.1} parent=1 // pred_check_branch
      %53 = sbr.rel (0) target = $region61
    $region60: #{tpu_custom_call.1} parent=1 // pred_region
      _
    $region61: #{tpu_custom_call.1} parent=1 // pred_fallthru
      _
    // Predicated region
    $region62: #{tpu_custom_call.1} parent=1 // pred_check
      _
    $region63: #{tpu_custom_call.1} parent=1 // pred_check_branch
      %55 = sbr.rel (0) target = $region65
    $region64: #{tpu_custom_call.1} parent=1 // pred_region
      _
    $region65: #{tpu_custom_call.1} parent=1 // pred_fallthru
      _
    // Predicated region
    $region66: #{tpu_custom_call.1} parent=1 // pred_check
      _
    $region67: #{tpu_custom_call.1} parent=1 // pred_check_branch
      %57 = sbr.rel (0) target = $region69
    $region68: #{tpu_custom_call.1} parent=1 // pred_region
      _
    $region69: #{tpu_custom_call.1} parent=1 // pred_fallthru
      _
    // Predicated region
    $region70: #{tpu_custom_call.1} parent=1 // pred_check
      _
    $region71: #{tpu_custom_call.1} parent=1 // pred_check_branch
      %59 = sbr.rel (0) target = $region73
    $region72: #{tpu_custom_call.1} parent=1 // pred_region
      _
    $region73: #{tpu_custom_call.1} parent=1 // pred_fallthru
      _
    %v60 = vld [vmem:[%s0] sm:$0xff]
    %v61 = vld [vmem:[%s0 + $0x8] sm:$0xff]
    %v62 = vld [vmem:[%s0 + $0x10] sm:$0xff]
    %v63 = vld [vmem:[%s0 + $0x18] sm:$0xff]
    %v64 = vlaneseq
    %v65 = vand.u32 %v64, 127
    %66 = vset.pattern.permute.xlu0 0
    %67 = vperm.xlu0 %66, %v60
    %v68 = vpop.permute.xlu0 %67
    %69 = vset.pattern.permute.xlu0 0
    %70 = vperm.xlu0 %69, %v61
    %v71 = vpop.permute.xlu0 %70
    %72 = vset.pattern.permute.xlu0 0
    %73 = vperm.xlu0 %72, %v62
    %v74 = vpop.permute.xlu0 %73
    %75 = vset.pattern.permute.xlu0 0
    %76 = vperm.xlu0 %75, %v63
    %v77 = vpop.permute.xlu0 %76
    %vm78 = vcmp.eq.s32.totalorder %v68, %v65
    %vm79 = vcmp.eq.s32.totalorder %v71, %v65
    %vm80 = vcmp.eq.s32.totalorder %v74, %v65
    %vm81 = vcmp.eq.s32.totalorder %v77, %v65
    %v82 = vsel %vm78, 1, 0
    %v83 = vsel %vm79, 1, 0
    %v84 = vsel %vm80, 1, 0
    %v85 = vsel %vm81, 1, 0
    %v86 = vcvt.s32.f32 %v82
    %v87 = vcvt.s32.f32 %v83
    %v88 = vcvt.s32.f32 %v84
    %v89 = vcvt.s32.f32 %v85
    %v90 = vld [vmem:[%s1] sm:$0xff]
    %v91 = vld [vmem:[%s1 + $0x8] sm:$0xff]
    %v92 = vld [vmem:[%s1 + $0x10] sm:$0xff]
    %v93 = vld [vmem:[%s1 + $0x18] sm:$0xff]
    %v94 = vld [vmem:[%s1 + $0x20] sm:$0xff]
    %v95 = vld [vmem:[%s1 + $0x28] sm:$0xff]
    %v96 = vld [vmem:[%s1 + $0x30] sm:$0x3]
    %vm97 = vcmask 408576
    %v99 = vsel %vm97, %v86, 0
    %v102 = vsel %vm97, %v87, 0
    %v105 = vsel %vm97, %v88, 0
    %v108 = vsel %vm97, %v89, 0
    %vm110 = vcmask 1041408
    %v112 = vsel %vm110, %v96, 0
    %114 = vmatpush.msra.mxu0 0.0
    %115 = vmatpush.msra.mxu0 0.0
    %116 = vmatpush.msra.mxu0 0.0
    %117 = vmatpush.msra.mxu0 0.0
    %118 = vmatpush.msra.mxu0 0.0
    %119 = vmatpush.msra.mxu0 0.0
    %120 = vmatpush.msra.mxu0 0.0
    %121 = vmatpush.msra.mxu0 0.0
    %122 = vmatpush.msra.mxu0 0.0
    %123 = vmatpush.msra.mxu0 %v112
    %124 = vmatpush.msra.mxu0 %v95
    %125 = vmatpush.msra.mxu0 %v94
    %126 = vmatpush.msra.mxu0 %v93
    %127 = vmatpush.msra.mxu0 %v92
    %128 = vmatpush.msra.mxu0 %v91
    %129 = vmatpush.msra.mxu0 %v90
    %130 = vmatmul.f32.gmra.mxu0 %v99
    %v131 = vpop.f32.mrf.mxu0
    %v132 = vadd.f32 0.0, %v131
    %133 = vmatmul.f32.gmra.mxu0 %v102
    %v134 = vpop.f32.mrf.mxu0
    %v135 = vadd.f32 0.0, %v134
    %136 = vmatmul.f32.gmra.mxu0 %v105
    %v137 = vpop.f32.mrf.mxu0
    %v138 = vadd.f32 0.0, %v137
    %139 = vmatmul.f32.gmra.mxu0 %v108
    %v140 = vpop.f32.mrf.mxu0
    %v141 = vadd.f32 0.0, %v140
    %142 = vdwg.mxu0
    %v147 = vrot.slane %v132, 2
    %v148 = vrot.slane %v132, 4
    %v149 = vrot.slane %v132, 6
    %v150 = vrot.slane %v135, 2
    %v151 = vrot.slane %v135, 4
    %v152 = vrot.slane %v135, 6
    %v153 = vrot.slane %v138, 2
    %v154 = vrot.slane %v138, 4
    %v155 = vrot.slane %v138, 6
    %v156 = vrot.slane %v141, 2
    %v157 = vrot.slane %v141, 4
    %v158 = vrot.slane %v141, 6
    %v159 = vld [vmem:[%s2] sm:$0xff]
    %v160 = vld [vmem:[%s2 + $0x8] sm:$0xff]
    %v161 = vld [vmem:[%s4] sm:$0x1]
    %v163 = vperm.slane %v161, 0
    %vm165 = vcmask 130048
    %v166 = vsel %vm165, %v132, 0
    %v168 = vsel %vm165, %v135, 0
    %v170 = vsel %vm165, %v138, 0
    %v172 = vsel %vm165, %v141, 0
    %174 = vmatpush.msra.mxu0 0.0
    %175 = vmatpush.msra.mxu0 0.0
    %176 = vmatpush.msra.mxu0 0.0
    %177 = vmatpush.msra.mxu0 0.0
    %178 = vmatpush.msra.mxu0 0.0
    %179 = vmatpush.msra.mxu0 0.0
    %180 = vmatpush.msra.mxu0 0.0
    %181 = vmatpush.msra.mxu0 0.0
    %182 = vmatpush.msra.mxu0 0.0
    %183 = vmatpush.msra.mxu0 0.0
    %184 = vmatpush.msra.mxu0 0.0
    %185 = vmatpush.msra.mxu0 0.0
    %186 = vmatpush.msra.mxu0 0.0
    %187 = vmatpush.msra.mxu0 0.0
    %188 = vmatpush.msra.mxu0 %v160
    %189 = vmatpush.msra.mxu0 %v159
    %190 = vmatmul.f32.gmra.mxu0 %v166
    %v191 = vpop.f32.mrf.mxu0
    %v192 = vadd.f32 %v163, %v191
    %193 = vmatmul.f32.gmra.mxu0 %v168
    %v194 = vpop.f32.mrf.mxu0
    %v195 = vadd.f32 %v163, %v194
    %196 = vmatmul.f32.gmra.mxu0 %v170
    %v197 = vpop.f32.mrf.mxu0
    %v198 = vadd.f32 %v163, %v197
    %199 = vmatmul.f32.gmra.mxu0 %v172
    %v200 = vpop.f32.mrf.mxu0
    %v201 = vadd.f32 %v163, %v200
    %202 = vdwg.mxu0
    %v207 = vrot.slane %v192, 2
    %v208 = vrot.slane %v192, 4
    %v209 = vrot.slane %v192, 6
    %v210 = vrot.slane %v195, 2
    %v211 = vrot.slane %v195, 4
    %v212 = vrot.slane %v195, 6
    %v213 = vrot.slane %v198, 2
    %v214 = vrot.slane %v198, 4
    %v215 = vrot.slane %v198, 6
    %v216 = vrot.slane %v201, 2
    %v217 = vrot.slane %v201, 4
    %v218 = vrot.slane %v201, 6
    %v231 = vld [vmem:[%s3] sm:$0xff]
    %v232 = vld [vmem:[%s3 + $0x8] sm:$0xff]
    %v233 = vld [vmem:[%s3 + $0x10] sm:$0xff]
    %v234 = vld [vmem:[%s3 + $0x18] sm:$0xff]
    %v235 = vld [vmem:[%s5] sm:$0x1]
    %v237 = vperm.slane %v235, 0
    %vm239 = vcmask 261120
    %v241 = vsel %vm239, 0.0, 0
    %243 = vmatpush.msra.mxu0 0.0
    %244 = vmatpush.msra.mxu0 0.0
    %245 = vmatpush.msra.mxu0 0.0
    %246 = vmatpush.msra.mxu0 0.0
    %247 = vmatpush.msra.mxu0 0.0
    %248 = vmatpush.msra.mxu0 0.0
    %249 = vmatpush.msra.mxu0 0.0
    %250 = vmatpush.msra.mxu0 0.0
    %251 = vmatpush.msra.mxu0 0.0
    %252 = vmatpush.msra.mxu0 0.0
    %253 = vmatpush.msra.mxu0 0.0
    %254 = vmatpush.msra.mxu0 0.0
    %255 = vmatpush.msra.mxu0 %v234
    %256 = vmatpush.msra.mxu0 %v233
    %257 = vmatpush.msra.mxu0 %v232
    %258 = vmatpush.msra.mxu0 %v231
    %259 = vmatmul.f32.gmra.mxu0 %v241
    %v260 = vpop.f32.mrf.mxu0
    %v261 = vadd.f32 %v237, %v260
    %262 = vdwg.mxu0
    %v263 = vadd.f32 %v192, %v261
    %v264 = vxor.u32 %v263, 2147483648
    %v265 = vmul.f32 %v264, 1.442695
    %v266 = vpow.pop %v265
    %v267 = vadd.f32 %v266, 1.0
    %v268 = vrcp.pop %v267
    %v269 = vmul.f32 %v267, %v268
    %v270 = vsub.f32 1.0, %v269
    %v271 = vmul.f32 %v268, %v270
    %v272 = vadd.f32 %v268, %v271
    %vm273 = vweird.f32 %v267
    %vm274 = vweird.f32 %v268
    %vm275 = vmor %vm273, %vm274
    %v276 = vsel %vm275, %v268, %v272
    %v277 = vand.u32 2147483647, %v267
    %vm278 = vcmp.eq.f32.partialorder %v277, 8.507059e+37
    %v279 = vand.u32 %v267, 2147483648
    %v280 = vor.u32 1.1754944e-38, %v279
    %v281 = vsel %vm278, %v280, %v276
    %v282 = vmul.f32 1.0, %v281
    %284 = vrot.lane.b32.xlu0 %v261, 96
    %v285 = vpop.permute.xlu0 %284
    %v287 = vmul.f32 %v282, %v285
    %289 = vrot.lane.b32.xlu0 %v287, 32
    %v290 = vpop.permute.xlu0 %289
    %v292 = vadd.f32 %v192, %v290
    %v293 = vtanh.pop %v292
    %v294 = vsub.f32 1.0, %v282
    %296 = vrot.lane.b32.xlu0 %v293, 112
    %v297 = vpop.permute.xlu0 %296
    %v299 = vmul.f32 %v294, %v297
    %v300 = vmul.f32 %v282, 0.0
    %v301 = vadd.f32 %v299, %v300
    %v302 = vadd.f32 %v218, %v261
    %v303 = vxor.u32 %v302, 2147483648
    %v304 = vmul.f32 %v303, 1.442695
    %v305 = vpow.pop %v304
    %v306 = vadd.f32 %v305, 1.0
    %v307 = vrcp.pop %v306
    %v308 = vmul.f32 %v306, %v307
    %v309 = vsub.f32 1.0, %v308
    %v310 = vmul.f32 %v307, %v309
    %v311 = vadd.f32 %v307, %v310
    %vm312 = vweird.f32 %v306
    %vm313 = vweird.f32 %v307
    %vm314 = vmor %vm312, %vm313
    %v315 = vsel %vm314, %v307, %v311
    %v316 = vand.u32 2147483647, %v306
    %vm317 = vcmp.eq.f32.partialorder %v316, 8.507059e+37
    %v318 = vand.u32 %v306, 2147483648
    %v319 = vor.u32 1.1754944e-38, %v318
    %v320 = vsel %vm317, %v319, %v315
    %v321 = vmul.f32 1.0, %v320
    %v322 = vmul.f32 %v321, %v285
    %324 = vrot.lane.b32.xlu0 %v322, 32
    %v325 = vpop.permute.xlu0 %324
    %v327 = vadd.f32 %v218, %v325
    %v328 = vtanh.pop %v327
    %v329 = vsub.f32 1.0, %v321
    %331 = vrot.lane.b32.xlu0 %v328, 112
    %v332 = vpop.permute.xlu0 %331
    %v334 = vmul.f32 %v329, %v332
    %v335 = vmul.f32 %v321, 0.0
    %v336 = vadd.f32 %v334, %v335
    %338 = vst [vmem:[#allocation1] ss:$4 sm:$0xff] %v301
    %v339 = vld.sshfl [vmem:[#allocation1] sm:$0xff pattern:$0x73625140]
    %340 = vrot.lane.b32.xlu0 %v339, 112
    %v341 = vpop.permute.xlu0 %340
    %344 = vst [vmem:[#allocation1] ss:$4 sm:$0xff] %v336
    %v345 = vld.sshfl [vmem:[#allocation1] sm:$0xff pattern:$0x73625140]
    %346 = vrot.lane.b32.xlu0 %v345, 80
    %v347 = vpop.permute.xlu0 %346
    %v349 = vsel %vm165, %v341, %v347
    %350 = vst [vmem:[#allocation1] ss:$4 sm:$0xff] %v301
    %v351 = vld.sshfl [vmem:[#allocation1] sm:$0xff pattern:$0x73625140]
    %352 = vrot.lane.b32.xlu0 %v351, 112
    %v353 = vpop.permute.xlu0 %352
    %vm355 = vcmask 123904
    %356 = vst.msk [vmem:[#allocation2] sm:$0x3] %vm355, %v353
    %357 = vst [vmem:[#allocation1] ss:$4 sm:$0xff] %v336
    %v358 = vld.sshfl [vmem:[#allocation1] sm:$0xff pattern:$0x73625140]
    %359 = vrot.lane.b32.xlu0 %v358, 64
    %v360 = vpop.permute.xlu0 %359
    %s362 = scalar_lea.vmem [#allocation3], 30
    %363 = vst.msk [vmem:[%s362] sm:$0x3] %vm355, %v360
    %v365 = vsel %vm239, %v349, 0
    %367 = vmatpush.msra.mxu0 0.0
    %368 = vmatpush.msra.mxu0 0.0
    %369 = vmatpush.msra.mxu0 0.0
    %370 = vmatpush.msra.mxu0 0.0
    %371 = vmatpush.msra.mxu0 0.0
    %372 = vmatpush.msra.mxu0 0.0
    %373 = vmatpush.msra.mxu0 0.0
    %374 = vmatpush.msra.mxu0 0.0
    %375 = vmatpush.msra.mxu0 0.0
    %376 = vmatpush.msra.mxu0 0.0
    %377 = vmatpush.msra.mxu0 0.0
    %378 = vmatpush.msra.mxu0 0.0
    %379 = vmatpush.msra.mxu0 %v234
    %380 = vmatpush.msra.mxu0 %v233
    %381 = vmatpush.msra.mxu0 %v232
    %382 = vmatpush.msra.mxu0 %v231
    %383 = vmatmul.f32.gmra.mxu0 %v365
    %v384 = vpop.f32.mrf.mxu0
    %v385 = vadd.f32 %v237, %v384
    %386 = vdwg.mxu0
    %v387 = vadd.f32 %v207, %v385
    %v388 = vxor.u32 %v387, 2147483648
    %v389 = vmul.f32 %v388, 1.442695
    %v390 = vpow.pop %v389
    %v391 = vadd.f32 %v390, 1.0
    %v392 = vrcp.pop %v391
    %v393 = vmul.f32 %v391, %v392
    %v394 = vsub.f32 1.0, %v393
    %v395 = vmul.f32 %v392, %v394
    %v396 = vadd.f32 %v392, %v395
    %vm397 = vweird.f32 %v391
    %vm398 = vweird.f32 %v392
    %vm399 = vmor %vm397, %vm398
    %v400 = vsel %vm399, %v392, %v396
    %v401 = vand.u32 2147483647, %v391
    %vm402 = vcmp.eq.f32.partialorder %v401, 8.507059e+37
    %v403 = vand.u32 %v391, 2147483648
    %v404 = vor.u32 1.1754944e-38, %v403
    %v405 = vsel %vm402, %v404, %v400
    %v406 = vmul.f32 1.0, %v405
    %408 = vrot.lane.b32.xlu0 %v385, 96
    %v409 = vpop.permute.xlu0 %408
    %v411 = vmul.f32 %v406, %v409
    %413 = vrot.lane.b32.xlu0 %v411, 32
    %v414 = vpop.permute.xlu0 %413
    %v416 = vadd.f32 %v207, %v414
    %v417 = vtanh.pop %v416
    %v418 = vsub.f32 1.0, %v406
    %420 = vrot.lane.b32.xlu0 %v417, 112
    %v421 = vpop.permute.xlu0 %420
    %v423 = vmul.f32 %v418, %v421
    %424 = vrot.lane.b32.xlu0 %v349, 16
    %v425 = vpop.permute.xlu0 %424
    %v427 = vmul.f32 %v406, %v425
    %v428 = vadd.f32 %v423, %v427
    %v429 = vadd.f32 %v217, %v385
    %v430 = vxor.u32 %v429, 2147483648
    %v431 = vmul.f32 %v430, 1.442695
    %v432 = vpow.pop %v431
    %v433 = vadd.f32 %v432, 1.0
    %v434 = vrcp.pop %v433
    %v435 = vmul.f32 %v433, %v434
    %v436 = vsub.f32 1.0, %v435
    %v437 = vmul.f32 %v434, %v436
    %v438 = vadd.f32 %v434, %v437
    %vm439 = vweird.f32 %v433
    %vm440 = vweird.f32 %v434
    %vm441 = vmor %vm439, %vm440
    %v442 = vsel %vm441, %v434, %v438
    %v443 = vand.u32 2147483647, %v433
    %vm444 = vcmp.eq.f32.partialorder %v443, 8.507059e+37
    %v445 = vand.u32 %v433, 2147483648
    %v446 = vor.u32 1.1754944e-38, %v445
    %v447 = vsel %vm444, %v446, %v442
    %v448 = vmul.f32 1.0, %v447
    %v449 = vmul.f32 %v448, %v409
    %451 = vrot.lane.b32.xlu0 %v449, 32
    %v452 = vpop.permute.xlu0 %451
    %v454 = vadd.f32 %v217, %v452
    %v455 = vtanh.pop %v454
    %v456 = vsub.f32 1.0, %v448
    %458 = vrot.lane.b32.xlu0 %v455, 112
    %v459 = vpop.permute.xlu0 %458
    %v461 = vmul.f32 %v456, %v459
    %462 = vrot.lane.b32.xlu0 %v349, 48
    %v463 = vpop.permute.xlu0 %462
    %v465 = vmul.f32 %v448, %v463
    %v466 = vadd.f32 %v461, %v465
    %468 = vst [vmem:[#allocation1] ss:$4 sm:$0xff] %v428
    %v469 = vld.sshfl [vmem:[#allocation1] sm:$0xff pattern:$0x73625140]
    %470 = vrot.lane.b32.xlu0 %v469, 112
    %v471 = vpop.permute.xlu0 %470
    %474 = vst [vmem:[#allocation1] ss:$4 sm:$0xff] %v466
    %v475 = vld.sshfl [vmem:[#allocation1] sm:$0xff pattern:$0x73625140]
    %476 = vrot.lane.b32.xlu0 %v475, 80
    %v477 = vpop.permute.xlu0 %476
    %v479 = vsel %vm165, %v471, %v477
    %480 = vst [vmem:[#allocation1] ss:$4 sm:$0xff] %v428
    %v481 = vld.sshfl [vmem:[#allocation1] sm:$0xff pattern:$0x73625140]
    %482 = vrot.lane.b32.xlu0 %v481, 112
    %v483 = vpop.permute.xlu0 %482
    %s485 = scalar_lea.vmem [#allocation2], 2
    %486 = vst.msk [vmem:[%s485] sm:$0x3] %vm355, %v483
    %487 = vst [vmem:[#allocation1] ss:$4 sm:$0xff] %v466
    %v488 = vld.sshfl [vmem:[#allocation1] sm:$0xff pattern:$0x73625140]
    %489 = vrot.lane.b32.xlu0 %v488, 64
    %v490 = vpop.permute.xlu0 %489
    %s492 = scalar_lea.vmem [#allocation3], 28
    %493 = vst.msk [vmem:[%s492] sm:$0x3] %vm355, %v490
    %v495 = vsel %vm239, %v479, 0
    %497 = vmatpush.msra.mxu0 0.0
    %498 = vmatpush.msra.mxu0 0.0
    %499 = vmatpush.msra.mxu0 0.0
    %500 = vmatpush.msra.mxu0 0.0
    %501 = vmatpush.msra.mxu0 0.0
    %502 = vmatpush.msra.mxu0 0.0
    %503 = vmatpush.msra.mxu0 0.0
    %504 = vmatpush.msra.mxu0 0.0
    %505 = vmatpush.msra.mxu0 0.0
    %506 = vmatpush.msra.mxu0 0.0
    %507 = vmatpush.msra.mxu0 0.0
    %508 = vmatpush.msra.mxu0 0.0
    %509 = vmatpush.msra.mxu0 %v234
    %510 = vmatpush.msra.mxu0 %v233
    %511 = vmatpush.msra.mxu0 %v232
    %512 = vmatpush.msra.mxu0 %v231
    %513 = vmatmul.f32.gmra.mxu0 %v495
    %v514 = vpop.f32.mrf.mxu0
    %v515 = vadd.f32 %v237, %v514
    %516 = vdwg.mxu0
    %v517 = vadd.f32 %v208, %v515
    %v518 = vxor.u32 %v517, 2147483648
    %v519 = vmul.f32 %v518, 1.442695
    %v520 = vpow.pop %v519
    %v521 = vadd.f32 %v520, 1.0
    %v522 = vrcp.pop %v521
    %v523 = vmul.f32 %v521, %v522
    %v524 = vsub.f32 1.0, %v523
    %v525 = vmul.f32 %v522, %v524
    %v526 = vadd.f32 %v522, %v525
    %vm527 = vweird.f32 %v521
    %vm528 = vweird.f32 %v522
    %vm529 = vmor %vm527, %vm528
    %v530 = vsel %vm529, %v522, %v526
    %v531 = vand.u32 2147483647, %v521
    %vm532 = vcmp.eq.f32.partialorder %v531, 8.507059e+37
    %v533 = vand.u32 %v521, 2147483648
    %v534 = vor.u32 1.1754944e-38, %v533
    %v535 = vsel %vm532, %v534, %v530
    %v536 = vmul.f32 1.0, %v535
    %538 = vrot.lane.b32.xlu0 %v515, 96
    %v539 = vpop.permute.xlu0 %538
    %v541 = vmul.f32 %v536, %v539
    %543 = vrot.lane.b32.xlu0 %v541, 32
    %v544 = vpop.permute.xlu0 %543
    %v546 = vadd.f32 %v208, %v544
    %v547 = vtanh.pop %v546
    %v548 = vsub.f32 1.0, %v536
    %550 = vrot.lane.b32.xlu0 %v547, 112
    %v551 = vpop.permute.xlu0 %550
    %v553 = vmul.f32 %v548, %v551
    %554 = vrot.lane.b32.xlu0 %v479, 16
    %v555 = vpop.permute.xlu0 %554
    %v557 = vmul.f32 %v536, %v555
    %v558 = vadd.f32 %v553, %v557
    %v559 = vadd.f32 %v216, %v515
    %v560 = vxor.u32 %v559, 2147483648
    %v561 = vmul.f32 %v560, 1.442695
    %v562 = vpow.pop %v561
    %v563 = vadd.f32 %v562, 1.0
    %v564 = vrcp.pop %v563
    %v565 = vmul.f32 %v563, %v564
    %v566 = vsub.f32 1.0, %v565
    %v567 = vmul.f32 %v564, %v566
    %v568 = vadd.f32 %v564, %v567
    %vm569 = vweird.f32 %v563
    %vm570 = vweird.f32 %v564
    %vm571 = vmor %vm569, %vm570
    %v572 = vsel %vm571, %v564, %v568
    %v573 = vand.u32 2147483647, %v563
    %vm574 = vcmp.eq.f32.partialorder %v573, 8.507059e+37
    %v575 = vand.u32 %v563, 2147483648
    %v576 = vor.u32 1.1754944e-38, %v575
    %v577 = vsel %vm574, %v576, %v572
    %v578 = vmul.f32 1.0, %v577
    %v579 = vmul.f32 %v578, %v539
    %581 = vrot.lane.b32.xlu0 %v579, 32
    %v582 = vpop.permute.xlu0 %581
    %v584 = vadd.f32 %v216, %v582
    %v585 = vtanh.pop %v584
    %v586 = vsub.f32 1.0, %v578
    %588 = vrot.lane.b32.xlu0 %v585, 112
    %v589 = vpop.permute.xlu0 %588
    %v591 = vmul.f32 %v586, %v589
    %592 = vrot.lane.b32.xlu0 %v479, 48
    %v593 = vpop.permute.xlu0 %592
    %v595 = vmul.f32 %v578, %v593
    %v596 = vadd.f32 %v591, %v595
    %598 = vst [vmem:[#allocation1] ss:$4 sm:$0xff] %v558
    %v599 = vld.sshfl [vmem:[#allocation1] sm:$0xff pattern:$0x73625140]
    %600 = vrot.lane.b32.xlu0 %v599, 112
    %v601 = vpop.permute.xlu0 %600
    %604 = vst [vmem:[#allocation1] ss:$4 sm:$0xff] %v596
    %v605 = vld.sshfl [vmem:[#allocation1] sm:$0xff pattern:$0x73625140]
    %606 = vrot.lane.b32.xlu0 %v605, 80
    %v607 = vpop.permute.xlu0 %606
    %v609 = vsel %vm165, %v601, %v607
    %610 = vst [vmem:[#allocation1] ss:$4 sm:$0xff] %v558
    %v611 = vld.sshfl [vmem:[#allocation1] sm:$0xff pattern:$0x73625140]
    %612 = vrot.lane.b32.xlu0 %v611, 112
    %v613 = vpop.permute.xlu0 %612
    %s615 = scalar_lea.vmem [#allocation2], 4
    %616 = vst.msk [vmem:[%s615] sm:$0x3] %vm355, %v613
    %617 = vst [vmem:[#allocation1] ss:$4 sm:$0xff] %v596
    %v618 = vld.sshfl [vmem:[#allocation1] sm:$0xff pattern:$0x73625140]
    %619 = vrot.lane.b32.xlu0 %v618, 64
    %v620 = vpop.permute.xlu0 %619
    %s622 = scalar_lea.vmem [#allocation3], 26
    %623 = vst.msk [vmem:[%s622] sm:$0x3] %vm355, %v620
    %v625 = vsel %vm239, %v609, 0
    %627 = vmatpush.msra.mxu0 0.0
    %628 = vmatpush.msra.mxu0 0.0
    %629 = vmatpush.msra.mxu0 0.0
    %630 = vmatpush.msra.mxu0 0.0
    %631 = vmatpush.msra.mxu0 0.0
    %632 = vmatpush.msra.mxu0 0.0
    %633 = vmatpush.msra.mxu0 0.0
    %634 = vmatpush.msra.mxu0 0.0
    %635 = vmatpush.msra.mxu0 0.0
    %636 = vmatpush.msra.mxu0 0.0
    %637 = vmatpush.msra.mxu0 0.0
    %638 = vmatpush.msra.mxu0 0.0
    %639 = vmatpush.msra.mxu0 %v234
    %640 = vmatpush.msra.mxu0 %v233
    %641 = vmatpush.msra.mxu0 %v232
    %642 = vmatpush.msra.mxu0 %v231
    %643 = vmatmul.f32.gmra.mxu0 %v625
    %v644 = vpop.f32.mrf.mxu0
    %v645 = vadd.f32 %v237, %v644
    %646 = vdwg.mxu0
    %v647 = vadd.f32 %v209, %v645
    %v648 = vxor.u32 %v647, 2147483648
    %v649 = vmul.f32 %v648, 1.442695
    %v650 = vpow.pop %v649
    %v651 = vadd.f32 %v650, 1.0
    %v652 = vrcp.pop %v651
    %v653 = vmul.f32 %v651, %v652
    %v654 = vsub.f32 1.0, %v653
    %v655 = vmul.f32 %v652, %v654
    %v656 = vadd.f32 %v652, %v655
    %vm657 = vweird.f32 %v651
    %vm658 = vweird.f32 %v652
    %vm659 = vmor %vm657, %vm658
    %v660 = vsel %vm659, %v652, %v656
    %v661 = vand.u32 2147483647, %v651
    %vm662 = vcmp.eq.f32.partialorder %v661, 8.507059e+37
    %v663 = vand.u32 %v651, 2147483648
    %v664 = vor.u32 1.1754944e-38, %v663
    %v665 = vsel %vm662, %v664, %v660
    %v666 = vmul.f32 1.0, %v665
    %668 = vrot.lane.b32.xlu0 %v645, 96
    %v669 = vpop.permute.xlu0 %668
    %v671 = vmul.f32 %v666, %v669
    %673 = vrot.lane.b32.xlu0 %v671, 32
    %v674 = vpop.permute.xlu0 %673
    %v676 = vadd.f32 %v209, %v674
    %v677 = vtanh.pop %v676
    %v678 = vsub.f32 1.0, %v666
    %680 = vrot.lane.b32.xlu0 %v677, 112
    %v681 = vpop.permute.xlu0 %680
    %v683 = vmul.f32 %v678, %v681
    %684 = vrot.lane.b32.xlu0 %v609, 16
    %v685 = vpop.permute.xlu0 %684
    %v687 = vmul.f32 %v666, %v685
    %v688 = vadd.f32 %v683, %v687
    %v689 = vadd.f32 %v201, %v645
    %v690 = vxor.u32 %v689, 2147483648
    %v691 = vmul.f32 %v690, 1.442695
    %v692 = vpow.pop %v691
    %v693 = vadd.f32 %v692, 1.0
    %v694 = vrcp.pop %v693
    %v695 = vmul.f32 %v693, %v694
    %v696 = vsub.f32 1.0, %v695
    %v697 = vmul.f32 %v694, %v696
    %v698 = vadd.f32 %v694, %v697
    %vm699 = vweird.f32 %v693
    %vm700 = vweird.f32 %v694
    %vm701 = vmor %vm699, %vm700
    %v702 = vsel %vm701, %v694, %v698
    %v703 = vand.u32 2147483647, %v693
    %vm704 = vcmp.eq.f32.partialorder %v703, 8.507059e+37
    %v705 = vand.u32 %v693, 2147483648
    %v706 = vor.u32 1.1754944e-38, %v705
    %v707 = vsel %vm704, %v706, %v702
    %v708 = vmul.f32 1.0, %v707
    %v709 = vmul.f32 %v708, %v669
    %711 = vrot.lane.b32.xlu0 %v709, 32
    %v712 = vpop.permute.xlu0 %711
    %v714 = vadd.f32 %v201, %v712
    %v715 = vtanh.pop %v714
    %v716 = vsub.f32 1.0, %v708
    %718 = vrot.lane.b32.xlu0 %v715, 112
    %v719 = vpop.permute.xlu0 %718
    %v721 = vmul.f32 %v716, %v719
    %722 = vrot.lane.b32.xlu0 %v609, 48
    %v723 = vpop.permute.xlu0 %722
    %v725 = vmul.f32 %v708, %v723
    %v726 = vadd.f32 %v721, %v725
    %728 = vst [vmem:[#allocation1] ss:$4 sm:$0xff] %v688
    %v729 = vld.sshfl [vmem:[#allocation1] sm:$0xff pattern:$0x73625140]
    %730 = vrot.lane.b32.xlu0 %v729, 112
    %v731 = vpop.permute.xlu0 %730
    %734 = vst [vmem:[#allocation1] ss:$4 sm:$0xff] %v726
    %v735 = vld.sshfl [vmem:[#allocation1] sm:$0xff pattern:$0x73625140]
    %736 = vrot.lane.b32.xlu0 %v735, 80
    %v737 = vpop.permute.xlu0 %736
    %v739 = vsel %vm165, %v731, %v737
    %740 = vst [vmem:[#allocation1] ss:$4 sm:$0xff] %v688
    %v741 = vld.sshfl [vmem:[#allocation1] sm:$0xff pattern:$0x73625140]
    %742 = vrot.lane.b32.xlu0 %v741, 112
    %v743 = vpop.permute.xlu0 %742
    %s745 = scalar_lea.vmem [#allocation2], 6
    %746 = vst.msk [vmem:[%s745] sm:$0x3] %vm355, %v743
    %747 = vst [vmem:[#allocation1] ss:$4 sm:$0xff] %v726
    %v748 = vld.sshfl [vmem:[#allocation1] sm:$0xff pattern:$0x73625140]
    %749 = vrot.lane.b32.xlu0 %v748, 64
    %v750 = vpop.permute.xlu0 %749
    %s752 = scalar_lea.vmem [#allocation3], 24
    %753 = vst.msk [vmem:[%s752] sm:$0x3] %vm355, %v750
    %v755 = vsel %vm239, %v739, 0
    %757 = vmatpush.msra.mxu0 0.0
    %758 = vmatpush.msra.mxu0 0.0
    %759 = vmatpush.msra.mxu0 0.0
    %760 = vmatpush.msra.mxu0 0.0
    %761 = vmatpush.msra.mxu0 0.0
    %762 = vmatpush.msra.mxu0 0.0
    %763 = vmatpush.msra.mxu0 0.0
    %764 = vmatpush.msra.mxu0 0.0
    %765 = vmatpush.msra.mxu0 0.0
    %766 = vmatpush.msra.mxu0 0.0
    %767 = vmatpush.msra.mxu0 0.0
    %768 = vmatpush.msra.mxu0 0.0
    %769 = vmatpush.msra.mxu0 %v234
    %770 = vmatpush.msra.mxu0 %v233
    %771 = vmatpush.msra.mxu0 %v232
    %772 = vmatpush.msra.mxu0 %v231
    %773 = vmatmul.f32.gmra.mxu0 %v755
    %v774 = vpop.f32.mrf.mxu0
    %v775 = vadd.f32 %v237, %v774
    %776 = vdwg.mxu0
    %v777 = vadd.f32 %v195, %v775
    %v778 = vxor.u32 %v777, 2147483648
    %v779 = vmul.f32 %v778, 1.442695
    %v780 = vpow.pop %v779
    %v781 = vadd.f32 %v780, 1.0
    %v782 = vrcp.pop %v781
    %v783 = vmul.f32 %v781, %v782
    %v784 = vsub.f32 1.0, %v783
    %v785 = vmul.f32 %v782, %v784
    %v786 = vadd.f32 %v782, %v785
    %vm787 = vweird.f32 %v781
    %vm788 = vweird.f32 %v782
    %vm789 = vmor %vm787, %vm788
    %v790 = vsel %vm789, %v782, %v786
    %v791 = vand.u32 2147483647, %v781
    %vm792 = vcmp.eq.f32.partialorder %v791, 8.507059e+37
    %v793 = vand.u32 %v781, 2147483648
    %v794 = vor.u32 1.1754944e-38, %v793
    %v795 = vsel %vm792, %v794, %v790
    %v796 = vmul.f32 1.0, %v795
    %798 = vrot.lane.b32.xlu0 %v775, 96
    %v799 = vpop.permute.xlu0 %798
    %v801 = vmul.f32 %v796, %v799
    %803 = vrot.lane.b32.xlu0 %v801, 32
    %v804 = vpop.permute.xlu0 %803
    %v806 = vadd.f32 %v195, %v804
    %v807 = vtanh.pop %v806
    %v808 = vsub.f32 1.0, %v796
    %810 = vrot.lane.b32.xlu0 %v807, 112
    %v811 = vpop.permute.xlu0 %810
    %v813 = vmul.f32 %v808, %v811
    %814 = vrot.lane.b32.xlu0 %v739, 16
    %v815 = vpop.permute.xlu0 %814
    %v817 = vmul.f32 %v796, %v815
    %v818 = vadd.f32 %v813, %v817
    %v819 = vadd.f32 %v215, %v775
    %v820 = vxor.u32 %v819, 2147483648
    %v821 = vmul.f32 %v820, 1.442695
    %v822 = vpow.pop %v821
    %v823 = vadd.f32 %v822, 1.0
    %v824 = vrcp.pop %v823
    %v825 = vmul.f32 %v823, %v824
    %v826 = vsub.f32 1.0, %v825
    %v827 = vmul.f32 %v824, %v826
    %v828 = vadd.f32 %v824, %v827
    %vm829 = vweird.f32 %v823
    %vm830 = vweird.f32 %v824
    %vm831 = vmor %vm829, %vm830
    %v832 = vsel %vm831, %v824, %v828
    %v833 = vand.u32 2147483647, %v823
    %vm834 = vcmp.eq.f32.partialorder %v833, 8.507059e+37
    %v835 = vand.u32 %v823, 2147483648
    %v836 = vor.u32 1.1754944e-38, %v835
    %v837 = vsel %vm834, %v836, %v832
    %v838 = vmul.f32 1.0, %v837
    %v839 = vmul.f32 %v838, %v799
    %841 = vrot.lane.b32.xlu0 %v839, 32
    %v842 = vpop.permute.xlu0 %841
    %v844 = vadd.f32 %v215, %v842
    %v845 = vtanh.pop %v844
    %v846 = vsub.f32 1.0, %v838
    %848 = vrot.lane.b32.xlu0 %v845, 112
    %v849 = vpop.permute.xlu0 %848
    %v851 = vmul.f32 %v846, %v849
    %852 = vrot.lane.b32.xlu0 %v739, 48
    %v853 = vpop.permute.xlu0 %852
    %v855 = vmul.f32 %v838, %v853
    %v856 = vadd.f32 %v851, %v855
    %858 = vst [vmem:[#allocation1] ss:$4 sm:$0xff] %v818
    %v859 = vld.sshfl [vmem:[#allocation1] sm:$0xff pattern:$0x73625140]
    %860 = vrot.lane.b32.xlu0 %v859, 112
    %v861 = vpop.permute.xlu0 %860
    %864 = vst [vmem:[#allocation1] ss:$4 sm:$0xff] %v856
    %v865 = vld.sshfl [vmem:[#allocation1] sm:$0xff pattern:$0x73625140]
    %866 = vrot.lane.b32.xlu0 %v865, 80
    %v867 = vpop.permute.xlu0 %866
    %v869 = vsel %vm165, %v861, %v867
    %870 = vst [vmem:[#allocation1] ss:$4 sm:$0xff] %v818
    %v871 = vld.sshfl [vmem:[#allocation1] sm:$0xff pattern:$0x73625140]
    %872 = vrot.lane.b32.xlu0 %v871, 112
    %v873 = vpop.permute.xlu0 %872
    %s875 = scalar_lea.vmem [#allocation2], 8
    %876 = vst.msk [vmem:[%s875] sm:$0x3] %vm355, %v873
    %877 = vst [vmem:[#allocation1] ss:$4 sm:$0xff] %v856
    %v878 = vld.sshfl [vmem:[#allocation1] sm:$0xff pattern:$0x73625140]
    %879 = vrot.lane.b32.xlu0 %v878, 64
    %v880 = vpop.permute.xlu0 %879
    %s882 = scalar_lea.vmem [#allocation3], 22
    %883 = vst.msk [vmem:[%s882] sm:$0x3] %vm355, %v880
    %v885 = vsel %vm239, %v869, 0
    %887 = vmatpush.msra.mxu0 0.0
    %888 = vmatpush.msra.mxu0 0.0
    %889 = vmatpush.msra.mxu0 0.0
    %890 = vmatpush.msra.mxu0 0.0
    %891 = vmatpush.msra.mxu0 0.0
    %892 = vmatpush.msra.mxu0 0.0
    %893 = vmatpush.msra.mxu0 0.0
    %894 = vmatpush.msra.mxu0 0.0
    %895 = vmatpush.msra.mxu0 0.0
    %896 = vmatpush.msra.mxu0 0.0
    %897 = vmatpush.msra.mxu0 0.0
    %898 = vmatpush.msra.mxu0 0.0
    %899 = vmatpush.msra.mxu0 %v234
    %900 = vmatpush.msra.mxu0 %v233
    %901 = vmatpush.msra.mxu0 %v232
    %902 = vmatpush.msra.mxu0 %v231
    %903 = vmatmul.f32.gmra.mxu0 %v885
    %v904 = vpop.f32.mrf.mxu0
    %v905 = vadd.f32 %v237, %v904
    %906 = vdwg.mxu0
    %v907 = vadd.f32 %v210, %v905
    %v908 = vxor.u32 %v907, 2147483648
    %v909 = vmul.f32 %v908, 1.442695
    %v910 = vpow.pop %v909
    %v911 = vadd.f32 %v910, 1.0
    %v912 = vrcp.pop %v911
    %v913 = vmul.f32 %v911, %v912
    %v914 = vsub.f32 1.0, %v913
    %v915 = vmul.f32 %v912, %v914
    %v916 = vadd.f32 %v912, %v915
    %vm917 = vweird.f32 %v911
    %vm918 = vweird.f32 %v912
    %vm919 = vmor %vm917, %vm918
    %v920 = vsel %vm919, %v912, %v916
    %v921 = vand.u32 2147483647, %v911
    %vm922 = vcmp.eq.f32.partialorder %v921, 8.507059e+37
    %v923 = vand.u32 %v911, 2147483648
    %v924 = vor.u32 1.1754944e-38, %v923
    %v925 = vsel %vm922, %v924, %v920
    %v926 = vmul.f32 1.0, %v925
    %928 = vrot.lane.b32.xlu0 %v905, 96
    %v929 = vpop.permute.xlu0 %928
    %v931 = vmul.f32 %v926, %v929
    %933 = vrot.lane.b32.xlu0 %v931, 32
    %v934 = vpop.permute.xlu0 %933
    %v936 = vadd.f32 %v210, %v934
    %v937 = vtanh.pop %v936
    %v938 = vsub.f32 1.0, %v926
    %940 = vrot.lane.b32.xlu0 %v937, 112
    %v941 = vpop.permute.xlu0 %940
    %v943 = vmul.f32 %v938, %v941
    %944 = vrot.lane.b32.xlu0 %v869, 16
    %v945 = vpop.permute.xlu0 %944
    %v947 = vmul.f32 %v926, %v945
    %v948 = vadd.f32 %v943, %v947
    %v949 = vadd.f32 %v214, %v905
    %v950 = vxor.u32 %v949, 2147483648
    %v951 = vmul.f32 %v950, 1.442695
    %v952 = vpow.pop %v951
    %v953 = vadd.f32 %v952, 1.0
    %v954 = vrcp.pop %v953
    %v955 = vmul.f32 %v953, %v954
    %v956 = vsub.f32 1.0, %v955
    %v957 = vmul.f32 %v954, %v956
    %v958 = vadd.f32 %v954, %v957
    %vm959 = vweird.f32 %v953
    %vm960 = vweird.f32 %v954
    %vm961 = vmor %vm959, %vm960
    %v962 = vsel %vm961, %v954, %v958
    %v963 = vand.u32 2147483647, %v953
    %vm964 = vcmp.eq.f32.partialorder %v963, 8.507059e+37
    %v965 = vand.u32 %v953, 2147483648
    %v966 = vor.u32 1.1754944e-38, %v965
    %v967 = vsel %vm964, %v966, %v962
    %v968 = vmul.f32 1.0, %v967
    %v969 = vmul.f32 %v968, %v929
    %971 = vrot.lane.b32.xlu0 %v969, 32
    %v972 = vpop.permute.xlu0 %971
    %v974 = vadd.f32 %v214, %v972
    %v975 = vtanh.pop %v974
    %v976 = vsub.f32 1.0, %v968
    %978 = vrot.lane.b32.xlu0 %v975, 112
    %v979 = vpop.permute.xlu0 %978
    %v981 = vmul.f32 %v976, %v979
    %982 = vrot.lane.b32.xlu0 %v869, 48
    %v983 = vpop.permute.xlu0 %982
    %v985 = vmul.f32 %v968, %v983
    %v986 = vadd.f32 %v981, %v985
    %988 = vst [vmem:[#allocation1] ss:$4 sm:$0xff] %v948
    %v989 = vld.sshfl [vmem:[#allocation1] sm:$0xff pattern:$0x73625140]
    %990 = vrot.lane.b32.xlu0 %v989, 112
    %v991 = vpop.permute.xlu0 %990
    %994 = vst [vmem:[#allocation1] ss:$4 sm:$0xff] %v986
    %v995 = vld.sshfl [vmem:[#allocation1] sm:$0xff pattern:$0x73625140]
    %996 = vrot.lane.b32.xlu0 %v995, 80
    %v997 = vpop.permute.xlu0 %996
    %v999 = vsel %vm165, %v991, %v997
    %1000 = vst [vmem:[#allocation1] ss:$4 sm:$0xff] %v948
    %v1001 = vld.sshfl [vmem:[#allocation1] sm:$0xff pattern:$0x73625140]
    %1002 = vrot.lane.b32.xlu0 %v1001, 112
    %v1003 = vpop.permute.xlu0 %1002
    %s1005 = scalar_lea.vmem [#allocation2], 10
    %1006 = vst.msk [vmem:[%s1005] sm:$0x3] %vm355, %v1003
    %1007 = vst [vmem:[#allocation1] ss:$4 sm:$0xff] %v986
    %v1008 = vld.sshfl [vmem:[#allocation1] sm:$0xff pattern:$0x73625140]
    %1009 = vrot.lane.b32.xlu0 %v1008, 64
    %v1010 = vpop.permute.xlu0 %1009
    %s1012 = scalar_lea.vmem [#allocation3], 20
    %1013 = vst.msk [vmem:[%s1012] sm:$0x3] %vm355, %v1010
    %v1015 = vsel %vm239, %v999, 0
    %1017 = vmatpush.msra.mxu0 0.0
    %1018 = vmatpush.msra.mxu0 0.0
    %1019 = vmatpush.msra.mxu0 0.0
    %1020 = vmatpush.msra.mxu0 0.0
    %1021 = vmatpush.msra.mxu0 0.0
    %1022 = vmatpush.msra.mxu0 0.0
    %1023 = vmatpush.msra.mxu0 0.0
    %1024 = vmatpush.msra.mxu0 0.0
    %1025 = vmatpush.msra.mxu0 0.0
    %1026 = vmatpush.msra.mxu0 0.0
    %1027 = vmatpush.msra.mxu0 0.0
    %1028 = vmatpush.msra.mxu0 0.0
    %1029 = vmatpush.msra.mxu0 %v234
    %1030 = vmatpush.msra.mxu0 %v233
    %1031 = vmatpush.msra.mxu0 %v232
    %1032 = vmatpush.msra.mxu0 %v231
    %1033 = vmatmul.f32.gmra.mxu0 %v1015
    %v1034 = vpop.f32.mrf.mxu0
    %v1035 = vadd.f32 %v237, %v1034
    %1036 = vdwg.mxu0
    %v1037 = vadd.f32 %v211, %v1035
    %v1038 = vxor.u32 %v1037, 2147483648
    %v1039 = vmul.f32 %v1038, 1.442695
    %v1040 = vpow.pop %v1039
    %v1041 = vadd.f32 %v1040, 1.0
    %v1042 = vrcp.pop %v1041
    %v1043 = vmul.f32 %v1041, %v1042
    %v1044 = vsub.f32 1.0, %v1043
    %v1045 = vmul.f32 %v1042, %v1044
    %v1046 = vadd.f32 %v1042, %v1045
    %vm1047 = vweird.f32 %v1041
    %vm1048 = vweird.f32 %v1042
    %vm1049 = vmor %vm1047, %vm1048
    %v1050 = vsel %vm1049, %v1042, %v1046
    %v1051 = vand.u32 2147483647, %v1041
    %vm1052 = vcmp.eq.f32.partialorder %v1051, 8.507059e+37
    %v1053 = vand.u32 %v1041, 2147483648
    %v1054 = vor.u32 1.1754944e-38, %v1053
    %v1055 = vsel %vm1052, %v1054, %v1050
    %v1056 = vmul.f32 1.0, %v1055
    %1058 = vrot.lane.b32.xlu0 %v1035, 96
    %v1059 = vpop.permute.xlu0 %1058
    %v1061 = vmul.f32 %v1056, %v1059
    %1063 = vrot.lane.b32.xlu0 %v1061, 32
    %v1064 = vpop.permute.xlu0 %1063
    %v1066 = vadd.f32 %v211, %v1064
    %v1067 = vtanh.pop %v1066
    %v1068 = vsub.f32 1.0, %v1056
    %1070 = vrot.lane.b32.xlu0 %v1067, 112
    %v1071 = vpop.permute.xlu0 %1070
    %v1073 = vmul.f32 %v1068, %v1071
    %1074 = vrot.lane.b32.xlu0 %v999, 16
    %v1075 = vpop.permute.xlu0 %1074
    %v1077 = vmul.f32 %v1056, %v1075
    %v1078 = vadd.f32 %v1073, %v1077
    %v1079 = vadd.f32 %v213, %v1035
    %v1080 = vxor.u32 %v1079, 2147483648
    %v1081 = vmul.f32 %v1080, 1.442695
    %v1082 = vpow.pop %v1081
    %v1083 = vadd.f32 %v1082, 1.0
    %v1084 = vrcp.pop %v1083
    %v1085 = vmul.f32 %v1083, %v1084
    %v1086 = vsub.f32 1.0, %v1085
    %v1087 = vmul.f32 %v1084, %v1086
    %v1088 = vadd.f32 %v1084, %v1087
    %vm1089 = vweird.f32 %v1083
    %vm1090 = vweird.f32 %v1084
    %vm1091 = vmor %vm1089, %vm1090
    %v1092 = vsel %vm1091, %v1084, %v1088
    %v1093 = vand.u32 2147483647, %v1083
    %vm1094 = vcmp.eq.f32.partialorder %v1093, 8.507059e+37
    %v1095 = vand.u32 %v1083, 2147483648
    %v1096 = vor.u32 1.1754944e-38, %v1095
    %v1097 = vsel %vm1094, %v1096, %v1092
    %v1098 = vmul.f32 1.0, %v1097
    %v1099 = vmul.f32 %v1098, %v1059
    %1101 = vrot.lane.b32.xlu0 %v1099, 32
    %v1102 = vpop.permute.xlu0 %1101
    %v1104 = vadd.f32 %v213, %v1102
    %v1105 = vtanh.pop %v1104
    %v1106 = vsub.f32 1.0, %v1098
    %1108 = vrot.lane.b32.xlu0 %v1105, 112
    %v1109 = vpop.permute.xlu0 %1108
    %v1111 = vmul.f32 %v1106, %v1109
    %1112 = vrot.lane.b32.xlu0 %v999, 48
    %v1113 = vpop.permute.xlu0 %1112
    %v1115 = vmul.f32 %v1098, %v1113
    %v1116 = vadd.f32 %v1111, %v1115
    %1118 = vst [vmem:[#allocation1] ss:$4 sm:$0xff] %v1078
    %v1119 = vld.sshfl [vmem:[#allocation1] sm:$0xff pattern:$0x73625140]
    %1120 = vrot.lane.b32.xlu0 %v1119, 112
    %v1121 = vpop.permute.xlu0 %1120
    %1124 = vst [vmem:[#allocation1] ss:$4 sm:$0xff] %v1116
    %v1125 = vld.sshfl [vmem:[#allocation1] sm:$0xff pattern:$0x73625140]
    %1126 = vrot.lane.b32.xlu0 %v1125, 80
    %v1127 = vpop.permute.xlu0 %1126
    %v1129 = vsel %vm165, %v1121, %v1127
    %1130 = vst [vmem:[#allocation1] ss:$4 sm:$0xff] %v1078
    %v1131 = vld.sshfl [vmem:[#allocation1] sm:$0xff pattern:$0x73625140]
    %1132 = vrot.lane.b32.xlu0 %v1131, 112
    %v1133 = vpop.permute.xlu0 %1132
    %s1135 = scalar_lea.vmem [#allocation2], 12
    %1136 = vst.msk [vmem:[%s1135] sm:$0x3] %vm355, %v1133
    %1137 = vst [vmem:[#allocation1] ss:$4 sm:$0xff] %v1116
    %v1138 = vld.sshfl [vmem:[#allocation1] sm:$0xff pattern:$0x73625140]
    %1139 = vrot.lane.b32.xlu0 %v1138, 64
    %v1140 = vpop.permute.xlu0 %1139
    %s1142 = scalar_lea.vmem [#allocation3], 18
    %1143 = vst.msk [vmem:[%s1142] sm:$0x3] %vm355, %v1140
    %v1145 = vsel %vm239, %v1129, 0
    %1147 = vmatpush.msra.mxu0 0.0
    %1148 = vmatpush.msra.mxu0 0.0
    %1149 = vmatpush.msra.mxu0 0.0
    %1150 = vmatpush.msra.mxu0 0.0
    %1151 = vmatpush.msra.mxu0 0.0
    %1152 = vmatpush.msra.mxu0 0.0
    %1153 = vmatpush.msra.mxu0 0.0
    %1154 = vmatpush.msra.mxu0 0.0
    %1155 = vmatpush.msra.mxu0 0.0
    %1156 = vmatpush.msra.mxu0 0.0
    %1157 = vmatpush.msra.mxu0 0.0
    %1158 = vmatpush.msra.mxu0 0.0
    %1159 = vmatpush.msra.mxu0 %v234
    %1160 = vmatpush.msra.mxu0 %v233
    %1161 = vmatpush.msra.mxu0 %v232
    %1162 = vmatpush.msra.mxu0 %v231
    %1163 = vmatmul.f32.gmra.mxu0 %v1145
    %v1164 = vpop.f32.mrf.mxu0
    %v1165 = vadd.f32 %v237, %v1164
    %1166 = vdwg.mxu0
    %v1167 = vadd.f32 %v212, %v1165
    %v1168 = vxor.u32 %v1167, 2147483648
    %v1169 = vmul.f32 %v1168, 1.442695
    %v1170 = vpow.pop %v1169
    %v1171 = vadd.f32 %v1170, 1.0
    %v1172 = vrcp.pop %v1171
    %v1173 = vmul.f32 %v1171, %v1172
    %v1174 = vsub.f32 1.0, %v1173
    %v1175 = vmul.f32 %v1172, %v1174
    %v1176 = vadd.f32 %v1172, %v1175
    %vm1177 = vweird.f32 %v1171
    %vm1178 = vweird.f32 %v1172
    %vm1179 = vmor %vm1177, %vm1178
    %v1180 = vsel %vm1179, %v1172, %v1176
    %v1181 = vand.u32 2147483647, %v1171
    %vm1182 = vcmp.eq.f32.partialorder %v1181, 8.507059e+37
    %v1183 = vand.u32 %v1171, 2147483648
    %v1184 = vor.u32 1.1754944e-38, %v1183
    %v1185 = vsel %vm1182, %v1184, %v1180
    %v1186 = vmul.f32 1.0, %v1185
    %1188 = vrot.lane.b32.xlu0 %v1165, 96
    %v1189 = vpop.permute.xlu0 %1188
    %v1191 = vmul.f32 %v1186, %v1189
    %1193 = vrot.lane.b32.xlu0 %v1191, 32
    %v1194 = vpop.permute.xlu0 %1193
    %v1196 = vadd.f32 %v212, %v1194
    %v1197 = vtanh.pop %v1196
    %v1198 = vsub.f32 1.0, %v1186
    %1200 = vrot.lane.b32.xlu0 %v1197, 112
    %v1201 = vpop.permute.xlu0 %1200
    %v1203 = vmul.f32 %v1198, %v1201
    %1204 = vrot.lane.b32.xlu0 %v1129, 16
    %v1205 = vpop.permute.xlu0 %1204
    %v1207 = vmul.f32 %v1186, %v1205
    %v1208 = vadd.f32 %v1203, %v1207
    %v1209 = vadd.f32 %v198, %v1165
    %v1210 = vxor.u32 %v1209, 2147483648
    %v1211 = vmul.f32 %v1210, 1.442695
    %v1212 = vpow.pop %v1211
    %v1213 = vadd.f32 %v1212, 1.0
    %v1214 = vrcp.pop %v1213
    %v1215 = vmul.f32 %v1213, %v1214
    %v1216 = vsub.f32 1.0, %v1215
    %v1217 = vmul.f32 %v1214, %v1216
    %v1218 = vadd.f32 %v1214, %v1217
    %vm1219 = vweird.f32 %v1213
    %vm1220 = vweird.f32 %v1214
    %vm1221 = vmor %vm1219, %vm1220
    %v1222 = vsel %vm1221, %v1214, %v1218
    %v1223 = vand.u32 2147483647, %v1213
    %vm1224 = vcmp.eq.f32.partialorder %v1223, 8.507059e+37
    %v1225 = vand.u32 %v1213, 2147483648
    %v1226 = vor.u32 1.1754944e-38, %v1225
    %v1227 = vsel %vm1224, %v1226, %v1222
    %v1228 = vmul.f32 1.0, %v1227
    %v1229 = vmul.f32 %v1228, %v1189
    %1231 = vrot.lane.b32.xlu0 %v1229, 32
    %v1232 = vpop.permute.xlu0 %1231
    %v1234 = vadd.f32 %v198, %v1232
    %v1235 = vtanh.pop %v1234
    %v1236 = vsub.f32 1.0, %v1228
    %1238 = vrot.lane.b32.xlu0 %v1235, 112
    %v1239 = vpop.permute.xlu0 %1238
    %v1241 = vmul.f32 %v1236, %v1239
    %1242 = vrot.lane.b32.xlu0 %v1129, 48
    %v1243 = vpop.permute.xlu0 %1242
    %v1245 = vmul.f32 %v1228, %v1243
    %v1246 = vadd.f32 %v1241, %v1245
    %1248 = vst [vmem:[#allocation1] ss:$4 sm:$0xff] %v1208
    %v1249 = vld.sshfl [vmem:[#allocation1] sm:$0xff pattern:$0x73625140]
    %1250 = vrot.lane.b32.xlu0 %v1249, 112
    %v1251 = vpop.permute.xlu0 %1250
    %1254 = vst [vmem:[#allocation1] ss:$4 sm:$0xff] %v1246
    %v1255 = vld.sshfl [vmem:[#allocation1] sm:$0xff pattern:$0x73625140]
    %1256 = vrot.lane.b32.xlu0 %v1255, 80
    %v1257 = vpop.permute.xlu0 %1256
    %v1259 = vsel %vm165, %v1251, %v1257
    %1260 = vst [vmem:[#allocation1] ss:$4 sm:$0xff] %v1208
    %v1261 = vld.sshfl [vmem:[#allocation1] sm:$0xff pattern:$0x73625140]
    %1262 = vrot.lane.b32.xlu0 %v1261, 112
    %v1263 = vpop.permute.xlu0 %1262
    %s1265 = scalar_lea.vmem [#allocation2], 14
    %1266 = vst.msk [vmem:[%s1265] sm:$0x3] %vm355, %v1263
    %1267 = vst [vmem:[#allocation1] ss:$4 sm:$0xff] %v1246
    %v1268 = vld.sshfl [vmem:[#allocation1] sm:$0xff pattern:$0x73625140]
    %1269 = vrot.lane.b32.xlu0 %v1268, 64
    %v1270 = vpop.permute.xlu0 %1269
    %s1272 = scalar_lea.vmem [#allocation3], 16
    %1273 = vst.msk [vmem:[%s1272] sm:$0x3] %vm355, %v1270
    %v1275 = vsel %vm239, %v1259, 0
    %1277 = vmatpush.msra.mxu0 0.0
    %1278 = vmatpush.msra.mxu0 0.0
    %1279 = vmatpush.msra.mxu0 0.0
    %1280 = vmatpush.msra.mxu0 0.0
    %1281 = vmatpush.msra.mxu0 0.0
    %1282 = vmatpush.msra.mxu0 0.0
    %1283 = vmatpush.msra.mxu0 0.0
    %1284 = vmatpush.msra.mxu0 0.0
    %1285 = vmatpush.msra.mxu0 0.0
    %1286 = vmatpush.msra.mxu0 0.0
    %1287 = vmatpush.msra.mxu0 0.0
    %1288 = vmatpush.msra.mxu0 0.0
    %1289 = vmatpush.msra.mxu0 %v234
    %1290 = vmatpush.msra.mxu0 %v233
    %1291 = vmatpush.msra.mxu0 %v232
    %1292 = vmatpush.msra.mxu0 %v231
    %1293 = vmatmul.f32.gmra.mxu0 %v1275
    %v1294 = vpop.f32.mrf.mxu0
    %v1295 = vadd.f32 %v237, %v1294
    %1296 = vdwg.mxu0
    %v1297 = vadd.f32 %v198, %v1295
    %v1298 = vxor.u32 %v1297, 2147483648
    %v1299 = vmul.f32 %v1298, 1.442695
    %v1300 = vpow.pop %v1299
    %v1301 = vadd.f32 %v1300, 1.0
    %v1302 = vrcp.pop %v1301
    %v1303 = vmul.f32 %v1301, %v1302
    %v1304 = vsub.f32 1.0, %v1303
    %v1305 = vmul.f32 %v1302, %v1304
    %v1306 = vadd.f32 %v1302, %v1305
    %vm1307 = vweird.f32 %v1301
    %vm1308 = vweird.f32 %v1302
    %vm1309 = vmor %vm1307, %vm1308
    %v1310 = vsel %vm1309, %v1302, %v1306
    %v1311 = vand.u32 2147483647, %v1301
    %vm1312 = vcmp.eq.f32.partialorder %v1311, 8.507059e+37
    %v1313 = vand.u32 %v1301, 2147483648
    %v1314 = vor.u32 1.1754944e-38, %v1313
    %v1315 = vsel %vm1312, %v1314, %v1310
    %v1316 = vmul.f32 1.0, %v1315
    %1318 = vrot.lane.b32.xlu0 %v1295, 96
    %v1319 = vpop.permute.xlu0 %1318
    %v1321 = vmul.f32 %v1316, %v1319
    %1323 = vrot.lane.b32.xlu0 %v1321, 32
    %v1324 = vpop.permute.xlu0 %1323
    %v1326 = vadd.f32 %v198, %v1324
    %v1327 = vtanh.pop %v1326
    %v1328 = vsub.f32 1.0, %v1316
    %1330 = vrot.lane.b32.xlu0 %v1327, 112
    %v1331 = vpop.permute.xlu0 %1330
    %v1333 = vmul.f32 %v1328, %v1331
    %1334 = vrot.lane.b32.xlu0 %v1259, 16
    %v1335 = vpop.permute.xlu0 %1334
    %v1337 = vmul.f32 %v1316, %v1335
    %v1338 = vadd.f32 %v1333, %v1337
    %v1339 = vadd.f32 %v212, %v1295
    %v1340 = vxor.u32 %v1339, 2147483648
    %v1341 = vmul.f32 %v1340, 1.442695
    %v1342 = vpow.pop %v1341
    %v1343 = vadd.f32 %v1342, 1.0
    %v1344 = vrcp.pop %v1343
    %v1345 = vmul.f32 %v1343, %v1344
    %v1346 = vsub.f32 1.0, %v1345
    %v1347 = vmul.f32 %v1344, %v1346
    %v1348 = vadd.f32 %v1344, %v1347
    %vm1349 = vweird.f32 %v1343
    %vm1350 = vweird.f32 %v1344
    %vm1351 = vmor %vm1349, %vm1350
    %v1352 = vsel %vm1351, %v1344, %v1348
    %v1353 = vand.u32 2147483647, %v1343
    %vm1354 = vcmp.eq.f32.partialorder %v1353, 8.507059e+37
    %v1355 = vand.u32 %v1343, 2147483648
    %v1356 = vor.u32 1.1754944e-38, %v1355
    %v1357 = vsel %vm1354, %v1356, %v1352
    %v1358 = vmul.f32 1.0, %v1357
    %v1359 = vmul.f32 %v1358, %v1319
    %1361 = vrot.lane.b32.xlu0 %v1359, 32
    %v1362 = vpop.permute.xlu0 %1361
    %v1364 = vadd.f32 %v212, %v1362
    %v1365 = vtanh.pop %v1364
    %v1366 = vsub.f32 1.0, %v1358
    %1368 = vrot.lane.b32.xlu0 %v1365, 112
    %v1369 = vpop.permute.xlu0 %1368
    %v1371 = vmul.f32 %v1366, %v1369
    %1372 = vrot.lane.b32.xlu0 %v1259, 48
    %v1373 = vpop.permute.xlu0 %1372
    %v1375 = vmul.f32 %v1358, %v1373
    %v1376 = vadd.f32 %v1371, %v1375
    %1378 = vst [vmem:[#allocation1] ss:$4 sm:$0xff] %v1338
    %v1379 = vld.sshfl [vmem:[#allocation1] sm:$0xff pattern:$0x73625140]
    %1380 = vrot.lane.b32.xlu0 %v1379, 112
    %v1381 = vpop.permute.xlu0 %1380
    %1384 = vst [vmem:[#allocation1] ss:$4 sm:$0xff] %v1376
    %v1385 = vld.sshfl [vmem:[#allocation1] sm:$0xff pattern:$0x73625140]
    %1386 = vrot.lane.b32.xlu0 %v1385, 80
    %v1387 = vpop.permute.xlu0 %1386
    %v1389 = vsel %vm165, %v1381, %v1387
    %1390 = vst [vmem:[#allocation1] ss:$4 sm:$0xff] %v1338
    %v1391 = vld.sshfl [vmem:[#allocation1] sm:$0xff pattern:$0x73625140]
    %1392 = vrot.lane.b32.xlu0 %v1391, 112
    %v1393 = vpop.permute.xlu0 %1392
    %s1395 = scalar_lea.vmem [#allocation2], 16
    %1396 = vst.msk [vmem:[%s1395] sm:$0x3] %vm355, %v1393
    %1397 = vst [vmem:[#allocation1] ss:$4 sm:$0xff] %v1376
    %v1398 = vld.sshfl [vmem:[#allocation1] sm:$0xff pattern:$0x73625140]
    %1399 = vrot.lane.b32.xlu0 %v1398, 64
    %v1400 = vpop.permute.xlu0 %1399
    %s1402 = scalar_lea.vmem [#allocation3], 14
    %1403 = vst.msk [vmem:[%s1402] sm:$0x3] %vm355, %v1400
    %v1405 = vsel %vm239, %v1389, 0
    %1407 = vmatpush.msra.mxu0 0.0
    %1408 = vmatpush.msra.mxu0 0.0
    %1409 = vmatpush.msra.mxu0 0.0
    %1410 = vmatpush.msra.mxu0 0.0
    %1411 = vmatpush.msra.mxu0 0.0
    %1412 = vmatpush.msra.mxu0 0.0
    %1413 = vmatpush.msra.mxu0 0.0
    %1414 = vmatpush.msra.mxu0 0.0
    %1415 = vmatpush.msra.mxu0 0.0
    %1416 = vmatpush.msra.mxu0 0.0
    %1417 = vmatpush.msra.mxu0 0.0
    %1418 = vmatpush.msra.mxu0 0.0
    %1419 = vmatpush.msra.mxu0 %v234
    %1420 = vmatpush.msra.mxu0 %v233
    %1421 = vmatpush.msra.mxu0 %v232
    %1422 = vmatpush.msra.mxu0 %v231
    %1423 = vmatmul.f32.gmra.mxu0 %v1405
    %v1424 = vpop.f32.mrf.mxu0
    %v1425 = vadd.f32 %v237, %v1424
    %1426 = vdwg.mxu0
    %v1427 = vadd.f32 %v213, %v1425
    %v1428 = vxor.u32 %v1427, 2147483648
    %v1429 = vmul.f32 %v1428, 1.442695
    %v1430 = vpow.pop %v1429
    %v1431 = vadd.f32 %v1430, 1.0
    %v1432 = vrcp.pop %v1431
    %v1433 = vmul.f32 %v1431, %v1432
    %v1434 = vsub.f32 1.0, %v1433
    %v1435 = vmul.f32 %v1432, %v1434
    %v1436 = vadd.f32 %v1432, %v1435
    %vm1437 = vweird.f32 %v1431
    %vm1438 = vweird.f32 %v1432
    %vm1439 = vmor %vm1437, %vm1438
    %v1440 = vsel %vm1439, %v1432, %v1436
    %v1441 = vand.u32 2147483647, %v1431
    %vm1442 = vcmp.eq.f32.partialorder %v1441, 8.507059e+37
    %v1443 = vand.u32 %v1431, 2147483648
    %v1444 = vor.u32 1.1754944e-38, %v1443
    %v1445 = vsel %vm1442, %v1444, %v1440
    %v1446 = vmul.f32 1.0, %v1445
    %1448 = vrot.lane.b32.xlu0 %v1425, 96
    %v1449 = vpop.permute.xlu0 %1448
    %v1451 = vmul.f32 %v1446, %v1449
    %1453 = vrot.lane.b32.xlu0 %v1451, 32
    %v1454 = vpop.permute.xlu0 %1453
    %v1456 = vadd.f32 %v213, %v1454
    %v1457 = vtanh.pop %v1456
    %v1458 = vsub.f32 1.0, %v1446
    %1460 = vrot.lane.b32.xlu0 %v1457, 112
    %v1461 = vpop.permute.xlu0 %1460
    %v1463 = vmul.f32 %v1458, %v1461
    %1464 = vrot.lane.b32.xlu0 %v1389, 16
    %v1465 = vpop.permute.xlu0 %1464
    %v1467 = vmul.f32 %v1446, %v1465
    %v1468 = vadd.f32 %v1463, %v1467
    %v1469 = vadd.f32 %v211, %v1425
    %v1470 = vxor.u32 %v1469, 2147483648
    %v1471 = vmul.f32 %v1470, 1.442695
    %v1472 = vpow.pop %v1471
    %v1473 = vadd.f32 %v1472, 1.0
    %v1474 = vrcp.pop %v1473
    %v1475 = vmul.f32 %v1473, %v1474
    %v1476 = vsub.f32 1.0, %v1475
    %v1477 = vmul.f32 %v1474, %v1476
    %v1478 = vadd.f32 %v1474, %v1477
    %vm1479 = vweird.f32 %v1473
    %vm1480 = vweird.f32 %v1474
    %vm1481 = vmor %vm1479, %vm1480
    %v1482 = vsel %vm1481, %v1474, %v1478
    %v1483 = vand.u32 2147483647, %v1473
    %vm1484 = vcmp.eq.f32.partialorder %v1483, 8.507059e+37
    %v1485 = vand.u32 %v1473, 2147483648
    %v1486 = vor.u32 1.1754944e-38, %v1485
    %v1487 = vsel %vm1484, %v1486, %v1482
    %v1488 = vmul.f32 1.0, %v1487
    %v1489 = vmul.f32 %v1488, %v1449
    %1491 = vrot.lane.b32.xlu0 %v1489, 32
    %v1492 = vpop.permute.xlu0 %1491
    %v1494 = vadd.f32 %v211, %v1492
    %v1495 = vtanh.pop %v1494
    %v1496 = vsub.f32 1.0, %v1488
    %1498 = vrot.lane.b32.xlu0 %v1495, 112
    %v1499 = vpop.permute.xlu0 %1498
    %v1501 = vmul.f32 %v1496, %v1499
    %1502 = vrot.lane.b32.xlu0 %v1389, 48
    %v1503 = vpop.permute.xlu0 %1502
    %v1505 = vmul.f32 %v1488, %v1503
    %v1506 = vadd.f32 %v1501, %v1505
    %1508 = vst [vmem:[#allocation1] ss:$4 sm:$0xff] %v1468
    %v1509 = vld.sshfl [vmem:[#allocation1] sm:$0xff pattern:$0x73625140]
    %1510 = vrot.lane.b32.xlu0 %v1509, 112
    %v1511 = vpop.permute.xlu0 %1510
    %1514 = vst [vmem:[#allocation1] ss:$4 sm:$0xff] %v1506
    %v1515 = vld.sshfl [vmem:[#allocation1] sm:$0xff pattern:$0x73625140]
    %1516 = vrot.lane.b32.xlu0 %v1515, 80
    %v1517 = vpop.permute.xlu0 %1516
    %v1519 = vsel %vm165, %v1511, %v1517
    %1520 = vst [vmem:[#allocation1] ss:$4 sm:$0xff] %v1468
    %v1521 = vld.sshfl [vmem:[#allocation1] sm:$0xff pattern:$0x73625140]
    %1522 = vrot.lane.b32.xlu0 %v1521, 112
    %v1523 = vpop.permute.xlu0 %1522
    %s1525 = scalar_lea.vmem [#allocation2], 18
    %1526 = vst.msk [vmem:[%s1525] sm:$0x3] %vm355, %v1523
    %1527 = vst [vmem:[#allocation1] ss:$4 sm:$0xff] %v1506
    %v1528 = vld.sshfl [vmem:[#allocation1] sm:$0xff pattern:$0x73625140]
    %1529 = vrot.lane.b32.xlu0 %v1528, 64
    %v1530 = vpop.permute.xlu0 %1529
    %s1532 = scalar_lea.vmem [#allocation3], 12
    %1533 = vst.msk [vmem:[%s1532] sm:$0x3] %vm355, %v1530
    %v1535 = vsel %vm239, %v1519, 0
    %1537 = vmatpush.msra.mxu0 0.0
    %1538 = vmatpush.msra.mxu0 0.0
    %1539 = vmatpush.msra.mxu0 0.0
    %1540 = vmatpush.msra.mxu0 0.0
    %1541 = vmatpush.msra.mxu0 0.0
    %1542 = vmatpush.msra.mxu0 0.0
    %1543 = vmatpush.msra.mxu0 0.0
    %1544 = vmatpush.msra.mxu0 0.0
    %1545 = vmatpush.msra.mxu0 0.0
    %1546 = vmatpush.msra.mxu0 0.0
    %1547 = vmatpush.msra.mxu0 0.0
    %1548 = vmatpush.msra.mxu0 0.0
    %1549 = vmatpush.msra.mxu0 %v234
    %1550 = vmatpush.msra.mxu0 %v233
    %1551 = vmatpush.msra.mxu0 %v232
    %1552 = vmatpush.msra.mxu0 %v231
    %1553 = vmatmul.f32.gmra.mxu0 %v1535
    %v1554 = vpop.f32.mrf.mxu0
    %v1555 = vadd.f32 %v237, %v1554
    %1556 = vdwg.mxu0
    %v1557 = vadd.f32 %v214, %v1555
    %v1558 = vxor.u32 %v1557, 2147483648
    %v1559 = vmul.f32 %v1558, 1.442695
    %v1560 = vpow.pop %v1559
    %v1561 = vadd.f32 %v1560, 1.0
    %v1562 = vrcp.pop %v1561
    %v1563 = vmul.f32 %v1561, %v1562
    %v1564 = vsub.f32 1.0, %v1563
    %v1565 = vmul.f32 %v1562, %v1564
    %v1566 = vadd.f32 %v1562, %v1565
    %vm1567 = vweird.f32 %v1561
    %vm1568 = vweird.f32 %v1562
    %vm1569 = vmor %vm1567, %vm1568
    %v1570 = vsel %vm1569, %v1562, %v1566
    %v1571 = vand.u32 2147483647, %v1561
    %vm1572 = vcmp.eq.f32.partialorder %v1571, 8.507059e+37
    %v1573 = vand.u32 %v1561, 2147483648
    %v1574 = vor.u32 1.1754944e-38, %v1573
    %v1575 = vsel %vm1572, %v1574, %v1570
    %v1576 = vmul.f32 1.0, %v1575
    %1578 = vrot.lane.b32.xlu0 %v1555, 96
    %v1579 = vpop.permute.xlu0 %1578
    %v1581 = vmul.f32 %v1576, %v1579
    %1583 = vrot.lane.b32.xlu0 %v1581, 32
    %v1584 = vpop.permute.xlu0 %1583
    %v1586 = vadd.f32 %v214, %v1584
    %v1587 = vtanh.pop %v1586
    %v1588 = vsub.f32 1.0, %v1576
    %1590 = vrot.lane.b32.xlu0 %v1587, 112
    %v1591 = vpop.permute.xlu0 %1590
    %v1593 = vmul.f32 %v1588, %v1591
    %1594 = vrot.lane.b32.xlu0 %v1519, 16
    %v1595 = vpop.permute.xlu0 %1594
    %v1597 = vmul.f32 %v1576, %v1595
    %v1598 = vadd.f32 %v1593, %v1597
    %v1599 = vadd.f32 %v210, %v1555
    %v1600 = vxor.u32 %v1599, 2147483648
    %v1601 = vmul.f32 %v1600, 1.442695
    %v1602 = vpow.pop %v1601
    %v1603 = vadd.f32 %v1602, 1.0
    %v1604 = vrcp.pop %v1603
    %v1605 = vmul.f32 %v1603, %v1604
    %v1606 = vsub.f32 1.0, %v1605
    %v1607 = vmul.f32 %v1604, %v1606
    %v1608 = vadd.f32 %v1604, %v1607
    %vm1609 = vweird.f32 %v1603
    %vm1610 = vweird.f32 %v1604
    %vm1611 = vmor %vm1609, %vm1610
    %v1612 = vsel %vm1611, %v1604, %v1608
    %v1613 = vand.u32 2147483647, %v1603
    %vm1614 = vcmp.eq.f32.partialorder %v1613, 8.507059e+37
    %v1615 = vand.u32 %v1603, 2147483648
    %v1616 = vor.u32 1.1754944e-38, %v1615
    %v1617 = vsel %vm1614, %v1616, %v1612
    %v1618 = vmul.f32 1.0, %v1617
    %v1619 = vmul.f32 %v1618, %v1579
    %1621 = vrot.lane.b32.xlu0 %v1619, 32
    %v1622 = vpop.permute.xlu0 %1621
    %v1624 = vadd.f32 %v210, %v1622
    %v1625 = vtanh.pop %v1624
    %v1626 = vsub.f32 1.0, %v1618
    %1628 = vrot.lane.b32.xlu0 %v1625, 112
    %v1629 = vpop.permute.xlu0 %1628
    %v1631 = vmul.f32 %v1626, %v1629
    %1632 = vrot.lane.b32.xlu0 %v1519, 48
    %v1633 = vpop.permute.xlu0 %1632
    %v1635 = vmul.f32 %v1618, %v1633
    %v1636 = vadd.f32 %v1631, %v1635
    %1638 = vst [vmem:[#allocation1] ss:$4 sm:$0xff] %v1598
    %v1639 = vld.sshfl [vmem:[#allocation1] sm:$0xff pattern:$0x73625140]
    %1640 = vrot.lane.b32.xlu0 %v1639, 112
    %v1641 = vpop.permute.xlu0 %1640
    %1644 = vst [vmem:[#allocation1] ss:$4 sm:$0xff] %v1636
    %v1645 = vld.sshfl [vmem:[#allocation1] sm:$0xff pattern:$0x73625140]
    %1646 = vrot.lane.b32.xlu0 %v1645, 80
    %v1647 = vpop.permute.xlu0 %1646
    %v1649 = vsel %vm165, %v1641, %v1647
    %1650 = vst [vmem:[#allocation1] ss:$4 sm:$0xff] %v1598
    %v1651 = vld.sshfl [vmem:[#allocation1] sm:$0xff pattern:$0x73625140]
    %1652 = vrot.lane.b32.xlu0 %v1651, 112
    %v1653 = vpop.permute.xlu0 %1652
    %s1655 = scalar_lea.vmem [#allocation2], 20
    %1656 = vst.msk [vmem:[%s1655] sm:$0x3] %vm355, %v1653
    %1657 = vst [vmem:[#allocation1] ss:$4 sm:$0xff] %v1636
    %v1658 = vld.sshfl [vmem:[#allocation1] sm:$0xff pattern:$0x73625140]
    %1659 = vrot.lane.b32.xlu0 %v1658, 64
    %v1660 = vpop.permute.xlu0 %1659
    %s1662 = scalar_lea.vmem [#allocation3], 10
    %1663 = vst.msk [vmem:[%s1662] sm:$0x3] %vm355, %v1660
    %v1665 = vsel %vm239, %v1649, 0
    %1667 = vmatpush.msra.mxu0 0.0
    %1668 = vmatpush.msra.mxu0 0.0
    %1669 = vmatpush.msra.mxu0 0.0
    %1670 = vmatpush.msra.mxu0 0.0
    %1671 = vmatpush.msra.mxu0 0.0
    %1672 = vmatpush.msra.mxu0 0.0
    %1673 = vmatpush.msra.mxu0 0.0
    %1674 = vmatpush.msra.mxu0 0.0
    %1675 = vmatpush.msra.mxu0 0.0
    %1676 = vmatpush.msra.mxu0 0.0
    %1677 = vmatpush.msra.mxu0 0.0
    %1678 = vmatpush.msra.mxu0 0.0
    %1679 = vmatpush.msra.mxu0 %v234
    %1680 = vmatpush.msra.mxu0 %v233
    %1681 = vmatpush.msra.mxu0 %v232
    %1682 = vmatpush.msra.mxu0 %v231
    %1683 = vmatmul.f32.gmra.mxu0 %v1665
    %v1684 = vpop.f32.mrf.mxu0
    %v1685 = vadd.f32 %v237, %v1684
    %1686 = vdwg.mxu0
    %v1687 = vadd.f32 %v215, %v1685
    %v1688 = vxor.u32 %v1687, 2147483648
    %v1689 = vmul.f32 %v1688, 1.442695
    %v1690 = vpow.pop %v1689
    %v1691 = vadd.f32 %v1690, 1.0
    %v1692 = vrcp.pop %v1691
    %v1693 = vmul.f32 %v1691, %v1692
    %v1694 = vsub.f32 1.0, %v1693
    %v1695 = vmul.f32 %v1692, %v1694
    %v1696 = vadd.f32 %v1692, %v1695
    %vm1697 = vweird.f32 %v1691
    %vm1698 = vweird.f32 %v1692
    %vm1699 = vmor %vm1697, %vm1698
    %v1700 = vsel %vm1699, %v1692, %v1696
    %v1701 = vand.u32 2147483647, %v1691
    %vm1702 = vcmp.eq.f32.partialorder %v1701, 8.507059e+37
    %v1703 = vand.u32 %v1691, 2147483648
    %v1704 = vor.u32 1.1754944e-38, %v1703
    %v1705 = vsel %vm1702, %v1704, %v1700
    %v1706 = vmul.f32 1.0, %v1705
    %1708 = vrot.lane.b32.xlu0 %v1685, 96
    %v1709 = vpop.permute.xlu0 %1708
    %v1711 = vmul.f32 %v1706, %v1709
    %1713 = vrot.lane.b32.xlu0 %v1711, 32
    %v1714 = vpop.permute.xlu0 %1713
    %v1716 = vadd.f32 %v215, %v1714
    %v1717 = vtanh.pop %v1716
    %v1718 = vsub.f32 1.0, %v1706
    %1720 = vrot.lane.b32.xlu0 %v1717, 112
    %v1721 = vpop.permute.xlu0 %1720
    %v1723 = vmul.f32 %v1718, %v1721
    %1724 = vrot.lane.b32.xlu0 %v1649, 16
    %v1725 = vpop.permute.xlu0 %1724
    %v1727 = vmul.f32 %v1706, %v1725
    %v1728 = vadd.f32 %v1723, %v1727
    %v1729 = vadd.f32 %v195, %v1685
    %v1730 = vxor.u32 %v1729, 2147483648
    %v1731 = vmul.f32 %v1730, 1.442695
    %v1732 = vpow.pop %v1731
    %v1733 = vadd.f32 %v1732, 1.0
    %v1734 = vrcp.pop %v1733
    %v1735 = vmul.f32 %v1733, %v1734
    %v1736 = vsub.f32 1.0, %v1735
    %v1737 = vmul.f32 %v1734, %v1736
    %v1738 = vadd.f32 %v1734, %v1737
    %vm1739 = vweird.f32 %v1733
    %vm1740 = vweird.f32 %v1734
    %vm1741 = vmor %vm1739, %vm1740
    %v1742 = vsel %vm1741, %v1734, %v1738
    %v1743 = vand.u32 2147483647, %v1733
    %vm1744 = vcmp.eq.f32.partialorder %v1743, 8.507059e+37
    %v1745 = vand.u32 %v1733, 2147483648
    %v1746 = vor.u32 1.1754944e-38, %v1745
    %v1747 = vsel %vm1744, %v1746, %v1742
    %v1748 = vmul.f32 1.0, %v1747
    %v1749 = vmul.f32 %v1748, %v1709
    %1751 = vrot.lane.b32.xlu0 %v1749, 32
    %v1752 = vpop.permute.xlu0 %1751
    %v1754 = vadd.f32 %v195, %v1752
    %v1755 = vtanh.pop %v1754
    %v1756 = vsub.f32 1.0, %v1748
    %1758 = vrot.lane.b32.xlu0 %v1755, 112
    %v1759 = vpop.permute.xlu0 %1758
    %v1761 = vmul.f32 %v1756, %v1759
    %1762 = vrot.lane.b32.xlu0 %v1649, 48
    %v1763 = vpop.permute.xlu0 %1762
    %v1765 = vmul.f32 %v1748, %v1763
    %v1766 = vadd.f32 %v1761, %v1765
    %1768 = vst [vmem:[#allocation1] ss:$4 sm:$0xff] %v1728
    %v1769 = vld.sshfl [vmem:[#allocation1] sm:$0xff pattern:$0x73625140]
    %1770 = vrot.lane.b32.xlu0 %v1769, 112
    %v1771 = vpop.permute.xlu0 %1770
    %1774 = vst [vmem:[#allocation1] ss:$4 sm:$0xff] %v1766
    %v1775 = vld.sshfl [vmem:[#allocation1] sm:$0xff pattern:$0x73625140]
    %1776 = vrot.lane.b32.xlu0 %v1775, 80
    %v1777 = vpop.permute.xlu0 %1776
    %v1779 = vsel %vm165, %v1771, %v1777
    %1780 = vst [vmem:[#allocation1] ss:$4 sm:$0xff] %v1728
    %v1781 = vld.sshfl [vmem:[#allocation1] sm:$0xff pattern:$0x73625140]
    %1782 = vrot.lane.b32.xlu0 %v1781, 112
    %v1783 = vpop.permute.xlu0 %1782
    %s1785 = scalar_lea.vmem [#allocation2], 22
    %1786 = vst.msk [vmem:[%s1785] sm:$0x3] %vm355, %v1783
    %1787 = vst [vmem:[#allocation1] ss:$4 sm:$0xff] %v1766
    %v1788 = vld.sshfl [vmem:[#allocation1] sm:$0xff pattern:$0x73625140]
    %1789 = vrot.lane.b32.xlu0 %v1788, 64
    %v1790 = vpop.permute.xlu0 %1789
    %s1792 = scalar_lea.vmem [#allocation3], 8
    %1793 = vst.msk [vmem:[%s1792] sm:$0x3] %vm355, %v1790
    %v1795 = vsel %vm239, %v1779, 0
    %1797 = vmatpush.msra.mxu0 0.0
    %1798 = vmatpush.msra.mxu0 0.0
    %1799 = vmatpush.msra.mxu0 0.0
    %1800 = vmatpush.msra.mxu0 0.0
    %1801 = vmatpush.msra.mxu0 0.0
    %1802 = vmatpush.msra.mxu0 0.0
    %1803 = vmatpush.msra.mxu0 0.0
    %1804 = vmatpush.msra.mxu0 0.0
    %1805 = vmatpush.msra.mxu0 0.0
    %1806 = vmatpush.msra.mxu0 0.0
    %1807 = vmatpush.msra.mxu0 0.0
    %1808 = vmatpush.msra.mxu0 0.0
    %1809 = vmatpush.msra.mxu0 %v234
    %1810 = vmatpush.msra.mxu0 %v233
    %1811 = vmatpush.msra.mxu0 %v232
    %1812 = vmatpush.msra.mxu0 %v231
    %1813 = vmatmul.f32.gmra.mxu0 %v1795
    %v1814 = vpop.f32.mrf.mxu0
    %v1815 = vadd.f32 %v237, %v1814
    %1816 = vdwg.mxu0
    %v1817 = vadd.f32 %v201, %v1815
    %v1818 = vxor.u32 %v1817, 2147483648
    %v1819 = vmul.f32 %v1818, 1.442695
    %v1820 = vpow.pop %v1819
    %v1821 = vadd.f32 %v1820, 1.0
    %v1822 = vrcp.pop %v1821
    %v1823 = vmul.f32 %v1821, %v1822
    %v1824 = vsub.f32 1.0, %v1823
    %v1825 = vmul.f32 %v1822, %v1824
    %v1826 = vadd.f32 %v1822, %v1825
    %vm1827 = vweird.f32 %v1821
    %vm1828 = vweird.f32 %v1822
    %vm1829 = vmor %vm1827, %vm1828
    %v1830 = vsel %vm1829, %v1822, %v1826
    %v1831 = vand.u32 2147483647, %v1821
    %vm1832 = vcmp.eq.f32.partialorder %v1831, 8.507059e+37
    %v1833 = vand.u32 %v1821, 2147483648
    %v1834 = vor.u32 1.1754944e-38, %v1833
    %v1835 = vsel %vm1832, %v1834, %v1830
    %v1836 = vmul.f32 1.0, %v1835
    %1838 = vrot.lane.b32.xlu0 %v1815, 96
    %v1839 = vpop.permute.xlu0 %1838
    %v1841 = vmul.f32 %v1836, %v1839
    %1843 = vrot.lane.b32.xlu0 %v1841, 32
    %v1844 = vpop.permute.xlu0 %1843
    %v1846 = vadd.f32 %v201, %v1844
    %v1847 = vtanh.pop %v1846
    %v1848 = vsub.f32 1.0, %v1836
    %1850 = vrot.lane.b32.xlu0 %v1847, 112
    %v1851 = vpop.permute.xlu0 %1850
    %v1853 = vmul.f32 %v1848, %v1851
    %1854 = vrot.lane.b32.xlu0 %v1779, 16
    %v1855 = vpop.permute.xlu0 %1854
    %v1857 = vmul.f32 %v1836, %v1855
    %v1858 = vadd.f32 %v1853, %v1857
    %v1859 = vadd.f32 %v209, %v1815
    %v1860 = vxor.u32 %v1859, 2147483648
    %v1861 = vmul.f32 %v1860, 1.442695
    %v1862 = vpow.pop %v1861
    %v1863 = vadd.f32 %v1862, 1.0
    %v1864 = vrcp.pop %v1863
    %v1865 = vmul.f32 %v1863, %v1864
    %v1866 = vsub.f32 1.0, %v1865
    %v1867 = vmul.f32 %v1864, %v1866
    %v1868 = vadd.f32 %v1864, %v1867
    %vm1869 = vweird.f32 %v1863
    %vm1870 = vweird.f32 %v1864
    %vm1871 = vmor %vm1869, %vm1870
    %v1872 = vsel %vm1871, %v1864, %v1868
    %v1873 = vand.u32 2147483647, %v1863
    %vm1874 = vcmp.eq.f32.partialorder %v1873, 8.507059e+37
    %v1875 = vand.u32 %v1863, 2147483648
    %v1876 = vor.u32 1.1754944e-38, %v1875
    %v1877 = vsel %vm1874, %v1876, %v1872
    %v1878 = vmul.f32 1.0, %v1877
    %v1879 = vmul.f32 %v1878, %v1839
    %1881 = vrot.lane.b32.xlu0 %v1879, 32
    %v1882 = vpop.permute.xlu0 %1881
    %v1884 = vadd.f32 %v209, %v1882
    %v1885 = vtanh.pop %v1884
    %v1886 = vsub.f32 1.0, %v1878
    %1888 = vrot.lane.b32.xlu0 %v1885, 112
    %v1889 = vpop.permute.xlu0 %1888
    %v1891 = vmul.f32 %v1886, %v1889
    %1892 = vrot.lane.b32.xlu0 %v1779, 48
    %v1893 = vpop.permute.xlu0 %1892
    %v1895 = vmul.f32 %v1878, %v1893
    %v1896 = vadd.f32 %v1891, %v1895
    %1898 = vst [vmem:[#allocation1] ss:$4 sm:$0xff] %v1858
    %v1899 = vld.sshfl [vmem:[#allocation1] sm:$0xff pattern:$0x73625140]
    %1900 = vrot.lane.b32.xlu0 %v1899, 112
    %v1901 = vpop.permute.xlu0 %1900
    %1904 = vst [vmem:[#allocation1] ss:$4 sm:$0xff] %v1896
    %v1905 = vld.sshfl [vmem:[#allocation1] sm:$0xff pattern:$0x73625140]
    %1906 = vrot.lane.b32.xlu0 %v1905, 80
    %v1907 = vpop.permute.xlu0 %1906
    %v1909 = vsel %vm165, %v1901, %v1907
    %1910 = vst [vmem:[#allocation1] ss:$4 sm:$0xff] %v1858
    %v1911 = vld.sshfl [vmem:[#allocation1] sm:$0xff pattern:$0x73625140]
    %1912 = vrot.lane.b32.xlu0 %v1911, 112
    %v1913 = vpop.permute.xlu0 %1912
    %s1915 = scalar_lea.vmem [#allocation2], 24
    %1916 = vst.msk [vmem:[%s1915] sm:$0x3] %vm355, %v1913
    %1917 = vst [vmem:[#allocation1] ss:$4 sm:$0xff] %v1896
    %v1918 = vld.sshfl [vmem:[#allocation1] sm:$0xff pattern:$0x73625140]
    %1919 = vrot.lane.b32.xlu0 %v1918, 64
    %v1920 = vpop.permute.xlu0 %1919
    %s1922 = scalar_lea.vmem [#allocation3], 6
    %1923 = vst.msk [vmem:[%s1922] sm:$0x3] %vm355, %v1920
    %v1925 = vsel %vm239, %v1909, 0
    %1927 = vmatpush.msra.mxu0 0.0
    %1928 = vmatpush.msra.mxu0 0.0
    %1929 = vmatpush.msra.mxu0 0.0
    %1930 = vmatpush.msra.mxu0 0.0
    %1931 = vmatpush.msra.mxu0 0.0
    %1932 = vmatpush.msra.mxu0 0.0
    %1933 = vmatpush.msra.mxu0 0.0
    %1934 = vmatpush.msra.mxu0 0.0
    %1935 = vmatpush.msra.mxu0 0.0
    %1936 = vmatpush.msra.mxu0 0.0
    %1937 = vmatpush.msra.mxu0 0.0
    %1938 = vmatpush.msra.mxu0 0.0
    %1939 = vmatpush.msra.mxu0 %v234
    %1940 = vmatpush.msra.mxu0 %v233
    %1941 = vmatpush.msra.mxu0 %v232
    %1942 = vmatpush.msra.mxu0 %v231
    %1943 = vmatmul.f32.gmra.mxu0 %v1925
    %v1944 = vpop.f32.mrf.mxu0
    %v1945 = vadd.f32 %v237, %v1944
    %1946 = vdwg.mxu0
    %v1947 = vadd.f32 %v216, %v1945
    %v1948 = vxor.u32 %v1947, 2147483648
    %v1949 = vmul.f32 %v1948, 1.442695
    %v1950 = vpow.pop %v1949
    %v1951 = vadd.f32 %v1950, 1.0
    %v1952 = vrcp.pop %v1951
    %v1953 = vmul.f32 %v1951, %v1952
    %v1954 = vsub.f32 1.0, %v1953
    %v1955 = vmul.f32 %v1952, %v1954
    %v1956 = vadd.f32 %v1952, %v1955
    %vm1957 = vweird.f32 %v1951
    %vm1958 = vweird.f32 %v1952
    %vm1959 = vmor %vm1957, %vm1958
    %v1960 = vsel %vm1959, %v1952, %v1956
    %v1961 = vand.u32 2147483647, %v1951
    %vm1962 = vcmp.eq.f32.partialorder %v1961, 8.507059e+37
    %v1963 = vand.u32 %v1951, 2147483648
    %v1964 = vor.u32 1.1754944e-38, %v1963
    %v1965 = vsel %vm1962, %v1964, %v1960
    %v1966 = vmul.f32 1.0, %v1965
    %1968 = vrot.lane.b32.xlu0 %v1945, 96
    %v1969 = vpop.permute.xlu0 %1968
    %v1971 = vmul.f32 %v1966, %v1969
    %1973 = vrot.lane.b32.xlu0 %v1971, 32
    %v1974 = vpop.permute.xlu0 %1973
    %v1976 = vadd.f32 %v216, %v1974
    %v1977 = vtanh.pop %v1976
    %v1978 = vsub.f32 1.0, %v1966
    %1980 = vrot.lane.b32.xlu0 %v1977, 112
    %v1981 = vpop.permute.xlu0 %1980
    %v1983 = vmul.f32 %v1978, %v1981
    %1984 = vrot.lane.b32.xlu0 %v1909, 16
    %v1985 = vpop.permute.xlu0 %1984
    %v1987 = vmul.f32 %v1966, %v1985
    %v1988 = vadd.f32 %v1983, %v1987
    %v1989 = vadd.f32 %v208, %v1945
    %v1990 = vxor.u32 %v1989, 2147483648
    %v1991 = vmul.f32 %v1990, 1.442695
    %v1992 = vpow.pop %v1991
    %v1993 = vadd.f32 %v1992, 1.0
    %v1994 = vrcp.pop %v1993
    %v1995 = vmul.f32 %v1993, %v1994
    %v1996 = vsub.f32 1.0, %v1995
    %v1997 = vmul.f32 %v1994, %v1996
    %v1998 = vadd.f32 %v1994, %v1997
    %vm1999 = vweird.f32 %v1993
    %vm2000 = vweird.f32 %v1994
    %vm2001 = vmor %vm1999, %vm2000
    %v2002 = vsel %vm2001, %v1994, %v1998
    %v2003 = vand.u32 2147483647, %v1993
    %vm2004 = vcmp.eq.f32.partialorder %v2003, 8.507059e+37
    %v2005 = vand.u32 %v1993, 2147483648
    %v2006 = vor.u32 1.1754944e-38, %v2005
    %v2007 = vsel %vm2004, %v2006, %v2002
    %v2008 = vmul.f32 1.0, %v2007
    %v2009 = vmul.f32 %v2008, %v1969
    %2011 = vrot.lane.b32.xlu0 %v2009, 32
    %v2012 = vpop.permute.xlu0 %2011
    %v2014 = vadd.f32 %v208, %v2012
    %v2015 = vtanh.pop %v2014
    %v2016 = vsub.f32 1.0, %v2008
    %2018 = vrot.lane.b32.xlu0 %v2015, 112
    %v2019 = vpop.permute.xlu0 %2018
    %v2021 = vmul.f32 %v2016, %v2019
    %2022 = vrot.lane.b32.xlu0 %v1909, 48
    %v2023 = vpop.permute.xlu0 %2022
    %v2025 = vmul.f32 %v2008, %v2023
    %v2026 = vadd.f32 %v2021, %v2025
    %2028 = vst [vmem:[#allocation1] ss:$4 sm:$0xff] %v1988
    %v2029 = vld.sshfl [vmem:[#allocation1] sm:$0xff pattern:$0x73625140]
    %2030 = vrot.lane.b32.xlu0 %v2029, 112
    %v2031 = vpop.permute.xlu0 %2030
    %2034 = vst [vmem:[#allocation1] ss:$4 sm:$0xff] %v2026
    %v2035 = vld.sshfl [vmem:[#allocation1] sm:$0xff pattern:$0x73625140]
    %2036 = vrot.lane.b32.xlu0 %v2035, 80
    %v2037 = vpop.permute.xlu0 %2036
    %v2039 = vsel %vm165, %v2031, %v2037
    %2040 = vst [vmem:[#allocation1] ss:$4 sm:$0xff] %v1988
    %v2041 = vld.sshfl [vmem:[#allocation1] sm:$0xff pattern:$0x73625140]
    %2042 = vrot.lane.b32.xlu0 %v2041, 112
    %v2043 = vpop.permute.xlu0 %2042
    %s2045 = scalar_lea.vmem [#allocation2], 26
    %2046 = vst.msk [vmem:[%s2045] sm:$0x3] %vm355, %v2043
    %2047 = vst [vmem:[#allocation1] ss:$4 sm:$0xff] %v2026
    %v2048 = vld.sshfl [vmem:[#allocation1] sm:$0xff pattern:$0x73625140]
    %2049 = vrot.lane.b32.xlu0 %v2048, 64
    %v2050 = vpop.permute.xlu0 %2049
    %s2052 = scalar_lea.vmem [#allocation3], 4
    %2053 = vst.msk [vmem:[%s2052] sm:$0x3] %vm355, %v2050
    %v2055 = vsel %vm239, %v2039, 0
    %2057 = vmatpush.msra.mxu0 0.0
    %2058 = vmatpush.msra.mxu0 0.0
    %2059 = vmatpush.msra.mxu0 0.0
    %2060 = vmatpush.msra.mxu0 0.0
    %2061 = vmatpush.msra.mxu0 0.0
    %2062 = vmatpush.msra.mxu0 0.0
    %2063 = vmatpush.msra.mxu0 0.0
    %2064 = vmatpush.msra.mxu0 0.0
    %2065 = vmatpush.msra.mxu0 0.0
    %2066 = vmatpush.msra.mxu0 0.0
    %2067 = vmatpush.msra.mxu0 0.0
    %2068 = vmatpush.msra.mxu0 0.0
    %2069 = vmatpush.msra.mxu0 %v234
    %2070 = vmatpush.msra.mxu0 %v233
    %2071 = vmatpush.msra.mxu0 %v232
    %2072 = vmatpush.msra.mxu0 %v231
    %2073 = vmatmul.f32.gmra.mxu0 %v2055
    %v2074 = vpop.f32.mrf.mxu0
    %v2075 = vadd.f32 %v237, %v2074
    %2076 = vdwg.mxu0
    %v2077 = vadd.f32 %v217, %v2075
    %v2078 = vxor.u32 %v2077, 2147483648
    %v2079 = vmul.f32 %v2078, 1.442695
    %v2080 = vpow.pop %v2079
    %v2081 = vadd.f32 %v2080, 1.0
    %v2082 = vrcp.pop %v2081
    %v2083 = vmul.f32 %v2081, %v2082
    %v2084 = vsub.f32 1.0, %v2083
    %v2085 = vmul.f32 %v2082, %v2084
    %v2086 = vadd.f32 %v2082, %v2085
    %vm2087 = vweird.f32 %v2081
    %vm2088 = vweird.f32 %v2082
    %vm2089 = vmor %vm2087, %vm2088
    %v2090 = vsel %vm2089, %v2082, %v2086
    %v2091 = vand.u32 2147483647, %v2081
    %vm2092 = vcmp.eq.f32.partialorder %v2091, 8.507059e+37
    %v2093 = vand.u32 %v2081, 2147483648
    %v2094 = vor.u32 1.1754944e-38, %v2093
    %v2095 = vsel %vm2092, %v2094, %v2090
    %v2096 = vmul.f32 1.0, %v2095
    %2098 = vrot.lane.b32.xlu0 %v2075, 96
    %v2099 = vpop.permute.xlu0 %2098
    %v2101 = vmul.f32 %v2096, %v2099
    %2103 = vrot.lane.b32.xlu0 %v2101, 32
    %v2104 = vpop.permute.xlu0 %2103
    %v2106 = vadd.f32 %v217, %v2104
    %v2107 = vtanh.pop %v2106
    %v2108 = vsub.f32 1.0, %v2096
    %2110 = vrot.lane.b32.xlu0 %v2107, 112
    %v2111 = vpop.permute.xlu0 %2110
    %v2113 = vmul.f32 %v2108, %v2111
    %2114 = vrot.lane.b32.xlu0 %v2039, 16
    %v2115 = vpop.permute.xlu0 %2114
    %v2117 = vmul.f32 %v2096, %v2115
    %v2118 = vadd.f32 %v2113, %v2117
    %v2119 = vadd.f32 %v207, %v2075
    %v2120 = vxor.u32 %v2119, 2147483648
    %v2121 = vmul.f32 %v2120, 1.442695
    %v2122 = vpow.pop %v2121
    %v2123 = vadd.f32 %v2122, 1.0
    %v2124 = vrcp.pop %v2123
    %v2125 = vmul.f32 %v2123, %v2124
    %v2126 = vsub.f32 1.0, %v2125
    %v2127 = vmul.f32 %v2124, %v2126
    %v2128 = vadd.f32 %v2124, %v2127
    %vm2129 = vweird.f32 %v2123
    %vm2130 = vweird.f32 %v2124
    %vm2131 = vmor %vm2129, %vm2130
    %v2132 = vsel %vm2131, %v2124, %v2128
    %v2133 = vand.u32 2147483647, %v2123
    %vm2134 = vcmp.eq.f32.partialorder %v2133, 8.507059e+37
    %v2135 = vand.u32 %v2123, 2147483648
    %v2136 = vor.u32 1.1754944e-38, %v2135
    %v2137 = vsel %vm2134, %v2136, %v2132
    %v2138 = vmul.f32 1.0, %v2137
    %v2139 = vmul.f32 %v2138, %v2099
    %2141 = vrot.lane.b32.xlu0 %v2139, 32
    %v2142 = vpop.permute.xlu0 %2141
    %v2144 = vadd.f32 %v207, %v2142
    %v2145 = vtanh.pop %v2144
    %v2146 = vsub.f32 1.0, %v2138
    %2148 = vrot.lane.b32.xlu0 %v2145, 112
    %v2149 = vpop.permute.xlu0 %2148
    %v2151 = vmul.f32 %v2146, %v2149
    %2152 = vrot.lane.b32.xlu0 %v2039, 48
    %v2153 = vpop.permute.xlu0 %2152
    %v2155 = vmul.f32 %v2138, %v2153
    %v2156 = vadd.f32 %v2151, %v2155
    %2158 = vst [vmem:[#allocation1] ss:$4 sm:$0xff] %v2118
    %v2159 = vld.sshfl [vmem:[#allocation1] sm:$0xff pattern:$0x73625140]
    %2160 = vrot.lane.b32.xlu0 %v2159, 112
    %v2161 = vpop.permute.xlu0 %2160
    %2164 = vst [vmem:[#allocation1] ss:$4 sm:$0xff] %v2156
    %v2165 = vld.sshfl [vmem:[#allocation1] sm:$0xff pattern:$0x73625140]
    %2166 = vrot.lane.b32.xlu0 %v2165, 80
    %v2167 = vpop.permute.xlu0 %2166
    %v2169 = vsel %vm165, %v2161, %v2167
    %2170 = vst [vmem:[#allocation1] ss:$4 sm:$0xff] %v2118
    %v2171 = vld.sshfl [vmem:[#allocation1] sm:$0xff pattern:$0x73625140]
    %2172 = vrot.lane.b32.xlu0 %v2171, 112
    %v2173 = vpop.permute.xlu0 %2172
    %s2175 = scalar_lea.vmem [#allocation2], 28
    %2176 = vst.msk [vmem:[%s2175] sm:$0x3] %vm355, %v2173
    %2177 = vst [vmem:[#allocation1] ss:$4 sm:$0xff] %v2156
    %v2178 = vld.sshfl [vmem:[#allocation1] sm:$0xff pattern:$0x73625140]
    %2179 = vrot.lane.b32.xlu0 %v2178, 64
    %v2180 = vpop.permute.xlu0 %2179
    %s2182 = scalar_lea.vmem [#allocation3], 2
    %2183 = vst.msk [vmem:[%s2182] sm:$0x3] %vm355, %v2180
    %v2185 = vsel %vm239, %v2169, 0
    %2187 = vmatpush.msra.mxu0 0.0
    %2188 = vmatpush.msra.mxu0 0.0
    %2189 = vmatpush.msra.mxu0 0.0
    %2190 = vmatpush.msra.mxu0 0.0
    %2191 = vmatpush.msra.mxu0 0.0
    %2192 = vmatpush.msra.mxu0 0.0
    %2193 = vmatpush.msra.mxu0 0.0
    %2194 = vmatpush.msra.mxu0 0.0
    %2195 = vmatpush.msra.mxu0 0.0
    %2196 = vmatpush.msra.mxu0 0.0
    %2197 = vmatpush.msra.mxu0 0.0
    %2198 = vmatpush.msra.mxu0 0.0
    %2199 = vmatpush.msra.mxu0 %v234
    %2200 = vmatpush.msra.mxu0 %v233
    %2201 = vmatpush.msra.mxu0 %v232
    %2202 = vmatpush.msra.mxu0 %v231
    %2203 = vmatmul.f32.gmra.mxu0 %v2185
    %v2204 = vpop.f32.mrf.mxu0
    %v2205 = vadd.f32 %v237, %v2204
    %2206 = vdwg.mxu0
    %v2207 = vadd.f32 %v218, %v2205
    %v2208 = vxor.u32 %v2207, 2147483648
    %v2209 = vmul.f32 %v2208, 1.442695
    %v2210 = vpow.pop %v2209
    %v2211 = vadd.f32 %v2210, 1.0
    %v2212 = vrcp.pop %v2211
    %v2213 = vmul.f32 %v2211, %v2212
    %v2214 = vsub.f32 1.0, %v2213
    %v2215 = vmul.f32 %v2212, %v2214
    %v2216 = vadd.f32 %v2212, %v2215
    %vm2217 = vweird.f32 %v2211
    %vm2218 = vweird.f32 %v2212
    %vm2219 = vmor %vm2217, %vm2218
    %v2220 = vsel %vm2219, %v2212, %v2216
    %v2221 = vand.u32 2147483647, %v2211
    %vm2222 = vcmp.eq.f32.partialorder %v2221, 8.507059e+37
    %v2223 = vand.u32 %v2211, 2147483648
    %v2224 = vor.u32 1.1754944e-38, %v2223
    %v2225 = vsel %vm2222, %v2224, %v2220
    %v2226 = vmul.f32 1.0, %v2225
    %2228 = vrot.lane.b32.xlu0 %v2205, 96
    %v2229 = vpop.permute.xlu0 %2228
    %v2231 = vmul.f32 %v2226, %v2229
    %2233 = vrot.lane.b32.xlu0 %v2231, 32
    %v2234 = vpop.permute.xlu0 %2233
    %v2236 = vadd.f32 %v218, %v2234
    %v2237 = vtanh.pop %v2236
    %v2238 = vsub.f32 1.0, %v2226
    %2240 = vrot.lane.b32.xlu0 %v2237, 112
    %v2241 = vpop.permute.xlu0 %2240
    %v2243 = vmul.f32 %v2238, %v2241
    %2244 = vrot.lane.b32.xlu0 %v2169, 16
    %v2245 = vpop.permute.xlu0 %2244
    %v2247 = vmul.f32 %v2226, %v2245
    %v2248 = vadd.f32 %v2243, %v2247
    %v2249 = vadd.f32 %v192, %v2205
    %v2250 = vxor.u32 %v2249, 2147483648
    %v2251 = vmul.f32 %v2250, 1.442695
    %v2252 = vpow.pop %v2251
    %v2253 = vadd.f32 %v2252, 1.0
    %v2254 = vrcp.pop %v2253
    %v2255 = vmul.f32 %v2253, %v2254
    %v2256 = vsub.f32 1.0, %v2255
    %v2257 = vmul.f32 %v2254, %v2256
    %v2258 = vadd.f32 %v2254, %v2257
    %vm2259 = vweird.f32 %v2253
    %vm2260 = vweird.f32 %v2254
    %vm2261 = vmor %vm2259, %vm2260
    %v2262 = vsel %vm2261, %v2254, %v2258
    %v2263 = vand.u32 2147483647, %v2253
    %vm2264 = vcmp.eq.f32.partialorder %v2263, 8.507059e+37
    %v2265 = vand.u32 %v2253, 2147483648
    %v2266 = vor.u32 1.1754944e-38, %v2265
    %v2267 = vsel %vm2264, %v2266, %v2262
    %v2268 = vmul.f32 1.0, %v2267
    %v2269 = vmul.f32 %v2268, %v2229
    %2271 = vrot.lane.b32.xlu0 %v2269, 32
    %v2272 = vpop.permute.xlu0 %2271
    %v2274 = vadd.f32 %v192, %v2272
    %v2275 = vtanh.pop %v2274
    %v2276 = vsub.f32 1.0, %v2268
    %2278 = vrot.lane.b32.xlu0 %v2275, 112
    %v2279 = vpop.permute.xlu0 %2278
    %v2281 = vmul.f32 %v2276, %v2279
    %2282 = vrot.lane.b32.xlu0 %v2169, 48
    %v2283 = vpop.permute.xlu0 %2282
    %v2285 = vmul.f32 %v2268, %v2283
    %v2286 = vadd.f32 %v2281, %v2285
    %2288 = vst [vmem:[#allocation1] ss:$4 sm:$0xff] %v2248
    %v2289 = vld.sshfl [vmem:[#allocation1] sm:$0xff pattern:$0x73625140]
    %2290 = vrot.lane.b32.xlu0 %v2289, 112
    %v2291 = vpop.permute.xlu0 %2290
    %s2293 = scalar_lea.vmem [#allocation2], 30
    %2294 = vst.msk [vmem:[%s2293] sm:$0x3] %vm355, %v2291
    %2296 = vst [vmem:[#allocation1] ss:$4 sm:$0xff] %v2286
    %v2297 = vld.sshfl [vmem:[#allocation1] sm:$0xff pattern:$0x73625140]
    %2298 = vrot.lane.b32.xlu0 %v2297, 64
    %v2299 = vpop.permute.xlu0 %2298
    %2301 = vst.msk [vmem:[#allocation3] sm:$0x3] %vm355, %v2299
    %v2302 = vld [vmem:[#allocation2] sm:$0x3]
    %v2303 = vld [vmem:[#allocation2 + $0x2] sm:$0x3]
    %v2304 = vld [vmem:[#allocation2 + $0x4] sm:$0x3]
    %v2305 = vld [vmem:[#allocation2 + $0x6] sm:$0x3]
    %v2306 = vld [vmem:[#allocation2 + $0x8] sm:$0x3]
    %v2307 = vld [vmem:[#allocation2 + $0xa] sm:$0x3]
    %v2308 = vld [vmem:[#allocation2 + $0xc] sm:$0x3]
    %v2309 = vld [vmem:[#allocation2 + $0xe] sm:$0x3]
    %v2310 = vld [vmem:[#allocation2 + $0x10] sm:$0x3]
    %v2311 = vld [vmem:[#allocation2 + $0x12] sm:$0x3]
    %v2312 = vld [vmem:[#allocation2 + $0x14] sm:$0x3]
    %v2313 = vld [vmem:[#allocation2 + $0x16] sm:$0x3]
    %v2314 = vld [vmem:[#allocation2 + $0x18] sm:$0x3]
    %v2315 = vld [vmem:[#allocation2 + $0x1a] sm:$0x3]
    %v2316 = vld [vmem:[#allocation2 + $0x1c] sm:$0x3]
    %v2317 = vld [vmem:[#allocation2 + $0x1e] sm:$0x3]
    %v2318 = vld [vmem:[#allocation3] sm:$0x3]
    %v2319 = vld [vmem:[#allocation3 + $0x2] sm:$0x3]
    %v2320 = vld [vmem:[#allocation3 + $0x4] sm:$0x3]
    %v2321 = vld [vmem:[#allocation3 + $0x6] sm:$0x3]
    %v2322 = vld [vmem:[#allocation3 + $0x8] sm:$0x3]
    %v2323 = vld [vmem:[#allocation3 + $0xa] sm:$0x3]
    %v2324 = vld [vmem:[#allocation3 + $0xc] sm:$0x3]
    %v2325 = vld [vmem:[#allocation3 + $0xe] sm:$0x3]
    %v2326 = vld [vmem:[#allocation3 + $0x10] sm:$0x3]
    %v2327 = vld [vmem:[#allocation3 + $0x12] sm:$0x3]
    %v2328 = vld [vmem:[#allocation3 + $0x14] sm:$0x3]
    %v2329 = vld [vmem:[#allocation3 + $0x16] sm:$0x3]
    %v2330 = vld [vmem:[#allocation3 + $0x18] sm:$0x3]
    %v2331 = vld [vmem:[#allocation3 + $0x1a] sm:$0x3]
    %v2332 = vld [vmem:[#allocation3 + $0x1c] sm:$0x3]
    %v2333 = vld [vmem:[#allocation3 + $0x1e] sm:$0x3]
    %2350 = vrot.lane.b32.xlu0 %v2318, 16
    %v2351 = vpop.permute.xlu0 %2350
    %2352 = vrot.lane.b32.xlu0 %v2319, 16
    %v2353 = vpop.permute.xlu0 %2352
    %2354 = vrot.lane.b32.xlu0 %v2320, 16
    %v2355 = vpop.permute.xlu0 %2354
    %2356 = vrot.lane.b32.xlu0 %v2321, 16
    %v2357 = vpop.permute.xlu0 %2356
    %2358 = vrot.lane.b32.xlu0 %v2322, 16
    %v2359 = vpop.permute.xlu0 %2358
    %2360 = vrot.lane.b32.xlu0 %v2323, 16
    %v2361 = vpop.permute.xlu0 %2360
    %2362 = vrot.lane.b32.xlu0 %v2324, 16
    %v2363 = vpop.permute.xlu0 %2362
    %2364 = vrot.lane.b32.xlu0 %v2325, 16
    %v2365 = vpop.permute.xlu0 %2364
    %2366 = vrot.lane.b32.xlu0 %v2326, 16
    %v2367 = vpop.permute.xlu0 %2366
    %2368 = vrot.lane.b32.xlu0 %v2327, 16
    %v2369 = vpop.permute.xlu0 %2368
    %2370 = vrot.lane.b32.xlu0 %v2328, 16
    %v2371 = vpop.permute.xlu0 %2370
    %2372 = vrot.lane.b32.xlu0 %v2329, 16
    %v2373 = vpop.permute.xlu0 %2372
    %2374 = vrot.lane.b32.xlu0 %v2330, 16
    %v2375 = vpop.permute.xlu0 %2374
    %2376 = vrot.lane.b32.xlu0 %v2331, 16
    %v2377 = vpop.permute.xlu0 %2376
    %2378 = vrot.lane.b32.xlu0 %v2332, 16
    %v2379 = vpop.permute.xlu0 %2378
    %2380 = vrot.lane.b32.xlu0 %v2333, 16
    %v2381 = vpop.permute.xlu0 %2380
    %v2398 = vsel %vm165, %v2302, %v2351
    %v2399 = vsel %vm165, %v2303, %v2353
    %v2400 = vsel %vm165, %v2304, %v2355
    %v2401 = vsel %vm165, %v2305, %v2357
    %v2402 = vsel %vm165, %v2306, %v2359
    %v2403 = vsel %vm165, %v2307, %v2361
    %v2404 = vsel %vm165, %v2308, %v2363
    %v2405 = vsel %vm165, %v2309, %v2365
    %v2406 = vsel %vm165, %v2310, %v2367
    %v2407 = vsel %vm165, %v2311, %v2369
    %v2408 = vsel %vm165, %v2312, %v2371
    %v2409 = vsel %vm165, %v2313, %v2373
    %v2410 = vsel %vm165, %v2314, %v2375
    %v2411 = vsel %vm165, %v2315, %v2377
    %v2412 = vsel %vm165, %v2316, %v2379
    %v2413 = vsel %vm165, %v2317, %v2381
    %v2414 = vld [vmem:[%s6] sm:$0xff]
    %v2415 = vld [vmem:[%s6 + $0x8] sm:$0xff]
    %v2416 = vld [vmem:[%s6 + $0x10] sm:$0xff]
    %v2417 = vld [vmem:[%s6 + $0x18] sm:$0xff]
    %v2418 = vld [vmem:[%s8] sm:$0x1]
    %v2420 = vperm.slane %v2418, 0
    %2438 = vst [vmem:[#allocation1] ss:$4 sm:$0xff] %v2398
    %s2439 = scalar_lea.vmem [#allocation1], 1
    %2440 = vst [vmem:[%s2439] ss:$4 sm:$0xff] %v2399
    %s2441 = scalar_lea.vmem [#allocation1], 2
    %2442 = vst [vmem:[%s2441] ss:$4 sm:$0xff] %v2400
    %s2443 = scalar_lea.vmem [#allocation1], 3
    %2444 = vst [vmem:[%s2443] ss:$4 sm:$0xff] %v2401
    %s2445 = scalar_lea.vmem [#allocation1], 32
    %2446 = vst [vmem:[%s2445] ss:$4 sm:$0xff] %v2402
    %s2447 = scalar_lea.vmem [#allocation1], 33
    %2448 = vst [vmem:[%s2447] ss:$4 sm:$0xff] %v2403
    %s2449 = scalar_lea.vmem [#allocation1], 34
    %2450 = vst [vmem:[%s2449] ss:$4 sm:$0xff] %v2404
    %s2451 = scalar_lea.vmem [#allocation1], 35
    %2452 = vst [vmem:[%s2451] ss:$4 sm:$0xff] %v2405
    %v2453 = vld.sshfl [vmem:[#allocation1] sm:$0xff pattern:$0x73625140]
    %v2454 = vld.sshfl [vmem:[#allocation1 + $0x20] sm:$0xff pattern:$0x73625140]
    %2455 = vst [vmem:[#allocation1] ss:$4 sm:$0xff] %v2406
    %2456 = vst [vmem:[%s2439] ss:$4 sm:$0xff] %v2407
    %2457 = vst [vmem:[%s2441] ss:$4 sm:$0xff] %v2408
    %2458 = vst [vmem:[%s2443] ss:$4 sm:$0xff] %v2409
    %2459 = vst [vmem:[%s2445] ss:$4 sm:$0xff] %v2410
    %2460 = vst [vmem:[%s2447] ss:$4 sm:$0xff] %v2411
    %2461 = vst [vmem:[%s2449] ss:$4 sm:$0xff] %v2412
    %2462 = vst [vmem:[%s2451] ss:$4 sm:$0xff] %v2413
    %v2463 = vld.sshfl [vmem:[#allocation1] sm:$0xff pattern:$0x73625140]
    %v2464 = vld.sshfl [vmem:[#allocation1 + $0x20] sm:$0xff pattern:$0x73625140]
    %v2465 = vsel %vm239, %v2453, 0
    %v2467 = vsel %vm239, %v2454, 0
    %v2469 = vsel %vm239, %v2463, 0
    %v2471 = vsel %vm239, %v2464, 0
    %2473 = vmatpush.msra.mxu0 0.0
    %2474 = vmatpush.msra.mxu0 0.0
    %2475 = vmatpush.msra.mxu0 0.0
    %2476 = vmatpush.msra.mxu0 0.0
    %2477 = vmatpush.msra.mxu0 0.0
    %2478 = vmatpush.msra.mxu0 0.0
    %2479 = vmatpush.msra.mxu0 0.0
    %2480 = vmatpush.msra.mxu0 0.0
    %2481 = vmatpush.msra.mxu0 0.0
    %2482 = vmatpush.msra.mxu0 0.0
    %2483 = vmatpush.msra.mxu0 0.0
    %2484 = vmatpush.msra.mxu0 0.0
    %2485 = vmatpush.msra.mxu0 %v2417
    %2486 = vmatpush.msra.mxu0 %v2416
    %2487 = vmatpush.msra.mxu0 %v2415
    %2488 = vmatpush.msra.mxu0 %v2414
    %2489 = vmatmul.f32.gmra.mxu0 %v2465
    %v2490 = vpop.f32.mrf.mxu0
    %v2491 = vadd.f32 %v2420, %v2490
    %2492 = vmatmul.f32.gmra.mxu0 %v2467
    %v2493 = vpop.f32.mrf.mxu0
    %v2494 = vadd.f32 %v2420, %v2493
    %2495 = vmatmul.f32.gmra.mxu0 %v2469
    %v2496 = vpop.f32.mrf.mxu0
    %v2497 = vadd.f32 %v2420, %v2496
    %2498 = vmatmul.f32.gmra.mxu0 %v2471
    %v2499 = vpop.f32.mrf.mxu0
    %v2500 = vadd.f32 %v2420, %v2499
    %2501 = vdwg.mxu0
    %v2506 = vrot.slane %v2491, 2
    %v2507 = vrot.slane %v2491, 4
    %v2508 = vrot.slane %v2491, 6
    %v2509 = vrot.slane %v2494, 2
    %v2510 = vrot.slane %v2494, 4
    %v2511 = vrot.slane %v2494, 6
    %v2512 = vrot.slane %v2497, 2
    %v2513 = vrot.slane %v2497, 4
    %v2514 = vrot.slane %v2497, 6
    %v2515 = vrot.slane %v2500, 2
    %v2516 = vrot.slane %v2500, 4
    %v2517 = vrot.slane %v2500, 6
    %v2530 = vld [vmem:[%s7] sm:$0xff]
    %v2531 = vld [vmem:[%s7 + $0x8] sm:$0xff]
    %v2532 = vld [vmem:[%s7 + $0x10] sm:$0xff]
    %v2533 = vld [vmem:[%s7 + $0x18] sm:$0xff]
    %v2534 = vld [vmem:[%s9] sm:$0x1]
    %v2536 = vperm.slane %v2534, 0
    %2538 = vmatpush.msra.mxu0 0.0
    %2539 = vmatpush.msra.mxu0 0.0
    %2540 = vmatpush.msra.mxu0 0.0
    %2541 = vmatpush.msra.mxu0 0.0
    %2542 = vmatpush.msra.mxu0 0.0
    %2543 = vmatpush.msra.mxu0 0.0
    %2544 = vmatpush.msra.mxu0 0.0
    %2545 = vmatpush.msra.mxu0 0.0
    %2546 = vmatpush.msra.mxu0 0.0
    %2547 = vmatpush.msra.mxu0 0.0
    %2548 = vmatpush.msra.mxu0 0.0
    %2549 = vmatpush.msra.mxu0 0.0
    %2550 = vmatpush.msra.mxu0 %v2533
    %2551 = vmatpush.msra.mxu0 %v2532
    %2552 = vmatpush.msra.mxu0 %v2531
    %2553 = vmatpush.msra.mxu0 %v2530
    %2554 = vmatmul.f32.gmra.mxu0 %v241
    %v2555 = vpop.f32.mrf.mxu0
    %v2556 = vadd.f32 %v2536, %v2555
    %2557 = vdwg.mxu0
    %v2558 = vadd.f32 %v2491, %v2556
    %v2559 = vxor.u32 %v2558, 2147483648
    %v2560 = vmul.f32 %v2559, 1.442695
    %v2561 = vpow.pop %v2560
    %v2562 = vadd.f32 %v2561, 1.0
    %v2563 = vrcp.pop %v2562
    %v2564 = vmul.f32 %v2562, %v2563
    %v2565 = vsub.f32 1.0, %v2564
    %v2566 = vmul.f32 %v2563, %v2565
    %v2567 = vadd.f32 %v2563, %v2566
    %vm2568 = vweird.f32 %v2562
    %vm2569 = vweird.f32 %v2563
    %vm2570 = vmor %vm2568, %vm2569
    %v2571 = vsel %vm2570, %v2563, %v2567
    %v2572 = vand.u32 2147483647, %v2562
    %vm2573 = vcmp.eq.f32.partialorder %v2572, 8.507059e+37
    %v2574 = vand.u32 %v2562, 2147483648
    %v2575 = vor.u32 1.1754944e-38, %v2574
    %v2576 = vsel %vm2573, %v2575, %v2571
    %v2577 = vmul.f32 1.0, %v2576
    %2579 = vrot.lane.b32.xlu0 %v2556, 96
    %v2580 = vpop.permute.xlu0 %2579
    %v2582 = vmul.f32 %v2577, %v2580
    %2584 = vrot.lane.b32.xlu0 %v2582, 32
    %v2585 = vpop.permute.xlu0 %2584
    %v2587 = vadd.f32 %v2491, %v2585
    %v2588 = vtanh.pop %v2587
    %v2589 = vsub.f32 1.0, %v2577
    %2591 = vrot.lane.b32.xlu0 %v2588, 112
    %v2592 = vpop.permute.xlu0 %2591
    %v2594 = vmul.f32 %v2589, %v2592
    %v2595 = vmul.f32 %v2577, 0.0
    %v2596 = vadd.f32 %v2594, %v2595
    %v2597 = vadd.f32 %v2517, %v2556
    %v2598 = vxor.u32 %v2597, 2147483648
    %v2599 = vmul.f32 %v2598, 1.442695
    %v2600 = vpow.pop %v2599
    %v2601 = vadd.f32 %v2600, 1.0
    %v2602 = vrcp.pop %v2601
    %v2603 = vmul.f32 %v2601, %v2602
    %v2604 = vsub.f32 1.0, %v2603
    %v2605 = vmul.f32 %v2602, %v2604
    %v2606 = vadd.f32 %v2602, %v2605
    %vm2607 = vweird.f32 %v2601
    %vm2608 = vweird.f32 %v2602
    %vm2609 = vmor %vm2607, %vm2608
    %v2610 = vsel %vm2609, %v2602, %v2606
    %v2611 = vand.u32 2147483647, %v2601
    %vm2612 = vcmp.eq.f32.partialorder %v2611, 8.507059e+37
    %v2613 = vand.u32 %v2601, 2147483648
    %v2614 = vor.u32 1.1754944e-38, %v2613
    %v2615 = vsel %vm2612, %v2614, %v2610
    %v2616 = vmul.f32 1.0, %v2615
    %v2617 = vmul.f32 %v2616, %v2580
    %2619 = vrot.lane.b32.xlu0 %v2617, 32
    %v2620 = vpop.permute.xlu0 %2619
    %v2622 = vadd.f32 %v2517, %v2620
    %v2623 = vtanh.pop %v2622
    %v2624 = vsub.f32 1.0, %v2616
    %2626 = vrot.lane.b32.xlu0 %v2623, 112
    %v2627 = vpop.permute.xlu0 %2626
    %v2629 = vmul.f32 %v2624, %v2627
    %v2630 = vmul.f32 %v2616, 0.0
    %v2631 = vadd.f32 %v2629, %v2630
    %2633 = vst [vmem:[#allocation1] ss:$4 sm:$0xff] %v2596
    %v2634 = vld.sshfl [vmem:[#allocation1] sm:$0xff pattern:$0x73625140]
    %2635 = vrot.lane.b32.xlu0 %v2634, 112
    %v2636 = vpop.permute.xlu0 %2635
    %2639 = vst [vmem:[#allocation1] ss:$4 sm:$0xff] %v2631
    %v2640 = vld.sshfl [vmem:[#allocation1] sm:$0xff pattern:$0x73625140]
    %2641 = vrot.lane.b32.xlu0 %v2640, 80
    %v2642 = vpop.permute.xlu0 %2641
    %v2644 = vsel %vm165, %v2636, %v2642
    %2645 = vst [vmem:[#allocation1] ss:$4 sm:$0xff] %v2596
    %v2646 = vld.sshfl [vmem:[#allocation1] sm:$0xff pattern:$0x73625140]
    %2647 = vrot.lane.b32.xlu0 %v2646, 112
    %v2648 = vpop.permute.xlu0 %2647
    %2650 = vst.msk [vmem:[#allocation2] sm:$0x3] %vm355, %v2648
    %2651 = vst [vmem:[#allocation1] ss:$4 sm:$0xff] %v2631
    %v2652 = vld.sshfl [vmem:[#allocation1] sm:$0xff pattern:$0x73625140]
    %2653 = vrot.lane.b32.xlu0 %v2652, 64
    %v2654 = vpop.permute.xlu0 %2653
    %2656 = vst.msk [vmem:[%s362] sm:$0x3] %vm355, %v2654
    %v2658 = vsel %vm239, %v2644, 0
    %2660 = vmatpush.msra.mxu0 0.0
    %2661 = vmatpush.msra.mxu0 0.0
    %2662 = vmatpush.msra.mxu0 0.0
    %2663 = vmatpush.msra.mxu0 0.0
    %2664 = vmatpush.msra.mxu0 0.0
    %2665 = vmatpush.msra.mxu0 0.0
    %2666 = vmatpush.msra.mxu0 0.0
    %2667 = vmatpush.msra.mxu0 0.0
    %2668 = vmatpush.msra.mxu0 0.0
    %2669 = vmatpush.msra.mxu0 0.0
    %2670 = vmatpush.msra.mxu0 0.0
    %2671 = vmatpush.msra.mxu0 0.0
    %2672 = vmatpush.msra.mxu0 %v2533
    %2673 = vmatpush.msra.mxu0 %v2532
    %2674 = vmatpush.msra.mxu0 %v2531
    %2675 = vmatpush.msra.mxu0 %v2530
    %2676 = vmatmul.f32.gmra.mxu0 %v2658
    %v2677 = vpop.f32.mrf.mxu0
    %v2678 = vadd.f32 %v2536, %v2677
    %2679 = vdwg.mxu0
    %v2680 = vadd.f32 %v2506, %v2678
    %v2681 = vxor.u32 %v2680, 2147483648
    %v2682 = vmul.f32 %v2681, 1.442695
    %v2683 = vpow.pop %v2682
    %v2684 = vadd.f32 %v2683, 1.0
    %v2685 = vrcp.pop %v2684
    %v2686 = vmul.f32 %v2684, %v2685
    %v2687 = vsub.f32 1.0, %v2686
    %v2688 = vmul.f32 %v2685, %v2687
    %v2689 = vadd.f32 %v2685, %v2688
    %vm2690 = vweird.f32 %v2684
    %vm2691 = vweird.f32 %v2685
    %vm2692 = vmor %vm2690, %vm2691
    %v2693 = vsel %vm2692, %v2685, %v2689
    %v2694 = vand.u32 2147483647, %v2684
    %vm2695 = vcmp.eq.f32.partialorder %v2694, 8.507059e+37
    %v2696 = vand.u32 %v2684, 2147483648
    %v2697 = vor.u32 1.1754944e-38, %v2696
    %v2698 = vsel %vm2695, %v2697, %v2693
    %v2699 = vmul.f32 1.0, %v2698
    %2701 = vrot.lane.b32.xlu0 %v2678, 96
    %v2702 = vpop.permute.xlu0 %2701
    %v2704 = vmul.f32 %v2699, %v2702
    %2706 = vrot.lane.b32.xlu0 %v2704, 32
    %v2707 = vpop.permute.xlu0 %2706
    %v2709 = vadd.f32 %v2506, %v2707
    %v2710 = vtanh.pop %v2709
    %v2711 = vsub.f32 1.0, %v2699
    %2713 = vrot.lane.b32.xlu0 %v2710, 112
    %v2714 = vpop.permute.xlu0 %2713
    %v2716 = vmul.f32 %v2711, %v2714
    %2717 = vrot.lane.b32.xlu0 %v2644, 16
    %v2718 = vpop.permute.xlu0 %2717
    %v2720 = vmul.f32 %v2699, %v2718
    %v2721 = vadd.f32 %v2716, %v2720
    %v2722 = vadd.f32 %v2516, %v2678
    %v2723 = vxor.u32 %v2722, 2147483648
    %v2724 = vmul.f32 %v2723, 1.442695
    %v2725 = vpow.pop %v2724
    %v2726 = vadd.f32 %v2725, 1.0
    %v2727 = vrcp.pop %v2726
    %v2728 = vmul.f32 %v2726, %v2727
    %v2729 = vsub.f32 1.0, %v2728
    %v2730 = vmul.f32 %v2727, %v2729
    %v2731 = vadd.f32 %v2727, %v2730
    %vm2732 = vweird.f32 %v2726
    %vm2733 = vweird.f32 %v2727
    %vm2734 = vmor %vm2732, %vm2733
    %v2735 = vsel %vm2734, %v2727, %v2731
    %v2736 = vand.u32 2147483647, %v2726
    %vm2737 = vcmp.eq.f32.partialorder %v2736, 8.507059e+37
    %v2738 = vand.u32 %v2726, 2147483648
    %v2739 = vor.u32 1.1754944e-38, %v2738
    %v2740 = vsel %vm2737, %v2739, %v2735
    %v2741 = vmul.f32 1.0, %v2740
    %v2742 = vmul.f32 %v2741, %v2702
    %2744 = vrot.lane.b32.xlu0 %v2742, 32
    %v2745 = vpop.permute.xlu0 %2744
    %v2747 = vadd.f32 %v2516, %v2745
    %v2748 = vtanh.pop %v2747
    %v2749 = vsub.f32 1.0, %v2741
    %2751 = vrot.lane.b32.xlu0 %v2748, 112
    %v2752 = vpop.permute.xlu0 %2751
    %v2754 = vmul.f32 %v2749, %v2752
    %2755 = vrot.lane.b32.xlu0 %v2644, 48
    %v2756 = vpop.permute.xlu0 %2755
    %v2758 = vmul.f32 %v2741, %v2756
    %v2759 = vadd.f32 %v2754, %v2758
    %2761 = vst [vmem:[#allocation1] ss:$4 sm:$0xff] %v2721
    %v2762 = vld.sshfl [vmem:[#allocation1] sm:$0xff pattern:$0x73625140]
    %2763 = vrot.lane.b32.xlu0 %v2762, 112
    %v2764 = vpop.permute.xlu0 %2763
    %2767 = vst [vmem:[#allocation1] ss:$4 sm:$0xff] %v2759
    %v2768 = vld.sshfl [vmem:[#allocation1] sm:$0xff pattern:$0x73625140]
    %2769 = vrot.lane.b32.xlu0 %v2768, 80
    %v2770 = vpop.permute.xlu0 %2769
    %v2772 = vsel %vm165, %v2764, %v2770
    %2773 = vst [vmem:[#allocation1] ss:$4 sm:$0xff] %v2721
    %v2774 = vld.sshfl [vmem:[#allocation1] sm:$0xff pattern:$0x73625140]
    %2775 = vrot.lane.b32.xlu0 %v2774, 112
    %v2776 = vpop.permute.xlu0 %2775
    %2778 = vst.msk [vmem:[%s485] sm:$0x3] %vm355, %v2776
    %2779 = vst [vmem:[#allocation1] ss:$4 sm:$0xff] %v2759
    %v2780 = vld.sshfl [vmem:[#allocation1] sm:$0xff pattern:$0x73625140]
    %2781 = vrot.lane.b32.xlu0 %v2780, 64
    %v2782 = vpop.permute.xlu0 %2781
    %2784 = vst.msk [vmem:[%s492] sm:$0x3] %vm355, %v2782
    %v2786 = vsel %vm239, %v2772, 0
    %2788 = vmatpush.msra.mxu0 0.0
    %2789 = vmatpush.msra.mxu0 0.0
    %2790 = vmatpush.msra.mxu0 0.0
    %2791 = vmatpush.msra.mxu0 0.0
    %2792 = vmatpush.msra.mxu0 0.0
    %2793 = vmatpush.msra.mxu0 0.0
    %2794 = vmatpush.msra.mxu0 0.0
    %2795 = vmatpush.msra.mxu0 0.0
    %2796 = vmatpush.msra.mxu0 0.0
    %2797 = vmatpush.msra.mxu0 0.0
    %2798 = vmatpush.msra.mxu0 0.0
    %2799 = vmatpush.msra.mxu0 0.0
    %2800 = vmatpush.msra.mxu0 %v2533
    %2801 = vmatpush.msra.mxu0 %v2532
    %2802 = vmatpush.msra.mxu0 %v2531
    %2803 = vmatpush.msra.mxu0 %v2530
    %2804 = vmatmul.f32.gmra.mxu0 %v2786
    %v2805 = vpop.f32.mrf.mxu0
    %v2806 = vadd.f32 %v2536, %v2805
    %2807 = vdwg.mxu0
    %v2808 = vadd.f32 %v2507, %v2806
    %v2809 = vxor.u32 %v2808, 2147483648
    %v2810 = vmul.f32 %v2809, 1.442695
    %v2811 = vpow.pop %v2810
    %v2812 = vadd.f32 %v2811, 1.0
    %v2813 = vrcp.pop %v2812
    %v2814 = vmul.f32 %v2812, %v2813
    %v2815 = vsub.f32 1.0, %v2814
    %v2816 = vmul.f32 %v2813, %v2815
    %v2817 = vadd.f32 %v2813, %v2816
    %vm2818 = vweird.f32 %v2812
    %vm2819 = vweird.f32 %v2813
    %vm2820 = vmor %vm2818, %vm2819
    %v2821 = vsel %vm2820, %v2813, %v2817
    %v2822 = vand.u32 2147483647, %v2812
    %vm2823 = vcmp.eq.f32.partialorder %v2822, 8.507059e+37
    %v2824 = vand.u32 %v2812, 2147483648
    %v2825 = vor.u32 1.1754944e-38, %v2824
    %v2826 = vsel %vm2823, %v2825, %v2821
    %v2827 = vmul.f32 1.0, %v2826
    %2829 = vrot.lane.b32.xlu0 %v2806, 96
    %v2830 = vpop.permute.xlu0 %2829
    %v2832 = vmul.f32 %v2827, %v2830
    %2834 = vrot.lane.b32.xlu0 %v2832, 32
    %v2835 = vpop.permute.xlu0 %2834
    %v2837 = vadd.f32 %v2507, %v2835
    %v2838 = vtanh.pop %v2837
    %v2839 = vsub.f32 1.0, %v2827
    %2841 = vrot.lane.b32.xlu0 %v2838, 112
    %v2842 = vpop.permute.xlu0 %2841
    %v2844 = vmul.f32 %v2839, %v2842
    %2845 = vrot.lane.b32.xlu0 %v2772, 16
    %v2846 = vpop.permute.xlu0 %2845
    %v2848 = vmul.f32 %v2827, %v2846
    %v2849 = vadd.f32 %v2844, %v2848
    %v2850 = vadd.f32 %v2515, %v2806
    %v2851 = vxor.u32 %v2850, 2147483648
    %v2852 = vmul.f32 %v2851, 1.442695
    %v2853 = vpow.pop %v2852
    %v2854 = vadd.f32 %v2853, 1.0
    %v2855 = vrcp.pop %v2854
    %v2856 = vmul.f32 %v2854, %v2855
    %v2857 = vsub.f32 1.0, %v2856
    %v2858 = vmul.f32 %v2855, %v2857
    %v2859 = vadd.f32 %v2855, %v2858
    %vm2860 = vweird.f32 %v2854
    %vm2861 = vweird.f32 %v2855
    %vm2862 = vmor %vm2860, %vm2861
    %v2863 = vsel %vm2862, %v2855, %v2859
    %v2864 = vand.u32 2147483647, %v2854
    %vm2865 = vcmp.eq.f32.partialorder %v2864, 8.507059e+37
    %v2866 = vand.u32 %v2854, 2147483648
    %v2867 = vor.u32 1.1754944e-38, %v2866
    %v2868 = vsel %vm2865, %v2867, %v2863
    %v2869 = vmul.f32 1.0, %v2868
    %v2870 = vmul.f32 %v2869, %v2830
    %2872 = vrot.lane.b32.xlu0 %v2870, 32
    %v2873 = vpop.permute.xlu0 %2872
    %v2875 = vadd.f32 %v2515, %v2873
    %v2876 = vtanh.pop %v2875
    %v2877 = vsub.f32 1.0, %v2869
    %2879 = vrot.lane.b32.xlu0 %v2876, 112
    %v2880 = vpop.permute.xlu0 %2879
    %v2882 = vmul.f32 %v2877, %v2880
    %2883 = vrot.lane.b32.xlu0 %v2772, 48
    %v2884 = vpop.permute.xlu0 %2883
    %v2886 = vmul.f32 %v2869, %v2884
    %v2887 = vadd.f32 %v2882, %v2886
    %2889 = vst [vmem:[#allocation1] ss:$4 sm:$0xff] %v2849
    %v2890 = vld.sshfl [vmem:[#allocation1] sm:$0xff pattern:$0x73625140]
    %2891 = vrot.lane.b32.xlu0 %v2890, 112
    %v2892 = vpop.permute.xlu0 %2891
    %2895 = vst [vmem:[#allocation1] ss:$4 sm:$0xff] %v2887
    %v2896 = vld.sshfl [vmem:[#allocation1] sm:$0xff pattern:$0x73625140]
    %2897 = vrot.lane.b32.xlu0 %v2896, 80
    %v2898 = vpop.permute.xlu0 %2897
    %v2900 = vsel %vm165, %v2892, %v2898
    %2901 = vst [vmem:[#allocation1] ss:$4 sm:$0xff] %v2849
    %v2902 = vld.sshfl [vmem:[#allocation1] sm:$0xff pattern:$0x73625140]
    %2903 = vrot.lane.b32.xlu0 %v2902, 112
    %v2904 = vpop.permute.xlu0 %2903
    %2906 = vst.msk [vmem:[%s615] sm:$0x3] %vm355, %v2904
    %2907 = vst [vmem:[#allocation1] ss:$4 sm:$0xff] %v2887
    %v2908 = vld.sshfl [vmem:[#allocation1] sm:$0xff pattern:$0x73625140]
    %2909 = vrot.lane.b32.xlu0 %v2908, 64
    %v2910 = vpop.permute.xlu0 %2909
    %2912 = vst.msk [vmem:[%s622] sm:$0x3] %vm355, %v2910
    %v2914 = vsel %vm239, %v2900, 0
    %2916 = vmatpush.msra.mxu0 0.0
    %2917 = vmatpush.msra.mxu0 0.0
    %2918 = vmatpush.msra.mxu0 0.0
    %2919 = vmatpush.msra.mxu0 0.0
    %2920 = vmatpush.msra.mxu0 0.0
    %2921 = vmatpush.msra.mxu0 0.0
    %2922 = vmatpush.msra.mxu0 0.0
    %2923 = vmatpush.msra.mxu0 0.0
    %2924 = vmatpush.msra.mxu0 0.0
    %2925 = vmatpush.msra.mxu0 0.0
    %2926 = vmatpush.msra.mxu0 0.0
    %2927 = vmatpush.msra.mxu0 0.0
    %2928 = vmatpush.msra.mxu0 %v2533
    %2929 = vmatpush.msra.mxu0 %v2532
    %2930 = vmatpush.msra.mxu0 %v2531
    %2931 = vmatpush.msra.mxu0 %v2530
    %2932 = vmatmul.f32.gmra.mxu0 %v2914
    %v2933 = vpop.f32.mrf.mxu0
    %v2934 = vadd.f32 %v2536, %v2933
    %2935 = vdwg.mxu0
    %v2936 = vadd.f32 %v2508, %v2934
    %v2937 = vxor.u32 %v2936, 2147483648
    %v2938 = vmul.f32 %v2937, 1.442695
    %v2939 = vpow.pop %v2938
    %v2940 = vadd.f32 %v2939, 1.0
    %v2941 = vrcp.pop %v2940
    %v2942 = vmul.f32 %v2940, %v2941
    %v2943 = vsub.f32 1.0, %v2942
    %v2944 = vmul.f32 %v2941, %v2943
    %v2945 = vadd.f32 %v2941, %v2944
    %vm2946 = vweird.f32 %v2940
    %vm2947 = vweird.f32 %v2941
    %vm2948 = vmor %vm2946, %vm2947
    %v2949 = vsel %vm2948, %v2941, %v2945
    %v2950 = vand.u32 2147483647, %v2940
    %vm2951 = vcmp.eq.f32.partialorder %v2950, 8.507059e+37
    %v2952 = vand.u32 %v2940, 2147483648
    %v2953 = vor.u32 1.1754944e-38, %v2952
    %v2954 = vsel %vm2951, %v2953, %v2949
    %v2955 = vmul.f32 1.0, %v2954
    %2957 = vrot.lane.b32.xlu0 %v2934, 96
    %v2958 = vpop.permute.xlu0 %2957
    %v2960 = vmul.f32 %v2955, %v2958
    %2962 = vrot.lane.b32.xlu0 %v2960, 32
    %v2963 = vpop.permute.xlu0 %2962
    %v2965 = vadd.f32 %v2508, %v2963
    %v2966 = vtanh.pop %v2965
    %v2967 = vsub.f32 1.0, %v2955
    %2969 = vrot.lane.b32.xlu0 %v2966, 112
    %v2970 = vpop.permute.xlu0 %2969
    %v2972 = vmul.f32 %v2967, %v2970
    %2973 = vrot.lane.b32.xlu0 %v2900, 16
    %v2974 = vpop.permute.xlu0 %2973
    %v2976 = vmul.f32 %v2955, %v2974
    %v2977 = vadd.f32 %v2972, %v2976
    %v2978 = vadd.f32 %v2500, %v2934
    %v2979 = vxor.u32 %v2978, 2147483648
    %v2980 = vmul.f32 %v2979, 1.442695
    %v2981 = vpow.pop %v2980
    %v2982 = vadd.f32 %v2981, 1.0
    %v2983 = vrcp.pop %v2982
    %v2984 = vmul.f32 %v2982, %v2983
    %v2985 = vsub.f32 1.0, %v2984
    %v2986 = vmul.f32 %v2983, %v2985
    %v2987 = vadd.f32 %v2983, %v2986
    %vm2988 = vweird.f32 %v2982
    %vm2989 = vweird.f32 %v2983
    %vm2990 = vmor %vm2988, %vm2989
    %v2991 = vsel %vm2990, %v2983, %v2987
    %v2992 = vand.u32 2147483647, %v2982
    %vm2993 = vcmp.eq.f32.partialorder %v2992, 8.507059e+37
    %v2994 = vand.u32 %v2982, 2147483648
    %v2995 = vor.u32 1.1754944e-38, %v2994
    %v2996 = vsel %vm2993, %v2995, %v2991
    %v2997 = vmul.f32 1.0, %v2996
    %v2998 = vmul.f32 %v2997, %v2958
    %3000 = vrot.lane.b32.xlu0 %v2998, 32
    %v3001 = vpop.permute.xlu0 %3000
    %v3003 = vadd.f32 %v2500, %v3001
    %v3004 = vtanh.pop %v3003
    %v3005 = vsub.f32 1.0, %v2997
    %3007 = vrot.lane.b32.xlu0 %v3004, 112
    %v3008 = vpop.permute.xlu0 %3007
    %v3010 = vmul.f32 %v3005, %v3008
    %3011 = vrot.lane.b32.xlu0 %v2900, 48
    %v3012 = vpop.permute.xlu0 %3011
    %v3014 = vmul.f32 %v2997, %v3012
    %v3015 = vadd.f32 %v3010, %v3014
    %3017 = vst [vmem:[#allocation1] ss:$4 sm:$0xff] %v2977
    %v3018 = vld.sshfl [vmem:[#allocation1] sm:$0xff pattern:$0x73625140]
    %3019 = vrot.lane.b32.xlu0 %v3018, 112
    %v3020 = vpop.permute.xlu0 %3019
    %3023 = vst [vmem:[#allocation1] ss:$4 sm:$0xff] %v3015
    %v3024 = vld.sshfl [vmem:[#allocation1] sm:$0xff pattern:$0x73625140]
    %3025 = vrot.lane.b32.xlu0 %v3024, 80
    %v3026 = vpop.permute.xlu0 %3025
    %v3028 = vsel %vm165, %v3020, %v3026
    %3029 = vst [vmem:[#allocation1] ss:$4 sm:$0xff] %v2977
    %v3030 = vld.sshfl [vmem:[#allocation1] sm:$0xff pattern:$0x73625140]
    %3031 = vrot.lane.b32.xlu0 %v3030, 112
    %v3032 = vpop.permute.xlu0 %3031
    %3034 = vst.msk [vmem:[%s745] sm:$0x3] %vm355, %v3032
    %3035 = vst [vmem:[#allocation1] ss:$4 sm:$0xff] %v3015
    %v3036 = vld.sshfl [vmem:[#allocation1] sm:$0xff pattern:$0x73625140]
    %3037 = vrot.lane.b32.xlu0 %v3036, 64
    %v3038 = vpop.permute.xlu0 %3037
    %3040 = vst.msk [vmem:[%s752] sm:$0x3] %vm355, %v3038
    %v3042 = vsel %vm239, %v3028, 0
    %3044 = vmatpush.msra.mxu0 0.0
    %3045 = vmatpush.msra.mxu0 0.0
    %3046 = vmatpush.msra.mxu0 0.0
    %3047 = vmatpush.msra.mxu0 0.0
    %3048 = vmatpush.msra.mxu0 0.0
    %3049 = vmatpush.msra.mxu0 0.0
    %3050 = vmatpush.msra.mxu0 0.0
    %3051 = vmatpush.msra.mxu0 0.0
    %3052 = vmatpush.msra.mxu0 0.0
    %3053 = vmatpush.msra.mxu0 0.0
    %3054 = vmatpush.msra.mxu0 0.0
    %3055 = vmatpush.msra.mxu0 0.0
    %3056 = vmatpush.msra.mxu0 %v2533
    %3057 = vmatpush.msra.mxu0 %v2532
    %3058 = vmatpush.msra.mxu0 %v2531
    %3059 = vmatpush.msra.mxu0 %v2530
    %3060 = vmatmul.f32.gmra.mxu0 %v3042
    %v3061 = vpop.f32.mrf.mxu0
    %v3062 = vadd.f32 %v2536, %v3061
    %3063 = vdwg.mxu0
    %v3064 = vadd.f32 %v2494, %v3062
    %v3065 = vxor.u32 %v3064, 2147483648
    %v3066 = vmul.f32 %v3065, 1.442695
    %v3067 = vpow.pop %v3066
    %v3068 = vadd.f32 %v3067, 1.0
    %v3069 = vrcp.pop %v3068
    %v3070 = vmul.f32 %v3068, %v3069
    %v3071 = vsub.f32 1.0, %v3070
    %v3072 = vmul.f32 %v3069, %v3071
    %v3073 = vadd.f32 %v3069, %v3072
    %vm3074 = vweird.f32 %v3068
    %vm3075 = vweird.f32 %v3069
    %vm3076 = vmor %vm3074, %vm3075
    %v3077 = vsel %vm3076, %v3069, %v3073
    %v3078 = vand.u32 2147483647, %v3068
    %vm3079 = vcmp.eq.f32.partialorder %v3078, 8.507059e+37
    %v3080 = vand.u32 %v3068, 2147483648
    %v3081 = vor.u32 1.1754944e-38, %v3080
    %v3082 = vsel %vm3079, %v3081, %v3077
    %v3083 = vmul.f32 1.0, %v3082
    %3085 = vrot.lane.b32.xlu0 %v3062, 96
    %v3086 = vpop.permute.xlu0 %3085
    %v3088 = vmul.f32 %v3083, %v3086
    %3090 = vrot.lane.b32.xlu0 %v3088, 32
    %v3091 = vpop.permute.xlu0 %3090
    %v3093 = vadd.f32 %v2494, %v3091
    %v3094 = vtanh.pop %v3093
    %v3095 = vsub.f32 1.0, %v3083
    %3097 = vrot.lane.b32.xlu0 %v3094, 112
    %v3098 = vpop.permute.xlu0 %3097
    %v3100 = vmul.f32 %v3095, %v3098
    %3101 = vrot.lane.b32.xlu0 %v3028, 16
    %v3102 = vpop.permute.xlu0 %3101
    %v3104 = vmul.f32 %v3083, %v3102
    %v3105 = vadd.f32 %v3100, %v3104
    %v3106 = vadd.f32 %v2514, %v3062
    %v3107 = vxor.u32 %v3106, 2147483648
    %v3108 = vmul.f32 %v3107, 1.442695
    %v3109 = vpow.pop %v3108
    %v3110 = vadd.f32 %v3109, 1.0
    %v3111 = vrcp.pop %v3110
    %v3112 = vmul.f32 %v3110, %v3111
    %v3113 = vsub.f32 1.0, %v3112
    %v3114 = vmul.f32 %v3111, %v3113
    %v3115 = vadd.f32 %v3111, %v3114
    %vm3116 = vweird.f32 %v3110
    %vm3117 = vweird.f32 %v3111
    %vm3118 = vmor %vm3116, %vm3117
    %v3119 = vsel %vm3118, %v3111, %v3115
    %v3120 = vand.u32 2147483647, %v3110
    %vm3121 = vcmp.eq.f32.partialorder %v3120, 8.507059e+37
    %v3122 = vand.u32 %v3110, 2147483648
    %v3123 = vor.u32 1.1754944e-38, %v3122
    %v3124 = vsel %vm3121, %v3123, %v3119
    %v3125 = vmul.f32 1.0, %v3124
    %v3126 = vmul.f32 %v3125, %v3086
    %3128 = vrot.lane.b32.xlu0 %v3126, 32
    %v3129 = vpop.permute.xlu0 %3128
    %v3131 = vadd.f32 %v2514, %v3129
    %v3132 = vtanh.pop %v3131
    %v3133 = vsub.f32 1.0, %v3125
    %3135 = vrot.lane.b32.xlu0 %v3132, 112
    %v3136 = vpop.permute.xlu0 %3135
    %v3138 = vmul.f32 %v3133, %v3136
    %3139 = vrot.lane.b32.xlu0 %v3028, 48
    %v3140 = vpop.permute.xlu0 %3139
    %v3142 = vmul.f32 %v3125, %v3140
    %v3143 = vadd.f32 %v3138, %v3142
    %3145 = vst [vmem:[#allocation1] ss:$4 sm:$0xff] %v3105
    %v3146 = vld.sshfl [vmem:[#allocation1] sm:$0xff pattern:$0x73625140]
    %3147 = vrot.lane.b32.xlu0 %v3146, 112
    %v3148 = vpop.permute.xlu0 %3147
    %3151 = vst [vmem:[#allocation1] ss:$4 sm:$0xff] %v3143
    %v3152 = vld.sshfl [vmem:[#allocation1] sm:$0xff pattern:$0x73625140]
    %3153 = vrot.lane.b32.xlu0 %v3152, 80
    %v3154 = vpop.permute.xlu0 %3153
    %v3156 = vsel %vm165, %v3148, %v3154
    %3157 = vst [vmem:[#allocation1] ss:$4 sm:$0xff] %v3105
    %v3158 = vld.sshfl [vmem:[#allocation1] sm:$0xff pattern:$0x73625140]
    %3159 = vrot.lane.b32.xlu0 %v3158, 112
    %v3160 = vpop.permute.xlu0 %3159
    %3162 = vst.msk [vmem:[%s875] sm:$0x3] %vm355, %v3160
    %3163 = vst [vmem:[#allocation1] ss:$4 sm:$0xff] %v3143
    %v3164 = vld.sshfl [vmem:[#allocation1] sm:$0xff pattern:$0x73625140]
    %3165 = vrot.lane.b32.xlu0 %v3164, 64
    %v3166 = vpop.permute.xlu0 %3165
    %3168 = vst.msk [vmem:[%s882] sm:$0x3] %vm355, %v3166
    %v3170 = vsel %vm239, %v3156, 0
    %3172 = vmatpush.msra.mxu0 0.0
    %3173 = vmatpush.msra.mxu0 0.0
    %3174 = vmatpush.msra.mxu0 0.0
    %3175 = vmatpush.msra.mxu0 0.0
    %3176 = vmatpush.msra.mxu0 0.0
    %3177 = vmatpush.msra.mxu0 0.0
    %3178 = vmatpush.msra.mxu0 0.0
    %3179 = vmatpush.msra.mxu0 0.0
    %3180 = vmatpush.msra.mxu0 0.0
    %3181 = vmatpush.msra.mxu0 0.0
    %3182 = vmatpush.msra.mxu0 0.0
    %3183 = vmatpush.msra.mxu0 0.0
    %3184 = vmatpush.msra.mxu0 %v2533
    %3185 = vmatpush.msra.mxu0 %v2532
    %3186 = vmatpush.msra.mxu0 %v2531
    %3187 = vmatpush.msra.mxu0 %v2530
    %3188 = vmatmul.f32.gmra.mxu0 %v3170
    %v3189 = vpop.f32.mrf.mxu0
    %v3190 = vadd.f32 %v2536, %v3189
    %3191 = vdwg.mxu0
    %v3192 = vadd.f32 %v2509, %v3190
    %v3193 = vxor.u32 %v3192, 2147483648
    %v3194 = vmul.f32 %v3193, 1.442695
    %v3195 = vpow.pop %v3194
    %v3196 = vadd.f32 %v3195, 1.0
    %v3197 = vrcp.pop %v3196
    %v3198 = vmul.f32 %v3196, %v3197
    %v3199 = vsub.f32 1.0, %v3198
    %v3200 = vmul.f32 %v3197, %v3199
    %v3201 = vadd.f32 %v3197, %v3200
    %vm3202 = vweird.f32 %v3196
    %vm3203 = vweird.f32 %v3197
    %vm3204 = vmor %vm3202, %vm3203
    %v3205 = vsel %vm3204, %v3197, %v3201
    %v3206 = vand.u32 2147483647, %v3196
    %vm3207 = vcmp.eq.f32.partialorder %v3206, 8.507059e+37
    %v3208 = vand.u32 %v3196, 2147483648
    %v3209 = vor.u32 1.1754944e-38, %v3208
    %v3210 = vsel %vm3207, %v3209, %v3205
    %v3211 = vmul.f32 1.0, %v3210
    %3213 = vrot.lane.b32.xlu0 %v3190, 96
    %v3214 = vpop.permute.xlu0 %3213
    %v3216 = vmul.f32 %v3211, %v3214
    %3218 = vrot.lane.b32.xlu0 %v3216, 32
    %v3219 = vpop.permute.xlu0 %3218
    %v3221 = vadd.f32 %v2509, %v3219
    %v3222 = vtanh.pop %v3221
    %v3223 = vsub.f32 1.0, %v3211
    %3225 = vrot.lane.b32.xlu0 %v3222, 112
    %v3226 = vpop.permute.xlu0 %3225
    %v3228 = vmul.f32 %v3223, %v3226
    %3229 = vrot.lane.b32.xlu0 %v3156, 16
    %v3230 = vpop.permute.xlu0 %3229
    %v3232 = vmul.f32 %v3211, %v3230
    %v3233 = vadd.f32 %v3228, %v3232
    %v3234 = vadd.f32 %v2513, %v3190
    %v3235 = vxor.u32 %v3234, 2147483648
    %v3236 = vmul.f32 %v3235, 1.442695
    %v3237 = vpow.pop %v3236
    %v3238 = vadd.f32 %v3237, 1.0
    %v3239 = vrcp.pop %v3238
    %v3240 = vmul.f32 %v3238, %v3239
    %v3241 = vsub.f32 1.0, %v3240
    %v3242 = vmul.f32 %v3239, %v3241
    %v3243 = vadd.f32 %v3239, %v3242
    %vm3244 = vweird.f32 %v3238
    %vm3245 = vweird.f32 %v3239
    %vm3246 = vmor %vm3244, %vm3245
    %v3247 = vsel %vm3246, %v3239, %v3243
    %v3248 = vand.u32 2147483647, %v3238
    %vm3249 = vcmp.eq.f32.partialorder %v3248, 8.507059e+37
    %v3250 = vand.u32 %v3238, 2147483648
    %v3251 = vor.u32 1.1754944e-38, %v3250
    %v3252 = vsel %vm3249, %v3251, %v3247
    %v3253 = vmul.f32 1.0, %v3252
    %v3254 = vmul.f32 %v3253, %v3214
    %3256 = vrot.lane.b32.xlu0 %v3254, 32
    %v3257 = vpop.permute.xlu0 %3256
    %v3259 = vadd.f32 %v2513, %v3257
    %v3260 = vtanh.pop %v3259
    %v3261 = vsub.f32 1.0, %v3253
    %3263 = vrot.lane.b32.xlu0 %v3260, 112
    %v3264 = vpop.permute.xlu0 %3263
    %v3266 = vmul.f32 %v3261, %v3264
    %3267 = vrot.lane.b32.xlu0 %v3156, 48
    %v3268 = vpop.permute.xlu0 %3267
    %v3270 = vmul.f32 %v3253, %v3268
    %v3271 = vadd.f32 %v3266, %v3270
    %3273 = vst [vmem:[#allocation1] ss:$4 sm:$0xff] %v3233
    %v3274 = vld.sshfl [vmem:[#allocation1] sm:$0xff pattern:$0x73625140]
    %3275 = vrot.lane.b32.xlu0 %v3274, 112
    %v3276 = vpop.permute.xlu0 %3275
    %3279 = vst [vmem:[#allocation1] ss:$4 sm:$0xff] %v3271
    %v3280 = vld.sshfl [vmem:[#allocation1] sm:$0xff pattern:$0x73625140]
    %3281 = vrot.lane.b32.xlu0 %v3280, 80
    %v3282 = vpop.permute.xlu0 %3281
    %v3284 = vsel %vm165, %v3276, %v3282
    %3285 = vst [vmem:[#allocation1] ss:$4 sm:$0xff] %v3233
    %v3286 = vld.sshfl [vmem:[#allocation1] sm:$0xff pattern:$0x73625140]
    %3287 = vrot.lane.b32.xlu0 %v3286, 112
    %v3288 = vpop.permute.xlu0 %3287
    %3290 = vst.msk [vmem:[%s1005] sm:$0x3] %vm355, %v3288
    %3291 = vst [vmem:[#allocation1] ss:$4 sm:$0xff] %v3271
    %v3292 = vld.sshfl [vmem:[#allocation1] sm:$0xff pattern:$0x73625140]
    %3293 = vrot.lane.b32.xlu0 %v3292, 64
    %v3294 = vpop.permute.xlu0 %3293
    %3296 = vst.msk [vmem:[%s1012] sm:$0x3] %vm355, %v3294
    %v3298 = vsel %vm239, %v3284, 0
    %3300 = vmatpush.msra.mxu0 0.0
    %3301 = vmatpush.msra.mxu0 0.0
    %3302 = vmatpush.msra.mxu0 0.0
    %3303 = vmatpush.msra.mxu0 0.0
    %3304 = vmatpush.msra.mxu0 0.0
    %3305 = vmatpush.msra.mxu0 0.0
    %3306 = vmatpush.msra.mxu0 0.0
    %3307 = vmatpush.msra.mxu0 0.0
    %3308 = vmatpush.msra.mxu0 0.0
    %3309 = vmatpush.msra.mxu0 0.0
    %3310 = vmatpush.msra.mxu0 0.0
    %3311 = vmatpush.msra.mxu0 0.0
    %3312 = vmatpush.msra.mxu0 %v2533
    %3313 = vmatpush.msra.mxu0 %v2532
    %3314 = vmatpush.msra.mxu0 %v2531
    %3315 = vmatpush.msra.mxu0 %v2530
    %3316 = vmatmul.f32.gmra.mxu0 %v3298
    %v3317 = vpop.f32.mrf.mxu0
    %v3318 = vadd.f32 %v2536, %v3317
    %3319 = vdwg.mxu0
    %v3320 = vadd.f32 %v2510, %v3318
    %v3321 = vxor.u32 %v3320, 2147483648
    %v3322 = vmul.f32 %v3321, 1.442695
    %v3323 = vpow.pop %v3322
    %v3324 = vadd.f32 %v3323, 1.0
    %v3325 = vrcp.pop %v3324
    %v3326 = vmul.f32 %v3324, %v3325
    %v3327 = vsub.f32 1.0, %v3326
    %v3328 = vmul.f32 %v3325, %v3327
    %v3329 = vadd.f32 %v3325, %v3328
    %vm3330 = vweird.f32 %v3324
    %vm3331 = vweird.f32 %v3325
    %vm3332 = vmor %vm3330, %vm3331
    %v3333 = vsel %vm3332, %v3325, %v3329
    %v3334 = vand.u32 2147483647, %v3324
    %vm3335 = vcmp.eq.f32.partialorder %v3334, 8.507059e+37
    %v3336 = vand.u32 %v3324, 2147483648
    %v3337 = vor.u32 1.1754944e-38, %v3336
    %v3338 = vsel %vm3335, %v3337, %v3333
    %v3339 = vmul.f32 1.0, %v3338
    %3341 = vrot.lane.b32.xlu0 %v3318, 96
    %v3342 = vpop.permute.xlu0 %3341
    %v3344 = vmul.f32 %v3339, %v3342
    %3346 = vrot.lane.b32.xlu0 %v3344, 32
    %v3347 = vpop.permute.xlu0 %3346
    %v3349 = vadd.f32 %v2510, %v3347
    %v3350 = vtanh.pop %v3349
    %v3351 = vsub.f32 1.0, %v3339
    %3353 = vrot.lane.b32.xlu0 %v3350, 112
    %v3354 = vpop.permute.xlu0 %3353
    %v3356 = vmul.f32 %v3351, %v3354
    %3357 = vrot.lane.b32.xlu0 %v3284, 16
    %v3358 = vpop.permute.xlu0 %3357
    %v3360 = vmul.f32 %v3339, %v3358
    %v3361 = vadd.f32 %v3356, %v3360
    %v3362 = vadd.f32 %v2512, %v3318
    %v3363 = vxor.u32 %v3362, 2147483648
    %v3364 = vmul.f32 %v3363, 1.442695
    %v3365 = vpow.pop %v3364
    %v3366 = vadd.f32 %v3365, 1.0
    %v3367 = vrcp.pop %v3366
    %v3368 = vmul.f32 %v3366, %v3367
    %v3369 = vsub.f32 1.0, %v3368
    %v3370 = vmul.f32 %v3367, %v3369
    %v3371 = vadd.f32 %v3367, %v3370
    %vm3372 = vweird.f32 %v3366
    %vm3373 = vweird.f32 %v3367
    %vm3374 = vmor %vm3372, %vm3373
    %v3375 = vsel %vm3374, %v3367, %v3371
    %v3376 = vand.u32 2147483647, %v3366
    %vm3377 = vcmp.eq.f32.partialorder %v3376, 8.507059e+37
    %v3378 = vand.u32 %v3366, 2147483648
    %v3379 = vor.u32 1.1754944e-38, %v3378
    %v3380 = vsel %vm3377, %v3379, %v3375
    %v3381 = vmul.f32 1.0, %v3380
    %v3382 = vmul.f32 %v3381, %v3342
    %3384 = vrot.lane.b32.xlu0 %v3382, 32
    %v3385 = vpop.permute.xlu0 %3384
    %v3387 = vadd.f32 %v2512, %v3385
    %v3388 = vtanh.pop %v3387
    %v3389 = vsub.f32 1.0, %v3381
    %3391 = vrot.lane.b32.xlu0 %v3388, 112
    %v3392 = vpop.permute.xlu0 %3391
    %v3394 = vmul.f32 %v3389, %v3392
    %3395 = vrot.lane.b32.xlu0 %v3284, 48
    %v3396 = vpop.permute.xlu0 %3395
    %v3398 = vmul.f32 %v3381, %v3396
    %v3399 = vadd.f32 %v3394, %v3398
    %3401 = vst [vmem:[#allocation1] ss:$4 sm:$0xff] %v3361
    %v3402 = vld.sshfl [vmem:[#allocation1] sm:$0xff pattern:$0x73625140]
    %3403 = vrot.lane.b32.xlu0 %v3402, 112
    %v3404 = vpop.permute.xlu0 %3403
    %3407 = vst [vmem:[#allocation1] ss:$4 sm:$0xff] %v3399
    %v3408 = vld.sshfl [vmem:[#allocation1] sm:$0xff pattern:$0x73625140]
    %3409 = vrot.lane.b32.xlu0 %v3408, 80
    %v3410 = vpop.permute.xlu0 %3409
    %v3412 = vsel %vm165, %v3404, %v3410
    %3413 = vst [vmem:[#allocation1] ss:$4 sm:$0xff] %v3361
    %v3414 = vld.sshfl [vmem:[#allocation1] sm:$0xff pattern:$0x73625140]
    %3415 = vrot.lane.b32.xlu0 %v3414, 112
    %v3416 = vpop.permute.xlu0 %3415
    %3418 = vst.msk [vmem:[%s1135] sm:$0x3] %vm355, %v3416
    %3419 = vst [vmem:[#allocation1] ss:$4 sm:$0xff] %v3399
    %v3420 = vld.sshfl [vmem:[#allocation1] sm:$0xff pattern:$0x73625140]
    %3421 = vrot.lane.b32.xlu0 %v3420, 64
    %v3422 = vpop.permute.xlu0 %3421
    %3424 = vst.msk [vmem:[%s1142] sm:$0x3] %vm355, %v3422
    %v3426 = vsel %vm239, %v3412, 0
    %3428 = vmatpush.msra.mxu0 0.0
    %3429 = vmatpush.msra.mxu0 0.0
    %3430 = vmatpush.msra.mxu0 0.0
    %3431 = vmatpush.msra.mxu0 0.0
    %3432 = vmatpush.msra.mxu0 0.0
    %3433 = vmatpush.msra.mxu0 0.0
    %3434 = vmatpush.msra.mxu0 0.0
    %3435 = vmatpush.msra.mxu0 0.0
    %3436 = vmatpush.msra.mxu0 0.0
    %3437 = vmatpush.msra.mxu0 0.0
    %3438 = vmatpush.msra.mxu0 0.0
    %3439 = vmatpush.msra.mxu0 0.0
    %3440 = vmatpush.msra.mxu0 %v2533
    %3441 = vmatpush.msra.mxu0 %v2532
    %3442 = vmatpush.msra.mxu0 %v2531
    %3443 = vmatpush.msra.mxu0 %v2530
    %3444 = vmatmul.f32.gmra.mxu0 %v3426
    %v3445 = vpop.f32.mrf.mxu0
    %v3446 = vadd.f32 %v2536, %v3445
    %3447 = vdwg.mxu0
    %v3448 = vadd.f32 %v2511, %v3446
    %v3449 = vxor.u32 %v3448, 2147483648
    %v3450 = vmul.f32 %v3449, 1.442695
    %v3451 = vpow.pop %v3450
    %v3452 = vadd.f32 %v3451, 1.0
    %v3453 = vrcp.pop %v3452
    %v3454 = vmul.f32 %v3452, %v3453
    %v3455 = vsub.f32 1.0, %v3454
    %v3456 = vmul.f32 %v3453, %v3455
    %v3457 = vadd.f32 %v3453, %v3456
    %vm3458 = vweird.f32 %v3452
    %vm3459 = vweird.f32 %v3453
    %vm3460 = vmor %vm3458, %vm3459
    %v3461 = vsel %vm3460, %v3453, %v3457
    %v3462 = vand.u32 2147483647, %v3452
    %vm3463 = vcmp.eq.f32.partialorder %v3462, 8.507059e+37
    %v3464 = vand.u32 %v3452, 2147483648
    %v3465 = vor.u32 1.1754944e-38, %v3464
    %v3466 = vsel %vm3463, %v3465, %v3461
    %v3467 = vmul.f32 1.0, %v3466
    %3469 = vrot.lane.b32.xlu0 %v3446, 96
    %v3470 = vpop.permute.xlu0 %3469
    %v3472 = vmul.f32 %v3467, %v3470
    %3474 = vrot.lane.b32.xlu0 %v3472, 32
    %v3475 = vpop.permute.xlu0 %3474
    %v3477 = vadd.f32 %v2511, %v3475
    %v3478 = vtanh.pop %v3477
    %v3479 = vsub.f32 1.0, %v3467
    %3481 = vrot.lane.b32.xlu0 %v3478, 112
    %v3482 = vpop.permute.xlu0 %3481
    %v3484 = vmul.f32 %v3479, %v3482
    %3485 = vrot.lane.b32.xlu0 %v3412, 16
    %v3486 = vpop.permute.xlu0 %3485
    %v3488 = vmul.f32 %v3467, %v3486
    %v3489 = vadd.f32 %v3484, %v3488
    %v3490 = vadd.f32 %v2497, %v3446
    %v3491 = vxor.u32 %v3490, 2147483648
    %v3492 = vmul.f32 %v3491, 1.442695
    %v3493 = vpow.pop %v3492
    %v3494 = vadd.f32 %v3493, 1.0
    %v3495 = vrcp.pop %v3494
    %v3496 = vmul.f32 %v3494, %v3495
    %v3497 = vsub.f32 1.0, %v3496
    %v3498 = vmul.f32 %v3495, %v3497
    %v3499 = vadd.f32 %v3495, %v3498
    %vm3500 = vweird.f32 %v3494
    %vm3501 = vweird.f32 %v3495
    %vm3502 = vmor %vm3500, %vm3501
    %v3503 = vsel %vm3502, %v3495, %v3499
    %v3504 = vand.u32 2147483647, %v3494
    %vm3505 = vcmp.eq.f32.partialorder %v3504, 8.507059e+37
    %v3506 = vand.u32 %v3494, 2147483648
    %v3507 = vor.u32 1.1754944e-38, %v3506
    %v3508 = vsel %vm3505, %v3507, %v3503
    %v3509 = vmul.f32 1.0, %v3508
    %v3510 = vmul.f32 %v3509, %v3470
    %3512 = vrot.lane.b32.xlu0 %v3510, 32
    %v3513 = vpop.permute.xlu0 %3512
    %v3515 = vadd.f32 %v2497, %v3513
    %v3516 = vtanh.pop %v3515
    %v3517 = vsub.f32 1.0, %v3509
    %3519 = vrot.lane.b32.xlu0 %v3516, 112
    %v3520 = vpop.permute.xlu0 %3519
    %v3522 = vmul.f32 %v3517, %v3520
    %3523 = vrot.lane.b32.xlu0 %v3412, 48
    %v3524 = vpop.permute.xlu0 %3523
    %v3526 = vmul.f32 %v3509, %v3524
    %v3527 = vadd.f32 %v3522, %v3526
    %3529 = vst [vmem:[#allocation1] ss:$4 sm:$0xff] %v3489
    %v3530 = vld.sshfl [vmem:[#allocation1] sm:$0xff pattern:$0x73625140]
    %3531 = vrot.lane.b32.xlu0 %v3530, 112
    %v3532 = vpop.permute.xlu0 %3531
    %3535 = vst [vmem:[#allocation1] ss:$4 sm:$0xff] %v3527
    %v3536 = vld.sshfl [vmem:[#allocation1] sm:$0xff pattern:$0x73625140]
    %3537 = vrot.lane.b32.xlu0 %v3536, 80
    %v3538 = vpop.permute.xlu0 %3537
    %v3540 = vsel %vm165, %v3532, %v3538
    %3541 = vst [vmem:[#allocation1] ss:$4 sm:$0xff] %v3489
    %v3542 = vld.sshfl [vmem:[#allocation1] sm:$0xff pattern:$0x73625140]
    %3543 = vrot.lane.b32.xlu0 %v3542, 112
    %v3544 = vpop.permute.xlu0 %3543
    %3546 = vst.msk [vmem:[%s1265] sm:$0x3] %vm355, %v3544
    %3547 = vst [vmem:[#allocation1] ss:$4 sm:$0xff] %v3527
    %v3548 = vld.sshfl [vmem:[#allocation1] sm:$0xff pattern:$0x73625140]
    %3549 = vrot.lane.b32.xlu0 %v3548, 64
    %v3550 = vpop.permute.xlu0 %3549
    %3552 = vst.msk [vmem:[%s1272] sm:$0x3] %vm355, %v3550
    %v3554 = vsel %vm239, %v3540, 0
    %3556 = vmatpush.msra.mxu0 0.0
    %3557 = vmatpush.msra.mxu0 0.0
    %3558 = vmatpush.msra.mxu0 0.0
    %3559 = vmatpush.msra.mxu0 0.0
    %3560 = vmatpush.msra.mxu0 0.0
    %3561 = vmatpush.msra.mxu0 0.0
    %3562 = vmatpush.msra.mxu0 0.0
    %3563 = vmatpush.msra.mxu0 0.0
    %3564 = vmatpush.msra.mxu0 0.0
    %3565 = vmatpush.msra.mxu0 0.0
    %3566 = vmatpush.msra.mxu0 0.0
    %3567 = vmatpush.msra.mxu0 0.0
    %3568 = vmatpush.msra.mxu0 %v2533
    %3569 = vmatpush.msra.mxu0 %v2532
    %3570 = vmatpush.msra.mxu0 %v2531
    %3571 = vmatpush.msra.mxu0 %v2530
    %3572 = vmatmul.f32.gmra.mxu0 %v3554
    %v3573 = vpop.f32.mrf.mxu0
    %v3574 = vadd.f32 %v2536, %v3573
    %3575 = vdwg.mxu0
    %v3576 = vadd.f32 %v2497, %v3574
    %v3577 = vxor.u32 %v3576, 2147483648
    %v3578 = vmul.f32 %v3577, 1.442695
    %v3579 = vpow.pop %v3578
    %v3580 = vadd.f32 %v3579, 1.0
    %v3581 = vrcp.pop %v3580
    %v3582 = vmul.f32 %v3580, %v3581
    %v3583 = vsub.f32 1.0, %v3582
    %v3584 = vmul.f32 %v3581, %v3583
    %v3585 = vadd.f32 %v3581, %v3584
    %vm3586 = vweird.f32 %v3580
    %vm3587 = vweird.f32 %v3581
    %vm3588 = vmor %vm3586, %vm3587
    %v3589 = vsel %vm3588, %v3581, %v3585
    %v3590 = vand.u32 2147483647, %v3580
    %vm3591 = vcmp.eq.f32.partialorder %v3590, 8.507059e+37
    %v3592 = vand.u32 %v3580, 2147483648
    %v3593 = vor.u32 1.1754944e-38, %v3592
    %v3594 = vsel %vm3591, %v3593, %v3589
    %v3595 = vmul.f32 1.0, %v3594
    %3597 = vrot.lane.b32.xlu0 %v3574, 96
    %v3598 = vpop.permute.xlu0 %3597
    %v3600 = vmul.f32 %v3595, %v3598
    %3602 = vrot.lane.b32.xlu0 %v3600, 32
    %v3603 = vpop.permute.xlu0 %3602
    %v3605 = vadd.f32 %v2497, %v3603
    %v3606 = vtanh.pop %v3605
    %v3607 = vsub.f32 1.0, %v3595
    %3609 = vrot.lane.b32.xlu0 %v3606, 112
    %v3610 = vpop.permute.xlu0 %3609
    %v3612 = vmul.f32 %v3607, %v3610
    %3613 = vrot.lane.b32.xlu0 %v3540, 16
    %v3614 = vpop.permute.xlu0 %3613
    %v3616 = vmul.f32 %v3595, %v3614
    %v3617 = vadd.f32 %v3612, %v3616
    %v3618 = vadd.f32 %v2511, %v3574
    %v3619 = vxor.u32 %v3618, 2147483648
    %v3620 = vmul.f32 %v3619, 1.442695
    %v3621 = vpow.pop %v3620
    %v3622 = vadd.f32 %v3621, 1.0
    %v3623 = vrcp.pop %v3622
    %v3624 = vmul.f32 %v3622, %v3623
    %v3625 = vsub.f32 1.0, %v3624
    %v3626 = vmul.f32 %v3623, %v3625
    %v3627 = vadd.f32 %v3623, %v3626
    %vm3628 = vweird.f32 %v3622
    %vm3629 = vweird.f32 %v3623
    %vm3630 = vmor %vm3628, %vm3629
    %v3631 = vsel %vm3630, %v3623, %v3627
    %v3632 = vand.u32 2147483647, %v3622
    %vm3633 = vcmp.eq.f32.partialorder %v3632, 8.507059e+37
    %v3634 = vand.u32 %v3622, 2147483648
    %v3635 = vor.u32 1.1754944e-38, %v3634
    %v3636 = vsel %vm3633, %v3635, %v3631
    %v3637 = vmul.f32 1.0, %v3636
    %v3638 = vmul.f32 %v3637, %v3598
    %3640 = vrot.lane.b32.xlu0 %v3638, 32
    %v3641 = vpop.permute.xlu0 %3640
    %v3643 = vadd.f32 %v2511, %v3641
    %v3644 = vtanh.pop %v3643
    %v3645 = vsub.f32 1.0, %v3637
    %3647 = vrot.lane.b32.xlu0 %v3644, 112
    %v3648 = vpop.permute.xlu0 %3647
    %v3650 = vmul.f32 %v3645, %v3648
    %3651 = vrot.lane.b32.xlu0 %v3540, 48
    %v3652 = vpop.permute.xlu0 %3651
    %v3654 = vmul.f32 %v3637, %v3652
    %v3655 = vadd.f32 %v3650, %v3654
    %3657 = vst [vmem:[#allocation1] ss:$4 sm:$0xff] %v3617
    %v3658 = vld.sshfl [vmem:[#allocation1] sm:$0xff pattern:$0x73625140]
    %3659 = vrot.lane.b32.xlu0 %v3658, 112
    %v3660 = vpop.permute.xlu0 %3659
    %3663 = vst [vmem:[#allocation1] ss:$4 sm:$0xff] %v3655
    %v3664 = vld.sshfl [vmem:[#allocation1] sm:$0xff pattern:$0x73625140]
    %3665 = vrot.lane.b32.xlu0 %v3664, 80
    %v3666 = vpop.permute.xlu0 %3665
    %v3668 = vsel %vm165, %v3660, %v3666
    %3669 = vst [vmem:[#allocation1] ss:$4 sm:$0xff] %v3617
    %v3670 = vld.sshfl [vmem:[#allocation1] sm:$0xff pattern:$0x73625140]
    %3671 = vrot.lane.b32.xlu0 %v3670, 112
    %v3672 = vpop.permute.xlu0 %3671
    %3674 = vst.msk [vmem:[%s1395] sm:$0x3] %vm355, %v3672
    %3675 = vst [vmem:[#allocation1] ss:$4 sm:$0xff] %v3655
    %v3676 = vld.sshfl [vmem:[#allocation1] sm:$0xff pattern:$0x73625140]
    %3677 = vrot.lane.b32.xlu0 %v3676, 64
    %v3678 = vpop.permute.xlu0 %3677
    %3680 = vst.msk [vmem:[%s1402] sm:$0x3] %vm355, %v3678
    %v3682 = vsel %vm239, %v3668, 0
    %3684 = vmatpush.msra.mxu0 0.0
    %3685 = vmatpush.msra.mxu0 0.0
    %3686 = vmatpush.msra.mxu0 0.0
    %3687 = vmatpush.msra.mxu0 0.0
    %3688 = vmatpush.msra.mxu0 0.0
    %3689 = vmatpush.msra.mxu0 0.0
    %3690 = vmatpush.msra.mxu0 0.0
    %3691 = vmatpush.msra.mxu0 0.0
    %3692 = vmatpush.msra.mxu0 0.0
    %3693 = vmatpush.msra.mxu0 0.0
    %3694 = vmatpush.msra.mxu0 0.0
    %3695 = vmatpush.msra.mxu0 0.0
    %3696 = vmatpush.msra.mxu0 %v2533
    %3697 = vmatpush.msra.mxu0 %v2532
    %3698 = vmatpush.msra.mxu0 %v2531
    %3699 = vmatpush.msra.mxu0 %v2530
    %3700 = vmatmul.f32.gmra.mxu0 %v3682
    %v3701 = vpop.f32.mrf.mxu0
    %v3702 = vadd.f32 %v2536, %v3701
    %3703 = vdwg.mxu0
    %v3704 = vadd.f32 %v2512, %v3702
    %v3705 = vxor.u32 %v3704, 2147483648
    %v3706 = vmul.f32 %v3705, 1.442695
    %v3707 = vpow.pop %v3706
    %v3708 = vadd.f32 %v3707, 1.0
    %v3709 = vrcp.pop %v3708
    %v3710 = vmul.f32 %v3708, %v3709
    %v3711 = vsub.f32 1.0, %v3710
    %v3712 = vmul.f32 %v3709, %v3711
    %v3713 = vadd.f32 %v3709, %v3712
    %vm3714 = vweird.f32 %v3708
    %vm3715 = vweird.f32 %v3709
    %vm3716 = vmor %vm3714, %vm3715
    %v3717 = vsel %vm3716, %v3709, %v3713
    %v3718 = vand.u32 2147483647, %v3708
    %vm3719 = vcmp.eq.f32.partialorder %v3718, 8.507059e+37
    %v3720 = vand.u32 %v3708, 2147483648
    %v3721 = vor.u32 1.1754944e-38, %v3720
    %v3722 = vsel %vm3719, %v3721, %v3717
    %v3723 = vmul.f32 1.0, %v3722
    %3725 = vrot.lane.b32.xlu0 %v3702, 96
    %v3726 = vpop.permute.xlu0 %3725
    %v3728 = vmul.f32 %v3723, %v3726
    %3730 = vrot.lane.b32.xlu0 %v3728, 32
    %v3731 = vpop.permute.xlu0 %3730
    %v3733 = vadd.f32 %v2512, %v3731
    %v3734 = vtanh.pop %v3733
    %v3735 = vsub.f32 1.0, %v3723
    %3737 = vrot.lane.b32.xlu0 %v3734, 112
    %v3738 = vpop.permute.xlu0 %3737
    %v3740 = vmul.f32 %v3735, %v3738
    %3741 = vrot.lane.b32.xlu0 %v3668, 16
    %v3742 = vpop.permute.xlu0 %3741
    %v3744 = vmul.f32 %v3723, %v3742
    %v3745 = vadd.f32 %v3740, %v3744
    %v3746 = vadd.f32 %v2510, %v3702
    %v3747 = vxor.u32 %v3746, 2147483648
    %v3748 = vmul.f32 %v3747, 1.442695
    %v3749 = vpow.pop %v3748
    %v3750 = vadd.f32 %v3749, 1.0
    %v3751 = vrcp.pop %v3750
    %v3752 = vmul.f32 %v3750, %v3751
    %v3753 = vsub.f32 1.0, %v3752
    %v3754 = vmul.f32 %v3751, %v3753
    %v3755 = vadd.f32 %v3751, %v3754
    %vm3756 = vweird.f32 %v3750
    %vm3757 = vweird.f32 %v3751
    %vm3758 = vmor %vm3756, %vm3757
    %v3759 = vsel %vm3758, %v3751, %v3755
    %v3760 = vand.u32 2147483647, %v3750
    %vm3761 = vcmp.eq.f32.partialorder %v3760, 8.507059e+37
    %v3762 = vand.u32 %v3750, 2147483648
    %v3763 = vor.u32 1.1754944e-38, %v3762
    %v3764 = vsel %vm3761, %v3763, %v3759
    %v3765 = vmul.f32 1.0, %v3764
    %v3766 = vmul.f32 %v3765, %v3726
    %3768 = vrot.lane.b32.xlu0 %v3766, 32
    %v3769 = vpop.permute.xlu0 %3768
    %v3771 = vadd.f32 %v2510, %v3769
    %v3772 = vtanh.pop %v3771
    %v3773 = vsub.f32 1.0, %v3765
    %3775 = vrot.lane.b32.xlu0 %v3772, 112
    %v3776 = vpop.permute.xlu0 %3775
    %v3778 = vmul.f32 %v3773, %v3776
    %3779 = vrot.lane.b32.xlu0 %v3668, 48
    %v3780 = vpop.permute.xlu0 %3779
    %v3782 = vmul.f32 %v3765, %v3780
    %v3783 = vadd.f32 %v3778, %v3782
    %3785 = vst [vmem:[#allocation1] ss:$4 sm:$0xff] %v3745
    %v3786 = vld.sshfl [vmem:[#allocation1] sm:$0xff pattern:$0x73625140]
    %3787 = vrot.lane.b32.xlu0 %v3786, 112
    %v3788 = vpop.permute.xlu0 %3787
    %3791 = vst [vmem:[#allocation1] ss:$4 sm:$0xff] %v3783
    %v3792 = vld.sshfl [vmem:[#allocation1] sm:$0xff pattern:$0x73625140]
    %3793 = vrot.lane.b32.xlu0 %v3792, 80
    %v3794 = vpop.permute.xlu0 %3793
    %v3796 = vsel %vm165, %v3788, %v3794
    %3797 = vst [vmem:[#allocation1] ss:$4 sm:$0xff] %v3745
    %v3798 = vld.sshfl [vmem:[#allocation1] sm:$0xff pattern:$0x73625140]
    %3799 = vrot.lane.b32.xlu0 %v3798, 112
    %v3800 = vpop.permute.xlu0 %3799
    %3802 = vst.msk [vmem:[%s1525] sm:$0x3] %vm355, %v3800
    %3803 = vst [vmem:[#allocation1] ss:$4 sm:$0xff] %v3783
    %v3804 = vld.sshfl [vmem:[#allocation1] sm:$0xff pattern:$0x73625140]
    %3805 = vrot.lane.b32.xlu0 %v3804, 64
    %v3806 = vpop.permute.xlu0 %3805
    %3808 = vst.msk [vmem:[%s1532] sm:$0x3] %vm355, %v3806
    %v3810 = vsel %vm239, %v3796, 0
    %3812 = vmatpush.msra.mxu0 0.0
    %3813 = vmatpush.msra.mxu0 0.0
    %3814 = vmatpush.msra.mxu0 0.0
    %3815 = vmatpush.msra.mxu0 0.0
    %3816 = vmatpush.msra.mxu0 0.0
    %3817 = vmatpush.msra.mxu0 0.0
    %3818 = vmatpush.msra.mxu0 0.0
    %3819 = vmatpush.msra.mxu0 0.0
    %3820 = vmatpush.msra.mxu0 0.0
    %3821 = vmatpush.msra.mxu0 0.0
    %3822 = vmatpush.msra.mxu0 0.0
    %3823 = vmatpush.msra.mxu0 0.0
    %3824 = vmatpush.msra.mxu0 %v2533
    %3825 = vmatpush.msra.mxu0 %v2532
    %3826 = vmatpush.msra.mxu0 %v2531
    %3827 = vmatpush.msra.mxu0 %v2530
    %3828 = vmatmul.f32.gmra.mxu0 %v3810
    %v3829 = vpop.f32.mrf.mxu0
    %v3830 = vadd.f32 %v2536, %v3829
    %3831 = vdwg.mxu0
    %v3832 = vadd.f32 %v2513, %v3830
    %v3833 = vxor.u32 %v3832, 2147483648
    %v3834 = vmul.f32 %v3833, 1.442695
    %v3835 = vpow.pop %v3834
    %v3836 = vadd.f32 %v3835, 1.0
    %v3837 = vrcp.pop %v3836
    %v3838 = vmul.f32 %v3836, %v3837
    %v3839 = vsub.f32 1.0, %v3838
    %v3840 = vmul.f32 %v3837, %v3839
    %v3841 = vadd.f32 %v3837, %v3840
    %vm3842 = vweird.f32 %v3836
    %vm3843 = vweird.f32 %v3837
    %vm3844 = vmor %vm3842, %vm3843
    %v3845 = vsel %vm3844, %v3837, %v3841
    %v3846 = vand.u32 2147483647, %v3836
    %vm3847 = vcmp.eq.f32.partialorder %v3846, 8.507059e+37
    %v3848 = vand.u32 %v3836, 2147483648
    %v3849 = vor.u32 1.1754944e-38, %v3848
    %v3850 = vsel %vm3847, %v3849, %v3845
    %v3851 = vmul.f32 1.0, %v3850
    %3853 = vrot.lane.b32.xlu0 %v3830, 96
    %v3854 = vpop.permute.xlu0 %3853
    %v3856 = vmul.f32 %v3851, %v3854
    %3858 = vrot.lane.b32.xlu0 %v3856, 32
    %v3859 = vpop.permute.xlu0 %3858
    %v3861 = vadd.f32 %v2513, %v3859
    %v3862 = vtanh.pop %v3861
    %v3863 = vsub.f32 1.0, %v3851
    %3865 = vrot.lane.b32.xlu0 %v3862, 112
    %v3866 = vpop.permute.xlu0 %3865
    %v3868 = vmul.f32 %v3863, %v3866
    %3869 = vrot.lane.b32.xlu0 %v3796, 16
    %v3870 = vpop.permute.xlu0 %3869
    %v3872 = vmul.f32 %v3851, %v3870
    %v3873 = vadd.f32 %v3868, %v3872
    %v3874 = vadd.f32 %v2509, %v3830
    %v3875 = vxor.u32 %v3874, 2147483648
    %v3876 = vmul.f32 %v3875, 1.442695
    %v3877 = vpow.pop %v3876
    %v3878 = vadd.f32 %v3877, 1.0
    %v3879 = vrcp.pop %v3878
    %v3880 = vmul.f32 %v3878, %v3879
    %v3881 = vsub.f32 1.0, %v3880
    %v3882 = vmul.f32 %v3879, %v3881
    %v3883 = vadd.f32 %v3879, %v3882
    %vm3884 = vweird.f32 %v3878
    %vm3885 = vweird.f32 %v3879
    %vm3886 = vmor %vm3884, %vm3885
    %v3887 = vsel %vm3886, %v3879, %v3883
    %v3888 = vand.u32 2147483647, %v3878
    %vm3889 = vcmp.eq.f32.partialorder %v3888, 8.507059e+37
    %v3890 = vand.u32 %v3878, 2147483648
    %v3891 = vor.u32 1.1754944e-38, %v3890
    %v3892 = vsel %vm3889, %v3891, %v3887
    %v3893 = vmul.f32 1.0, %v3892
    %v3894 = vmul.f32 %v3893, %v3854
    %3896 = vrot.lane.b32.xlu0 %v3894, 32
    %v3897 = vpop.permute.xlu0 %3896
    %v3899 = vadd.f32 %v2509, %v3897
    %v3900 = vtanh.pop %v3899
    %v3901 = vsub.f32 1.0, %v3893
    %3903 = vrot.lane.b32.xlu0 %v3900, 112
    %v3904 = vpop.permute.xlu0 %3903
    %v3906 = vmul.f32 %v3901, %v3904
    %3907 = vrot.lane.b32.xlu0 %v3796, 48
    %v3908 = vpop.permute.xlu0 %3907
    %v3910 = vmul.f32 %v3893, %v3908
    %v3911 = vadd.f32 %v3906, %v3910
    %3913 = vst [vmem:[#allocation1] ss:$4 sm:$0xff] %v3873
    %v3914 = vld.sshfl [vmem:[#allocation1] sm:$0xff pattern:$0x73625140]
    %3915 = vrot.lane.b32.xlu0 %v3914, 112
    %v3916 = vpop.permute.xlu0 %3915
    %3919 = vst [vmem:[#allocation1] ss:$4 sm:$0xff] %v3911
    %v3920 = vld.sshfl [vmem:[#allocation1] sm:$0xff pattern:$0x73625140]
    %3921 = vrot.lane.b32.xlu0 %v3920, 80
    %v3922 = vpop.permute.xlu0 %3921
    %v3924 = vsel %vm165, %v3916, %v3922
    %3925 = vst [vmem:[#allocation1] ss:$4 sm:$0xff] %v3873
    %v3926 = vld.sshfl [vmem:[#allocation1] sm:$0xff pattern:$0x73625140]
    %3927 = vrot.lane.b32.xlu0 %v3926, 112
    %v3928 = vpop.permute.xlu0 %3927
    %3930 = vst.msk [vmem:[%s1655] sm:$0x3] %vm355, %v3928
    %3931 = vst [vmem:[#allocation1] ss:$4 sm:$0xff] %v3911
    %v3932 = vld.sshfl [vmem:[#allocation1] sm:$0xff pattern:$0x73625140]
    %3933 = vrot.lane.b32.xlu0 %v3932, 64
    %v3934 = vpop.permute.xlu0 %3933
    %3936 = vst.msk [vmem:[%s1662] sm:$0x3] %vm355, %v3934
    %v3938 = vsel %vm239, %v3924, 0
    %3940 = vmatpush.msra.mxu0 0.0
    %3941 = vmatpush.msra.mxu0 0.0
    %3942 = vmatpush.msra.mxu0 0.0
    %3943 = vmatpush.msra.mxu0 0.0
    %3944 = vmatpush.msra.mxu0 0.0
    %3945 = vmatpush.msra.mxu0 0.0
    %3946 = vmatpush.msra.mxu0 0.0
    %3947 = vmatpush.msra.mxu0 0.0
    %3948 = vmatpush.msra.mxu0 0.0
    %3949 = vmatpush.msra.mxu0 0.0
    %3950 = vmatpush.msra.mxu0 0.0
    %3951 = vmatpush.msra.mxu0 0.0
    %3952 = vmatpush.msra.mxu0 %v2533
    %3953 = vmatpush.msra.mxu0 %v2532
    %3954 = vmatpush.msra.mxu0 %v2531
    %3955 = vmatpush.msra.mxu0 %v2530
    %3956 = vmatmul.f32.gmra.mxu0 %v3938
    %v3957 = vpop.f32.mrf.mxu0
    %v3958 = vadd.f32 %v2536, %v3957
    %3959 = vdwg.mxu0
    %v3960 = vadd.f32 %v2514, %v3958
    %v3961 = vxor.u32 %v3960, 2147483648
    %v3962 = vmul.f32 %v3961, 1.442695
    %v3963 = vpow.pop %v3962
    %v3964 = vadd.f32 %v3963, 1.0
    %v3965 = vrcp.pop %v3964
    %v3966 = vmul.f32 %v3964, %v3965
    %v3967 = vsub.f32 1.0, %v3966
    %v3968 = vmul.f32 %v3965, %v3967
    %v3969 = vadd.f32 %v3965, %v3968
    %vm3970 = vweird.f32 %v3964
    %vm3971 = vweird.f32 %v3965
    %vm3972 = vmor %vm3970, %vm3971
    %v3973 = vsel %vm3972, %v3965, %v3969
    %v3974 = vand.u32 2147483647, %v3964
    %vm3975 = vcmp.eq.f32.partialorder %v3974, 8.507059e+37
    %v3976 = vand.u32 %v3964, 2147483648
    %v3977 = vor.u32 1.1754944e-38, %v3976
    %v3978 = vsel %vm3975, %v3977, %v3973
    %v3979 = vmul.f32 1.0, %v3978
    %3981 = vrot.lane.b32.xlu0 %v3958, 96
    %v3982 = vpop.permute.xlu0 %3981
    %v3984 = vmul.f32 %v3979, %v3982
    %3986 = vrot.lane.b32.xlu0 %v3984, 32
    %v3987 = vpop.permute.xlu0 %3986
    %v3989 = vadd.f32 %v2514, %v3987
    %v3990 = vtanh.pop %v3989
    %v3991 = vsub.f32 1.0, %v3979
    %3993 = vrot.lane.b32.xlu0 %v3990, 112
    %v3994 = vpop.permute.xlu0 %3993
    %v3996 = vmul.f32 %v3991, %v3994
    %3997 = vrot.lane.b32.xlu0 %v3924, 16
    %v3998 = vpop.permute.xlu0 %3997
    %v4000 = vmul.f32 %v3979, %v3998
    %v4001 = vadd.f32 %v3996, %v4000
    %v4002 = vadd.f32 %v2494, %v3958
    %v4003 = vxor.u32 %v4002, 2147483648
    %v4004 = vmul.f32 %v4003, 1.442695
    %v4005 = vpow.pop %v4004
    %v4006 = vadd.f32 %v4005, 1.0
    %v4007 = vrcp.pop %v4006
    %v4008 = vmul.f32 %v4006, %v4007
    %v4009 = vsub.f32 1.0, %v4008
    %v4010 = vmul.f32 %v4007, %v4009
    %v4011 = vadd.f32 %v4007, %v4010
    %vm4012 = vweird.f32 %v4006
    %vm4013 = vweird.f32 %v4007
    %vm4014 = vmor %vm4012, %vm4013
    %v4015 = vsel %vm4014, %v4007, %v4011
    %v4016 = vand.u32 2147483647, %v4006
    %vm4017 = vcmp.eq.f32.partialorder %v4016, 8.507059e+37
    %v4018 = vand.u32 %v4006, 2147483648
    %v4019 = vor.u32 1.1754944e-38, %v4018
    %v4020 = vsel %vm4017, %v4019, %v4015
    %v4021 = vmul.f32 1.0, %v4020
    %v4022 = vmul.f32 %v4021, %v3982
    %4024 = vrot.lane.b32.xlu0 %v4022, 32
    %v4025 = vpop.permute.xlu0 %4024
    %v4027 = vadd.f32 %v2494, %v4025
    %v4028 = vtanh.pop %v4027
    %v4029 = vsub.f32 1.0, %v4021
    %4031 = vrot.lane.b32.xlu0 %v4028, 112
    %v4032 = vpop.permute.xlu0 %4031
    %v4034 = vmul.f32 %v4029, %v4032
    %4035 = vrot.lane.b32.xlu0 %v3924, 48
    %v4036 = vpop.permute.xlu0 %4035
    %v4038 = vmul.f32 %v4021, %v4036
    %v4039 = vadd.f32 %v4034, %v4038
    %4041 = vst [vmem:[#allocation1] ss:$4 sm:$0xff] %v4001
    %v4042 = vld.sshfl [vmem:[#allocation1] sm:$0xff pattern:$0x73625140]
    %4043 = vrot.lane.b32.xlu0 %v4042, 112
    %v4044 = vpop.permute.xlu0 %4043
    %4047 = vst [vmem:[#allocation1] ss:$4 sm:$0xff] %v4039
    %v4048 = vld.sshfl [vmem:[#allocation1] sm:$0xff pattern:$0x73625140]
    %4049 = vrot.lane.b32.xlu0 %v4048, 80
    %v4050 = vpop.permute.xlu0 %4049
    %v4052 = vsel %vm165, %v4044, %v4050
    %4053 = vst [vmem:[#allocation1] ss:$4 sm:$0xff] %v4001
    %v4054 = vld.sshfl [vmem:[#allocation1] sm:$0xff pattern:$0x73625140]
    %4055 = vrot.lane.b32.xlu0 %v4054, 112
    %v4056 = vpop.permute.xlu0 %4055
    %4058 = vst.msk [vmem:[%s1785] sm:$0x3] %vm355, %v4056
    %4059 = vst [vmem:[#allocation1] ss:$4 sm:$0xff] %v4039
    %v4060 = vld.sshfl [vmem:[#allocation1] sm:$0xff pattern:$0x73625140]
    %4061 = vrot.lane.b32.xlu0 %v4060, 64
    %v4062 = vpop.permute.xlu0 %4061
    %4064 = vst.msk [vmem:[%s1792] sm:$0x3] %vm355, %v4062
    %v4066 = vsel %vm239, %v4052, 0
    %4068 = vmatpush.msra.mxu0 0.0
    %4069 = vmatpush.msra.mxu0 0.0
    %4070 = vmatpush.msra.mxu0 0.0
    %4071 = vmatpush.msra.mxu0 0.0
    %4072 = vmatpush.msra.mxu0 0.0
    %4073 = vmatpush.msra.mxu0 0.0
    %4074 = vmatpush.msra.mxu0 0.0
    %4075 = vmatpush.msra.mxu0 0.0
    %4076 = vmatpush.msra.mxu0 0.0
    %4077 = vmatpush.msra.mxu0 0.0
    %4078 = vmatpush.msra.mxu0 0.0
    %4079 = vmatpush.msra.mxu0 0.0
    %4080 = vmatpush.msra.mxu0 %v2533
    %4081 = vmatpush.msra.mxu0 %v2532
    %4082 = vmatpush.msra.mxu0 %v2531
    %4083 = vmatpush.msra.mxu0 %v2530
    %4084 = vmatmul.f32.gmra.mxu0 %v4066
    %v4085 = vpop.f32.mrf.mxu0
    %v4086 = vadd.f32 %v2536, %v4085
    %4087 = vdwg.mxu0
    %v4088 = vadd.f32 %v2500, %v4086
    %v4089 = vxor.u32 %v4088, 2147483648
    %v4090 = vmul.f32 %v4089, 1.442695
    %v4091 = vpow.pop %v4090
    %v4092 = vadd.f32 %v4091, 1.0
    %v4093 = vrcp.pop %v4092
    %v4094 = vmul.f32 %v4092, %v4093
    %v4095 = vsub.f32 1.0, %v4094
    %v4096 = vmul.f32 %v4093, %v4095
    %v4097 = vadd.f32 %v4093, %v4096
    %vm4098 = vweird.f32 %v4092
    %vm4099 = vweird.f32 %v4093
    %vm4100 = vmor %vm4098, %vm4099
    %v4101 = vsel %vm4100, %v4093, %v4097
    %v4102 = vand.u32 2147483647, %v4092
    %vm4103 = vcmp.eq.f32.partialorder %v4102, 8.507059e+37
    %v4104 = vand.u32 %v4092, 2147483648
    %v4105 = vor.u32 1.1754944e-38, %v4104
    %v4106 = vsel %vm4103, %v4105, %v4101
    %v4107 = vmul.f32 1.0, %v4106
    %4109 = vrot.lane.b32.xlu0 %v4086, 96
    %v4110 = vpop.permute.xlu0 %4109
    %v4112 = vmul.f32 %v4107, %v4110
    %4114 = vrot.lane.b32.xlu0 %v4112, 32
    %v4115 = vpop.permute.xlu0 %4114
    %v4117 = vadd.f32 %v2500, %v4115
    %v4118 = vtanh.pop %v4117
    %v4119 = vsub.f32 1.0, %v4107
    %4121 = vrot.lane.b32.xlu0 %v4118, 112
    %v4122 = vpop.permute.xlu0 %4121
    %v4124 = vmul.f32 %v4119, %v4122
    %4125 = vrot.lane.b32.xlu0 %v4052, 16
    %v4126 = vpop.permute.xlu0 %4125
    %v4128 = vmul.f32 %v4107, %v4126
    %v4129 = vadd.f32 %v4124, %v4128
    %v4130 = vadd.f32 %v2508, %v4086
    %v4131 = vxor.u32 %v4130, 2147483648
    %v4132 = vmul.f32 %v4131, 1.442695
    %v4133 = vpow.pop %v4132
    %v4134 = vadd.f32 %v4133, 1.0
    %v4135 = vrcp.pop %v4134
    %v4136 = vmul.f32 %v4134, %v4135
    %v4137 = vsub.f32 1.0, %v4136
    %v4138 = vmul.f32 %v4135, %v4137
    %v4139 = vadd.f32 %v4135, %v4138
    %vm4140 = vweird.f32 %v4134
    %vm4141 = vweird.f32 %v4135
    %vm4142 = vmor %vm4140, %vm4141
    %v4143 = vsel %vm4142, %v4135, %v4139
    %v4144 = vand.u32 2147483647, %v4134
    %vm4145 = vcmp.eq.f32.partialorder %v4144, 8.507059e+37
    %v4146 = vand.u32 %v4134, 2147483648
    %v4147 = vor.u32 1.1754944e-38, %v4146
    %v4148 = vsel %vm4145, %v4147, %v4143
    %v4149 = vmul.f32 1.0, %v4148
    %v4150 = vmul.f32 %v4149, %v4110
    %4152 = vrot.lane.b32.xlu0 %v4150, 32
    %v4153 = vpop.permute.xlu0 %4152
    %v4155 = vadd.f32 %v2508, %v4153
    %v4156 = vtanh.pop %v4155
    %v4157 = vsub.f32 1.0, %v4149
    %4159 = vrot.lane.b32.xlu0 %v4156, 112
    %v4160 = vpop.permute.xlu0 %4159
    %v4162 = vmul.f32 %v4157, %v4160
    %4163 = vrot.lane.b32.xlu0 %v4052, 48
    %v4164 = vpop.permute.xlu0 %4163
    %v4166 = vmul.f32 %v4149, %v4164
    %v4167 = vadd.f32 %v4162, %v4166
    %4169 = vst [vmem:[#allocation1] ss:$4 sm:$0xff] %v4129
    %v4170 = vld.sshfl [vmem:[#allocation1] sm:$0xff pattern:$0x73625140]
    %4171 = vrot.lane.b32.xlu0 %v4170, 112
    %v4172 = vpop.permute.xlu0 %4171
    %4175 = vst [vmem:[#allocation1] ss:$4 sm:$0xff] %v4167
    %v4176 = vld.sshfl [vmem:[#allocation1] sm:$0xff pattern:$0x73625140]
    %4177 = vrot.lane.b32.xlu0 %v4176, 80
    %v4178 = vpop.permute.xlu0 %4177
    %v4180 = vsel %vm165, %v4172, %v4178
    %4181 = vst [vmem:[#allocation1] ss:$4 sm:$0xff] %v4129
    %v4182 = vld.sshfl [vmem:[#allocation1] sm:$0xff pattern:$0x73625140]
    %4183 = vrot.lane.b32.xlu0 %v4182, 112
    %v4184 = vpop.permute.xlu0 %4183
    %4186 = vst.msk [vmem:[%s1915] sm:$0x3] %vm355, %v4184
    %4187 = vst [vmem:[#allocation1] ss:$4 sm:$0xff] %v4167
    %v4188 = vld.sshfl [vmem:[#allocation1] sm:$0xff pattern:$0x73625140]
    %4189 = vrot.lane.b32.xlu0 %v4188, 64
    %v4190 = vpop.permute.xlu0 %4189
    %4192 = vst.msk [vmem:[%s1922] sm:$0x3] %vm355, %v4190
    %v4194 = vsel %vm239, %v4180, 0
    %4196 = vmatpush.msra.mxu0 0.0
    %4197 = vmatpush.msra.mxu0 0.0
    %4198 = vmatpush.msra.mxu0 0.0
    %4199 = vmatpush.msra.mxu0 0.0
    %4200 = vmatpush.msra.mxu0 0.0
    %4201 = vmatpush.msra.mxu0 0.0
    %4202 = vmatpush.msra.mxu0 0.0
    %4203 = vmatpush.msra.mxu0 0.0
    %4204 = vmatpush.msra.mxu0 0.0
    %4205 = vmatpush.msra.mxu0 0.0
    %4206 = vmatpush.msra.mxu0 0.0
    %4207 = vmatpush.msra.mxu0 0.0
    %4208 = vmatpush.msra.mxu0 %v2533
    %4209 = vmatpush.msra.mxu0 %v2532
    %4210 = vmatpush.msra.mxu0 %v2531
    %4211 = vmatpush.msra.mxu0 %v2530
    %4212 = vmatmul.f32.gmra.mxu0 %v4194
    %v4213 = vpop.f32.mrf.mxu0
    %v4214 = vadd.f32 %v2536, %v4213
    %4215 = vdwg.mxu0
    %v4216 = vadd.f32 %v2515, %v4214
    %v4217 = vxor.u32 %v4216, 2147483648
    %v4218 = vmul.f32 %v4217, 1.442695
    %v4219 = vpow.pop %v4218
    %v4220 = vadd.f32 %v4219, 1.0
    %v4221 = vrcp.pop %v4220
    %v4222 = vmul.f32 %v4220, %v4221
    %v4223 = vsub.f32 1.0, %v4222
    %v4224 = vmul.f32 %v4221, %v4223
    %v4225 = vadd.f32 %v4221, %v4224
    %vm4226 = vweird.f32 %v4220
    %vm4227 = vweird.f32 %v4221
    %vm4228 = vmor %vm4226, %vm4227
    %v4229 = vsel %vm4228, %v4221, %v4225
    %v4230 = vand.u32 2147483647, %v4220
    %vm4231 = vcmp.eq.f32.partialorder %v4230, 8.507059e+37
    %v4232 = vand.u32 %v4220, 2147483648
    %v4233 = vor.u32 1.1754944e-38, %v4232
    %v4234 = vsel %vm4231, %v4233, %v4229
    %v4235 = vmul.f32 1.0, %v4234
    %4237 = vrot.lane.b32.xlu0 %v4214, 96
    %v4238 = vpop.permute.xlu0 %4237
    %v4240 = vmul.f32 %v4235, %v4238
    %4242 = vrot.lane.b32.xlu0 %v4240, 32
    %v4243 = vpop.permute.xlu0 %4242
    %v4245 = vadd.f32 %v2515, %v4243
    %v4246 = vtanh.pop %v4245
    %v4247 = vsub.f32 1.0, %v4235
    %4249 = vrot.lane.b32.xlu0 %v4246, 112
    %v4250 = vpop.permute.xlu0 %4249
    %v4252 = vmul.f32 %v4247, %v4250
    %4253 = vrot.lane.b32.xlu0 %v4180, 16
    %v4254 = vpop.permute.xlu0 %4253
    %v4256 = vmul.f32 %v4235, %v4254
    %v4257 = vadd.f32 %v4252, %v4256
    %v4258 = vadd.f32 %v2507, %v4214
    %v4259 = vxor.u32 %v4258, 2147483648
    %v4260 = vmul.f32 %v4259, 1.442695
    %v4261 = vpow.pop %v4260
    %v4262 = vadd.f32 %v4261, 1.0
    %v4263 = vrcp.pop %v4262
    %v4264 = vmul.f32 %v4262, %v4263
    %v4265 = vsub.f32 1.0, %v4264
    %v4266 = vmul.f32 %v4263, %v4265
    %v4267 = vadd.f32 %v4263, %v4266
    %vm4268 = vweird.f32 %v4262
    %vm4269 = vweird.f32 %v4263
    %vm4270 = vmor %vm4268, %vm4269
    %v4271 = vsel %vm4270, %v4263, %v4267
    %v4272 = vand.u32 2147483647, %v4262
    %vm4273 = vcmp.eq.f32.partialorder %v4272, 8.507059e+37
    %v4274 = vand.u32 %v4262, 2147483648
    %v4275 = vor.u32 1.1754944e-38, %v4274
    %v4276 = vsel %vm4273, %v4275, %v4271
    %v4277 = vmul.f32 1.0, %v4276
    %v4278 = vmul.f32 %v4277, %v4238
    %4280 = vrot.lane.b32.xlu0 %v4278, 32
    %v4281 = vpop.permute.xlu0 %4280
    %v4283 = vadd.f32 %v2507, %v4281
    %v4284 = vtanh.pop %v4283
    %v4285 = vsub.f32 1.0, %v4277
    %4287 = vrot.lane.b32.xlu0 %v4284, 112
    %v4288 = vpop.permute.xlu0 %4287
    %v4290 = vmul.f32 %v4285, %v4288
    %4291 = vrot.lane.b32.xlu0 %v4180, 48
    %v4292 = vpop.permute.xlu0 %4291
    %v4294 = vmul.f32 %v4277, %v4292
    %v4295 = vadd.f32 %v4290, %v4294
    %4297 = vst [vmem:[#allocation1] ss:$4 sm:$0xff] %v4257
    %v4298 = vld.sshfl [vmem:[#allocation1] sm:$0xff pattern:$0x73625140]
    %4299 = vrot.lane.b32.xlu0 %v4298, 112
    %v4300 = vpop.permute.xlu0 %4299
    %4303 = vst [vmem:[#allocation1] ss:$4 sm:$0xff] %v4295
    %v4304 = vld.sshfl [vmem:[#allocation1] sm:$0xff pattern:$0x73625140]
    %4305 = vrot.lane.b32.xlu0 %v4304, 80
    %v4306 = vpop.permute.xlu0 %4305
    %v4308 = vsel %vm165, %v4300, %v4306
    %4309 = vst [vmem:[#allocation1] ss:$4 sm:$0xff] %v4257
    %v4310 = vld.sshfl [vmem:[#allocation1] sm:$0xff pattern:$0x73625140]
    %4311 = vrot.lane.b32.xlu0 %v4310, 112
    %v4312 = vpop.permute.xlu0 %4311
    %4314 = vst.msk [vmem:[%s2045] sm:$0x3] %vm355, %v4312
    %4315 = vst [vmem:[#allocation1] ss:$4 sm:$0xff] %v4295
    %v4316 = vld.sshfl [vmem:[#allocation1] sm:$0xff pattern:$0x73625140]
    %4317 = vrot.lane.b32.xlu0 %v4316, 64
    %v4318 = vpop.permute.xlu0 %4317
    %4320 = vst.msk [vmem:[%s2052] sm:$0x3] %vm355, %v4318
    %v4322 = vsel %vm239, %v4308, 0
    %4324 = vmatpush.msra.mxu0 0.0
    %4325 = vmatpush.msra.mxu0 0.0
    %4326 = vmatpush.msra.mxu0 0.0
    %4327 = vmatpush.msra.mxu0 0.0
    %4328 = vmatpush.msra.mxu0 0.0
    %4329 = vmatpush.msra.mxu0 0.0
    %4330 = vmatpush.msra.mxu0 0.0
    %4331 = vmatpush.msra.mxu0 0.0
    %4332 = vmatpush.msra.mxu0 0.0
    %4333 = vmatpush.msra.mxu0 0.0
    %4334 = vmatpush.msra.mxu0 0.0
    %4335 = vmatpush.msra.mxu0 0.0
    %4336 = vmatpush.msra.mxu0 %v2533
    %4337 = vmatpush.msra.mxu0 %v2532
    %4338 = vmatpush.msra.mxu0 %v2531
    %4339 = vmatpush.msra.mxu0 %v2530
    %4340 = vmatmul.f32.gmra.mxu0 %v4322
    %v4341 = vpop.f32.mrf.mxu0
    %v4342 = vadd.f32 %v2536, %v4341
    %4343 = vdwg.mxu0
    %v4344 = vadd.f32 %v2516, %v4342
    %v4345 = vxor.u32 %v4344, 2147483648
    %v4346 = vmul.f32 %v4345, 1.442695
    %v4347 = vpow.pop %v4346
    %v4348 = vadd.f32 %v4347, 1.0
    %v4349 = vrcp.pop %v4348
    %v4350 = vmul.f32 %v4348, %v4349
    %v4351 = vsub.f32 1.0, %v4350
    %v4352 = vmul.f32 %v4349, %v4351
    %v4353 = vadd.f32 %v4349, %v4352
    %vm4354 = vweird.f32 %v4348
    %vm4355 = vweird.f32 %v4349
    %vm4356 = vmor %vm4354, %vm4355
    %v4357 = vsel %vm4356, %v4349, %v4353
    %v4358 = vand.u32 2147483647, %v4348
    %vm4359 = vcmp.eq.f32.partialorder %v4358, 8.507059e+37
    %v4360 = vand.u32 %v4348, 2147483648
    %v4361 = vor.u32 1.1754944e-38, %v4360
    %v4362 = vsel %vm4359, %v4361, %v4357
    %v4363 = vmul.f32 1.0, %v4362
    %4365 = vrot.lane.b32.xlu0 %v4342, 96
    %v4366 = vpop.permute.xlu0 %4365
    %v4368 = vmul.f32 %v4363, %v4366
    %4370 = vrot.lane.b32.xlu0 %v4368, 32
    %v4371 = vpop.permute.xlu0 %4370
    %v4373 = vadd.f32 %v2516, %v4371
    %v4374 = vtanh.pop %v4373
    %v4375 = vsub.f32 1.0, %v4363
    %4377 = vrot.lane.b32.xlu0 %v4374, 112
    %v4378 = vpop.permute.xlu0 %4377
    %v4380 = vmul.f32 %v4375, %v4378
    %4381 = vrot.lane.b32.xlu0 %v4308, 16
    %v4382 = vpop.permute.xlu0 %4381
    %v4384 = vmul.f32 %v4363, %v4382
    %v4385 = vadd.f32 %v4380, %v4384
    %v4386 = vadd.f32 %v2506, %v4342
    %v4387 = vxor.u32 %v4386, 2147483648
    %v4388 = vmul.f32 %v4387, 1.442695
    %v4389 = vpow.pop %v4388
    %v4390 = vadd.f32 %v4389, 1.0
    %v4391 = vrcp.pop %v4390
    %v4392 = vmul.f32 %v4390, %v4391
    %v4393 = vsub.f32 1.0, %v4392
    %v4394 = vmul.f32 %v4391, %v4393
    %v4395 = vadd.f32 %v4391, %v4394
    %vm4396 = vweird.f32 %v4390
    %vm4397 = vweird.f32 %v4391
    %vm4398 = vmor %vm4396, %vm4397
    %v4399 = vsel %vm4398, %v4391, %v4395
    %v4400 = vand.u32 2147483647, %v4390
    %vm4401 = vcmp.eq.f32.partialorder %v4400, 8.507059e+37
    %v4402 = vand.u32 %v4390, 2147483648
    %v4403 = vor.u32 1.1754944e-38, %v4402
    %v4404 = vsel %vm4401, %v4403, %v4399
    %v4405 = vmul.f32 1.0, %v4404
    %v4406 = vmul.f32 %v4405, %v4366
    %4408 = vrot.lane.b32.xlu0 %v4406, 32
    %v4409 = vpop.permute.xlu0 %4408
    %v4411 = vadd.f32 %v2506, %v4409
    %v4412 = vtanh.pop %v4411
    %v4413 = vsub.f32 1.0, %v4405
    %4415 = vrot.lane.b32.xlu0 %v4412, 112
    %v4416 = vpop.permute.xlu0 %4415
    %v4418 = vmul.f32 %v4413, %v4416
    %4419 = vrot.lane.b32.xlu0 %v4308, 48
    %v4420 = vpop.permute.xlu0 %4419
    %v4422 = vmul.f32 %v4405, %v4420
    %v4423 = vadd.f32 %v4418, %v4422
    %4425 = vst [vmem:[#allocation1] ss:$4 sm:$0xff] %v4385
    %v4426 = vld.sshfl [vmem:[#allocation1] sm:$0xff pattern:$0x73625140]
    %4427 = vrot.lane.b32.xlu0 %v4426, 112
    %v4428 = vpop.permute.xlu0 %4427
    %4431 = vst [vmem:[#allocation1] ss:$4 sm:$0xff] %v4423
    %v4432 = vld.sshfl [vmem:[#allocation1] sm:$0xff pattern:$0x73625140]
    %4433 = vrot.lane.b32.xlu0 %v4432, 80
    %v4434 = vpop.permute.xlu0 %4433
    %v4436 = vsel %vm165, %v4428, %v4434
    %4437 = vst [vmem:[#allocation1] ss:$4 sm:$0xff] %v4385
    %v4438 = vld.sshfl [vmem:[#allocation1] sm:$0xff pattern:$0x73625140]
    %4439 = vrot.lane.b32.xlu0 %v4438, 112
    %v4440 = vpop.permute.xlu0 %4439
    %4442 = vst.msk [vmem:[%s2175] sm:$0x3] %vm355, %v4440
    %4443 = vst [vmem:[#allocation1] ss:$4 sm:$0xff] %v4423
    %v4444 = vld.sshfl [vmem:[#allocation1] sm:$0xff pattern:$0x73625140]
    %4445 = vrot.lane.b32.xlu0 %v4444, 64
    %v4446 = vpop.permute.xlu0 %4445
    %4448 = vst.msk [vmem:[%s2182] sm:$0x3] %vm355, %v4446
    %v4450 = vsel %vm239, %v4436, 0
    %4452 = vmatpush.msra.mxu0 0.0
    %4453 = vmatpush.msra.mxu0 0.0
    %4454 = vmatpush.msra.mxu0 0.0
    %4455 = vmatpush.msra.mxu0 0.0
    %4456 = vmatpush.msra.mxu0 0.0
    %4457 = vmatpush.msra.mxu0 0.0
    %4458 = vmatpush.msra.mxu0 0.0
    %4459 = vmatpush.msra.mxu0 0.0
    %4460 = vmatpush.msra.mxu0 0.0
    %4461 = vmatpush.msra.mxu0 0.0
    %4462 = vmatpush.msra.mxu0 0.0
    %4463 = vmatpush.msra.mxu0 0.0
    %4464 = vmatpush.msra.mxu0 %v2533
    %4465 = vmatpush.msra.mxu0 %v2532
    %4466 = vmatpush.msra.mxu0 %v2531
    %4467 = vmatpush.msra.mxu0 %v2530
    %4468 = vmatmul.f32.gmra.mxu0 %v4450
    %v4469 = vpop.f32.mrf.mxu0
    %v4470 = vadd.f32 %v2536, %v4469
    %4471 = vdwg.mxu0
    %v4472 = vadd.f32 %v2517, %v4470
    %v4473 = vxor.u32 %v4472, 2147483648
    %v4474 = vmul.f32 %v4473, 1.442695
    %v4475 = vpow.pop %v4474
    %v4476 = vadd.f32 %v4475, 1.0
    %v4477 = vrcp.pop %v4476
    %v4478 = vmul.f32 %v4476, %v4477
    %v4479 = vsub.f32 1.0, %v4478
    %v4480 = vmul.f32 %v4477, %v4479
    %v4481 = vadd.f32 %v4477, %v4480
    %vm4482 = vweird.f32 %v4476
    %vm4483 = vweird.f32 %v4477
    %vm4484 = vmor %vm4482, %vm4483
    %v4485 = vsel %vm4484, %v4477, %v4481
    %v4486 = vand.u32 2147483647, %v4476
    %vm4487 = vcmp.eq.f32.partialorder %v4486, 8.507059e+37
    %v4488 = vand.u32 %v4476, 2147483648
    %v4489 = vor.u32 1.1754944e-38, %v4488
    %v4490 = vsel %vm4487, %v4489, %v4485
    %v4491 = vmul.f32 1.0, %v4490
    %4493 = vrot.lane.b32.xlu0 %v4470, 96
    %v4494 = vpop.permute.xlu0 %4493
    %v4496 = vmul.f32 %v4491, %v4494
    %4498 = vrot.lane.b32.xlu0 %v4496, 32
    %v4499 = vpop.permute.xlu0 %4498
    %v4501 = vadd.f32 %v2517, %v4499
    %v4502 = vtanh.pop %v4501
    %v4503 = vsub.f32 1.0, %v4491
    %4505 = vrot.lane.b32.xlu0 %v4502, 112
    %v4506 = vpop.permute.xlu0 %4505
    %v4508 = vmul.f32 %v4503, %v4506
    %4509 = vrot.lane.b32.xlu0 %v4436, 16
    %v4510 = vpop.permute.xlu0 %4509
    %v4512 = vmul.f32 %v4491, %v4510
    %v4513 = vadd.f32 %v4508, %v4512
    %v4514 = vadd.f32 %v2491, %v4470
    %v4515 = vxor.u32 %v4514, 2147483648
    %v4516 = vmul.f32 %v4515, 1.442695
    %v4517 = vpow.pop %v4516
    %v4518 = vadd.f32 %v4517, 1.0
    %v4519 = vrcp.pop %v4518
    %v4520 = vmul.f32 %v4518, %v4519
    %v4521 = vsub.f32 1.0, %v4520
    %v4522 = vmul.f32 %v4519, %v4521
    %v4523 = vadd.f32 %v4519, %v4522
    %vm4524 = vweird.f32 %v4518
    %vm4525 = vweird.f32 %v4519
    %vm4526 = vmor %vm4524, %vm4525
    %v4527 = vsel %vm4526, %v4519, %v4523
    %v4528 = vand.u32 2147483647, %v4518
    %vm4529 = vcmp.eq.f32.partialorder %v4528, 8.507059e+37
    %v4530 = vand.u32 %v4518, 2147483648
    %v4531 = vor.u32 1.1754944e-38, %v4530
    %v4532 = vsel %vm4529, %v4531, %v4527
    %v4533 = vmul.f32 1.0, %v4532
    %v4534 = vmul.f32 %v4533, %v4494
    %4536 = vrot.lane.b32.xlu0 %v4534, 32
    %v4537 = vpop.permute.xlu0 %4536
    %v4539 = vadd.f32 %v2491, %v4537
    %v4540 = vtanh.pop %v4539
    %v4541 = vsub.f32 1.0, %v4533
    %4543 = vrot.lane.b32.xlu0 %v4540, 112
    %v4544 = vpop.permute.xlu0 %4543
    %v4546 = vmul.f32 %v4541, %v4544
    %4547 = vrot.lane.b32.xlu0 %v4436, 48
    %v4548 = vpop.permute.xlu0 %4547
    %v4550 = vmul.f32 %v4533, %v4548
    %v4551 = vadd.f32 %v4546, %v4550
    %4553 = vst [vmem:[#allocation1] ss:$4 sm:$0xff] %v4513
    %v4554 = vld.sshfl [vmem:[#allocation1] sm:$0xff pattern:$0x73625140]
    %4555 = vrot.lane.b32.xlu0 %v4554, 112
    %v4556 = vpop.permute.xlu0 %4555
    %4558 = vst.msk [vmem:[%s2293] sm:$0x3] %vm355, %v4556
    %4560 = vst [vmem:[#allocation1] ss:$4 sm:$0xff] %v4551
    %v4561 = vld.sshfl [vmem:[#allocation1] sm:$0xff pattern:$0x73625140]
    %4562 = vrot.lane.b32.xlu0 %v4561, 64
    %v4563 = vpop.permute.xlu0 %4562
    %4565 = vst.msk [vmem:[#allocation3] sm:$0x3] %vm355, %v4563
    %v4566 = vld [vmem:[#allocation2] sm:$0x3]
    %v4567 = vld [vmem:[#allocation2 + $0x2] sm:$0x3]
    %v4568 = vld [vmem:[#allocation2 + $0x4] sm:$0x3]
    %v4569 = vld [vmem:[#allocation2 + $0x6] sm:$0x3]
    %v4570 = vld [vmem:[#allocation2 + $0x8] sm:$0x3]
    %v4571 = vld [vmem:[#allocation2 + $0xa] sm:$0x3]
    %v4572 = vld [vmem:[#allocation2 + $0xc] sm:$0x3]
    %v4573 = vld [vmem:[#allocation2 + $0xe] sm:$0x3]
    %v4574 = vld [vmem:[#allocation2 + $0x10] sm:$0x3]
    %v4575 = vld [vmem:[#allocation2 + $0x12] sm:$0x3]
    %v4576 = vld [vmem:[#allocation2 + $0x14] sm:$0x3]
    %v4577 = vld [vmem:[#allocation2 + $0x16] sm:$0x3]
    %v4578 = vld [vmem:[#allocation2 + $0x18] sm:$0x3]
    %v4579 = vld [vmem:[#allocation2 + $0x1a] sm:$0x3]
    %v4580 = vld [vmem:[#allocation2 + $0x1c] sm:$0x3]
    %v4581 = vld [vmem:[#allocation2 + $0x1e] sm:$0x3]
    %v4582 = vld [vmem:[#allocation3] sm:$0x3]
    %v4583 = vld [vmem:[#allocation3 + $0x2] sm:$0x3]
    %v4584 = vld [vmem:[#allocation3 + $0x4] sm:$0x3]
    %v4585 = vld [vmem:[#allocation3 + $0x6] sm:$0x3]
    %v4586 = vld [vmem:[#allocation3 + $0x8] sm:$0x3]
    %v4587 = vld [vmem:[#allocation3 + $0xa] sm:$0x3]
    %v4588 = vld [vmem:[#allocation3 + $0xc] sm:$0x3]
    %v4589 = vld [vmem:[#allocation3 + $0xe] sm:$0x3]
    %v4590 = vld [vmem:[#allocation3 + $0x10] sm:$0x3]
    %v4591 = vld [vmem:[#allocation3 + $0x12] sm:$0x3]
    %v4592 = vld [vmem:[#allocation3 + $0x14] sm:$0x3]
    %v4593 = vld [vmem:[#allocation3 + $0x16] sm:$0x3]
    %v4594 = vld [vmem:[#allocation3 + $0x18] sm:$0x3]
    %v4595 = vld [vmem:[#allocation3 + $0x1a] sm:$0x3]
    %v4596 = vld [vmem:[#allocation3 + $0x1c] sm:$0x3]
    %v4597 = vld [vmem:[#allocation3 + $0x1e] sm:$0x3]
    %4614 = vrot.lane.b32.xlu0 %v4582, 16
    %v4615 = vpop.permute.xlu0 %4614
    %4616 = vrot.lane.b32.xlu0 %v4583, 16
    %v4617 = vpop.permute.xlu0 %4616
    %4618 = vrot.lane.b32.xlu0 %v4584, 16
    %v4619 = vpop.permute.xlu0 %4618
    %4620 = vrot.lane.b32.xlu0 %v4585, 16
    %v4621 = vpop.permute.xlu0 %4620
    %4622 = vrot.lane.b32.xlu0 %v4586, 16
    %v4623 = vpop.permute.xlu0 %4622
    %4624 = vrot.lane.b32.xlu0 %v4587, 16
    %v4625 = vpop.permute.xlu0 %4624
    %4626 = vrot.lane.b32.xlu0 %v4588, 16
    %v4627 = vpop.permute.xlu0 %4626
    %4628 = vrot.lane.b32.xlu0 %v4589, 16
    %v4629 = vpop.permute.xlu0 %4628
    %4630 = vrot.lane.b32.xlu0 %v4590, 16
    %v4631 = vpop.permute.xlu0 %4630
    %4632 = vrot.lane.b32.xlu0 %v4591, 16
    %v4633 = vpop.permute.xlu0 %4632
    %4634 = vrot.lane.b32.xlu0 %v4592, 16
    %v4635 = vpop.permute.xlu0 %4634
    %4636 = vrot.lane.b32.xlu0 %v4593, 16
    %v4637 = vpop.permute.xlu0 %4636
    %4638 = vrot.lane.b32.xlu0 %v4594, 16
    %v4639 = vpop.permute.xlu0 %4638
    %4640 = vrot.lane.b32.xlu0 %v4595, 16
    %v4641 = vpop.permute.xlu0 %4640
    %4642 = vrot.lane.b32.xlu0 %v4596, 16
    %v4643 = vpop.permute.xlu0 %4642
    %4644 = vrot.lane.b32.xlu0 %v4597, 16
    %v4645 = vpop.permute.xlu0 %4644
    %v4662 = vsel %vm165, %v4566, %v4615
    %v4663 = vsel %vm165, %v4567, %v4617
    %v4664 = vsel %vm165, %v4568, %v4619
    %v4665 = vsel %vm165, %v4569, %v4621
    %v4666 = vsel %vm165, %v4570, %v4623
    %v4667 = vsel %vm165, %v4571, %v4625
    %v4668 = vsel %vm165, %v4572, %v4627
    %v4669 = vsel %vm165, %v4573, %v4629
    %v4670 = vsel %vm165, %v4574, %v4631
    %v4671 = vsel %vm165, %v4575, %v4633
    %v4672 = vsel %vm165, %v4576, %v4635
    %v4673 = vsel %vm165, %v4577, %v4637
    %v4674 = vsel %vm165, %v4578, %v4639
    %v4675 = vsel %vm165, %v4579, %v4641
    %v4676 = vsel %vm165, %v4580, %v4643
    %v4677 = vsel %vm165, %v4581, %v4645
    %4678 = vst [vmem:[#allocation1] ss:$4 sm:$0xff] %v132
    %v4679 = vld.sshfl [vmem:[#allocation1] sm:$0xff pattern:$0x73625140]
    %s4680 = scalar_lea.vmem [#allocation1], 32
    %4681 = vst [vmem:[%s4680] ss:$4 sm:$0xff] %v147
    %v4682 = vld.sshfl [vmem:[#allocation1 + $0x20] sm:$0xff pattern:$0x73625140]
    %4683 = vst [vmem:[#allocation1] ss:$4 sm:$0xff] %v148
    %v4684 = vld.sshfl [vmem:[#allocation1] sm:$0xff pattern:$0x73625140]
    %4685 = vst [vmem:[%s4680] ss:$4 sm:$0xff] %v149
    %v4686 = vld.sshfl [vmem:[#allocation1 + $0x20] sm:$0xff pattern:$0x73625140]
    %4687 = vst [vmem:[#allocation1] ss:$4 sm:$0xff] %v135
    %v4688 = vld.sshfl [vmem:[#allocation1] sm:$0xff pattern:$0x73625140]
    %4689 = vst [vmem:[%s4680] ss:$4 sm:$0xff] %v150
    %v4690 = vld.sshfl [vmem:[#allocation1 + $0x20] sm:$0xff pattern:$0x73625140]
    %4691 = vst [vmem:[#allocation1] ss:$4 sm:$0xff] %v151
    %v4692 = vld.sshfl [vmem:[#allocation1] sm:$0xff pattern:$0x73625140]
    %4693 = vst [vmem:[%s4680] ss:$4 sm:$0xff] %v152
    %v4694 = vld.sshfl [vmem:[#allocation1 + $0x20] sm:$0xff pattern:$0x73625140]
    %4695 = vst [vmem:[#allocation1] ss:$4 sm:$0xff] %v138
    %v4696 = vld.sshfl [vmem:[#allocation1] sm:$0xff pattern:$0x73625140]
    %4697 = vst [vmem:[%s4680] ss:$4 sm:$0xff] %v153
    %v4698 = vld.sshfl [vmem:[#allocation1 + $0x20] sm:$0xff pattern:$0x73625140]
    %4699 = vst [vmem:[#allocation1] ss:$4 sm:$0xff] %v154
    %v4700 = vld.sshfl [vmem:[#allocation1] sm:$0xff pattern:$0x73625140]
    %4701 = vst [vmem:[%s4680] ss:$4 sm:$0xff] %v155
    %v4702 = vld.sshfl [vmem:[#allocation1 + $0x20] sm:$0xff pattern:$0x73625140]
    %4703 = vst [vmem:[#allocation1] ss:$4 sm:$0xff] %v141
    %v4704 = vld.sshfl [vmem:[#allocation1] sm:$0xff pattern:$0x73625140]
    %4705 = vst [vmem:[%s4680] ss:$4 sm:$0xff] %v156
    %v4706 = vld.sshfl [vmem:[#allocation1 + $0x20] sm:$0xff pattern:$0x73625140]
    %4707 = vst [vmem:[#allocation1] ss:$4 sm:$0xff] %v157
    %v4708 = vld.sshfl [vmem:[#allocation1] sm:$0xff pattern:$0x73625140]
    %4709 = vst [vmem:[%s4680] ss:$4 sm:$0xff] %v158
    %v4710 = vld.sshfl [vmem:[#allocation1 + $0x20] sm:$0xff pattern:$0x73625140]
    %4711 = vrot.lane.b32.xlu0 %v4679, 32
    %v4712 = vpop.permute.xlu0 %4711
    %4713 = vrot.lane.b32.xlu0 %v4682, 32
    %v4714 = vpop.permute.xlu0 %4713
    %4715 = vrot.lane.b32.xlu0 %v4684, 32
    %v4716 = vpop.permute.xlu0 %4715
    %4717 = vrot.lane.b32.xlu0 %v4686, 32
    %v4718 = vpop.permute.xlu0 %4717
    %4719 = vrot.lane.b32.xlu0 %v4688, 32
    %v4720 = vpop.permute.xlu0 %4719
    %4721 = vrot.lane.b32.xlu0 %v4690, 32
    %v4722 = vpop.permute.xlu0 %4721
    %4723 = vrot.lane.b32.xlu0 %v4692, 32
    %v4724 = vpop.permute.xlu0 %4723
    %4725 = vrot.lane.b32.xlu0 %v4694, 32
    %v4726 = vpop.permute.xlu0 %4725
    %4727 = vrot.lane.b32.xlu0 %v4696, 32
    %v4728 = vpop.permute.xlu0 %4727
    %4729 = vrot.lane.b32.xlu0 %v4698, 32
    %v4730 = vpop.permute.xlu0 %4729
    %4731 = vrot.lane.b32.xlu0 %v4700, 32
    %v4732 = vpop.permute.xlu0 %4731
    %4733 = vrot.lane.b32.xlu0 %v4702, 32
    %v4734 = vpop.permute.xlu0 %4733
    %4735 = vrot.lane.b32.xlu0 %v4704, 32
    %v4736 = vpop.permute.xlu0 %4735
    %4737 = vrot.lane.b32.xlu0 %v4706, 32
    %v4738 = vpop.permute.xlu0 %4737
    %4739 = vrot.lane.b32.xlu0 %v4708, 32
    %v4740 = vpop.permute.xlu0 %4739
    %4741 = vrot.lane.b32.xlu0 %v4710, 32
    %v4742 = vpop.permute.xlu0 %4741
    %v4759 = vsel %vm239, %v4662, %v4712
    %v4760 = vsel %vm239, %v4663, %v4714
    %v4761 = vsel %vm239, %v4664, %v4716
    %v4762 = vsel %vm239, %v4665, %v4718
    %v4763 = vsel %vm239, %v4666, %v4720
    %v4764 = vsel %vm239, %v4667, %v4722
    %v4765 = vsel %vm239, %v4668, %v4724
    %v4766 = vsel %vm239, %v4669, %v4726
    %v4767 = vsel %vm239, %v4670, %v4728
    %v4768 = vsel %vm239, %v4671, %v4730
    %v4769 = vsel %vm239, %v4672, %v4732
    %v4770 = vsel %vm239, %v4673, %v4734
    %v4771 = vsel %vm239, %v4674, %v4736
    %v4772 = vsel %vm239, %v4675, %v4738
    %v4773 = vsel %vm239, %v4676, %v4740
    %v4774 = vsel %vm239, %v4677, %v4742
    %4789 = vrot.lane.b32.xlu0 %v4760, 48
    %v4790 = vpop.permute.xlu0 %4789
    %4791 = vrot.lane.b32.xlu0 %v4761, 48
    %v4792 = vpop.permute.xlu0 %4791
    %4793 = vrot.lane.b32.xlu0 %v4762, 48
    %v4794 = vpop.permute.xlu0 %4793
    %4795 = vrot.lane.b32.xlu0 %v4763, 48
    %v4796 = vpop.permute.xlu0 %4795
    %4797 = vrot.lane.b32.xlu0 %v4764, 48
    %v4798 = vpop.permute.xlu0 %4797
    %4799 = vrot.lane.b32.xlu0 %v4765, 48
    %v4800 = vpop.permute.xlu0 %4799
    %4801 = vrot.lane.b32.xlu0 %v4766, 48
    %v4802 = vpop.permute.xlu0 %4801
    %4803 = vrot.lane.b32.xlu0 %v4767, 48
    %v4804 = vpop.permute.xlu0 %4803
    %4805 = vrot.lane.b32.xlu0 %v4768, 48
    %v4806 = vpop.permute.xlu0 %4805
    %4807 = vrot.lane.b32.xlu0 %v4769, 48
    %v4808 = vpop.permute.xlu0 %4807
    %4809 = vrot.lane.b32.xlu0 %v4770, 48
    %v4810 = vpop.permute.xlu0 %4809
    %4811 = vrot.lane.b32.xlu0 %v4771, 48
    %v4812 = vpop.permute.xlu0 %4811
    %4813 = vrot.lane.b32.xlu0 %v4772, 48
    %v4814 = vpop.permute.xlu0 %4813
    %4815 = vrot.lane.b32.xlu0 %v4773, 48
    %v4816 = vpop.permute.xlu0 %4815
    %4832 = vrot.lane.b32.xlu0 %v4761, 96
    %v4833 = vpop.permute.xlu0 %4832
    %4834 = vrot.lane.b32.xlu0 %v4762, 96
    %v4835 = vpop.permute.xlu0 %4834
    %4836 = vrot.lane.b32.xlu0 %v4763, 96
    %v4837 = vpop.permute.xlu0 %4836
    %4838 = vrot.lane.b32.xlu0 %v4764, 96
    %v4839 = vpop.permute.xlu0 %4838
    %4840 = vrot.lane.b32.xlu0 %v4765, 96
    %v4841 = vpop.permute.xlu0 %4840
    %4842 = vrot.lane.b32.xlu0 %v4766, 96
    %v4843 = vpop.permute.xlu0 %4842
    %4844 = vrot.lane.b32.xlu0 %v4767, 96
    %v4845 = vpop.permute.xlu0 %4844
    %4846 = vrot.lane.b32.xlu0 %v4768, 96
    %v4847 = vpop.permute.xlu0 %4846
    %4848 = vrot.lane.b32.xlu0 %v4769, 96
    %v4849 = vpop.permute.xlu0 %4848
    %4850 = vrot.lane.b32.xlu0 %v4770, 96
    %v4851 = vpop.permute.xlu0 %4850
    %4852 = vrot.lane.b32.xlu0 %v4771, 96
    %v4853 = vpop.permute.xlu0 %4852
    %4854 = vrot.lane.b32.xlu0 %v4772, 96
    %v4855 = vpop.permute.xlu0 %4854
    %4856 = vrot.lane.b32.xlu0 %v4773, 96
    %v4857 = vpop.permute.xlu0 %4856
    %4858 = vrot.lane.b32.xlu0 %v4774, 96
    %v4859 = vpop.permute.xlu0 %4858
    %vm4874 = vcmask 392192
    %v4875 = vsel %vm4874, %v4759, %v4790
    %v4876 = vsel %vm4874, %v4760, %v4792
    %v4877 = vsel %vm4874, %v4761, %v4794
    %v4878 = vsel %vm4874, %v4762, %v4796
    %v4879 = vsel %vm4874, %v4763, %v4798
    %v4880 = vsel %vm4874, %v4764, %v4800
    %v4881 = vsel %vm4874, %v4765, %v4802
    %v4882 = vsel %vm4874, %v4766, %v4804
    %v4883 = vsel %vm4874, %v4767, %v4806
    %v4884 = vsel %vm4874, %v4768, %v4808
    %v4885 = vsel %vm4874, %v4769, %v4810
    %v4886 = vsel %vm4874, %v4770, %v4812
    %v4887 = vsel %vm4874, %v4771, %v4814
    %v4888 = vsel %vm4874, %v4772, %v4816
    %vm4889 = vcmask 785408
    %v4890 = vsel %vm4889, %v4875, %v4833
    %v4891 = vsel %vm4889, %v4876, %v4835
    %v4892 = vsel %vm4889, %v4877, %v4837
    %v4893 = vsel %vm4889, %v4878, %v4839
    %v4894 = vsel %vm4889, %v4879, %v4841
    %v4895 = vsel %vm4889, %v4880, %v4843
    %v4896 = vsel %vm4889, %v4881, %v4845
    %v4897 = vsel %vm4889, %v4882, %v4847
    %v4898 = vsel %vm4889, %v4883, %v4849
    %v4899 = vsel %vm4889, %v4884, %v4851
    %v4900 = vsel %vm4889, %v4885, %v4853
    %v4901 = vsel %vm4889, %v4886, %v4855
    %v4902 = vsel %vm4889, %v4887, %v4857
    %v4903 = vsel %vm4889, %v4888, %v4859
    %v4918 = vrot.slane %v4833, 6
    %v4919 = vrot.slane %v4835, 6
    %v4920 = vrot.slane %v4837, 6
    %v4921 = vrot.slane %v4839, 6
    %v4922 = vrot.slane %v4841, 6
    %v4923 = vrot.slane %v4843, 6
    %v4924 = vrot.slane %v4845, 6
    %v4925 = vrot.slane %v4847, 6
    %v4926 = vrot.slane %v4849, 6
    %v4927 = vrot.slane %v4851, 6
    %v4928 = vrot.slane %v4853, 6
    %v4929 = vrot.slane %v4855, 6
    %v4930 = vrot.slane %v4857, 6
    %v4931 = vrot.slane %v4859, 6
    %v4932 = vsel %vm110, %v4890, %v4918
    %v4933 = vsel %vm110, %v4891, %v4919
    %v4934 = vsel %vm110, %v4892, %v4920
    %v4935 = vsel %vm110, %v4893, %v4921
    %v4936 = vsel %vm110, %v4894, %v4922
    %v4937 = vsel %vm110, %v4895, %v4923
    %v4938 = vsel %vm110, %v4896, %v4924
    %v4939 = vsel %vm110, %v4897, %v4925
    %v4940 = vsel %vm110, %v4898, %v4926
    %v4941 = vsel %vm110, %v4899, %v4927
    %v4942 = vsel %vm110, %v4900, %v4928
    %v4943 = vsel %vm110, %v4901, %v4929
    %v4944 = vsel %vm110, %v4902, %v4930
    %v4945 = vsel %vm110, %v4903, %v4931
    %v4946 = vld [vmem:[%s10] sm:$0xff]
    %v4947 = vld [vmem:[%s10 + $0x8] sm:$0xff]
    %v4948 = vld [vmem:[%s10 + $0x10] sm:$0xff]
    %v4949 = vld [vmem:[%s10 + $0x18] sm:$0xff]
    %v4950 = vld [vmem:[%s10 + $0x20] sm:$0xff]
    %v4951 = vld [vmem:[%s10 + $0x28] sm:$0xff]
    %v4952 = vld [vmem:[%s10 + $0x30] sm:$0xff]
    %v4953 = vld [vmem:[%s10 + $0x38] sm:$0xff]
    %v4954 = vld [vmem:[%s10 + $0x40] sm:$0xff]
    %v4955 = vld [vmem:[%s10 + $0x48] sm:$0xff]
    %v4956 = vld [vmem:[%s10 + $0x50] sm:$0xff]
    %v4957 = vld [vmem:[%s10 + $0x58] sm:$0xff]
    %v4958 = vld [vmem:[%s10 + $0x60] sm:$0xff]
    %v4959 = vld [vmem:[%s10 + $0x68] sm:$0xff]
    %v4960 = vld [vmem:[%s10 + $0x70] sm:$0xff]
    %v4961 = vld [vmem:[%s10 + $0x78] sm:$0xff]
    %v4962 = vld [vmem:[%s10 + $0x80] sm:$0xff]
    %v4963 = vld [vmem:[%s10 + $0x88] sm:$0xff]
    %v4964 = vld [vmem:[%s11] sm:$0x1]
    %v4966 = vperm.slane %v4964, 0
    %4968 = vst [vmem:[#allocation1] ss:$4 sm:$0xff] %v4932
    %s4969 = scalar_lea.vmem [#allocation1], 1
    %4970 = vst [vmem:[%s4969] ss:$4 sm:$0xff] %v4933
    %s4971 = scalar_lea.vmem [#allocation1], 2
    %4972 = vst [vmem:[%s4971] ss:$4 sm:$0xff] %v4934
    %s4973 = scalar_lea.vmem [#allocation1], 3
    %4974 = vst [vmem:[%s4973] ss:$4 sm:$0xff] %v4935
    %s4975 = scalar_lea.vmem [#allocation1], 32
    %4976 = vst [vmem:[%s4975] ss:$4 sm:$0xff] %v4936
    %s4977 = scalar_lea.vmem [#allocation1], 33
    %4978 = vst [vmem:[%s4977] ss:$4 sm:$0xff] %v4937
    %s4979 = scalar_lea.vmem [#allocation1], 34
    %4980 = vst [vmem:[%s4979] ss:$4 sm:$0xff] %v4938
    %s4981 = scalar_lea.vmem [#allocation1], 35
    %4982 = vst [vmem:[%s4981] ss:$4 sm:$0xff] %v4939
    %v4983 = vld.sshfl [vmem:[#allocation1] sm:$0xff pattern:$0x73625140]
    %v4984 = vld.sshfl [vmem:[#allocation1 + $0x8] sm:$0xff pattern:$0x73625140]
    %v4985 = vld.sshfl [vmem:[#allocation1 + $0x20] sm:$0xff pattern:$0x73625140]
    %v4986 = vld.sshfl [vmem:[#allocation1 + $0x28] sm:$0xff pattern:$0x73625140]
    %4987 = vst [vmem:[#allocation1] ss:$4 sm:$0xff] %v4940
    %4988 = vst [vmem:[%s4969] ss:$4 sm:$0xff] %v4941
    %4989 = vst [vmem:[%s4971] ss:$4 sm:$0xff] %v4942
    %4990 = vst [vmem:[%s4973] ss:$4 sm:$0xff] %v4943
    %4991 = vst [vmem:[%s4975] ss:$4 sm:$0xff] %v4944
    %4992 = vst [vmem:[%s4977] ss:$4 sm:$0xff] %v4945
    %v4993 = vld.sshfl [vmem:[#allocation1] sm:$0xff pattern:$0x73625140]
    %v4994 = vld.sshfl [vmem:[#allocation1 + $0x8] sm:$0xff pattern:$0x73625140]
    %v4995 = vld.sshfl [vmem:[#allocation1 + $0x20] sm:$0xff pattern:$0x73625140]
    %v4996 = vld.sshfl [vmem:[#allocation1 + $0x28] sm:$0xff pattern:$0x73625140]
    %v5001 = vsel %vm165, %v4984, 0
    %v5003 = vsel %vm165, %v4986, 0
    %v5005 = vsel %vm165, %v4994, 0
    %v5007 = vsel %vm165, %v4996, 0
    %5009 = vmatpush.msra.mxu0 %v4961
    %5010 = vmatpush.msra.mxu0 %v4960
    %5011 = vmatpush.msra.mxu0 %v4959
    %5012 = vmatpush.msra.mxu0 %v4958
    %5013 = vmatpush.msra.mxu0 %v4957
    %5014 = vmatpush.msra.mxu0 %v4956
    %5015 = vmatpush.msra.mxu0 %v4955
    %5016 = vmatpush.msra.mxu0 %v4954
    %5017 = vmatpush.msra.mxu0 %v4953
    %5018 = vmatpush.msra.mxu0 %v4952
    %5019 = vmatpush.msra.mxu0 %v4951
    %5020 = vmatpush.msra.mxu0 %v4950
    %5021 = vmatpush.msra.mxu0 %v4949
    %5022 = vmatpush.msra.mxu0 %v4948
    %5023 = vmatpush.msra.mxu0 %v4947
    %5024 = vmatpush.msra.mxu0 %v4946
    %5025 = vmatmul.f32.gmra.mxu0 %v4983
    %v5026 = vpop.f32.mrf.mxu0
    %v5027 = vadd.f32 %v4966, %v5026
    %5028 = vmatmul.f32.gmra.mxu0 %v4985
    %v5029 = vpop.f32.mrf.mxu0
    %v5030 = vadd.f32 %v4966, %v5029
    %5031 = vmatmul.f32.gmra.mxu0 %v4993
    %v5032 = vpop.f32.mrf.mxu0
    %v5033 = vadd.f32 %v4966, %v5032
    %5034 = vmatmul.f32.gmra.mxu0 %v4995
    %v5035 = vpop.f32.mrf.mxu0
    %v5036 = vadd.f32 %v4966, %v5035
    %5037 = vdwg.mxu0
    %5038 = vmatpush.msra.mxu0 0.0
    %5039 = vmatpush.msra.mxu0 0.0
    %5040 = vmatpush.msra.mxu0 0.0
    %5041 = vmatpush.msra.mxu0 0.0
    %5042 = vmatpush.msra.mxu0 0.0
    %5043 = vmatpush.msra.mxu0 0.0
    %5044 = vmatpush.msra.mxu0 0.0
    %5045 = vmatpush.msra.mxu0 0.0
    %5046 = vmatpush.msra.mxu0 0.0
    %5047 = vmatpush.msra.mxu0 0.0
    %5048 = vmatpush.msra.mxu0 0.0
    %5049 = vmatpush.msra.mxu0 0.0
    %5050 = vmatpush.msra.mxu0 0.0
    %5051 = vmatpush.msra.mxu0 0.0
    %5052 = vmatpush.msra.mxu0 %v4963
    %5053 = vmatpush.msra.mxu0 %v4962
    %5054 = vmatmul.f32.gmra.mxu0 %v5001
    %v5055 = vpop.f32.mrf.mxu0
    %v5056 = vadd.f32 %v5027, %v5055
    %5057 = vmatmul.f32.gmra.mxu0 %v5003
    %v5058 = vpop.f32.mrf.mxu0
    %v5059 = vadd.f32 %v5030, %v5058
    %5060 = vmatmul.f32.gmra.mxu0 %v5005
    %v5061 = vpop.f32.mrf.mxu0
    %v5062 = vadd.f32 %v5033, %v5061
    %5063 = vmatmul.f32.gmra.mxu0 %v5007
    %v5064 = vpop.f32.mrf.mxu0
    %v5065 = vadd.f32 %v5036, %v5064
    %5066 = vdwg.mxu0
    %v5067 = vmax.f32 %v5056, 0.0
    %v5068 = vmax.f32 %v5059, 0.0
    %v5069 = vmax.f32 %v5062, 0.0
    %v5070 = vmax.f32 %v5065, 0.0
    %v5075 = vrot.slane %v5067, 2
    %v5076 = vrot.slane %v5067, 4
    %v5077 = vrot.slane %v5067, 6
    %v5078 = vrot.slane %v5068, 2
    %v5079 = vrot.slane %v5068, 4
    %v5080 = vrot.slane %v5068, 6
    %v5081 = vrot.slane %v5069, 2
    %v5082 = vrot.slane %v5069, 4
    %v5083 = vrot.slane %v5069, 6
    %v5084 = vrot.slane %v5070, 2
    %5094 = vst [vmem:[#allocation1] ss:$4 sm:$0xff] %v5075
    %v5095 = vld.sshfl [vmem:[#allocation1] sm:$0xff pattern:$0x73625140]
    %s5096 = scalar_lea.vmem [#allocation1], 32
    %5097 = vst [vmem:[%s5096] ss:$4 sm:$0xff] %v5076
    %v5098 = vld.sshfl [vmem:[#allocation1 + $0x20] sm:$0xff pattern:$0x73625140]
    %5099 = vst [vmem:[#allocation1] ss:$4 sm:$0xff] %v5077
    %v5100 = vld.sshfl [vmem:[#allocation1] sm:$0xff pattern:$0x73625140]
    %5101 = vst [vmem:[%s5096] ss:$4 sm:$0xff] %v5068
    %v5102 = vld.sshfl [vmem:[#allocation1 + $0x20] sm:$0xff pattern:$0x73625140]
    %5103 = vst [vmem:[#allocation1] ss:$4 sm:$0xff] %v5078
    %v5104 = vld.sshfl [vmem:[#allocation1] sm:$0xff pattern:$0x73625140]
    %5105 = vst [vmem:[%s5096] ss:$4 sm:$0xff] %v5079
    %v5106 = vld.sshfl [vmem:[#allocation1 + $0x20] sm:$0xff pattern:$0x73625140]
    %5107 = vst [vmem:[#allocation1] ss:$4 sm:$0xff] %v5080
    %v5108 = vld.sshfl [vmem:[#allocation1] sm:$0xff pattern:$0x73625140]
    %5109 = vst [vmem:[%s5096] ss:$4 sm:$0xff] %v5069
    %v5110 = vld.sshfl [vmem:[#allocation1 + $0x20] sm:$0xff pattern:$0x73625140]
    %5111 = vst [vmem:[#allocation1] ss:$4 sm:$0xff] %v5081
    %v5112 = vld.sshfl [vmem:[#allocation1] sm:$0xff pattern:$0x73625140]
    %5113 = vst [vmem:[%s5096] ss:$4 sm:$0xff] %v5082
    %v5114 = vld.sshfl [vmem:[#allocation1 + $0x20] sm:$0xff pattern:$0x73625140]
    %5115 = vst [vmem:[#allocation1] ss:$4 sm:$0xff] %v5083
    %v5116 = vld.sshfl [vmem:[#allocation1] sm:$0xff pattern:$0x73625140]
    %5117 = vst [vmem:[%s5096] ss:$4 sm:$0xff] %v5070
    %v5118 = vld.sshfl [vmem:[#allocation1 + $0x20] sm:$0xff pattern:$0x73625140]
    %5119 = vrot.lane.b32.xlu0 %v5095, 32
    %v5120 = vpop.permute.xlu0 %5119
    %5121 = vrot.lane.b32.xlu0 %v5098, 32
    %v5122 = vpop.permute.xlu0 %5121
    %5123 = vrot.lane.b32.xlu0 %v5100, 32
    %v5124 = vpop.permute.xlu0 %5123
    %5125 = vrot.lane.b32.xlu0 %v5102, 32
    %v5126 = vpop.permute.xlu0 %5125
    %5127 = vrot.lane.b32.xlu0 %v5104, 32
    %v5128 = vpop.permute.xlu0 %5127
    %5129 = vrot.lane.b32.xlu0 %v5106, 32
    %v5130 = vpop.permute.xlu0 %5129
    %5131 = vrot.lane.b32.xlu0 %v5108, 32
    %v5132 = vpop.permute.xlu0 %5131
    %5133 = vrot.lane.b32.xlu0 %v5110, 32
    %v5134 = vpop.permute.xlu0 %5133
    %5135 = vrot.lane.b32.xlu0 %v5112, 32
    %v5136 = vpop.permute.xlu0 %5135
    %5137 = vrot.lane.b32.xlu0 %v5114, 32
    %v5138 = vpop.permute.xlu0 %5137
    %5139 = vrot.lane.b32.xlu0 %v5116, 32
    %v5140 = vpop.permute.xlu0 %5139
    %5141 = vrot.lane.b32.xlu0 %v5118, 32
    %v5142 = vpop.permute.xlu0 %5141
    %5155 = vst [vmem:[#allocation1] ss:$4 sm:$0xff] %v5076
    %v5156 = vld.sshfl [vmem:[#allocation1] sm:$0xff pattern:$0x73625140]
    %s5157 = scalar_lea.vmem [#allocation1], 32
    %5158 = vst [vmem:[%s5157] ss:$4 sm:$0xff] %v5077
    %v5159 = vld.sshfl [vmem:[#allocation1 + $0x20] sm:$0xff pattern:$0x73625140]
    %5160 = vst [vmem:[#allocation1] ss:$4 sm:$0xff] %v5068
    %v5161 = vld.sshfl [vmem:[#allocation1] sm:$0xff pattern:$0x73625140]
    %5162 = vst [vmem:[%s5157] ss:$4 sm:$0xff] %v5078
    %v5163 = vld.sshfl [vmem:[#allocation1 + $0x20] sm:$0xff pattern:$0x73625140]
    %5164 = vst [vmem:[#allocation1] ss:$4 sm:$0xff] %v5079
    %v5165 = vld.sshfl [vmem:[#allocation1] sm:$0xff pattern:$0x73625140]
    %5166 = vst [vmem:[%s5157] ss:$4 sm:$0xff] %v5080
    %v5167 = vld.sshfl [vmem:[#allocation1 + $0x20] sm:$0xff pattern:$0x73625140]
    %5168 = vst [vmem:[#allocation1] ss:$4 sm:$0xff] %v5069
    %v5169 = vld.sshfl [vmem:[#allocation1] sm:$0xff pattern:$0x73625140]
    %5170 = vst [vmem:[%s5157] ss:$4 sm:$0xff] %v5081
    %v5171 = vld.sshfl [vmem:[#allocation1 + $0x20] sm:$0xff pattern:$0x73625140]
    %5172 = vst [vmem:[#allocation1] ss:$4 sm:$0xff] %v5082
    %v5173 = vld.sshfl [vmem:[#allocation1] sm:$0xff pattern:$0x73625140]
    %5174 = vst [vmem:[%s5157] ss:$4 sm:$0xff] %v5083
    %v5175 = vld.sshfl [vmem:[#allocation1 + $0x20] sm:$0xff pattern:$0x73625140]
    %5176 = vst [vmem:[#allocation1] ss:$4 sm:$0xff] %v5070
    %v5177 = vld.sshfl [vmem:[#allocation1] sm:$0xff pattern:$0x73625140]
    %5178 = vst [vmem:[%s5157] ss:$4 sm:$0xff] %v5084
    %v5179 = vld.sshfl [vmem:[#allocation1 + $0x20] sm:$0xff pattern:$0x73625140]
    %5180 = vrot.lane.b32.xlu0 %v5156, 64
    %v5181 = vpop.permute.xlu0 %5180
    %5182 = vrot.lane.b32.xlu0 %v5159, 64
    %v5183 = vpop.permute.xlu0 %5182
    %5184 = vrot.lane.b32.xlu0 %v5161, 64
    %v5185 = vpop.permute.xlu0 %5184
    %5186 = vrot.lane.b32.xlu0 %v5163, 64
    %v5187 = vpop.permute.xlu0 %5186
    %5188 = vrot.lane.b32.xlu0 %v5165, 64
    %v5189 = vpop.permute.xlu0 %5188
    %5190 = vrot.lane.b32.xlu0 %v5167, 64
    %v5191 = vpop.permute.xlu0 %5190
    %5192 = vrot.lane.b32.xlu0 %v5169, 64
    %v5193 = vpop.permute.xlu0 %5192
    %5194 = vrot.lane.b32.xlu0 %v5171, 64
    %v5195 = vpop.permute.xlu0 %5194
    %5196 = vrot.lane.b32.xlu0 %v5173, 64
    %v5197 = vpop.permute.xlu0 %5196
    %5198 = vrot.lane.b32.xlu0 %v5175, 64
    %v5199 = vpop.permute.xlu0 %5198
    %5200 = vrot.lane.b32.xlu0 %v5177, 64
    %v5201 = vpop.permute.xlu0 %5200
    %5202 = vrot.lane.b32.xlu0 %v5179, 64
    %v5203 = vpop.permute.xlu0 %5202
    %v5216 = vsel %vm239, %v5067, %v5120
    %v5217 = vsel %vm239, %v5075, %v5122
    %v5218 = vsel %vm239, %v5076, %v5124
    %v5219 = vsel %vm239, %v5077, %v5126
    %v5220 = vsel %vm239, %v5068, %v5128
    %v5221 = vsel %vm239, %v5078, %v5130
    %v5222 = vsel %vm239, %v5079, %v5132
    %v5223 = vsel %vm239, %v5080, %v5134
    %v5224 = vsel %vm239, %v5069, %v5136
    %v5225 = vsel %vm239, %v5081, %v5138
    %v5226 = vsel %vm239, %v5082, %v5140
    %v5227 = vsel %vm239, %v5083, %v5142
    %vm5228 = vcmask 523264
    %v5229 = vsel %vm5228, %v5216, %v5181
    %v5230 = vsel %vm5228, %v5217, %v5183
    %v5231 = vsel %vm5228, %v5218, %v5185
    %v5232 = vsel %vm5228, %v5219, %v5187
    %v5233 = vsel %vm5228, %v5220, %v5189
    %v5234 = vsel %vm5228, %v5221, %v5191
    %v5235 = vsel %vm5228, %v5222, %v5193
    %v5236 = vsel %vm5228, %v5223, %v5195
    %v5237 = vsel %vm5228, %v5224, %v5197
    %v5238 = vsel %vm5228, %v5225, %v5199
    %v5239 = vsel %vm5228, %v5226, %v5201
    %v5240 = vsel %vm5228, %v5227, %v5203
    %v5241 = vld [vmem:[%s12] sm:$0xff]
    %v5242 = vld [vmem:[%s12 + $0x8] sm:$0xff]
    %v5243 = vld [vmem:[%s12 + $0x10] sm:$0xff]
    %v5244 = vld [vmem:[%s12 + $0x18] sm:$0xff]
    %v5245 = vld [vmem:[%s12 + $0x20] sm:$0xff]
    %v5246 = vld [vmem:[%s12 + $0x28] sm:$0xff]
    %v5247 = vld [vmem:[%s12 + $0x30] sm:$0xff]
    %v5248 = vld [vmem:[%s12 + $0x38] sm:$0xff]
    %v5249 = vld [vmem:[%s12 + $0x40] sm:$0xff]
    %v5250 = vld [vmem:[%s12 + $0x48] sm:$0xff]
    %v5251 = vld [vmem:[%s12 + $0x50] sm:$0xff]
    %v5252 = vld [vmem:[%s12 + $0x58] sm:$0xff]
    %v5253 = vld [vmem:[%s13] sm:$0x1]
    %v5255 = vperm.slane %v5253, 0
    %5269 = vst [vmem:[#allocation1] ss:$4 sm:$0xff] %v5229
    %s5270 = scalar_lea.vmem [#allocation1], 1
    %5271 = vst [vmem:[%s5270] ss:$4 sm:$0xff] %v5230
    %s5272 = scalar_lea.vmem [#allocation1], 2
    %5273 = vst [vmem:[%s5272] ss:$4 sm:$0xff] %v5231
    %s5274 = scalar_lea.vmem [#allocation1], 3
    %5275 = vst [vmem:[%s5274] ss:$4 sm:$0xff] %v5232
    %s5276 = scalar_lea.vmem [#allocation1], 32
    %5277 = vst [vmem:[%s5276] ss:$4 sm:$0xff] %v5233
    %s5278 = scalar_lea.vmem [#allocation1], 33
    %5279 = vst [vmem:[%s5278] ss:$4 sm:$0xff] %v5234
    %s5280 = scalar_lea.vmem [#allocation1], 34
    %5281 = vst [vmem:[%s5280] ss:$4 sm:$0xff] %v5235
    %s5282 = scalar_lea.vmem [#allocation1], 35
    %5283 = vst [vmem:[%s5282] ss:$4 sm:$0xff] %v5236
    %v5284 = vld.sshfl [vmem:[#allocation1] sm:$0xff pattern:$0x73625140]
    %v5285 = vld.sshfl [vmem:[#allocation1 + $0x20] sm:$0xff pattern:$0x73625140]
    %5286 = vst [vmem:[#allocation1] ss:$4 sm:$0xff] %v5237
    %5287 = vst [vmem:[%s5270] ss:$4 sm:$0xff] %v5238
    %5288 = vst [vmem:[%s5272] ss:$4 sm:$0xff] %v5239
    %5289 = vst [vmem:[%s5274] ss:$4 sm:$0xff] %v5240
    %v5290 = vld.sshfl [vmem:[#allocation1] sm:$0xff pattern:$0x73625140]
    %v5291 = vsel %vm4889, %v5284, 0
    %v5293 = vsel %vm4889, %v5285, 0
    %v5295 = vsel %vm4889, %v5290, 0
    %5297 = vmatpush.msra.mxu0 0.0
    %5298 = vmatpush.msra.mxu0 0.0
    %5299 = vmatpush.msra.mxu0 0.0
    %5300 = vmatpush.msra.mxu0 0.0
    %5301 = vmatpush.msra.mxu0 %v5252
    %5302 = vmatpush.msra.mxu0 %v5251
    %5303 = vmatpush.msra.mxu0 %v5250
    %5304 = vmatpush.msra.mxu0 %v5249
    %5305 = vmatpush.msra.mxu0 %v5248
    %5306 = vmatpush.msra.mxu0 %v5247
    %5307 = vmatpush.msra.mxu0 %v5246
    %5308 = vmatpush.msra.mxu0 %v5245
    %5309 = vmatpush.msra.mxu0 %v5244
    %5310 = vmatpush.msra.mxu0 %v5243
    %5311 = vmatpush.msra.mxu0 %v5242
    %5312 = vmatpush.msra.mxu0 %v5241
    %5313 = vmatmul.f32.gmra.mxu0 %v5291
    %v5314 = vpop.f32.mrf.mxu0
    %v5315 = vadd.f32 %v5255, %v5314
    %5316 = vmatmul.f32.gmra.mxu0 %v5293
    %v5317 = vpop.f32.mrf.mxu0
    %v5318 = vadd.f32 %v5255, %v5317
    %5319 = vmatmul.f32.gmra.mxu0 %v5295
    %v5320 = vpop.f32.mrf.mxu0
    %v5321 = vadd.f32 %v5255, %v5320
    %5322 = vdwg.mxu0
    %v5323 = vmax.f32 %v5315, 0.0
    %v5324 = vmax.f32 %v5318, 0.0
    %v5325 = vmax.f32 %v5321, 0.0
    %v5329 = vrot.slane %v5323, 2
    %v5330 = vrot.slane %v5323, 4
    %v5331 = vrot.slane %v5323, 6
    %v5332 = vrot.slane %v5324, 2
    %v5333 = vrot.slane %v5324, 4
    %v5334 = vrot.slane %v5324, 6
    %v5335 = vrot.slane %v5325, 2
    %v5336 = vrot.slane %v5325, 4
    %v5337 = vrot.slane %v5325, 6
    %v5347 = vmax.f32 %v5323, %v5329
    %v5348 = vmax.f32 %v5347, %v5330
    %v5349 = vmax.f32 %v5348, %v5331
    %v5350 = vmax.f32 %v5349, %v5324
    %v5351 = vmax.f32 %v5350, %v5332
    %v5352 = vmax.f32 %v5351, %v5333
    %v5353 = vmax.f32 %v5352, %v5334
    %v5354 = vmax.f32 %v5353, %v5325
    %v5355 = vmax.f32 %v5354, %v5335
    %v5356 = vmax.f32 %v5355, %v5336
    %v5357 = vmax.f32 %v5356, %v5337
    %vm5358 = vcmp.eq.f32.partialorder %v5323, %v5357
    %vm5359 = vcmp.eq.f32.partialorder %v5329, %v5357
    %vm5360 = vmxor %vm5358, 1
    %vm5361 = vmand %vm5359, %vm5360
    %vm5362 = vmor %vm5358, %vm5361
    %vm5363 = vcmp.eq.f32.partialorder %v5330, %v5357
    %vm5364 = vmxor %vm5362, 1
    %vm5365 = vmand %vm5363, %vm5364
    %vm5366 = vmor %vm5362, %vm5365
    %vm5367 = vcmp.eq.f32.partialorder %v5331, %v5357
    %vm5368 = vmxor %vm5366, 1
    %vm5369 = vmand %vm5367, %vm5368
    %vm5370 = vmor %vm5366, %vm5369
    %vm5371 = vcmp.eq.f32.partialorder %v5324, %v5357
    %vm5372 = vmxor %vm5370, 1
    %vm5373 = vmand %vm5371, %vm5372
    %vm5374 = vmor %vm5370, %vm5373
    %vm5375 = vcmp.eq.f32.partialorder %v5332, %v5357
    %vm5376 = vmxor %vm5374, 1
    %vm5377 = vmand %vm5375, %vm5376
    %vm5378 = vmor %vm5374, %vm5377
    %vm5379 = vcmp.eq.f32.partialorder %v5333, %v5357
    %vm5380 = vmxor %vm5378, 1
    %vm5381 = vmand %vm5379, %vm5380
    %vm5382 = vmor %vm5378, %vm5381
    %vm5383 = vcmp.eq.f32.partialorder %v5334, %v5357
    %vm5384 = vmxor %vm5382, 1
    %vm5385 = vmand %vm5383, %vm5384
    %vm5386 = vmor %vm5382, %vm5385
    %vm5387 = vcmp.eq.f32.partialorder %v5325, %v5357
    %vm5388 = vmxor %vm5386, 1
    %vm5389 = vmand %vm5387, %vm5388
    %vm5390 = vmor %vm5386, %vm5389
    %vm5391 = vcmp.eq.f32.partialorder %v5335, %v5357
    %vm5392 = vmxor %vm5390, 1
    %vm5393 = vmand %vm5391, %vm5392
    %vm5394 = vmor %vm5390, %vm5393
    %vm5395 = vcmp.eq.f32.partialorder %v5336, %v5357
    %vm5396 = vmxor %vm5394, 1
    %vm5397 = vmand %vm5395, %vm5396
    %vm5398 = vmor %vm5394, %vm5397
    %vm5399 = vcmp.eq.f32.partialorder %v5337, %v5357
    %vm5400 = vmxor %vm5398, 1
    %vm5401 = vmand %vm5399, %vm5400
    %v5402 = vsel %vm5358, -inf, %v5323
    %v5403 = vsel %vm5361, -inf, %v5329
    %v5404 = vsel %vm5365, -inf, %v5330
    %v5405 = vsel %vm5369, -inf, %v5331
    %v5406 = vsel %vm5373, -inf, %v5324
    %v5407 = vsel %vm5377, -inf, %v5332
    %v5408 = vsel %vm5381, -inf, %v5333
    %v5409 = vsel %vm5385, -inf, %v5334
    %v5410 = vsel %vm5389, -inf, %v5325
    %v5411 = vsel %vm5393, -inf, %v5335
    %v5412 = vsel %vm5397, -inf, %v5336
    %v5413 = vsel %vm5401, -inf, %v5337
    %v5414 = vmax.f32 %v5402, %v5403
    %v5415 = vmax.f32 %v5414, %v5404
    %v5416 = vmax.f32 %v5415, %v5405
    %v5417 = vmax.f32 %v5416, %v5406
    %v5418 = vmax.f32 %v5417, %v5407
    %v5419 = vmax.f32 %v5418, %v5408
    %v5420 = vmax.f32 %v5419, %v5409
    %v5421 = vmax.f32 %v5420, %v5410
    %v5422 = vmax.f32 %v5421, %v5411
    %v5423 = vmax.f32 %v5422, %v5412
    %v5424 = vmax.f32 %v5423, %v5413
    %vm5425 = vcmp.eq.f32.partialorder %v5402, %v5424
    %vm5426 = vmor %vm5358, %vm5425
    %vm5427 = vcmp.eq.f32.partialorder %v5403, %v5424
    %vm5428 = vmxor %vm5425, 1
    %vm5429 = vmand %vm5427, %vm5428
    %vm5430 = vmor %vm5361, %vm5429
    %vm5431 = vmor %vm5425, %vm5429
    %vm5432 = vcmp.eq.f32.partialorder %v5404, %v5424
    %vm5433 = vmxor %vm5431, 1
    %vm5434 = vmand %vm5432, %vm5433
    %vm5435 = vmor %vm5365, %vm5434
    %vm5436 = vmor %vm5431, %vm5434
    %vm5437 = vcmp.eq.f32.partialorder %v5405, %v5424
    %vm5438 = vmxor %vm5436, 1
    %vm5439 = vmand %vm5437, %vm5438
    %vm5440 = vmor %vm5369, %vm5439
    %vm5441 = vmor %vm5436, %vm5439
    %vm5442 = vcmp.eq.f32.partialorder %v5406, %v5424
    %vm5443 = vmxor %vm5441, 1
    %vm5444 = vmand %vm5442, %vm5443
    %vm5445 = vmor %vm5373, %vm5444
    %vm5446 = vmor %vm5441, %vm5444
    %vm5447 = vcmp.eq.f32.partialorder %v5407, %v5424
    %vm5448 = vmxor %vm5446, 1
    %vm5449 = vmand %vm5447, %vm5448
    %vm5450 = vmor %vm5377, %vm5449
    %vm5451 = vmor %vm5446, %vm5449
    %vm5452 = vcmp.eq.f32.partialorder %v5408, %v5424
    %vm5453 = vmxor %vm5451, 1
    %vm5454 = vmand %vm5452, %vm5453
    %vm5455 = vmor %vm5381, %vm5454
    %vm5456 = vmor %vm5451, %vm5454
    %vm5457 = vcmp.eq.f32.partialorder %v5409, %v5424
    %vm5458 = vmxor %vm5456, 1
    %vm5459 = vmand %vm5457, %vm5458
    %vm5460 = vmor %vm5385, %vm5459
    %vm5461 = vmor %vm5456, %vm5459
    %vm5462 = vcmp.eq.f32.partialorder %v5410, %v5424
    %vm5463 = vmxor %vm5461, 1
    %vm5464 = vmand %vm5462, %vm5463
    %vm5465 = vmor %vm5389, %vm5464
    %vm5466 = vmor %vm5461, %vm5464
    %vm5467 = vcmp.eq.f32.partialorder %v5411, %v5424
    %vm5468 = vmxor %vm5466, 1
    %vm5469 = vmand %vm5467, %vm5468
    %vm5470 = vmor %vm5393, %vm5469
    %vm5471 = vmor %vm5466, %vm5469
    %vm5472 = vcmp.eq.f32.partialorder %v5412, %v5424
    %vm5473 = vmxor %vm5471, 1
    %vm5474 = vmand %vm5472, %vm5473
    %vm5475 = vmor %vm5397, %vm5474
    %vm5476 = vmor %vm5471, %vm5474
    %vm5477 = vcmp.eq.f32.partialorder %v5413, %v5424
    %vm5478 = vmxor %vm5476, 1
    %vm5479 = vmand %vm5477, %vm5478
    %vm5480 = vmor %vm5401, %vm5479
    %v5481 = vsel %vm5426, 1, 0
    %v5482 = vcvt.s32.f32 %v5481
    %v5483 = vadd.f32 %v5482, 0.0
    %vm5484 = vcmp.eq.f32.partialorder %v5483, 1.0
    %vm5485 = vmand %vm5426, %vm5484
    %v5486 = vsel %vm5485, %v5323, 0.0
    %v5487 = vadd.f32 %v5486, 0.0
    %vm5488 = vcmp.eq.f32.partialorder %v5483, 2.0
    %vm5489 = vmand %vm5426, %vm5488
    %v5490 = vsel %vm5489, %v5323, 0.0
    %v5491 = vadd.f32 %v5490, 0.0
    %v5492 = vsel %vm5430, 1, 0
    %v5493 = vcvt.s32.f32 %v5492
    %v5494 = vadd.f32 %v5483, %v5493
    %vm5495 = vcmp.eq.f32.partialorder %v5494, 1.0
    %vm5496 = vmand %vm5430, %vm5495
    %v5497 = vsel %vm5496, %v5329, 0.0
    %v5498 = vadd.f32 %v5487, %v5497
    %vm5499 = vcmp.eq.f32.partialorder %v5494, 2.0
    %vm5500 = vmand %vm5430, %vm5499
    %v5501 = vsel %vm5500, %v5329, 0.0
    %v5502 = vadd.f32 %v5491, %v5501
    %v5503 = vsel %vm5435, 1, 0
    %v5504 = vcvt.s32.f32 %v5503
    %v5505 = vadd.f32 %v5494, %v5504
    %vm5506 = vcmp.eq.f32.partialorder %v5505, 1.0
    %vm5507 = vmand %vm5435, %vm5506
    %v5508 = vsel %vm5507, %v5330, 0.0
    %v5509 = vadd.f32 %v5498, %v5508
    %vm5510 = vcmp.eq.f32.partialorder %v5505, 2.0
    %vm5511 = vmand %vm5435, %vm5510
    %v5512 = vsel %vm5511, %v5330, 0.0
    %v5513 = vadd.f32 %v5502, %v5512
    %v5514 = vsel %vm5440, 1, 0
    %v5515 = vcvt.s32.f32 %v5514
    %v5516 = vadd.f32 %v5505, %v5515
    %vm5517 = vcmp.eq.f32.partialorder %v5516, 1.0
    %vm5518 = vmand %vm5440, %vm5517
    %v5519 = vsel %vm5518, %v5331, 0.0
    %v5520 = vadd.f32 %v5509, %v5519
    %vm5521 = vcmp.eq.f32.partialorder %v5516, 2.0
    %vm5522 = vmand %vm5440, %vm5521
    %v5523 = vsel %vm5522, %v5331, 0.0
    %v5524 = vadd.f32 %v5513, %v5523
    %v5525 = vsel %vm5445, 1, 0
    %v5526 = vcvt.s32.f32 %v5525
    %v5527 = vadd.f32 %v5516, %v5526
    %vm5528 = vcmp.eq.f32.partialorder %v5527, 1.0
    %vm5529 = vmand %vm5445, %vm5528
    %v5530 = vsel %vm5529, %v5324, 0.0
    %v5531 = vadd.f32 %v5520, %v5530
    %vm5532 = vcmp.eq.f32.partialorder %v5527, 2.0
    %vm5533 = vmand %vm5445, %vm5532
    %v5534 = vsel %vm5533, %v5324, 0.0
    %v5535 = vadd.f32 %v5524, %v5534
    %v5536 = vsel %vm5450, 1, 0
    %v5537 = vcvt.s32.f32 %v5536
    %v5538 = vadd.f32 %v5527, %v5537
    %vm5539 = vcmp.eq.f32.partialorder %v5538, 1.0
    %vm5540 = vmand %vm5450, %vm5539
    %v5541 = vsel %vm5540, %v5332, 0.0
    %v5542 = vadd.f32 %v5531, %v5541
    %vm5543 = vcmp.eq.f32.partialorder %v5538, 2.0
    %vm5544 = vmand %vm5450, %vm5543
    %v5545 = vsel %vm5544, %v5332, 0.0
    %v5546 = vadd.f32 %v5535, %v5545
    %v5547 = vsel %vm5455, 1, 0
    %v5548 = vcvt.s32.f32 %v5547
    %v5549 = vadd.f32 %v5538, %v5548
    %vm5550 = vcmp.eq.f32.partialorder %v5549, 1.0
    %vm5551 = vmand %vm5455, %vm5550
    %v5552 = vsel %vm5551, %v5333, 0.0
    %v5553 = vadd.f32 %v5542, %v5552
    %vm5554 = vcmp.eq.f32.partialorder %v5549, 2.0
    %vm5555 = vmand %vm5455, %vm5554
    %v5556 = vsel %vm5555, %v5333, 0.0
    %v5557 = vadd.f32 %v5546, %v5556
    %v5558 = vsel %vm5460, 1, 0
    %v5559 = vcvt.s32.f32 %v5558
    %v5560 = vadd.f32 %v5549, %v5559
    %vm5561 = vcmp.eq.f32.partialorder %v5560, 1.0
    %vm5562 = vmand %vm5460, %vm5561
    %v5563 = vsel %vm5562, %v5334, 0.0
    %v5564 = vadd.f32 %v5553, %v5563
    %vm5565 = vcmp.eq.f32.partialorder %v5560, 2.0
    %vm5566 = vmand %vm5460, %vm5565
    %v5567 = vsel %vm5566, %v5334, 0.0
    %v5568 = vadd.f32 %v5557, %v5567
    %v5569 = vsel %vm5465, 1, 0
    %v5570 = vcvt.s32.f32 %v5569
    %v5571 = vadd.f32 %v5560, %v5570
    %vm5572 = vcmp.eq.f32.partialorder %v5571, 1.0
    %vm5573 = vmand %vm5465, %vm5572
    %v5574 = vsel %vm5573, %v5325, 0.0
    %v5575 = vadd.f32 %v5564, %v5574
    %vm5576 = vcmp.eq.f32.partialorder %v5571, 2.0
    %vm5577 = vmand %vm5465, %vm5576
    %v5578 = vsel %vm5577, %v5325, 0.0
    %v5579 = vadd.f32 %v5568, %v5578
    %v5580 = vsel %vm5470, 1, 0
    %v5581 = vcvt.s32.f32 %v5580
    %v5582 = vadd.f32 %v5571, %v5581
    %vm5583 = vcmp.eq.f32.partialorder %v5582, 1.0
    %vm5584 = vmand %vm5470, %vm5583
    %v5585 = vsel %vm5584, %v5335, 0.0
    %v5586 = vadd.f32 %v5575, %v5585
    %vm5587 = vcmp.eq.f32.partialorder %v5582, 2.0
    %vm5588 = vmand %vm5470, %vm5587
    %v5589 = vsel %vm5588, %v5335, 0.0
    %v5590 = vadd.f32 %v5579, %v5589
    %v5591 = vsel %vm5475, 1, 0
    %v5592 = vcvt.s32.f32 %v5591
    %v5593 = vadd.f32 %v5582, %v5592
    %vm5594 = vcmp.eq.f32.partialorder %v5593, 1.0
    %vm5595 = vmand %vm5475, %vm5594
    %v5596 = vsel %vm5595, %v5336, 0.0
    %v5597 = vadd.f32 %v5586, %v5596
    %vm5598 = vcmp.eq.f32.partialorder %v5593, 2.0
    %vm5599 = vmand %vm5475, %vm5598
    %v5600 = vsel %vm5599, %v5336, 0.0
    %v5601 = vadd.f32 %v5590, %v5600
    %v5602 = vsel %vm5480, 1, 0
    %v5603 = vcvt.s32.f32 %v5602
    %v5604 = vadd.f32 %v5593, %v5603
    %vm5605 = vcmp.eq.f32.partialorder %v5604, 1.0
    %vm5606 = vmand %vm5480, %vm5605
    %v5607 = vsel %vm5606, %v5337, 0.0
    %v5608 = vadd.f32 %v5597, %v5607
    %vm5609 = vcmp.eq.f32.partialorder %v5604, 2.0
    %vm5610 = vmand %vm5480, %vm5609
    %v5611 = vsel %vm5610, %v5337, 0.0
    %v5612 = vadd.f32 %v5601, %v5611
    %v5613 = vld [vmem:[%s15] sm:$0x1]
    %v5614 = vld [vmem:[%s14] sm:$0xff]
    %v5615 = vld [vmem:[%s14 + $0x8] sm:$0xff]
    %v5616 = vld [vmem:[%s14 + $0x10] sm:$0xff]
    %v5617 = vld [vmem:[%s14 + $0x18] sm:$0xff]
    %v5619 = vsel %vm239, %v5608, 0
    %5621 = vmatpush.msra.mxu0 0.0
    %5622 = vmatpush.msra.mxu0 0.0
    %5623 = vmatpush.msra.mxu0 0.0
    %5624 = vmatpush.msra.mxu0 0.0
    %5625 = vmatpush.msra.mxu0 0.0
    %5626 = vmatpush.msra.mxu0 0.0
    %5627 = vmatpush.msra.mxu0 0.0
    %5628 = vmatpush.msra.mxu0 0.0
    %5629 = vmatpush.msra.mxu0 0.0
    %5630 = vmatpush.msra.mxu0 0.0
    %5631 = vmatpush.msra.mxu0 0.0
    %5632 = vmatpush.msra.mxu0 0.0
    %5633 = vmatpush.msra.mxu0 %v5617
    %5634 = vmatpush.msra.mxu0 %v5616
    %5635 = vmatpush.msra.mxu0 %v5615
    %5636 = vmatpush.msra.mxu0 %v5614
    %5637 = vmatmul.f32.gmra.mxu0 %v5619
    %v5638 = vpop.f32.mrf.mxu0
    %v5639 = vadd.f32 0.0, %v5638
    %5640 = vdwg.mxu0
    %v5642 = vperm.slane %v5613, 0
    %v5644 = vadd.f32 %v5642, %v5639
    %s5645 = scalar_lea.vmem %s14, 32
    %v5646 = vld [vmem:[%s5645] sm:$0xff]
    %v5647 = vld [vmem:[%s5645 + $0x8] sm:$0xff]
    %v5648 = vld [vmem:[%s5645 + $0x10] sm:$0xff]
    %v5649 = vld [vmem:[%s5645 + $0x18] sm:$0xff]
    %v5651 = vsel %vm239, %v5612, 0
    %5653 = vmatpush.msra.mxu0 0.0
    %5654 = vmatpush.msra.mxu0 0.0
    %5655 = vmatpush.msra.mxu0 0.0
    %5656 = vmatpush.msra.mxu0 0.0
    %5657 = vmatpush.msra.mxu0 0.0
    %5658 = vmatpush.msra.mxu0 0.0
    %5659 = vmatpush.msra.mxu0 0.0
    %5660 = vmatpush.msra.mxu0 0.0
    %5661 = vmatpush.msra.mxu0 0.0
    %5662 = vmatpush.msra.mxu0 0.0
    %5663 = vmatpush.msra.mxu0 0.0
    %5664 = vmatpush.msra.mxu0 0.0
    %5665 = vmatpush.msra.mxu0 %v5649
    %5666 = vmatpush.msra.mxu0 %v5648
    %5667 = vmatpush.msra.mxu0 %v5647
    %5668 = vmatpush.msra.mxu0 %v5646
    %5669 = vmatmul.f32.gmra.mxu0 %v5651
    %v5670 = vpop.f32.mrf.mxu0
    %v5671 = vadd.f32 0.0, %v5670
    %5672 = vdwg.mxu0
    %v5673 = vadd.f32 %v5644, %v5671
    %v5674 = vmax.f32 %v5673, 0.0
    %v5675 = vld [vmem:[%s16] sm:$0xff]
    %v5676 = vld [vmem:[%s16 + $0x8] sm:$0xff]
    %v5677 = vld [vmem:[%s16 + $0x10] sm:$0xff]
    %v5678 = vld [vmem:[%s16 + $0x18] sm:$0xff]
    %v5679 = vld [vmem:[%s16 + $0x20] sm:$0xff]
    %v5680 = vld [vmem:[%s16 + $0x28] sm:$0xff]
    %v5681 = vld [vmem:[%s16 + $0x30] sm:$0xff]
    %v5682 = vld [vmem:[%s16 + $0x38] sm:$0xff]
    %v5683 = vld [vmem:[%s17] sm:$0x1]
    %v5685 = vperm.slane %v5683, 0
    %v5688 = vsel %vm5228, %v5674, 0
    %5690 = vmatpush.msra.mxu0 0.0
    %5691 = vmatpush.msra.mxu0 0.0
    %5692 = vmatpush.msra.mxu0 0.0
    %5693 = vmatpush.msra.mxu0 0.0
    %5694 = vmatpush.msra.mxu0 0.0
    %5695 = vmatpush.msra.mxu0 0.0
    %5696 = vmatpush.msra.mxu0 0.0
    %5697 = vmatpush.msra.mxu0 0.0
    %5698 = vmatpush.msra.mxu0 %v5682
    %5699 = vmatpush.msra.mxu0 %v5681
    %5700 = vmatpush.msra.mxu0 %v5680
    %5701 = vmatpush.msra.mxu0 %v5679
    %5702 = vmatpush.msra.mxu0 %v5678
    %5703 = vmatpush.msra.mxu0 %v5677
    %5704 = vmatpush.msra.mxu0 %v5676
    %5705 = vmatpush.msra.mxu0 %v5675
    %5706 = vmatmul.f32.gmra.mxu0 %v5688
    %v5707 = vpop.f32.mrf.mxu0
    %v5708 = vadd.f32 %v5685, %v5707
    %5709 = vdwg.mxu0
    %vm5710 = vcmask 25600
    %5711 = vst.msk [vmem:[#allocation4] sm:$0x3] %vm5710, %v5708
    // Predicated region
    $region74: #{tpu_custom_call.1} parent=1 // pred_check
      _
    $region75: #{tpu_custom_call.1} parent=1 // pred_check_branch
      %5713 = sbr.rel (0) target = $region77
    $region76: #{tpu_custom_call.1} parent=1 // pred_region
      %5715 = vsyncadd [#allocation5], 0
      %s5717 = sshll.u32 [#allocation4], 4
      %s5718 = int_to_ptr.vmem [resolvable:$true] %s5717
      %s5719 = sshll.u32 %s18, 4
      %s5720 = int_to_ptr.hbm [resolvable:$true] %s5719
      %5722 = dma.vmem_to_hbm [thread:$0]  %s5718, 32, %s5720, [#allocation5]
    $region77: #{tpu_custom_call.1} parent=1 // pred_fallthru
      _
    // Predicated region
    $region78: #{tpu_custom_call.1} parent=1 // pred_check
      _
    $region79: #{tpu_custom_call.1} parent=1 // pred_check_branch
      %5724 = sbr.rel (0) target = $region81
    $region80: #{tpu_custom_call.1} parent=1 // pred_region
      %5726 = dma.done [#allocation5], 32
    $region81: #{tpu_custom_call.1} parent=1 // pred_fallthru
      _
    %5727 = vsyncpa [#allocation5], 1

</llo_original>
